<compile_context>
chip_gen: v5e
topology: v5e:2x2
jax: 0.10.0
libtpu: 0.0.40
codegen_flags: <defaults>
</compile_context>

<pallas_src>
import functools

import jax
import jax.numpy as jnp
from jax import lax
from jax.experimental import pallas as pl
from jax.experimental.pallas import tpu as pltpu


# ----------------------------- Pallas kernel ------------------------------ #

def _attention_kernel(x_ref, wqkv_ref, wo_ref, bout_ref, g_ref, beta_ref,
                      bias_ref, o_ref, qkv_s, ocat_s, *, heads, dim_head, eps):
    # x_ref block: (WB, N, dim), channels last.
    WB, N, dim = x_ref.shape
    R = WB * N
    inner = heads * dim_head

    x = x_ref[...].reshape(R, dim).astype(jnp.float32)

    # --- channel LayerNorm (torch: biased var, eps inside sqrt), f32 stats ---
    mean = jnp.mean(x, axis=-1, keepdims=True)
    var = jnp.mean((x - mean) ** 2, axis=-1, keepdims=True)
    xn = (x - mean) * lax.rsqrt(var + eps) * g_ref[0] + beta_ref[0]
    xn_bf = xn.astype(jnp.bfloat16)            # matmul operand only

    # --- fused qkv projection (q scale pre-folded into the weights) ----------
    # One (R, dim) @ (dim, 3*inner) matmul, f32 accumulation, staged through a
    # VMEM scratch so per-head extraction is a plain ref lane-slice.
    qkv_s[...] = jnp.dot(xn_bf, wqkv_ref[...],
                         preferred_element_type=jnp.float32)

    def split_heads(col0):
        # Static lane slices of the scratch ref, stacked on a *leading* batch
        # axis -> (heads*WB, N, dim_head).  Only leading-dim reshapes are used.
        parts = [qkv_s[:, col0 + h * dim_head: col0 + (h + 1) * dim_head]
                 for h in range(heads)]
        t = jnp.stack(parts, axis=0)                       # (heads, R, dh)
        return t.reshape(heads * WB, N, dim_head).astype(jnp.bfloat16)

    q = split_heads(0)
    k = split_heads(inner)
    v = split_heads(2 * inner)

    # --- attention, batched over all (head, window) pairs in one einsum ------
    sim = jnp.einsum('bid,bjd->bij', q, k,
                     preferred_element_type=jnp.float32)   # (heads*WB, N, N)
    sim = sim + bias_ref[...]                              # (N, N) broadcast, one add

    # softmax statistics in f32; normalization deferred past attn@v.
    m = jnp.max(sim, axis=-1, keepdims=True)
    p = jnp.exp(sim - m)
    l = jnp.sum(p, axis=-1, keepdims=True)

    o = jnp.einsum('bij,bjd->bid', p.astype(jnp.bfloat16), v,
                   preferred_element_type=jnp.float32)     # (heads*WB, N, dh)
    o = o * pl.reciprocal(l, approx=True)                  # deferred softmax norm

    # --- fused output projection ---------------------------------------------
    # Re-concatenate heads on the lane axis via ref stores -> (R, inner), then a
    # single (R, inner) @ (inner, dim) matmul (no K=8 accumulate chain).
    o4 = o.reshape(heads, WB, N, dim_head)
    for h in range(heads):
        ocat_s[:, h * dim_head:(h + 1) * dim_head] = o4[h].reshape(R, dim_head)

    y = jnp.dot(ocat_s[...].astype(jnp.bfloat16), wo_ref[...],
                preferred_element_type=jnp.float32) + bout_ref[0]
    o_ref[...] = y.reshape(WB, N, dim).astype(o_ref.dtype)


# ------------------------- DynamicPositionBias (glue) ---------------------- #

def _ln(x, g, b, eps=1e-5):
    m = jnp.mean(x, axis=-1, keepdims=True)
    v = jnp.mean((x - m) ** 2, axis=-1, keepdims=True)
    return (x - m) / jnp.sqrt(v + eps) * g + b


def compute_rel_pos_bias(params, wsz):
    # biases from DPB MLP on relative positions in [-wsz, wsz]
    pos = jnp.arange(-wsz, wsz + 1, dtype=jnp.float32)
    gi, gj = jnp.meshgrid(pos, pos, indexing="ij")
    rel = jnp.stack([gi, gj], axis=-1).reshape(-1, 2)        # ((2w+1)^2, 2)

    h = rel @ params["dpb_w1"] + params["dpb_b1"]
    h = jax.nn.relu(_ln(h, params["dpb_ln1_g"], params["dpb_ln1_b"]))
    h = h @ params["dpb_w2"] + params["dpb_b2"]
    h = jax.nn.relu(_ln(h, params["dpb_ln2_g"], params["dpb_ln2_b"]))
    h = h @ params["dpb_w3"] + params["dpb_b3"]
    h = jax.nn.relu(_ln(h, params["dpb_ln3_g"], params["dpb_ln3_b"]))
    biases = (h @ params["dpb_w4"] + params["dpb_b4"])[:, 0]  # ((2w+1)^2,)

    # rel_pos_indices buffer, identical to the torch __init__
    p = jnp.arange(wsz)
    gi, gj = jnp.meshgrid(p, p, indexing="ij")
    grid = jnp.stack([gi, gj], axis=-1).reshape(-1, 2)        # (N, 2)
    rel_idx = grid[:, None, :] - grid[None, :, :] + (wsz - 1)
    idx = rel_idx[..., 0] * (2 * wsz - 1) + rel_idx[..., 1]   # (N, N)
    return biases[idx]


# ------------------------------- wrapper ----------------------------------- #

def _pick_window_batch(num_windows, n_pixels, dim, inner, heads, *,
                       target_rows=2048, min_steps=2,
                       vmem_budget_bytes=20 * 2**20):
    """Windows per grid step.

    - target ~2048 rows/step so grid-step overhead & tiny DMAs are amortized,
    - keep >= 2 grid steps when possible (v7x megacore has 2 TensorCores),
    - shrink if a crude per-step VMEM estimate exceeds the budget (v7x: 64 MiB
      physical, 32 MiB default scoped).
    WB need NOT divide num_windows; the caller zero-pads the tail.
    """
    wb = max(1, min(num_windows, target_rows // max(1, n_pixels)))
    if num_windows >= min_steps:
        wb = min(wb, pl.cdiv(num_windows, min_steps))

    def step_bytes(w):
        r = w * n_pixels
        # in/out blocks (double-buffered f32) + LN/proj intermediates + qkv &
        # concat scratches + q/k/v bf16 stacks + sim/p (heads*WB, N, N) f32.
        return r * (30 * dim + 34 * inner + 8 * heads * n_pixels)

    while wb > 1 and step_bytes(wb) > vmem_budget_bytes:
        wb = pl.cdiv(wb, 2)
    return wb


def attention_forward(x, params, *, attn_type, window_size, heads, dim_head):
    """x: (B, dim, H, W) NCHW float32 -> (B, dim, H, W)."""
    B, dim, H, W = x.shape
    wsz = window_size
    N = wsz * wsz
    inner = heads * dim_head
    assert H % wsz == 0 and W % wsz == 0
    nh, nw = H // wsz, W // wsz
    num_windows = B * nh * nw
    scale = dim_head ** -0.5

    # window rearrange (XLA glue)
    # TODO(synk): fold the short/long window gather + channel transpose into the
    # BlockSpec index_map, and emit a lane-dense (WB, N*dim) slab, to remove the
    # extra HBM round trips / masked stores around this memory-bound kernel.
    if attn_type == "short":
        # 'b d (h s1) (w s2) -> (b h w) d s1 s2'  -> channels-last windows
        xw = x.reshape(B, dim, nh, wsz, nw, wsz).transpose(0, 2, 4, 3, 5, 1)
    elif attn_type == "long":
        # 'b d (l1 h) (l2 w) -> (b h w) d l1 l2'  -> channels-last windows
        xw = x.reshape(B, dim, wsz, nh, wsz, nw).transpose(0, 3, 5, 2, 4, 1)
    else:
        raise ValueError(attn_type)
    xw = xw.reshape(num_windows, N, dim)

    # Fused qkv weight with q scale folded in; bf16 matmul operands.
    w_qkv = params["w_qkv"]
    w_qkv = jnp.concatenate([w_qkv[:, :inner] * scale, w_qkv[:, inner:]],
                            axis=1).astype(jnp.bfloat16)          # (dim, 3*inner)
    w_out = params["w_out"].astype(jnp.bfloat16)                   # (inner, dim)

    bias = compute_rel_pos_bias(params, wsz)  # (N, N) f32, shared by all windows

    WB = _pick_window_batch(num_windows, N, dim, inner, heads)
    steps = pl.cdiv(num_windows, WB)
    num_w_pad = steps * WB
    if num_w_pad != num_windows:
        xw = jnp.pad(xw, ((0, num_w_pad - num_windows), (0, 0), (0, 0)))

    kernel = functools.partial(_attention_kernel, heads=heads,
                               dim_head=dim_head, eps=1e-5)

    out_w = pl.pallas_call(
        kernel,
        out_shape=jax.ShapeDtypeStruct((num_w_pad, N, dim), x.dtype),
        grid=(steps,),
        in_specs=[
            pl.BlockSpec((WB, N, dim), lambda i: (i, 0, 0)),        # x windows
            pl.BlockSpec((dim, 3 * inner), lambda i: (0, 0)),       # fused W_qkv
            pl.BlockSpec((inner, dim), lambda i: (0, 0)),           # W_out
            pl.BlockSpec((1, dim), lambda i: (0, 0)),               # b_out
            pl.BlockSpec((1, dim), lambda i: (0, 0)),               # ln g
            pl.BlockSpec((1, dim), lambda i: (0, 0)),               # ln b
            pl.BlockSpec((N, N), lambda i: (0, 0)),                 # rel-pos bias
        ],
        out_specs=pl.BlockSpec((WB, N, dim), lambda i: (i, 0, 0)),
        scratch_shapes=[
            pltpu.VMEM((WB * N, 3 * inner), jnp.float32),           # fused qkv
            pltpu.VMEM((WB * N, inner), jnp.float32),               # head concat
        ],
        compiler_params=pltpu.CompilerParams(
            dimension_semantics=("parallel",),
            vmem_limit_bytes=32 * 1024 * 1024),
    )(xw, w_qkv, w_out, params["b_out"][None, :],
      params["ln_g"][None, :], params["ln_b"][None, :], bias)

    # inverse window rearrange (glue)
    out_w = out_w[:num_windows].reshape(B, nh, nw, wsz, wsz, dim)
    if attn_type == "short":
        out = out_w.transpose(0, 5, 1, 3, 2, 4).reshape(B, dim, H, W)
    else:  # long
        out = out_w.transpose(0, 5, 3, 1, 4, 2).reshape(B, dim, H, W)
    return out


# --------------------------- pure-JAX reference ----------------------------- #

def attention_reference(x, params, *, attn_type, window_size, heads, dim_head):
    B, dim, H, W = x.shape
    wsz = window_size
    N = wsz * wsz
    inner = heads * dim_head
    nh, nw = H // wsz, W // wsz

    if attn_type == "short":
        xw = x.reshape(B, dim, nh, wsz, nw, wsz).transpose(0, 2, 4, 3, 5, 1)
    else:
        xw = x.reshape(B, dim, wsz, nh, wsz, nw).transpose(0, 3, 5, 2, 4, 1)
    xw = xw.reshape(B * nh * nw, N, dim)

    mean = jnp.mean(xw, axis=-1, keepdims=True)
    var = jnp.mean((xw - mean) ** 2, axis=-1, keepdims=True)
    xn = (xw - mean) / jnp.sqrt(var + 1e-5) * params["ln_g"] + params["ln_b"]

    qkv = xn @ params["w_qkv"]
    q, k, v = qkv[..., :inner], qkv[..., inner:2 * inner], qkv[..., 2 * inner:]

    def split_heads(t):  # (Bw, N, inner) -> (Bw, heads, N, d)
        return t.reshape(t.shape[0], N, heads, dim_head).transpose(0, 2, 1, 3)

    q, k, v = map(split_heads, (q, k, v))
    q = q * dim_head ** -0.5

    sim = jnp.einsum("bhid,bhjd->bhij", q, k)
    sim = sim + compute_rel_pos_bias(params, wsz)[None, None]
    attn = jax.nn.softmax(sim, axis=-1)
    out = jnp.einsum("bhij,bhjd->bhid", attn, v)
    out = out.transpose(0, 2, 1, 3).reshape(-1, N, inner)
    out = out @ params["w_out"] + params["b_out"]

    out = out.reshape(B, nh, nw, wsz, wsz, dim)
    if attn_type == "short":
        return out.transpose(0, 5, 1, 3, 2, 4).reshape(B, dim, H, W)
    return out.transpose(0, 5, 3, 1, 4, 2).reshape(B, dim, H, W)


# ----------------------------- param init ---------------------------------- #

def init_params(key, dim, dim_head):
    heads = dim // dim_head
    inner = heads * dim_head
    D = dim // 4
    ks = jax.random.split(key, 8)
    p = {
        "ln_g": jnp.ones((dim,), jnp.float32),
        "ln_b": jnp.zeros((dim,), jnp.float32),
        "w_qkv": 0.1 * jax.random.normal(ks[0], (dim, 3 * inner), jnp.float32),
        "w_out": 0.1 * jax.random.normal(ks[1], (inner, dim), jnp.float32),
        "b_out": 0.01 * jax.random.normal(ks[2], (dim,), jnp.float32),
        "dpb_w1": 0.2 * jax.random.normal(ks[3], (2, D), jnp.float32),
        "dpb_b1": jnp.zeros((D,), jnp.float32),
        "dpb_ln1_g": jnp.ones((D,), jnp.float32),
        "dpb_ln1_b": jnp.zeros((D,), jnp.float32),
        "dpb_w2": 0.2 * jax.random.normal(ks[4], (D, D), jnp.float32),
        "dpb_b2": jnp.zeros((D,), jnp.float32),
        "dpb_ln2_g": jnp.ones((D,), jnp.float32),
        "dpb_ln2_b": jnp.zeros((D,), jnp.float32),
        "dpb_w3": 0.2 * jax.random.normal(ks[5], (D, D), jnp.float32),
        "dpb_b3": jnp.zeros((D,), jnp.float32),
        "dpb_ln3_g": jnp.ones((D,), jnp.float32),
        "dpb_ln3_b": jnp.zeros((D,), jnp.float32),
        "dpb_w4": 0.2 * jax.random.normal(ks[6], (D, 1), jnp.float32),
        "dpb_b4": jnp.zeros((1,), jnp.float32),
    }
    return p


# --------------------------------- main ------------------------------------ #

if __name__ == "__main__":
    B, dim, H, W = 2, 32, 16, 16
    dim_head = 8
    heads = dim // dim_head
    window_size = 4   # dropout = 0.0 -> identity, omitted

    key = jax.random.PRNGKey(0)
    kx, kp = jax.random.split(key)
    x = jax.random.normal(kx, (B, dim, H, W), jnp.float32)
    params = init_params(kp, dim, dim_head)

    for attn_type in ("short", "long"):
        out = attention_forward(x, params, attn_type=attn_type,
                                window_size=window_size, heads=heads,
                                dim_head=dim_head)
        out = jax.block_until_ready(out)

        ref = attention_reference(x, params, attn_type=attn_type,
                                  window_size=window_size, heads=heads,
                                  dim_head=dim_head)
        assert out.shape == (B, dim, H, W)
        max_err = float(jnp.max(jnp.abs(out - ref)))
        assert jnp.allclose(out, ref, atol=2e-2, rtol=2e-2), (attn_type, max_err)

    print("KERNEL_OK")
</pallas_src>

<mosaic_0001>
module attributes {stable_mosaic.version = 11 : i64} {
  func.func @_attention_kernel(%arg0: i32, %arg1: memref<16x16x32xf32, #tpu.memory_space<vmem>>, %arg2: memref<32x96xbf16, #tpu.memory_space<vmem>>, %arg3: memref<32x32xbf16, #tpu.memory_space<vmem>>, %arg4: memref<1x32xf32, #tpu.memory_space<vmem>>, %arg5: memref<1x32xf32, #tpu.memory_space<vmem>>, %arg6: memref<1x32xf32, #tpu.memory_space<vmem>>, %arg7: memref<16x16xf32, #tpu.memory_space<vmem>>, %arg8: memref<16x16x32xf32, #tpu.memory_space<vmem>>, %arg9: memref<256x96xf32, #tpu.memory_space<vmem>>, %arg10: memref<256x32xf32, #tpu.memory_space<vmem>>) attributes {dimension_semantics = [#tpu.dimension_semantics<parallel>], iteration_bounds = array<i64: 2>, scalar_prefetch = 0 : i64, scratch_operands = 2 : i64, tpu.core_type = #tpu.core_type<tc>, window_params = [{transform_indices = @transform_0, window_bounds = array<i64: 16, 16, 32>}, {pipeline_mode = #tpu.pipeline_mode<synchronous>, transform_indices = @transform_1, window_bounds = array<i64: 32, 96>}, {pipeline_mode = #tpu.pipeline_mode<synchronous>, transform_indices = @transform_2, window_bounds = array<i64: 32, 32>}, {pipeline_mode = #tpu.pipeline_mode<synchronous>, transform_indices = @transform_3, window_bounds = array<i64: 1, 32>}, {pipeline_mode = #tpu.pipeline_mode<synchronous>, transform_indices = @transform_4, window_bounds = array<i64: 1, 32>}, {pipeline_mode = #tpu.pipeline_mode<synchronous>, transform_indices = @transform_5, window_bounds = array<i64: 1, 32>}, {pipeline_mode = #tpu.pipeline_mode<synchronous>, transform_indices = @transform_6, window_bounds = array<i64: 16, 16>}, {transform_indices = @transform_7, window_bounds = array<i64: 16, 16, 32>}]} {
    %c0 = arith.constant 0 : index
    %c0_0 = arith.constant 0 : index
    %c0_1 = arith.constant 0 : index
    %0 = vector.load %arg1[%c0, %c0_0, %c0_1] : memref<16x16x32xf32, #tpu.memory_space<vmem>>, vector<16x16x32xf32>
    %1 = vector.shape_cast %0 : vector<16x16x32xf32> to vector<256x32xf32>
    %cst = arith.constant dense<0.000000e+00> : vector<256xf32>
    %2 = vector.multi_reduction <add>, %1, %cst [1] : vector<256x32xf32> to vector<256xf32>
    %3 = vector.shape_cast %2 : vector<256xf32> to vector<256x1xf32>
    %cst_2 = arith.constant 3.200000e+01 : f32
    %4 = vector.broadcast %cst_2 : f32 to vector<256x1xf32>
    %5 = arith.divf %3, %4 : vector<256x1xf32>
    %6 = vector.broadcast %5 : vector<256x1xf32> to vector<256x32xf32>
    %7 = arith.subf %1, %6 : vector<256x32xf32>
    %8 = arith.mulf %7, %7 : vector<256x32xf32>
    %cst_3 = arith.constant dense<0.000000e+00> : vector<256xf32>
    %9 = vector.multi_reduction <add>, %8, %cst_3 [1] : vector<256x32xf32> to vector<256xf32>
    %10 = vector.shape_cast %9 : vector<256xf32> to vector<256x1xf32>
    %cst_4 = arith.constant 3.200000e+01 : f32
    %11 = vector.broadcast %cst_4 : f32 to vector<256x1xf32>
    %12 = arith.divf %10, %11 : vector<256x1xf32>
    %13 = vector.broadcast %5 : vector<256x1xf32> to vector<256x32xf32>
    %14 = arith.subf %1, %13 : vector<256x32xf32>
    %cst_5 = arith.constant 9.99999974E-6 : f32
    %15 = vector.broadcast %cst_5 : f32 to vector<256x1xf32>
    %16 = arith.addf %12, %15 : vector<256x1xf32>
    %17 = math.rsqrt %16 : vector<256x1xf32>
    %18 = vector.broadcast %17 : vector<256x1xf32> to vector<256x32xf32>
    %19 = arith.mulf %14, %18 : vector<256x32xf32>
    %c0_6 = arith.constant 0 : index
    %c0_7 = arith.constant 0 : index
    %20 = vector.load %arg5[%c0_6, %c0_7] : memref<1x32xf32, #tpu.memory_space<vmem>>, vector<1x32xf32>
    %21 = vector.shape_cast %20 : vector<1x32xf32> to vector<32xf32>
    %22 = vector.shape_cast %21 : vector<32xf32> to vector<1x32xf32>
    %23 = vector.broadcast %22 : vector<1x32xf32> to vector<256x32xf32>
    %24 = arith.mulf %19, %23 : vector<256x32xf32>
    %c0_8 = arith.constant 0 : index
    %c0_9 = arith.constant 0 : index
    %25 = vector.load %arg6[%c0_8, %c0_9] : memref<1x32xf32, #tpu.memory_space<vmem>>, vector<1x32xf32>
    %26 = vector.shape_cast %25 : vector<1x32xf32> to vector<32xf32>
    %27 = vector.shape_cast %26 : vector<32xf32> to vector<1x32xf32>
    %28 = vector.broadcast %27 : vector<1x32xf32> to vector<256x32xf32>
    %29 = arith.addf %24, %28 : vector<256x32xf32>
    %30 = arith.truncf %29 : vector<256x32xf32> to vector<256x32xbf16>
    %c0_10 = arith.constant 0 : index
    %c0_11 = arith.constant 0 : index
    %31 = vector.load %arg2[%c0_10, %c0_11] : memref<32x96xbf16, #tpu.memory_space<vmem>>, vector<32x96xbf16>
    %cst_12 = arith.constant dense<0.000000e+00> : vector<256x96xf32>
    %32 = tpu.matmul %30, %31, %cst_12 {dimension_numbers = #tpu.dot_dimension_numbers<[1], [0], [0], [1], [0, 0, 1, 1], [], []>} : vector<256x32xbf16>, vector<32x96xbf16>, vector<256x96xf32> -> vector<256x96xf32>
    %c0_13 = arith.constant 0 : index
    %c0_14 = arith.constant 0 : index
    %33 = vector.load %arg9[%c0_13, %c0_14] : memref<256x96xf32, #tpu.memory_space<vmem>>, vector<256x96xf32>
    tpu.vector_store %arg9[%c0_13, %c0_14], %32 {strides = array<i32>} : memref<256x96xf32, #tpu.memory_space<vmem>>, vector<256x96xf32>,
    %c0_15 = arith.constant 0 : index
    %c0_16 = arith.constant 0 : index
    %34 = vector.load %arg9[%c0_15, %c0_16] : memref<256x96xf32, #tpu.memory_space<vmem>>, vector<256x8xf32>
    %c0_17 = arith.constant 0 : index
    %c8 = arith.constant 8 : index
    %35 = vector.load %arg9[%c0_17, %c8] : memref<256x96xf32, #tpu.memory_space<vmem>>, vector<256x8xf32>
    %c0_18 = arith.constant 0 : index
    %c16 = arith.constant 16 : index
    %36 = vector.load %arg9[%c0_18, %c16] : memref<256x96xf32, #tpu.memory_space<vmem>>, vector<256x8xf32>
    %c0_19 = arith.constant 0 : index
    %c24 = arith.constant 24 : index
    %37 = vector.load %arg9[%c0_19, %c24] : memref<256x96xf32, #tpu.memory_space<vmem>>, vector<256x8xf32>
    %38 = vector.shape_cast %34 : vector<256x8xf32> to vector<1x256x8xf32>
    %39 = vector.shape_cast %35 : vector<256x8xf32> to vector<1x256x8xf32>
    %40 = vector.shape_cast %36 : vector<256x8xf32> to vector<1x256x8xf32>
    %41 = vector.shape_cast %37 : vector<256x8xf32> to vector<1x256x8xf32>
    %42 = tpu.concatenate %38, %39, %40, %41 in 0 : vector<1x256x8xf32>, vector<1x256x8xf32>, vector<1x256x8xf32>, vector<1x256x8xf32> -> vector<4x256x8xf32>
    %43 = vector.shape_cast %42 : vector<4x256x8xf32> to vector<64x16x8xf32>
    %44 = arith.truncf %43 : vector<64x16x8xf32> to vector<64x16x8xbf16>
    %c0_20 = arith.constant 0 : index
    %c32 = arith.constant 32 : index
    %45 = vector.load %arg9[%c0_20, %c32] : memref<256x96xf32, #tpu.memory_space<vmem>>, vector<256x8xf32>
    %c0_21 = arith.constant 0 : index
    %c40 = arith.constant 40 : index
    %46 = vector.load %arg9[%c0_21, %c40] : memref<256x96xf32, #tpu.memory_space<vmem>>, vector<256x8xf32>
    %c0_22 = arith.constant 0 : index
    %c48 = arith.constant 48 : index
    %47 = vector.load %arg9[%c0_22, %c48] : memref<256x96xf32, #tpu.memory_space<vmem>>, vector<256x8xf32>
    %c0_23 = arith.constant 0 : index
    %c56 = arith.constant 56 : index
    %48 = vector.load %arg9[%c0_23, %c56] : memref<256x96xf32, #tpu.memory_space<vmem>>, vector<256x8xf32>
    %49 = vector.shape_cast %45 : vector<256x8xf32> to vector<1x256x8xf32>
    %50 = vector.shape_cast %46 : vector<256x8xf32> to vector<1x256x8xf32>
    %51 = vector.shape_cast %47 : vector<256x8xf32> to vector<1x256x8xf32>
    %52 = vector.shape_cast %48 : vector<256x8xf32> to vector<1x256x8xf32>
    %53 = tpu.concatenate %49, %50, %51, %52 in 0 : vector<1x256x8xf32>, vector<1x256x8xf32>, vector<1x256x8xf32>, vector<1x256x8xf32> -> vector<4x256x8xf32>
    %54 = vector.shape_cast %53 : vector<4x256x8xf32> to vector<64x16x8xf32>
    %55 = arith.truncf %54 : vector<64x16x8xf32> to vector<64x16x8xbf16>
    %c0_24 = arith.constant 0 : index
    %c64 = arith.constant 64 : index
    %56 = vector.load %arg9[%c0_24, %c64] : memref<256x96xf32, #tpu.memory_space<vmem>>, vector<256x8xf32>
    %c0_25 = arith.constant 0 : index
    %c72 = arith.constant 72 : index
    %57 = vector.load %arg9[%c0_25, %c72] : memref<256x96xf32, #tpu.memory_space<vmem>>, vector<256x8xf32>
    %c0_26 = arith.constant 0 : index
    %c80 = arith.constant 80 : index
    %58 = vector.load %arg9[%c0_26, %c80] : memref<256x96xf32, #tpu.memory_space<vmem>>, vector<256x8xf32>
    %c0_27 = arith.constant 0 : index
    %c88 = arith.constant 88 : index
    %59 = vector.load %arg9[%c0_27, %c88] : memref<256x96xf32, #tpu.memory_space<vmem>>, vector<256x8xf32>
    %60 = vector.shape_cast %56 : vector<256x8xf32> to vector<1x256x8xf32>
    %61 = vector.shape_cast %57 : vector<256x8xf32> to vector<1x256x8xf32>
    %62 = vector.shape_cast %58 : vector<256x8xf32> to vector<1x256x8xf32>
    %63 = vector.shape_cast %59 : vector<256x8xf32> to vector<1x256x8xf32>
    %64 = tpu.concatenate %60, %61, %62, %63 in 0 : vector<1x256x8xf32>, vector<1x256x8xf32>, vector<1x256x8xf32>, vector<1x256x8xf32> -> vector<4x256x8xf32>
    %65 = vector.shape_cast %64 : vector<4x256x8xf32> to vector<64x16x8xf32>
    %66 = arith.truncf %65 : vector<64x16x8xf32> to vector<64x16x8xbf16>
    "tpu.trace_start"() <{level = 10 : i32, message = "bid,bjd->bij"}> : () -> ()
    %cst_28 = arith.constant dense<0.000000e+00> : vector<64x16x16xf32>
    %67 = tpu.matmul %44, %55, %cst_28 {dimension_numbers = #tpu.dot_dimension_numbers<[2], [2], [1], [1], [0, 0, 0, 1, 1, 1], [0], [0]>} : vector<64x16x8xbf16>, vector<64x16x8xbf16>, vector<64x16x16xf32> -> vector<64x16x16xf32>
    "tpu.trace_stop"() : () -> ()
    %c0_29 = arith.constant 0 : index
    %c0_30 = arith.constant 0 : index
    %68 = vector.load %arg7[%c0_29, %c0_30] : memref<16x16xf32, #tpu.memory_space<vmem>>, vector<16x16xf32>
    %69 = vector.shape_cast %68 : vector<16x16xf32> to vector<1x16x16xf32>
    %70 = vector.broadcast %69 : vector<1x16x16xf32> to vector<64x16x16xf32>
    %71 = arith.addf %67, %70 : vector<64x16x16xf32>
    %cst_31 = arith.constant dense<0xFF800000> : vector<64x16xf32>
    %72 = vector.multi_reduction <maximumf>, %71, %cst_31 [2] : vector<64x16x16xf32> to vector<64x16xf32>
    %73 = vector.shape_cast %72 : vector<64x16xf32> to vector<64x16x1xf32>
    %74 = vector.broadcast %73 : vector<64x16x1xf32> to vector<64x16x16xf32>
    %75 = arith.subf %71, %74 : vector<64x16x16xf32>
    %76 = math.exp %75 : vector<64x16x16xf32>
    %cst_32 = arith.constant dense<0.000000e+00> : vector<64x16xf32>
    %77 = vector.multi_reduction <add>, %76, %cst_32 [2] : vector<64x16x16xf32> to vector<64x16xf32>
    %78 = vector.shape_cast %77 : vector<64x16xf32> to vector<64x16x1xf32>
    %79 = arith.truncf %76 : vector<64x16x16xf32> to vector<64x16x16xbf16>
    "tpu.trace_start"() <{level = 10 : i32, message = "bij,bjd->bid"}> : () -> ()
    %cst_33 = arith.constant dense<0.000000e+00> : vector<64x16x8xf32>
    %80 = tpu.matmul %79, %66, %cst_33 {dimension_numbers = #tpu.dot_dimension_numbers<[2], [1], [1], [2], [0, 0, 0, 1, 1, 2], [0], [0]>} : vector<64x16x16xbf16>, vector<64x16x8xbf16>, vector<64x16x8xf32> -> vector<64x16x8xf32>
    "tpu.trace_stop"() : () -> ()
    %81 = tpu.reciprocal %78 {approx = true} : vector<64x16x1xf32> -> vector<64x16x1xf32>
    %82 = vector.broadcast %81 : vector<64x16x1xf32> to vector<64x16x8xf32>
    %83 = arith.mulf %80, %82 : vector<64x16x8xf32>
    %84 = vector.shape_cast %83 : vector<64x16x8xf32> to vector<4x16x16x8xf32>
    %85 = vector.extract_strided_slice %84 {offsets = [0, 0, 0, 0], sizes = [1, 16, 16, 8], strides = [1, 1, 1, 1]} : vector<4x16x16x8xf32> to vector<1x16x16x8xf32>
    %86 = vector.shape_cast %85 : vector<1x16x16x8xf32> to vector<16x16x8xf32>
    %87 = vector.shape_cast %86 : vector<16x16x8xf32> to vector<256x8xf32>
    %c0_34 = arith.constant 0 : index
    %c0_35 = arith.constant 0 : index
    %88 = vector.load %arg10[%c0_34, %c0_35] : memref<256x32xf32, #tpu.memory_space<vmem>>, vector<256x8xf32>
    tpu.vector_store %arg10[%c0_34, %c0_35], %87 {strides = array<i32>} : memref<256x32xf32, #tpu.memory_space<vmem>>, vector<256x8xf32>,
    %89 = vector.extract_strided_slice %84 {offsets = [1, 0, 0, 0], sizes = [1, 16, 16, 8], strides = [1, 1, 1, 1]} : vector<4x16x16x8xf32> to vector<1x16x16x8xf32>
    %90 = vector.shape_cast %89 : vector<1x16x16x8xf32> to vector<16x16x8xf32>
    %91 = vector.shape_cast %90 : vector<16x16x8xf32> to vector<256x8xf32>
    %c0_36 = arith.constant 0 : index
    %c8_37 = arith.constant 8 : index
    %92 = vector.load %arg10[%c0_36, %c8_37] : memref<256x32xf32, #tpu.memory_space<vmem>>, vector<256x8xf32>
    tpu.vector_store %arg10[%c0_36, %c8_37], %91 {strides = array<i32>} : memref<256x32xf32, #tpu.memory_space<vmem>>, vector<256x8xf32>,
    %93 = vector.extract_strided_slice %84 {offsets = [2, 0, 0, 0], sizes = [1, 16, 16, 8], strides = [1, 1, 1, 1]} : vector<4x16x16x8xf32> to vector<1x16x16x8xf32>
    %94 = vector.shape_cast %93 : vector<1x16x16x8xf32> to vector<16x16x8xf32>
    %95 = vector.shape_cast %94 : vector<16x16x8xf32> to vector<256x8xf32>
    %c0_38 = arith.constant 0 : index
    %c16_39 = arith.constant 16 : index
    %96 = vector.load %arg10[%c0_38, %c16_39] : memref<256x32xf32, #tpu.memory_space<vmem>>, vector<256x8xf32>
    tpu.vector_store %arg10[%c0_38, %c16_39], %95 {strides = array<i32>} : memref<256x32xf32, #tpu.memory_space<vmem>>, vector<256x8xf32>,
    %97 = vector.extract_strided_slice %84 {offsets = [3, 0, 0, 0], sizes = [1, 16, 16, 8], strides = [1, 1, 1, 1]} : vector<4x16x16x8xf32> to vector<1x16x16x8xf32>
    %98 = vector.shape_cast %97 : vector<1x16x16x8xf32> to vector<16x16x8xf32>
    %99 = vector.shape_cast %98 : vector<16x16x8xf32> to vector<256x8xf32>
    %c0_40 = arith.constant 0 : index
    %c24_41 = arith.constant 24 : index
    %100 = vector.load %arg10[%c0_40, %c24_41] : memref<256x32xf32, #tpu.memory_space<vmem>>, vector<256x8xf32>
    tpu.vector_store %arg10[%c0_40, %c24_41], %99 {strides = array<i32>} : memref<256x32xf32, #tpu.memory_space<vmem>>, vector<256x8xf32>,
    %c0_42 = arith.constant 0 : index
    %c0_43 = arith.constant 0 : index
    %101 = vector.load %arg10[%c0_42, %c0_43] : memref<256x32xf32, #tpu.memory_space<vmem>>, vector<256x32xf32>
    %102 = arith.truncf %101 : vector<256x32xf32> to vector<256x32xbf16>
    %c0_44 = arith.constant 0 : index
    %c0_45 = arith.constant 0 : index
    %103 = vector.load %arg3[%c0_44, %c0_45] : memref<32x32xbf16, #tpu.memory_space<vmem>>, vector<32x32xbf16>
    %cst_46 = arith.constant dense<0.000000e+00> : vector<256x32xf32>
    %104 = tpu.matmul %102, %103, %cst_46 {dimension_numbers = #tpu.dot_dimension_numbers<[1], [0], [0], [1], [0, 0, 1, 1], [], []>} : vector<256x32xbf16>, vector<32x32xbf16>, vector<256x32xf32> -> vector<256x32xf32>
    %c0_47 = arith.constant 0 : index
    %c0_48 = arith.constant 0 : index
    %105 = vector.load %arg4[%c0_47, %c0_48] : memref<1x32xf32, #tpu.memory_space<vmem>>, vector<1x32xf32>
    %106 = vector.shape_cast %105 : vector<1x32xf32> to vector<32xf32>
    %107 = vector.shape_cast %106 : vector<32xf32> to vector<1x32xf32>
    %108 = vector.broadcast %107 : vector<1x32xf32> to vector<256x32xf32>
    %109 = arith.addf %104, %108 : vector<256x32xf32>
    %110 = vector.shape_cast %109 : vector<256x32xf32> to vector<16x16x32xf32>
    %c0_49 = arith.constant 0 : index
    %c0_50 = arith.constant 0 : index
    %c0_51 = arith.constant 0 : index
    %111 = vector.load %arg8[%c0_49, %c0_50, %c0_51] : memref<16x16x32xf32, #tpu.memory_space<vmem>>, vector<16x16x32xf32>
    tpu.vector_store %arg8[%c0_49, %c0_50, %c0_51], %110 {strides = array<i32>} : memref<16x16x32xf32, #tpu.memory_space<vmem>>, vector<16x16x32xf32>,
    return
  }
  func.func @transform_0(%arg0: i32) -> (i32, i32, i32) {
    %c0_i32 = arith.constant 0 : i32
    %c0_i32_0 = arith.constant 0 : i32
    %c0_i32_1 = arith.constant 0 : i32
    return %arg0, %c0_i32, %c0_i32_0 : i32, i32, i32
  }
  func.func @transform_1(%arg0: i32) -> (i32, i32) {
    %c0_i32 = arith.constant 0 : i32
    %c0_i32_0 = arith.constant 0 : i32
    %c0_i32_1 = arith.constant 0 : i32
    return %c0_i32, %c0_i32_0 : i32, i32
  }
  func.func @transform_2(%arg0: i32) -> (i32, i32) {
    %c0_i32 = arith.constant 0 : i32
    %c0_i32_0 = arith.constant 0 : i32
    %c0_i32_1 = arith.constant 0 : i32
    return %c0_i32, %c0_i32_0 : i32, i32
  }
  func.func @transform_3(%arg0: i32) -> (i32, i32) {
    %c0_i32 = arith.constant 0 : i32
    %c0_i32_0 = arith.constant 0 : i32
    %c0_i32_1 = arith.constant 0 : i32
    return %c0_i32, %c0_i32_0 : i32, i32
  }
  func.func @transform_4(%arg0: i32) -> (i32, i32) {
    %c0_i32 = arith.constant 0 : i32
    %c0_i32_0 = arith.constant 0 : i32
    %c0_i32_1 = arith.constant 0 : i32
    return %c0_i32, %c0_i32_0 : i32, i32
  }
  func.func @transform_5(%arg0: i32) -> (i32, i32) {
    %c0_i32 = arith.constant 0 : i32
    %c0_i32_0 = arith.constant 0 : i32
    %c0_i32_1 = arith.constant 0 : i32
    return %c0_i32, %c0_i32_0 : i32, i32
  }
  func.func @transform_6(%arg0: i32) -> (i32, i32) {
    %c0_i32 = arith.constant 0 : i32
    %c0_i32_0 = arith.constant 0 : i32
    %c0_i32_1 = arith.constant 0 : i32
    return %c0_i32, %c0_i32_0 : i32, i32
  }
  func.func @transform_7(%arg0: i32) -> (i32, i32, i32) {
    %c0_i32 = arith.constant 0 : i32
    %c0_i32_0 = arith.constant 0 : i32
    %c0_i32_1 = arith.constant 0 : i32
    return %arg0, %c0_i32, %c0_i32_0 : i32, i32, i32
  }
}

</mosaic_0001>

<llo_original>
// kernel: tpu_custom_call.1
$region0: #{tpu_custom_call.1}
  #allocation0 [shape = 'u32[]', space=smem, size = 0x4, offset = 0x4, fixed_abs, tag = 'smem constant byte address 0x4 - core index']
  #allocation1 [shape = 'u32[72,128]{1,0:T(1,128)}', space=vmem, size = 0x9000, scoped, tag = 'internal scratch']
  #allocation2 [shape = 'f32[256,96]{1,0:T(8,128)}', space=vmem, size = 0x20000, scoped, tag = 'scratch operand']
  #allocation3 [shape = 'f32[256,32]{1,0:T(8,128)}', space=vmem, size = 0x20000, scoped, tag = 'scratch operand']
  %s0 = inlined_call_operand.hbm [shape: f32[32,16,32], index: 0, kind: input, shape index: {}]
  %s1 = inlined_call_operand.hbm [shape: bf16[32,96], index: 1, kind: input, shape index: {}]
  %s2 = inlined_call_operand.hbm [shape: bf16[32,32], index: 2, kind: input, shape index: {}]
  %s3 = inlined_call_operand.vmem [shape: f32[1,32], index: 3, kind: input, shape index: {}]
  %s4 = inlined_call_operand.vmem [shape: f32[1,32], index: 4, kind: input, shape index: {}]
  %s5 = inlined_call_operand.vmem [shape: f32[1,32], index: 5, kind: input, shape index: {}]
  %s6 = inlined_call_operand.hbm [shape: f32[16,16], index: 6, kind: input, shape index: {}]
  %s7 = inlined_call_operand.hbm [shape: f32[32,16,32], index: 7, kind: output, shape index: {}]
  %s8 = sld [smem:[#allocation0]]
  $region77: #{tpu_custom_call.1} parent=0
    _
  %s10 = ssub.s32 1, %s8
  %s11 = scalar_select 0, %s10, %s8
  $region1: #{tpu_custom_call.1} parent=0
    #allocation4 [shape = 'u8[262144]{0}', space=vmem, size = 0x40000, scoped, tag = 'input window, operand 0']
    #allocation5 [shape = 's32[2]{0}', space=sflag, size = 0x8, scoped, tag = 'scoped memory for tpu_custom_call.1']
    #allocation6 [shape = 's32[2]{0}', space=sflag, size = 0x8, scoped, tag = 'scoped memory for tpu_custom_call.1']
    #allocation7 [shape = 'u8[8192]{0}', space=vmem, size = 0x2000, scoped, tag = 'input window, operand 1, single buffered']
    #allocation8 [shape = 's32[1]{0}', space=sflag, size = 0x4, scoped, tag = 'scoped memory for tpu_custom_call.1']
    #allocation9 [shape = 'u8[8192]{0}', space=vmem, size = 0x2000, scoped, tag = 'input window, operand 2, single buffered']
    #allocation10 [shape = 'u8[8192]{0}', space=vmem, size = 0x2000, scoped, tag = 'input window, operand 6, single buffered']
    #allocation11 [shape = 's32[1]{0}', space=sflag, size = 0x4, scoped, tag = 'scoped memory for tpu_custom_call.1']
    #allocation12 [shape = 'u8[262144]{0}', space=vmem, size = 0x40000, scoped, tag = 'output window, operand 0']
    %12 = vsyncpa [#allocation5], 0
    %s13 = scalar_lea.sflag [#allocation5], 1
    %14 = vsyncpa %s13, 0
    %15 = vsyncpa [#allocation8], 0
    %16 = vsyncpa [#allocation11], 0
    %17 = vsyncpa [#allocation6], 0
    %s18 = scalar_lea.sflag [#allocation6], 1
    %19 = vsyncpa %s18, 0
    loop: start=0, step=1, limit=4
    $region2: #{tpu_custom_call.1} parent=1 // loop_pre_header
      _
    $region3: #{tpu_custom_call.1} parent=1 // loop_header
      %s21 = sphi 0, %s25
      %p22 = scmp.ge.s32.totalorder %s21, 4
      %s31 = sphi 0, %s33
      %s34 = sphi 0, %s31
      %s35 = sphi 0, %s34
      %s51 = sphi 0, %s35
      %s55 = sphi 0, %s55
      %s57 = sphi 0, %s55
      %s58 = sphi 0, %s57
      %s72 = sphi 0, %s58
      %s76 = sphi 0, %s76
      %s78 = sphi 0, %s76
      %s79 = sphi 0, %s78
      %s93 = sphi 0, %s79
      %s97 = sphi 0, %s97
      %s99 = sphi 0, %s97
      %s100 = sphi 0, %s99
      %s114 = sphi 0, %s100
      %s118 = sphi 0, %s118
      %s120 = sphi 0, %s118
      %s121 = sphi 0, %s120
      %s135 = sphi 0, %s121
      %s139 = sphi 0, %s139
      %s141 = sphi 0, %s139
      %s142 = sphi 0, %s141
      %s156 = sphi 0, %s142
      %s160 = sphi 0, %s160
      %s162 = sphi 0, %s160
      %s163 = sphi 0, %s162
      %s177 = sphi 0, %s163
      %s183 = sphi 0, %s185
      %s186 = sphi 0, %s183
      %s187 = sphi 0, %s186
      %s203 = sphi 0, %s187
    $region4: #{tpu_custom_call.1} parent=1 // loop_header_branch
      %24 = sbr.rel (%p22) target = $region8
    $region5: #{tpu_custom_call.1} parent=1 // loop_body
      %s26 = ssub.s32 %s21, 1
      %s27 = ssub.s32 %s21, 2
      %s28 = sadd.s32 %s21, 1
      %s29 = ssub.s32 %s21, %s28
      %p30 = scmp.eq.s32.totalorder %s29, 0
      %s32 = sadd.s32 %s31, 1
      %s33 = scalar_select %p30, %s31, %s32
      %p36 = pneg %p30
      %p37 = scmp.eq.s32.totalorder %s21, 1
      %p38 = por %p36, %p37
      %p39 = scmp.ne.s32.totalorder %s31, %s34
      %p40 = scmp.eq.s32.totalorder %s21, 0
      %p41 = por %p39, %p40
      %p42 = scmp.ne.s32.totalorder %s31, %s34
      %p43 = scmp.eq.s32.totalorder %s26, 1
      %p44 = por %p42, %p43
      %p45 = scmp.ne.s32.totalorder %s34, %s35
      %p46 = scmp.eq.s32.totalorder %s26, 0
      %p47 = por %p45, %p46
      %p48 = scmp.ne.s32.totalorder %s34, %s35
      %p49 = scmp.eq.s32.totalorder %s27, 1
      %p50 = por %p48, %p49
      %p52 = scmp.ne.s32.totalorder %s35, %s51
      %p53 = scmp.eq.s32.totalorder %s27, 0
      %p54 = por %p52, %p53
      %s56 = sadd.s32 %s55, 1
      %p59 = scmp.eq.s32.totalorder %s21, 1
      %p60 = scmp.ne.s32.totalorder %s55, %s57
      %p61 = scmp.eq.s32.totalorder %s21, 0
      %p62 = por %p60, %p61
      %p63 = scmp.ne.s32.totalorder %s55, %s57
      %p64 = scmp.eq.s32.totalorder %s26, 1
      %p65 = por %p63, %p64
      %p66 = scmp.ne.s32.totalorder %s57, %s58
      %p67 = scmp.eq.s32.totalorder %s26, 0
      %p68 = por %p66, %p67
      %p69 = scmp.ne.s32.totalorder %s57, %s58
      %p70 = scmp.eq.s32.totalorder %s27, 1
      %p71 = por %p69, %p70
      %p73 = scmp.ne.s32.totalorder %s58, %s72
      %p74 = scmp.eq.s32.totalorder %s27, 0
      %p75 = por %p73, %p74
      %s77 = sadd.s32 %s76, 1
      %p80 = scmp.eq.s32.totalorder %s21, 1
      %p81 = scmp.ne.s32.totalorder %s76, %s78
      %p82 = scmp.eq.s32.totalorder %s21, 0
      %p83 = por %p81, %p82
      %p84 = scmp.ne.s32.totalorder %s76, %s78
      %p85 = scmp.eq.s32.totalorder %s26, 1
      %p86 = por %p84, %p85
      %p87 = scmp.ne.s32.totalorder %s78, %s79
      %p88 = scmp.eq.s32.totalorder %s26, 0
      %p89 = por %p87, %p88
      %p90 = scmp.ne.s32.totalorder %s78, %s79
      %p91 = scmp.eq.s32.totalorder %s27, 1
      %p92 = por %p90, %p91
      %p94 = scmp.ne.s32.totalorder %s79, %s93
      %p95 = scmp.eq.s32.totalorder %s27, 0
      %p96 = por %p94, %p95
      %s98 = sadd.s32 %s97, 1
      %p101 = scmp.eq.s32.totalorder %s21, 1
      %p102 = scmp.ne.s32.totalorder %s97, %s99
      %p103 = scmp.eq.s32.totalorder %s21, 0
      %p104 = por %p102, %p103
      %p105 = scmp.ne.s32.totalorder %s97, %s99
      %p106 = scmp.eq.s32.totalorder %s26, 1
      %p107 = por %p105, %p106
      %p108 = scmp.ne.s32.totalorder %s99, %s100
      %p109 = scmp.eq.s32.totalorder %s26, 0
      %p110 = por %p108, %p109
      %p111 = scmp.ne.s32.totalorder %s99, %s100
      %p112 = scmp.eq.s32.totalorder %s27, 1
      %p113 = por %p111, %p112
      %p115 = scmp.ne.s32.totalorder %s100, %s114
      %p116 = scmp.eq.s32.totalorder %s27, 0
      %p117 = por %p115, %p116
      %s119 = sadd.s32 %s118, 1
      %p122 = scmp.eq.s32.totalorder %s21, 1
      %p123 = scmp.ne.s32.totalorder %s118, %s120
      %p124 = scmp.eq.s32.totalorder %s21, 0
      %p125 = por %p123, %p124
      %p126 = scmp.ne.s32.totalorder %s118, %s120
      %p127 = scmp.eq.s32.totalorder %s26, 1
      %p128 = por %p126, %p127
      %p129 = scmp.ne.s32.totalorder %s120, %s121
      %p130 = scmp.eq.s32.totalorder %s26, 0
      %p131 = por %p129, %p130
      %p132 = scmp.ne.s32.totalorder %s120, %s121
      %p133 = scmp.eq.s32.totalorder %s27, 1
      %p134 = por %p132, %p133
      %p136 = scmp.ne.s32.totalorder %s121, %s135
      %p137 = scmp.eq.s32.totalorder %s27, 0
      %p138 = por %p136, %p137
      %s140 = sadd.s32 %s139, 1
      %p143 = scmp.eq.s32.totalorder %s21, 1
      %p144 = scmp.ne.s32.totalorder %s139, %s141
      %p145 = scmp.eq.s32.totalorder %s21, 0
      %p146 = por %p144, %p145
      %p147 = scmp.ne.s32.totalorder %s139, %s141
      %p148 = scmp.eq.s32.totalorder %s26, 1
      %p149 = por %p147, %p148
      %p150 = scmp.ne.s32.totalorder %s141, %s142
      %p151 = scmp.eq.s32.totalorder %s26, 0
      %p152 = por %p150, %p151
      %p153 = scmp.ne.s32.totalorder %s141, %s142
      %p154 = scmp.eq.s32.totalorder %s27, 1
      %p155 = por %p153, %p154
      %p157 = scmp.ne.s32.totalorder %s142, %s156
      %p158 = scmp.eq.s32.totalorder %s27, 0
      %p159 = por %p157, %p158
      %s161 = sadd.s32 %s160, 1
      %p164 = scmp.eq.s32.totalorder %s21, 1
      %p165 = scmp.ne.s32.totalorder %s160, %s162
      %p166 = scmp.eq.s32.totalorder %s21, 0
      %p167 = por %p165, %p166
      %p168 = scmp.ne.s32.totalorder %s160, %s162
      %p169 = scmp.eq.s32.totalorder %s26, 1
      %p170 = por %p168, %p169
      %p171 = scmp.ne.s32.totalorder %s162, %s163
      %p172 = scmp.eq.s32.totalorder %s26, 0
      %p173 = por %p171, %p172
      %p174 = scmp.ne.s32.totalorder %s162, %s163
      %p175 = scmp.eq.s32.totalorder %s27, 1
      %p176 = por %p174, %p175
      %p178 = scmp.ne.s32.totalorder %s163, %s177
      %p179 = scmp.eq.s32.totalorder %s27, 0
      %p180 = por %p178, %p179
      %s181 = ssub.s32 %s21, %s28
      %p182 = scmp.eq.s32.totalorder %s181, 0
      %s184 = sadd.s32 %s183, 1
      %s185 = scalar_select %p182, %s183, %s184
      %p188 = pneg %p182
      %p189 = scmp.eq.s32.totalorder %s21, 1
      %p190 = por %p188, %p189
      %p191 = scmp.ne.s32.totalorder %s183, %s186
      %p192 = scmp.eq.s32.totalorder %s21, 0
      %p193 = por %p191, %p192
      %p194 = scmp.ne.s32.totalorder %s183, %s186
      %p195 = scmp.eq.s32.totalorder %s26, 1
      %p196 = por %p194, %p195
      %p197 = scmp.ne.s32.totalorder %s186, %s187
      %p198 = scmp.eq.s32.totalorder %s26, 0
      %p199 = por %p197, %p198
      %p200 = scmp.ne.s32.totalorder %s186, %s187
      %p201 = scmp.eq.s32.totalorder %s27, 1
      %p202 = por %p200, %p201
      %p204 = scmp.ne.s32.totalorder %s187, %s203
      %p205 = scmp.eq.s32.totalorder %s27, 0
      %p206 = por %p204, %p205
      %p207 = scmp.le.s32.totalorder 1, %s21
      %p208 = scmp.lt.s32.totalorder %s21, 3
      %p209 = pnand %p207, %p208
      %p210 = pneg %p209
      // Predicated region
      $region9: #{tpu_custom_call.1} parent=5 // pred_check
        _
      $region10: #{tpu_custom_call.1} parent=5 // pred_check_branch
        %212 = sbr.rel (%p209) target = $region12
      $region11: #{tpu_custom_call.1} parent=5 // pred_region
        %s213 = ssub.s32 %s21, 1
        // Predicated region
        $region13: #{tpu_custom_call.1} parent=11 // pred_check
          %p214 = pneg %p68
        $region14: #{tpu_custom_call.1} parent=11 // pred_check_branch
          %216 = sbr.rel (%p214) target = $region16
        $region15: #{tpu_custom_call.1} parent=11 // pred_region
          %218 = vsyncadd [#allocation8], 0
          %s219 = sshll.u32 %s1, 4
          %s220 = int_to_ptr.hbm [resolvable:$true] %s219
          %s221 = sshll.u32 [#allocation7], 4
          %s222 = int_to_ptr.vmem [resolvable:$true] %s221
          %227 = dma.hbm_to_vmem [thread:$0]  %s220, 256, %s222, [#allocation8], 64, 64, 4
        $region16: #{tpu_custom_call.1} parent=11 // pred_fallthru
          _
        // Predicated region
        $region17: #{tpu_custom_call.1} parent=11 // pred_check
          %p228 = pneg %p89
        $region18: #{tpu_custom_call.1} parent=11 // pred_check_branch
          %230 = sbr.rel (%p228) target = $region20
        $region19: #{tpu_custom_call.1} parent=11 // pred_region
          %232 = vsyncadd [#allocation8], 0
          %s233 = sshll.u32 %s2, 4
          %s234 = int_to_ptr.hbm [resolvable:$true] %s233
          %s235 = sshll.u32 [#allocation9], 4
          %s236 = int_to_ptr.vmem [resolvable:$true] %s235
          %241 = dma.hbm_to_vmem [thread:$0]  %s234, 256, %s236, [#allocation8], 64, 64, 4
        $region20: #{tpu_custom_call.1} parent=11 // pred_fallthru
          _
        // Predicated region
        $region21: #{tpu_custom_call.1} parent=11 // pred_check
          %p242 = pneg %p110
        $region22: #{tpu_custom_call.1} parent=11 // pred_check_branch
          %244 = sbr.rel (%p242) target = $region24
        $region23: #{tpu_custom_call.1} parent=11 // pred_region
          _
        $region24: #{tpu_custom_call.1} parent=11 // pred_fallthru
          _
        // Predicated region
        $region25: #{tpu_custom_call.1} parent=11 // pred_check
          %p245 = pneg %p131
        $region26: #{tpu_custom_call.1} parent=11 // pred_check_branch
          %247 = sbr.rel (%p245) target = $region28
        $region27: #{tpu_custom_call.1} parent=11 // pred_region
          _
        $region28: #{tpu_custom_call.1} parent=11 // pred_fallthru
          _
        // Predicated region
        $region29: #{tpu_custom_call.1} parent=11 // pred_check
          %p248 = pneg %p152
        $region30: #{tpu_custom_call.1} parent=11 // pred_check_branch
          %250 = sbr.rel (%p248) target = $region32
        $region31: #{tpu_custom_call.1} parent=11 // pred_region
          _
        $region32: #{tpu_custom_call.1} parent=11 // pred_fallthru
          _
        // Predicated region
        $region33: #{tpu_custom_call.1} parent=11 // pred_check
          %p251 = pneg %p173
        $region34: #{tpu_custom_call.1} parent=11 // pred_check_branch
          %253 = sbr.rel (%p251) target = $region36
        $region35: #{tpu_custom_call.1} parent=11 // pred_region
          %255 = vsyncadd [#allocation11], 0
          %s256 = sshll.u32 %s6, 4
          %s257 = int_to_ptr.hbm [resolvable:$true] %s256
          %s258 = sshll.u32 [#allocation10], 4
          %s259 = int_to_ptr.vmem [resolvable:$true] %s258
          %264 = dma.hbm_to_vmem [thread:$0]  %s257, 256, %s259, [#allocation11], 128, 128, 8
        $region36: #{tpu_custom_call.1} parent=11 // pred_fallthru
          _
      $region12: #{tpu_custom_call.1} parent=5 // pred_fallthru
        _
      %p265 = scmp.lt.s32.totalorder %s21, 2
      // Predicated region
      $region37: #{tpu_custom_call.1} parent=5 // pred_check
        %p266 = pneg %p265
      $region38: #{tpu_custom_call.1} parent=5 // pred_check_branch
        %268 = sbr.rel (%p266) target = $region40
      $region39: #{tpu_custom_call.1} parent=5 // pred_region
        // Predicated region
        $region41: #{tpu_custom_call.1} parent=39 // pred_check
          %p269 = pneg %p41
        $region42: #{tpu_custom_call.1} parent=39 // pred_check_branch
          %271 = sbr.rel (%p269) target = $region44
        $region43: #{tpu_custom_call.1} parent=39 // pred_region
          %s272 = sand.u32 %s31, 1
          %s273 = scalar_lea.sflag [#allocation5], %s272
          %s274 = sand.u32 %s31, 1
          %s275 = smul.addr %s274, 256
          %s276 = scalar_lea.vmem [#allocation4], %s275
          %s277 = smul.u32 16, %s21
          %279 = vsyncadd %s273, 0
          %s280 = smul.addr %s277, 2
          %s281 = smul.addr %s280, 8
          %s282 = scalar_lea.hbm %s0, %s281
          %s283 = sshll.u32 %s282, 4
          %s284 = int_to_ptr.hbm [resolvable:$true] %s283
          %s285 = sshll.u32 %s276, 4
          %s286 = int_to_ptr.vmem [resolvable:$true] %s285
          %291 = dma.hbm_to_vmem [thread:$0]  %s284, 4096, %s286, %s273, 128, 128, 8
        $region44: #{tpu_custom_call.1} parent=39 // pred_fallthru
          _
      $region40: #{tpu_custom_call.1} parent=5 // pred_fallthru
        _
      %p292 = scmp.le.s32.totalorder 1, %s21
      %p293 = scmp.lt.s32.totalorder %s21, 3
      %p294 = pnand %p292, %p293
      %p295 = pneg %p294
      // Predicated region
      $region45: #{tpu_custom_call.1} parent=5 // pred_check
        _
      $region46: #{tpu_custom_call.1} parent=5 // pred_check_branch
        %297 = sbr.rel (%p294) target = $region48
      $region47: #{tpu_custom_call.1} parent=5 // pred_region
        %s298 = ssub.s32 %s21, 1
        %s299 = sand.u32 %s34, 1
        %s300 = scalar_lea.sflag [#allocation5], %s299
        %s301 = sand.u32 %s34, 1
        %s302 = smul.addr %s301, 256
        %s303 = scalar_lea.vmem [#allocation4], %s302
        // Predicated region
        $region49: #{tpu_custom_call.1} parent=47 // pred_check
          %p304 = pneg %p47
        $region50: #{tpu_custom_call.1} parent=47 // pred_check_branch
          %306 = sbr.rel (%p304) target = $region52
        $region51: #{tpu_custom_call.1} parent=47 // pred_region
          %308 = dma.done %s300, 4096
        $region52: #{tpu_custom_call.1} parent=47 // pred_fallthru
          _
        // Predicated region
        $region53: #{tpu_custom_call.1} parent=47 // pred_check
          %p309 = pneg %p68
        $region54: #{tpu_custom_call.1} parent=47 // pred_check_branch
          %311 = sbr.rel (%p309) target = $region56
        $region55: #{tpu_custom_call.1} parent=47 // pred_region
          %313 = dma.done [#allocation8], 256
        $region56: #{tpu_custom_call.1} parent=47 // pred_fallthru
          _
        // Predicated region
        $region57: #{tpu_custom_call.1} parent=47 // pred_check
          %p314 = pneg %p89
        $region58: #{tpu_custom_call.1} parent=47 // pred_check_branch
          %316 = sbr.rel (%p314) target = $region60
        $region59: #{tpu_custom_call.1} parent=47 // pred_region
          %318 = dma.done [#allocation8], 256
        $region60: #{tpu_custom_call.1} parent=47 // pred_fallthru
          _
        // Predicated region
        $region61: #{tpu_custom_call.1} parent=47 // pred_check
          %p319 = pneg %p173
        $region62: #{tpu_custom_call.1} parent=47 // pred_check_branch
          %321 = sbr.rel (%p319) target = $region64
        $region63: #{tpu_custom_call.1} parent=47 // pred_region
          %323 = dma.done [#allocation11], 256
        $region64: #{tpu_custom_call.1} parent=47 // pred_fallthru
          _
        %s324 = sand.u32 %s34, 1
        %s325 = scalar_lea.sflag [#allocation5], %s324
        %s326 = sand.u32 %s34, 1
        %s327 = smul.addr %s326, 256
        %s328 = scalar_lea.vmem [#allocation4], %s327
        %p329 = pneg %p47
        %p330 = pneg %p44
        %p331 = pneg %p68
        %p332 = pneg %p65
        %p333 = pneg %p89
        %p334 = pneg %p86
        %p335 = pneg %p110
        %p336 = pneg %p107
        %p337 = pneg %p131
        %p338 = pneg %p128
        %p339 = pneg %p152
        %p340 = pneg %p149
        %p341 = pneg %p173
        %p342 = pneg %p170
        %p343 = pneg %p199
        %p344 = pneg %p196
        %s345 = sand.u32 %s186, 1
        %s346 = scalar_lea.sflag [#allocation6], %s345
        %s347 = sand.u32 %s186, 1
        %s348 = smul.addr %s347, 256
        %s349 = scalar_lea.vmem [#allocation12], %s348
        %s350 = smul.u32 16, %s26
        %s351 = smul.u32 16, %s26
        %v353 = vld [vmem:[%s303] sm:$0xff]
        %v354 = vld [vmem:[%s303 + $0x8] sm:$0xff]
        %v355 = vld [vmem:[%s303 + $0x10] sm:$0xff]
        %v356 = vld [vmem:[%s303 + $0x18] sm:$0xff]
        %v357 = vld [vmem:[%s303 + $0x20] sm:$0xff]
        %v358 = vld [vmem:[%s303 + $0x28] sm:$0xff]
        %v359 = vld [vmem:[%s303 + $0x30] sm:$0xff]
        %v360 = vld [vmem:[%s303 + $0x38] sm:$0xff]
        %v361 = vld [vmem:[%s303 + $0x40] sm:$0xff]
        %v362 = vld [vmem:[%s303 + $0x48] sm:$0xff]
        %v363 = vld [vmem:[%s303 + $0x50] sm:$0xff]
        %v364 = vld [vmem:[%s303 + $0x58] sm:$0xff]
        %v365 = vld [vmem:[%s303 + $0x60] sm:$0xff]
        %v366 = vld [vmem:[%s303 + $0x68] sm:$0xff]
        %v367 = vld [vmem:[%s303 + $0x70] sm:$0xff]
        %v368 = vld [vmem:[%s303 + $0x78] sm:$0xff]
        %v369 = vld [vmem:[%s303 + $0x80] sm:$0xff]
        %v370 = vld [vmem:[%s303 + $0x88] sm:$0xff]
        %v371 = vld [vmem:[%s303 + $0x90] sm:$0xff]
        %v372 = vld [vmem:[%s303 + $0x98] sm:$0xff]
        %v373 = vld [vmem:[%s303 + $0xa0] sm:$0xff]
        %v374 = vld [vmem:[%s303 + $0xa8] sm:$0xff]
        %v375 = vld [vmem:[%s303 + $0xb0] sm:$0xff]
        %v376 = vld [vmem:[%s303 + $0xb8] sm:$0xff]
        %v377 = vld [vmem:[%s303 + $0xc0] sm:$0xff]
        %v378 = vld [vmem:[%s303 + $0xc8] sm:$0xff]
        %v379 = vld [vmem:[%s303 + $0xd0] sm:$0xff]
        %v380 = vld [vmem:[%s303 + $0xd8] sm:$0xff]
        %v381 = vld [vmem:[%s303 + $0xe0] sm:$0xff]
        %v382 = vld [vmem:[%s303 + $0xe8] sm:$0xff]
        %v383 = vld [vmem:[%s303 + $0xf0] sm:$0xff]
        %v384 = vld [vmem:[%s303 + $0xf8] sm:$0xff]
        %vm385 = vcmask 261120
        %v386 = vsel %vm385, %v353, 0.0
        %387 = vadd.xlane.f32.xlu0 %v386
        %v388 = vpop.xlane.xlu0 %387
        %v389 = vsel %vm385, %v354, 0.0
        %390 = vadd.xlane.f32.xlu0 %v389
        %v391 = vpop.xlane.xlu0 %390
        %v392 = vsel %vm385, %v355, 0.0
        %393 = vadd.xlane.f32.xlu0 %v392
        %v394 = vpop.xlane.xlu0 %393
        %v395 = vsel %vm385, %v356, 0.0
        %396 = vadd.xlane.f32.xlu0 %v395
        %v397 = vpop.xlane.xlu0 %396
        %v398 = vsel %vm385, %v357, 0.0
        %399 = vadd.xlane.f32.xlu0 %v398
        %v400 = vpop.xlane.xlu0 %399
        %v401 = vsel %vm385, %v358, 0.0
        %402 = vadd.xlane.f32.xlu0 %v401
        %v403 = vpop.xlane.xlu0 %402
        %v404 = vsel %vm385, %v359, 0.0
        %405 = vadd.xlane.f32.xlu0 %v404
        %v406 = vpop.xlane.xlu0 %405
        %v407 = vsel %vm385, %v360, 0.0
        %408 = vadd.xlane.f32.xlu0 %v407
        %v409 = vpop.xlane.xlu0 %408
        %v410 = vsel %vm385, %v361, 0.0
        %411 = vadd.xlane.f32.xlu0 %v410
        %v412 = vpop.xlane.xlu0 %411
        %v413 = vsel %vm385, %v362, 0.0
        %414 = vadd.xlane.f32.xlu0 %v413
        %v415 = vpop.xlane.xlu0 %414
        %v416 = vsel %vm385, %v363, 0.0
        %417 = vadd.xlane.f32.xlu0 %v416
        %v418 = vpop.xlane.xlu0 %417
        %v419 = vsel %vm385, %v364, 0.0
        %420 = vadd.xlane.f32.xlu0 %v419
        %v421 = vpop.xlane.xlu0 %420
        %v422 = vsel %vm385, %v365, 0.0
        %423 = vadd.xlane.f32.xlu0 %v422
        %v424 = vpop.xlane.xlu0 %423
        %v425 = vsel %vm385, %v366, 0.0
        %426 = vadd.xlane.f32.xlu0 %v425
        %v427 = vpop.xlane.xlu0 %426
        %v428 = vsel %vm385, %v367, 0.0
        %429 = vadd.xlane.f32.xlu0 %v428
        %v430 = vpop.xlane.xlu0 %429
        %v431 = vsel %vm385, %v368, 0.0
        %432 = vadd.xlane.f32.xlu0 %v431
        %v433 = vpop.xlane.xlu0 %432
        %v434 = vsel %vm385, %v369, 0.0
        %435 = vadd.xlane.f32.xlu0 %v434
        %v436 = vpop.xlane.xlu0 %435
        %v437 = vsel %vm385, %v370, 0.0
        %438 = vadd.xlane.f32.xlu0 %v437
        %v439 = vpop.xlane.xlu0 %438
        %v440 = vsel %vm385, %v371, 0.0
        %441 = vadd.xlane.f32.xlu0 %v440
        %v442 = vpop.xlane.xlu0 %441
        %v443 = vsel %vm385, %v372, 0.0
        %444 = vadd.xlane.f32.xlu0 %v443
        %v445 = vpop.xlane.xlu0 %444
        %v446 = vsel %vm385, %v373, 0.0
        %447 = vadd.xlane.f32.xlu0 %v446
        %v448 = vpop.xlane.xlu0 %447
        %v449 = vsel %vm385, %v374, 0.0
        %450 = vadd.xlane.f32.xlu0 %v449
        %v451 = vpop.xlane.xlu0 %450
        %v452 = vsel %vm385, %v375, 0.0
        %453 = vadd.xlane.f32.xlu0 %v452
        %v454 = vpop.xlane.xlu0 %453
        %v455 = vsel %vm385, %v376, 0.0
        %456 = vadd.xlane.f32.xlu0 %v455
        %v457 = vpop.xlane.xlu0 %456
        %v458 = vsel %vm385, %v377, 0.0
        %459 = vadd.xlane.f32.xlu0 %v458
        %v460 = vpop.xlane.xlu0 %459
        %v461 = vsel %vm385, %v378, 0.0
        %462 = vadd.xlane.f32.xlu0 %v461
        %v463 = vpop.xlane.xlu0 %462
        %v464 = vsel %vm385, %v379, 0.0
        %465 = vadd.xlane.f32.xlu0 %v464
        %v466 = vpop.xlane.xlu0 %465
        %v467 = vsel %vm385, %v380, 0.0
        %468 = vadd.xlane.f32.xlu0 %v467
        %v469 = vpop.xlane.xlu0 %468
        %v470 = vsel %vm385, %v381, 0.0
        %471 = vadd.xlane.f32.xlu0 %v470
        %v472 = vpop.xlane.xlu0 %471
        %v473 = vsel %vm385, %v382, 0.0
        %474 = vadd.xlane.f32.xlu0 %v473
        %v475 = vpop.xlane.xlu0 %474
        %v476 = vsel %vm385, %v383, 0.0
        %477 = vadd.xlane.f32.xlu0 %v476
        %v478 = vpop.xlane.xlu0 %477
        %v479 = vsel %vm385, %v384, 0.0
        %480 = vadd.xlane.f32.xlu0 %v479
        %v481 = vpop.xlane.xlu0 %480
        %v482 = vrcp.pop 32.0
        %v483 = vmul.f32 32.0, %v482
        %v484 = vsub.f32 1.0, %v483
        %v485 = vmul.f32 %v482, %v484
        %v486 = vadd.f32 %v482, %v485
        %vm487 = vweird.f32 %v482
        %v488 = vsel %vm487, %v482, %v486
        %v489 = vmul.f32 %v388, %v488
        %v490 = vmul.f32 %v391, %v488
        %v491 = vmul.f32 %v394, %v488
        %v492 = vmul.f32 %v397, %v488
        %v493 = vmul.f32 %v400, %v488
        %v494 = vmul.f32 %v403, %v488
        %v495 = vmul.f32 %v406, %v488
        %v496 = vmul.f32 %v409, %v488
        %v497 = vmul.f32 %v412, %v488
        %v498 = vmul.f32 %v415, %v488
        %v499 = vmul.f32 %v418, %v488
        %v500 = vmul.f32 %v421, %v488
        %v501 = vmul.f32 %v424, %v488
        %v502 = vmul.f32 %v427, %v488
        %v503 = vmul.f32 %v430, %v488
        %v504 = vmul.f32 %v433, %v488
        %v505 = vmul.f32 %v436, %v488
        %v506 = vmul.f32 %v439, %v488
        %v507 = vmul.f32 %v442, %v488
        %v508 = vmul.f32 %v445, %v488
        %v509 = vmul.f32 %v448, %v488
        %v510 = vmul.f32 %v451, %v488
        %v511 = vmul.f32 %v454, %v488
        %v512 = vmul.f32 %v457, %v488
        %v513 = vmul.f32 %v460, %v488
        %v514 = vmul.f32 %v463, %v488
        %v515 = vmul.f32 %v466, %v488
        %v516 = vmul.f32 %v469, %v488
        %v517 = vmul.f32 %v472, %v488
        %v518 = vmul.f32 %v475, %v488
        %v519 = vmul.f32 %v478, %v488
        %v520 = vmul.f32 %v481, %v488
        %v521 = vsub.f32 %v353, %v489
        %v522 = vsub.f32 %v354, %v490
        %v523 = vsub.f32 %v355, %v491
        %v524 = vsub.f32 %v356, %v492
        %v525 = vsub.f32 %v357, %v493
        %v526 = vsub.f32 %v358, %v494
        %v527 = vsub.f32 %v359, %v495
        %v528 = vsub.f32 %v360, %v496
        %v529 = vsub.f32 %v361, %v497
        %v530 = vsub.f32 %v362, %v498
        %v531 = vsub.f32 %v363, %v499
        %v532 = vsub.f32 %v364, %v500
        %v533 = vsub.f32 %v365, %v501
        %v534 = vsub.f32 %v366, %v502
        %v535 = vsub.f32 %v367, %v503
        %v536 = vsub.f32 %v368, %v504
        %v537 = vsub.f32 %v369, %v505
        %v538 = vsub.f32 %v370, %v506
        %v539 = vsub.f32 %v371, %v507
        %v540 = vsub.f32 %v372, %v508
        %v541 = vsub.f32 %v373, %v509
        %v542 = vsub.f32 %v374, %v510
        %v543 = vsub.f32 %v375, %v511
        %v544 = vsub.f32 %v376, %v512
        %v545 = vsub.f32 %v377, %v513
        %v546 = vsub.f32 %v378, %v514
        %v547 = vsub.f32 %v379, %v515
        %v548 = vsub.f32 %v380, %v516
        %v549 = vsub.f32 %v381, %v517
        %v550 = vsub.f32 %v382, %v518
        %v551 = vsub.f32 %v383, %v519
        %v552 = vsub.f32 %v384, %v520
        %v553 = vmul.f32 %v521, %v521
        %v554 = vmul.f32 %v522, %v522
        %v555 = vmul.f32 %v523, %v523
        %v556 = vmul.f32 %v524, %v524
        %v557 = vmul.f32 %v525, %v525
        %v558 = vmul.f32 %v526, %v526
        %v559 = vmul.f32 %v527, %v527
        %v560 = vmul.f32 %v528, %v528
        %v561 = vmul.f32 %v529, %v529
        %v562 = vmul.f32 %v530, %v530
        %v563 = vmul.f32 %v531, %v531
        %v564 = vmul.f32 %v532, %v532
        %v565 = vmul.f32 %v533, %v533
        %v566 = vmul.f32 %v534, %v534
        %v567 = vmul.f32 %v535, %v535
        %v568 = vmul.f32 %v536, %v536
        %v569 = vmul.f32 %v537, %v537
        %v570 = vmul.f32 %v538, %v538
        %v571 = vmul.f32 %v539, %v539
        %v572 = vmul.f32 %v540, %v540
        %v573 = vmul.f32 %v541, %v541
        %v574 = vmul.f32 %v542, %v542
        %v575 = vmul.f32 %v543, %v543
        %v576 = vmul.f32 %v544, %v544
        %v577 = vmul.f32 %v545, %v545
        %v578 = vmul.f32 %v546, %v546
        %v579 = vmul.f32 %v547, %v547
        %v580 = vmul.f32 %v548, %v548
        %v581 = vmul.f32 %v549, %v549
        %v582 = vmul.f32 %v550, %v550
        %v583 = vmul.f32 %v551, %v551
        %v584 = vmul.f32 %v552, %v552
        %v585 = vsel %vm385, %v553, 0.0
        %586 = vadd.xlane.f32.xlu0 %v585
        %v587 = vpop.xlane.xlu0 %586
        %v588 = vsel %vm385, %v554, 0.0
        %589 = vadd.xlane.f32.xlu0 %v588
        %v590 = vpop.xlane.xlu0 %589
        %v591 = vsel %vm385, %v555, 0.0
        %592 = vadd.xlane.f32.xlu0 %v591
        %v593 = vpop.xlane.xlu0 %592
        %v594 = vsel %vm385, %v556, 0.0
        %595 = vadd.xlane.f32.xlu0 %v594
        %v596 = vpop.xlane.xlu0 %595
        %v597 = vsel %vm385, %v557, 0.0
        %598 = vadd.xlane.f32.xlu0 %v597
        %v599 = vpop.xlane.xlu0 %598
        %v600 = vsel %vm385, %v558, 0.0
        %601 = vadd.xlane.f32.xlu0 %v600
        %v602 = vpop.xlane.xlu0 %601
        %v603 = vsel %vm385, %v559, 0.0
        %604 = vadd.xlane.f32.xlu0 %v603
        %v605 = vpop.xlane.xlu0 %604
        %v606 = vsel %vm385, %v560, 0.0
        %607 = vadd.xlane.f32.xlu0 %v606
        %v608 = vpop.xlane.xlu0 %607
        %v609 = vsel %vm385, %v561, 0.0
        %610 = vadd.xlane.f32.xlu0 %v609
        %v611 = vpop.xlane.xlu0 %610
        %v612 = vsel %vm385, %v562, 0.0
        %613 = vadd.xlane.f32.xlu0 %v612
        %v614 = vpop.xlane.xlu0 %613
        %v615 = vsel %vm385, %v563, 0.0
        %616 = vadd.xlane.f32.xlu0 %v615
        %v617 = vpop.xlane.xlu0 %616
        %v618 = vsel %vm385, %v564, 0.0
        %619 = vadd.xlane.f32.xlu0 %v618
        %v620 = vpop.xlane.xlu0 %619
        %v621 = vsel %vm385, %v565, 0.0
        %622 = vadd.xlane.f32.xlu0 %v621
        %v623 = vpop.xlane.xlu0 %622
        %v624 = vsel %vm385, %v566, 0.0
        %625 = vadd.xlane.f32.xlu0 %v624
        %v626 = vpop.xlane.xlu0 %625
        %v627 = vsel %vm385, %v567, 0.0
        %628 = vadd.xlane.f32.xlu0 %v627
        %v629 = vpop.xlane.xlu0 %628
        %v630 = vsel %vm385, %v568, 0.0
        %631 = vadd.xlane.f32.xlu0 %v630
        %v632 = vpop.xlane.xlu0 %631
        %v633 = vsel %vm385, %v569, 0.0
        %634 = vadd.xlane.f32.xlu0 %v633
        %v635 = vpop.xlane.xlu0 %634
        %v636 = vsel %vm385, %v570, 0.0
        %637 = vadd.xlane.f32.xlu0 %v636
        %v638 = vpop.xlane.xlu0 %637
        %v639 = vsel %vm385, %v571, 0.0
        %640 = vadd.xlane.f32.xlu0 %v639
        %v641 = vpop.xlane.xlu0 %640
        %v642 = vsel %vm385, %v572, 0.0
        %643 = vadd.xlane.f32.xlu0 %v642
        %v644 = vpop.xlane.xlu0 %643
        %v645 = vsel %vm385, %v573, 0.0
        %646 = vadd.xlane.f32.xlu0 %v645
        %v647 = vpop.xlane.xlu0 %646
        %v648 = vsel %vm385, %v574, 0.0
        %649 = vadd.xlane.f32.xlu0 %v648
        %v650 = vpop.xlane.xlu0 %649
        %v651 = vsel %vm385, %v575, 0.0
        %652 = vadd.xlane.f32.xlu0 %v651
        %v653 = vpop.xlane.xlu0 %652
        %v654 = vsel %vm385, %v576, 0.0
        %655 = vadd.xlane.f32.xlu0 %v654
        %v656 = vpop.xlane.xlu0 %655
        %v657 = vsel %vm385, %v577, 0.0
        %658 = vadd.xlane.f32.xlu0 %v657
        %v659 = vpop.xlane.xlu0 %658
        %v660 = vsel %vm385, %v578, 0.0
        %661 = vadd.xlane.f32.xlu0 %v660
        %v662 = vpop.xlane.xlu0 %661
        %v663 = vsel %vm385, %v579, 0.0
        %664 = vadd.xlane.f32.xlu0 %v663
        %v665 = vpop.xlane.xlu0 %664
        %v666 = vsel %vm385, %v580, 0.0
        %667 = vadd.xlane.f32.xlu0 %v666
        %v668 = vpop.xlane.xlu0 %667
        %v669 = vsel %vm385, %v581, 0.0
        %670 = vadd.xlane.f32.xlu0 %v669
        %v671 = vpop.xlane.xlu0 %670
        %v672 = vsel %vm385, %v582, 0.0
        %673 = vadd.xlane.f32.xlu0 %v672
        %v674 = vpop.xlane.xlu0 %673
        %v675 = vsel %vm385, %v583, 0.0
        %676 = vadd.xlane.f32.xlu0 %v675
        %v677 = vpop.xlane.xlu0 %676
        %v678 = vsel %vm385, %v584, 0.0
        %679 = vadd.xlane.f32.xlu0 %v678
        %v680 = vpop.xlane.xlu0 %679
        %v681 = vmul.f32 %v587, %v488
        %v682 = vmul.f32 %v590, %v488
        %v683 = vmul.f32 %v593, %v488
        %v684 = vmul.f32 %v596, %v488
        %v685 = vmul.f32 %v599, %v488
        %v686 = vmul.f32 %v602, %v488
        %v687 = vmul.f32 %v605, %v488
        %v688 = vmul.f32 %v608, %v488
        %v689 = vmul.f32 %v611, %v488
        %v690 = vmul.f32 %v614, %v488
        %v691 = vmul.f32 %v617, %v488
        %v692 = vmul.f32 %v620, %v488
        %v693 = vmul.f32 %v623, %v488
        %v694 = vmul.f32 %v626, %v488
        %v695 = vmul.f32 %v629, %v488
        %v696 = vmul.f32 %v632, %v488
        %v697 = vmul.f32 %v635, %v488
        %v698 = vmul.f32 %v638, %v488
        %v699 = vmul.f32 %v641, %v488
        %v700 = vmul.f32 %v644, %v488
        %v701 = vmul.f32 %v647, %v488
        %v702 = vmul.f32 %v650, %v488
        %v703 = vmul.f32 %v653, %v488
        %v704 = vmul.f32 %v656, %v488
        %v705 = vmul.f32 %v659, %v488
        %v706 = vmul.f32 %v662, %v488
        %v707 = vmul.f32 %v665, %v488
        %v708 = vmul.f32 %v668, %v488
        %v709 = vmul.f32 %v671, %v488
        %v710 = vmul.f32 %v674, %v488
        %v711 = vmul.f32 %v677, %v488
        %v712 = vmul.f32 %v680, %v488
        %v713 = vadd.f32 %v681, 1e-05
        %v714 = vadd.f32 %v682, 1e-05
        %v715 = vadd.f32 %v683, 1e-05
        %v716 = vadd.f32 %v684, 1e-05
        %v717 = vadd.f32 %v685, 1e-05
        %v718 = vadd.f32 %v686, 1e-05
        %v719 = vadd.f32 %v687, 1e-05
        %v720 = vadd.f32 %v688, 1e-05
        %v721 = vadd.f32 %v689, 1e-05
        %v722 = vadd.f32 %v690, 1e-05
        %v723 = vadd.f32 %v691, 1e-05
        %v724 = vadd.f32 %v692, 1e-05
        %v725 = vadd.f32 %v693, 1e-05
        %v726 = vadd.f32 %v694, 1e-05
        %v727 = vadd.f32 %v695, 1e-05
        %v728 = vadd.f32 %v696, 1e-05
        %v729 = vadd.f32 %v697, 1e-05
        %v730 = vadd.f32 %v698, 1e-05
        %v731 = vadd.f32 %v699, 1e-05
        %v732 = vadd.f32 %v700, 1e-05
        %v733 = vadd.f32 %v701, 1e-05
        %v734 = vadd.f32 %v702, 1e-05
        %v735 = vadd.f32 %v703, 1e-05
        %v736 = vadd.f32 %v704, 1e-05
        %v737 = vadd.f32 %v705, 1e-05
        %v738 = vadd.f32 %v706, 1e-05
        %v739 = vadd.f32 %v707, 1e-05
        %v740 = vadd.f32 %v708, 1e-05
        %v741 = vadd.f32 %v709, 1e-05
        %v742 = vadd.f32 %v710, 1e-05
        %v743 = vadd.f32 %v711, 1e-05
        %v744 = vadd.f32 %v712, 1e-05
        %v745 = vrsqrt.pop %v713
        %v746 = vmul.f32 %v745, %v713
        %v747 = vmul.f32 %v746, %v745
        %v748 = vmul.f32 0.5, %v747
        %v749 = vsub.f32 1.5, %v748
        %v750 = vmul.f32 %v745, %v749
        %vm751 = vweird.f32 %v713
        %vm752 = vweird.f32 %v745
        %vm753 = vmor %vm751, %vm752
        %v754 = vsel %vm753, %v745, %v750
        %v755 = vrsqrt.pop %v714
        %v756 = vmul.f32 %v755, %v714
        %v757 = vmul.f32 %v756, %v755
        %v758 = vmul.f32 0.5, %v757
        %v759 = vsub.f32 1.5, %v758
        %v760 = vmul.f32 %v755, %v759
        %vm761 = vweird.f32 %v714
        %vm762 = vweird.f32 %v755
        %vm763 = vmor %vm761, %vm762
        %v764 = vsel %vm763, %v755, %v760
        %v765 = vrsqrt.pop %v715
        %v766 = vmul.f32 %v765, %v715
        %v767 = vmul.f32 %v766, %v765
        %v768 = vmul.f32 0.5, %v767
        %v769 = vsub.f32 1.5, %v768
        %v770 = vmul.f32 %v765, %v769
        %vm771 = vweird.f32 %v715
        %vm772 = vweird.f32 %v765
        %vm773 = vmor %vm771, %vm772
        %v774 = vsel %vm773, %v765, %v770
        %v775 = vrsqrt.pop %v716
        %v776 = vmul.f32 %v775, %v716
        %v777 = vmul.f32 %v776, %v775
        %v778 = vmul.f32 0.5, %v777
        %v779 = vsub.f32 1.5, %v778
        %v780 = vmul.f32 %v775, %v779
        %vm781 = vweird.f32 %v716
        %vm782 = vweird.f32 %v775
        %vm783 = vmor %vm781, %vm782
        %v784 = vsel %vm783, %v775, %v780
        %v785 = vrsqrt.pop %v717
        %v786 = vmul.f32 %v785, %v717
        %v787 = vmul.f32 %v786, %v785
        %v788 = vmul.f32 0.5, %v787
        %v789 = vsub.f32 1.5, %v788
        %v790 = vmul.f32 %v785, %v789
        %vm791 = vweird.f32 %v717
        %vm792 = vweird.f32 %v785
        %vm793 = vmor %vm791, %vm792
        %v794 = vsel %vm793, %v785, %v790
        %v795 = vrsqrt.pop %v718
        %v796 = vmul.f32 %v795, %v718
        %v797 = vmul.f32 %v796, %v795
        %v798 = vmul.f32 0.5, %v797
        %v799 = vsub.f32 1.5, %v798
        %v800 = vmul.f32 %v795, %v799
        %vm801 = vweird.f32 %v718
        %vm802 = vweird.f32 %v795
        %vm803 = vmor %vm801, %vm802
        %v804 = vsel %vm803, %v795, %v800
        %v805 = vrsqrt.pop %v719
        %v806 = vmul.f32 %v805, %v719
        %v807 = vmul.f32 %v806, %v805
        %v808 = vmul.f32 0.5, %v807
        %v809 = vsub.f32 1.5, %v808
        %v810 = vmul.f32 %v805, %v809
        %vm811 = vweird.f32 %v719
        %vm812 = vweird.f32 %v805
        %vm813 = vmor %vm811, %vm812
        %v814 = vsel %vm813, %v805, %v810
        %v815 = vrsqrt.pop %v720
        %v816 = vmul.f32 %v815, %v720
        %v817 = vmul.f32 %v816, %v815
        %v818 = vmul.f32 0.5, %v817
        %v819 = vsub.f32 1.5, %v818
        %v820 = vmul.f32 %v815, %v819
        %vm821 = vweird.f32 %v720
        %vm822 = vweird.f32 %v815
        %vm823 = vmor %vm821, %vm822
        %v824 = vsel %vm823, %v815, %v820
        %v825 = vrsqrt.pop %v721
        %v826 = vmul.f32 %v825, %v721
        %v827 = vmul.f32 %v826, %v825
        %v828 = vmul.f32 0.5, %v827
        %v829 = vsub.f32 1.5, %v828
        %v830 = vmul.f32 %v825, %v829
        %vm831 = vweird.f32 %v721
        %vm832 = vweird.f32 %v825
        %vm833 = vmor %vm831, %vm832
        %v834 = vsel %vm833, %v825, %v830
        %v835 = vrsqrt.pop %v722
        %v836 = vmul.f32 %v835, %v722
        %v837 = vmul.f32 %v836, %v835
        %v838 = vmul.f32 0.5, %v837
        %v839 = vsub.f32 1.5, %v838
        %v840 = vmul.f32 %v835, %v839
        %vm841 = vweird.f32 %v722
        %vm842 = vweird.f32 %v835
        %vm843 = vmor %vm841, %vm842
        %v844 = vsel %vm843, %v835, %v840
        %v845 = vrsqrt.pop %v723
        %v846 = vmul.f32 %v845, %v723
        %v847 = vmul.f32 %v846, %v845
        %v848 = vmul.f32 0.5, %v847
        %v849 = vsub.f32 1.5, %v848
        %v850 = vmul.f32 %v845, %v849
        %vm851 = vweird.f32 %v723
        %vm852 = vweird.f32 %v845
        %vm853 = vmor %vm851, %vm852
        %v854 = vsel %vm853, %v845, %v850
        %v855 = vrsqrt.pop %v724
        %v856 = vmul.f32 %v855, %v724
        %v857 = vmul.f32 %v856, %v855
        %v858 = vmul.f32 0.5, %v857
        %v859 = vsub.f32 1.5, %v858
        %v860 = vmul.f32 %v855, %v859
        %vm861 = vweird.f32 %v724
        %vm862 = vweird.f32 %v855
        %vm863 = vmor %vm861, %vm862
        %v864 = vsel %vm863, %v855, %v860
        %v865 = vrsqrt.pop %v725
        %v866 = vmul.f32 %v865, %v725
        %v867 = vmul.f32 %v866, %v865
        %v868 = vmul.f32 0.5, %v867
        %v869 = vsub.f32 1.5, %v868
        %v870 = vmul.f32 %v865, %v869
        %vm871 = vweird.f32 %v725
        %vm872 = vweird.f32 %v865
        %vm873 = vmor %vm871, %vm872
        %v874 = vsel %vm873, %v865, %v870
        %v875 = vrsqrt.pop %v726
        %v876 = vmul.f32 %v875, %v726
        %v877 = vmul.f32 %v876, %v875
        %v878 = vmul.f32 0.5, %v877
        %v879 = vsub.f32 1.5, %v878
        %v880 = vmul.f32 %v875, %v879
        %vm881 = vweird.f32 %v726
        %vm882 = vweird.f32 %v875
        %vm883 = vmor %vm881, %vm882
        %v884 = vsel %vm883, %v875, %v880
        %v885 = vrsqrt.pop %v727
        %v886 = vmul.f32 %v885, %v727
        %v887 = vmul.f32 %v886, %v885
        %v888 = vmul.f32 0.5, %v887
        %v889 = vsub.f32 1.5, %v888
        %v890 = vmul.f32 %v885, %v889
        %vm891 = vweird.f32 %v727
        %vm892 = vweird.f32 %v885
        %vm893 = vmor %vm891, %vm892
        %v894 = vsel %vm893, %v885, %v890
        %v895 = vrsqrt.pop %v728
        %v896 = vmul.f32 %v895, %v728
        %v897 = vmul.f32 %v896, %v895
        %v898 = vmul.f32 0.5, %v897
        %v899 = vsub.f32 1.5, %v898
        %v900 = vmul.f32 %v895, %v899
        %vm901 = vweird.f32 %v728
        %vm902 = vweird.f32 %v895
        %vm903 = vmor %vm901, %vm902
        %v904 = vsel %vm903, %v895, %v900
        %v905 = vrsqrt.pop %v729
        %v906 = vmul.f32 %v905, %v729
        %v907 = vmul.f32 %v906, %v905
        %v908 = vmul.f32 0.5, %v907
        %v909 = vsub.f32 1.5, %v908
        %v910 = vmul.f32 %v905, %v909
        %vm911 = vweird.f32 %v729
        %vm912 = vweird.f32 %v905
        %vm913 = vmor %vm911, %vm912
        %v914 = vsel %vm913, %v905, %v910
        %v915 = vrsqrt.pop %v730
        %v916 = vmul.f32 %v915, %v730
        %v917 = vmul.f32 %v916, %v915
        %v918 = vmul.f32 0.5, %v917
        %v919 = vsub.f32 1.5, %v918
        %v920 = vmul.f32 %v915, %v919
        %vm921 = vweird.f32 %v730
        %vm922 = vweird.f32 %v915
        %vm923 = vmor %vm921, %vm922
        %v924 = vsel %vm923, %v915, %v920
        %v925 = vrsqrt.pop %v731
        %v926 = vmul.f32 %v925, %v731
        %v927 = vmul.f32 %v926, %v925
        %v928 = vmul.f32 0.5, %v927
        %v929 = vsub.f32 1.5, %v928
        %v930 = vmul.f32 %v925, %v929
        %vm931 = vweird.f32 %v731
        %vm932 = vweird.f32 %v925
        %vm933 = vmor %vm931, %vm932
        %v934 = vsel %vm933, %v925, %v930
        %v935 = vrsqrt.pop %v732
        %v936 = vmul.f32 %v935, %v732
        %v937 = vmul.f32 %v936, %v935
        %v938 = vmul.f32 0.5, %v937
        %v939 = vsub.f32 1.5, %v938
        %v940 = vmul.f32 %v935, %v939
        %vm941 = vweird.f32 %v732
        %vm942 = vweird.f32 %v935
        %vm943 = vmor %vm941, %vm942
        %v944 = vsel %vm943, %v935, %v940
        %v945 = vrsqrt.pop %v733
        %v946 = vmul.f32 %v945, %v733
        %v947 = vmul.f32 %v946, %v945
        %v948 = vmul.f32 0.5, %v947
        %v949 = vsub.f32 1.5, %v948
        %v950 = vmul.f32 %v945, %v949
        %vm951 = vweird.f32 %v733
        %vm952 = vweird.f32 %v945
        %vm953 = vmor %vm951, %vm952
        %v954 = vsel %vm953, %v945, %v950
        %v955 = vrsqrt.pop %v734
        %v956 = vmul.f32 %v955, %v734
        %v957 = vmul.f32 %v956, %v955
        %v958 = vmul.f32 0.5, %v957
        %v959 = vsub.f32 1.5, %v958
        %v960 = vmul.f32 %v955, %v959
        %vm961 = vweird.f32 %v734
        %vm962 = vweird.f32 %v955
        %vm963 = vmor %vm961, %vm962
        %v964 = vsel %vm963, %v955, %v960
        %v965 = vrsqrt.pop %v735
        %v966 = vmul.f32 %v965, %v735
        %v967 = vmul.f32 %v966, %v965
        %v968 = vmul.f32 0.5, %v967
        %v969 = vsub.f32 1.5, %v968
        %v970 = vmul.f32 %v965, %v969
        %vm971 = vweird.f32 %v735
        %vm972 = vweird.f32 %v965
        %vm973 = vmor %vm971, %vm972
        %v974 = vsel %vm973, %v965, %v970
        %v975 = vrsqrt.pop %v736
        %v976 = vmul.f32 %v975, %v736
        %v977 = vmul.f32 %v976, %v975
        %v978 = vmul.f32 0.5, %v977
        %v979 = vsub.f32 1.5, %v978
        %v980 = vmul.f32 %v975, %v979
        %vm981 = vweird.f32 %v736
        %vm982 = vweird.f32 %v975
        %vm983 = vmor %vm981, %vm982
        %v984 = vsel %vm983, %v975, %v980
        %v985 = vrsqrt.pop %v737
        %v986 = vmul.f32 %v985, %v737
        %v987 = vmul.f32 %v986, %v985
        %v988 = vmul.f32 0.5, %v987
        %v989 = vsub.f32 1.5, %v988
        %v990 = vmul.f32 %v985, %v989
        %vm991 = vweird.f32 %v737
        %vm992 = vweird.f32 %v985
        %vm993 = vmor %vm991, %vm992
        %v994 = vsel %vm993, %v985, %v990
        %v995 = vrsqrt.pop %v738
        %v996 = vmul.f32 %v995, %v738
        %v997 = vmul.f32 %v996, %v995
        %v998 = vmul.f32 0.5, %v997
        %v999 = vsub.f32 1.5, %v998
        %v1000 = vmul.f32 %v995, %v999
        %vm1001 = vweird.f32 %v738
        %vm1002 = vweird.f32 %v995
        %vm1003 = vmor %vm1001, %vm1002
        %v1004 = vsel %vm1003, %v995, %v1000
        %v1005 = vrsqrt.pop %v739
        %v1006 = vmul.f32 %v1005, %v739
        %v1007 = vmul.f32 %v1006, %v1005
        %v1008 = vmul.f32 0.5, %v1007
        %v1009 = vsub.f32 1.5, %v1008
        %v1010 = vmul.f32 %v1005, %v1009
        %vm1011 = vweird.f32 %v739
        %vm1012 = vweird.f32 %v1005
        %vm1013 = vmor %vm1011, %vm1012
        %v1014 = vsel %vm1013, %v1005, %v1010
        %v1015 = vrsqrt.pop %v740
        %v1016 = vmul.f32 %v1015, %v740
        %v1017 = vmul.f32 %v1016, %v1015
        %v1018 = vmul.f32 0.5, %v1017
        %v1019 = vsub.f32 1.5, %v1018
        %v1020 = vmul.f32 %v1015, %v1019
        %vm1021 = vweird.f32 %v740
        %vm1022 = vweird.f32 %v1015
        %vm1023 = vmor %vm1021, %vm1022
        %v1024 = vsel %vm1023, %v1015, %v1020
        %v1025 = vrsqrt.pop %v741
        %v1026 = vmul.f32 %v1025, %v741
        %v1027 = vmul.f32 %v1026, %v1025
        %v1028 = vmul.f32 0.5, %v1027
        %v1029 = vsub.f32 1.5, %v1028
        %v1030 = vmul.f32 %v1025, %v1029
        %vm1031 = vweird.f32 %v741
        %vm1032 = vweird.f32 %v1025
        %vm1033 = vmor %vm1031, %vm1032
        %v1034 = vsel %vm1033, %v1025, %v1030
        %v1035 = vrsqrt.pop %v742
        %v1036 = vmul.f32 %v1035, %v742
        %v1037 = vmul.f32 %v1036, %v1035
        %v1038 = vmul.f32 0.5, %v1037
        %v1039 = vsub.f32 1.5, %v1038
        %v1040 = vmul.f32 %v1035, %v1039
        %vm1041 = vweird.f32 %v742
        %vm1042 = vweird.f32 %v1035
        %vm1043 = vmor %vm1041, %vm1042
        %v1044 = vsel %vm1043, %v1035, %v1040
        %v1045 = vrsqrt.pop %v743
        %v1046 = vmul.f32 %v1045, %v743
        %v1047 = vmul.f32 %v1046, %v1045
        %v1048 = vmul.f32 0.5, %v1047
        %v1049 = vsub.f32 1.5, %v1048
        %v1050 = vmul.f32 %v1045, %v1049
        %vm1051 = vweird.f32 %v743
        %vm1052 = vweird.f32 %v1045
        %vm1053 = vmor %vm1051, %vm1052
        %v1054 = vsel %vm1053, %v1045, %v1050
        %v1055 = vrsqrt.pop %v744
        %v1056 = vmul.f32 %v1055, %v744
        %v1057 = vmul.f32 %v1056, %v1055
        %v1058 = vmul.f32 0.5, %v1057
        %v1059 = vsub.f32 1.5, %v1058
        %v1060 = vmul.f32 %v1055, %v1059
        %vm1061 = vweird.f32 %v744
        %vm1062 = vweird.f32 %v1055
        %vm1063 = vmor %vm1061, %vm1062
        %v1064 = vsel %vm1063, %v1055, %v1060
        %v1065 = vmul.f32 %v521, %v754
        %v1066 = vmul.f32 %v522, %v764
        %v1067 = vmul.f32 %v523, %v774
        %v1068 = vmul.f32 %v524, %v784
        %v1069 = vmul.f32 %v525, %v794
        %v1070 = vmul.f32 %v526, %v804
        %v1071 = vmul.f32 %v527, %v814
        %v1072 = vmul.f32 %v528, %v824
        %v1073 = vmul.f32 %v529, %v834
        %v1074 = vmul.f32 %v530, %v844
        %v1075 = vmul.f32 %v531, %v854
        %v1076 = vmul.f32 %v532, %v864
        %v1077 = vmul.f32 %v533, %v874
        %v1078 = vmul.f32 %v534, %v884
        %v1079 = vmul.f32 %v535, %v894
        %v1080 = vmul.f32 %v536, %v904
        %v1081 = vmul.f32 %v537, %v914
        %v1082 = vmul.f32 %v538, %v924
        %v1083 = vmul.f32 %v539, %v934
        %v1084 = vmul.f32 %v540, %v944
        %v1085 = vmul.f32 %v541, %v954
        %v1086 = vmul.f32 %v542, %v964
        %v1087 = vmul.f32 %v543, %v974
        %v1088 = vmul.f32 %v544, %v984
        %v1089 = vmul.f32 %v545, %v994
        %v1090 = vmul.f32 %v546, %v1004
        %v1091 = vmul.f32 %v547, %v1014
        %v1092 = vmul.f32 %v548, %v1024
        %v1093 = vmul.f32 %v549, %v1034
        %v1094 = vmul.f32 %v550, %v1044
        %v1095 = vmul.f32 %v551, %v1054
        %v1096 = vmul.f32 %v552, %v1064
        %v1097 = vld [vmem:[%s4] sm:$0x1]
        %v1099 = vperm.slane %v1097, 0
        %v1101 = vmul.f32 %v1065, %v1099
        %v1102 = vmul.f32 %v1066, %v1099
        %v1103 = vmul.f32 %v1067, %v1099
        %v1104 = vmul.f32 %v1068, %v1099
        %v1105 = vmul.f32 %v1069, %v1099
        %v1106 = vmul.f32 %v1070, %v1099
        %v1107 = vmul.f32 %v1071, %v1099
        %v1108 = vmul.f32 %v1072, %v1099
        %v1109 = vmul.f32 %v1073, %v1099
        %v1110 = vmul.f32 %v1074, %v1099
        %v1111 = vmul.f32 %v1075, %v1099
        %v1112 = vmul.f32 %v1076, %v1099
        %v1113 = vmul.f32 %v1077, %v1099
        %v1114 = vmul.f32 %v1078, %v1099
        %v1115 = vmul.f32 %v1079, %v1099
        %v1116 = vmul.f32 %v1080, %v1099
        %v1117 = vmul.f32 %v1081, %v1099
        %v1118 = vmul.f32 %v1082, %v1099
        %v1119 = vmul.f32 %v1083, %v1099
        %v1120 = vmul.f32 %v1084, %v1099
        %v1121 = vmul.f32 %v1085, %v1099
        %v1122 = vmul.f32 %v1086, %v1099
        %v1123 = vmul.f32 %v1087, %v1099
        %v1124 = vmul.f32 %v1088, %v1099
        %v1125 = vmul.f32 %v1089, %v1099
        %v1126 = vmul.f32 %v1090, %v1099
        %v1127 = vmul.f32 %v1091, %v1099
        %v1128 = vmul.f32 %v1092, %v1099
        %v1129 = vmul.f32 %v1093, %v1099
        %v1130 = vmul.f32 %v1094, %v1099
        %v1131 = vmul.f32 %v1095, %v1099
        %v1132 = vmul.f32 %v1096, %v1099
        %v1133 = vld [vmem:[%s5] sm:$0x1]
        %v1135 = vperm.slane %v1133, 0
        %v1137 = vadd.f32 %v1101, %v1135
        %v1138 = vadd.f32 %v1102, %v1135
        %v1139 = vadd.f32 %v1103, %v1135
        %v1140 = vadd.f32 %v1104, %v1135
        %v1141 = vadd.f32 %v1105, %v1135
        %v1142 = vadd.f32 %v1106, %v1135
        %v1143 = vadd.f32 %v1107, %v1135
        %v1144 = vadd.f32 %v1108, %v1135
        %v1145 = vadd.f32 %v1109, %v1135
        %v1146 = vadd.f32 %v1110, %v1135
        %v1147 = vadd.f32 %v1111, %v1135
        %v1148 = vadd.f32 %v1112, %v1135
        %v1149 = vadd.f32 %v1113, %v1135
        %v1150 = vadd.f32 %v1114, %v1135
        %v1151 = vadd.f32 %v1115, %v1135
        %v1152 = vadd.f32 %v1116, %v1135
        %v1153 = vadd.f32 %v1117, %v1135
        %v1154 = vadd.f32 %v1118, %v1135
        %v1155 = vadd.f32 %v1119, %v1135
        %v1156 = vadd.f32 %v1120, %v1135
        %v1157 = vadd.f32 %v1121, %v1135
        %v1158 = vadd.f32 %v1122, %v1135
        %v1159 = vadd.f32 %v1123, %v1135
        %v1160 = vadd.f32 %v1124, %v1135
        %v1161 = vadd.f32 %v1125, %v1135
        %v1162 = vadd.f32 %v1126, %v1135
        %v1163 = vadd.f32 %v1127, %v1135
        %v1164 = vadd.f32 %v1128, %v1135
        %v1165 = vadd.f32 %v1129, %v1135
        %v1166 = vadd.f32 %v1130, %v1135
        %v1167 = vadd.f32 %v1131, %v1135
        %v1168 = vadd.f32 %v1132, %v1135
        %v1169 = vpack.c.bf16 %v1138, %v1137
        %v1170 = vpack.c.bf16 %v1140, %v1139
        %v1171 = vpack.c.bf16 %v1142, %v1141
        %v1172 = vpack.c.bf16 %v1144, %v1143
        %v1173 = vpack.c.bf16 %v1146, %v1145
        %v1174 = vpack.c.bf16 %v1148, %v1147
        %v1175 = vpack.c.bf16 %v1150, %v1149
        %v1176 = vpack.c.bf16 %v1152, %v1151
        %v1177 = vpack.c.bf16 %v1154, %v1153
        %v1178 = vpack.c.bf16 %v1156, %v1155
        %v1179 = vpack.c.bf16 %v1158, %v1157
        %v1180 = vpack.c.bf16 %v1160, %v1159
        %v1181 = vpack.c.bf16 %v1162, %v1161
        %v1182 = vpack.c.bf16 %v1164, %v1163
        %v1183 = vpack.c.bf16 %v1166, %v1165
        %v1184 = vpack.c.bf16 %v1168, %v1167
        %v1185 = vld [vmem:[#allocation7] sm:$0xf]
        %v1186 = vld [vmem:[#allocation7 + $0x4] sm:$0xf]
        %v1187 = vld [vmem:[#allocation7 + $0x8] sm:$0xf]
        %v1188 = vld [vmem:[#allocation7 + $0xc] sm:$0xf]
        %v1193 = vunpack.c.l.b16 %v1185
        %v1194 = vunpack.c.l.b16 %v1186
        %v1195 = vunpack.c.l.b16 %v1187
        %v1196 = vunpack.c.l.b16 %v1188
        %v1197 = vpack.c.b16 %v1194, %v1193
        %v1198 = vpack.c.b16 %v1196, %v1195
        %v1202 = vsel %vm385, %v1169, 0
        %v1205 = vsel %vm385, %v1170, 0
        %v1208 = vsel %vm385, %v1171, 0
        %v1211 = vsel %vm385, %v1172, 0
        %v1214 = vsel %vm385, %v1173, 0
        %v1217 = vsel %vm385, %v1174, 0
        %v1220 = vsel %vm385, %v1175, 0
        %v1223 = vsel %vm385, %v1176, 0
        %v1226 = vsel %vm385, %v1177, 0
        %v1229 = vsel %vm385, %v1178, 0
        %v1232 = vsel %vm385, %v1179, 0
        %v1235 = vsel %vm385, %v1180, 0
        %v1238 = vsel %vm385, %v1181, 0
        %v1241 = vsel %vm385, %v1182, 0
        %v1244 = vsel %vm385, %v1183, 0
        %v1247 = vsel %vm385, %v1184, 0
        %1249 = vmatpush.bf16.msra.mxu0 0
        %1250 = vmatpush.bf16.msra.mxu0 0
        %1251 = vmatpush.bf16.msra.mxu0 0
        %1252 = vmatpush.bf16.msra.mxu0 0
        %1253 = vmatpush.bf16.msra.mxu0 0
        %1254 = vmatpush.bf16.msra.mxu0 0
        %1255 = vmatpush.bf16.msra.mxu0 %v1198
        %1256 = vmatpush.bf16.msra.mxu0 %v1197
        %1257 = vmatmul.bf16.gmra.mxu0 %v1202
        %v1258 = vpop.f32.mrf.mxu0
        %v1259 = vadd.f32 0.0, %v1258
        %v1260 = vpop.f32.mrf.mxu0
        %v1261 = vadd.f32 0.0, %v1260
        %1262 = vmatmul.bf16.gmra.mxu0 %v1205
        %v1263 = vpop.f32.mrf.mxu0
        %v1264 = vadd.f32 0.0, %v1263
        %v1265 = vpop.f32.mrf.mxu0
        %v1266 = vadd.f32 0.0, %v1265
        %1267 = vmatmul.bf16.gmra.mxu0 %v1208
        %v1268 = vpop.f32.mrf.mxu0
        %v1269 = vadd.f32 0.0, %v1268
        %v1270 = vpop.f32.mrf.mxu0
        %v1271 = vadd.f32 0.0, %v1270
        %1272 = vmatmul.bf16.gmra.mxu0 %v1211
        %v1273 = vpop.f32.mrf.mxu0
        %v1274 = vadd.f32 0.0, %v1273
        %v1275 = vpop.f32.mrf.mxu0
        %v1276 = vadd.f32 0.0, %v1275
        %1277 = vmatmul.bf16.gmra.mxu0 %v1214
        %v1278 = vpop.f32.mrf.mxu0
        %v1279 = vadd.f32 0.0, %v1278
        %v1280 = vpop.f32.mrf.mxu0
        %v1281 = vadd.f32 0.0, %v1280
        %1282 = vmatmul.bf16.gmra.mxu0 %v1217
        %v1283 = vpop.f32.mrf.mxu0
        %v1284 = vadd.f32 0.0, %v1283
        %v1285 = vpop.f32.mrf.mxu0
        %v1286 = vadd.f32 0.0, %v1285
        %1287 = vmatmul.bf16.gmra.mxu0 %v1220
        %v1288 = vpop.f32.mrf.mxu0
        %v1289 = vadd.f32 0.0, %v1288
        %v1290 = vpop.f32.mrf.mxu0
        %v1291 = vadd.f32 0.0, %v1290
        %1292 = vmatmul.bf16.gmra.mxu0 %v1223
        %v1293 = vpop.f32.mrf.mxu0
        %v1294 = vadd.f32 0.0, %v1293
        %v1295 = vpop.f32.mrf.mxu0
        %v1296 = vadd.f32 0.0, %v1295
        %1297 = vmatmul.bf16.gmra.mxu0 %v1226
        %v1298 = vpop.f32.mrf.mxu0
        %v1299 = vadd.f32 0.0, %v1298
        %v1300 = vpop.f32.mrf.mxu0
        %v1301 = vadd.f32 0.0, %v1300
        %1302 = vmatmul.bf16.gmra.mxu0 %v1229
        %v1303 = vpop.f32.mrf.mxu0
        %v1304 = vadd.f32 0.0, %v1303
        %v1305 = vpop.f32.mrf.mxu0
        %v1306 = vadd.f32 0.0, %v1305
        %1307 = vmatmul.bf16.gmra.mxu0 %v1232
        %v1308 = vpop.f32.mrf.mxu0
        %v1309 = vadd.f32 0.0, %v1308
        %v1310 = vpop.f32.mrf.mxu0
        %v1311 = vadd.f32 0.0, %v1310
        %1312 = vmatmul.bf16.gmra.mxu0 %v1235
        %v1313 = vpop.f32.mrf.mxu0
        %v1314 = vadd.f32 0.0, %v1313
        %v1315 = vpop.f32.mrf.mxu0
        %v1316 = vadd.f32 0.0, %v1315
        %1317 = vmatmul.bf16.gmra.mxu0 %v1238
        %v1318 = vpop.f32.mrf.mxu0
        %v1319 = vadd.f32 0.0, %v1318
        %v1320 = vpop.f32.mrf.mxu0
        %v1321 = vadd.f32 0.0, %v1320
        %1322 = vmatmul.bf16.gmra.mxu0 %v1241
        %v1323 = vpop.f32.mrf.mxu0
        %v1324 = vadd.f32 0.0, %v1323
        %v1325 = vpop.f32.mrf.mxu0
        %v1326 = vadd.f32 0.0, %v1325
        %1327 = vmatmul.bf16.gmra.mxu0 %v1244
        %v1328 = vpop.f32.mrf.mxu0
        %v1329 = vadd.f32 0.0, %v1328
        %v1330 = vpop.f32.mrf.mxu0
        %v1331 = vadd.f32 0.0, %v1330
        %1332 = vmatmul.bf16.gmra.mxu0 %v1247
        %v1333 = vpop.f32.mrf.mxu0
        %v1334 = vadd.f32 0.0, %v1333
        %v1335 = vpop.f32.mrf.mxu0
        %v1336 = vadd.f32 0.0, %v1335
        %1337 = vdwg.mxu0
        %vm1338 = vcmask 785408
        %1339 = vst.msk [vmem:[#allocation2] sm:$0xff] %vm1338, %v1259
        %1340 = vst.msk [vmem:[#allocation2 + $0x8] sm:$0xff] %vm1338, %v1261
        %1341 = vst.msk [vmem:[#allocation2 + $0x10] sm:$0xff] %vm1338, %v1264
        %1342 = vst.msk [vmem:[#allocation2 + $0x18] sm:$0xff] %vm1338, %v1266
        %1343 = vst.msk [vmem:[#allocation2 + $0x20] sm:$0xff] %vm1338, %v1269
        %1344 = vst.msk [vmem:[#allocation2 + $0x28] sm:$0xff] %vm1338, %v1271
        %1345 = vst.msk [vmem:[#allocation2 + $0x30] sm:$0xff] %vm1338, %v1274
        %1346 = vst.msk [vmem:[#allocation2 + $0x38] sm:$0xff] %vm1338, %v1276
        %1347 = vst.msk [vmem:[#allocation2 + $0x40] sm:$0xff] %vm1338, %v1279
        %1348 = vst.msk [vmem:[#allocation2 + $0x48] sm:$0xff] %vm1338, %v1281
        %1349 = vst.msk [vmem:[#allocation2 + $0x50] sm:$0xff] %vm1338, %v1284
        %1350 = vst.msk [vmem:[#allocation2 + $0x58] sm:$0xff] %vm1338, %v1286
        %1351 = vst.msk [vmem:[#allocation2 + $0x60] sm:$0xff] %vm1338, %v1289
        %1352 = vst.msk [vmem:[#allocation2 + $0x68] sm:$0xff] %vm1338, %v1291
        %1353 = vst.msk [vmem:[#allocation2 + $0x70] sm:$0xff] %vm1338, %v1294
        %1354 = vst.msk [vmem:[#allocation2 + $0x78] sm:$0xff] %vm1338, %v1296
        %1355 = vst.msk [vmem:[#allocation2 + $0x80] sm:$0xff] %vm1338, %v1299
        %1356 = vst.msk [vmem:[#allocation2 + $0x88] sm:$0xff] %vm1338, %v1301
        %1357 = vst.msk [vmem:[#allocation2 + $0x90] sm:$0xff] %vm1338, %v1304
        %1358 = vst.msk [vmem:[#allocation2 + $0x98] sm:$0xff] %vm1338, %v1306
        %1359 = vst.msk [vmem:[#allocation2 + $0xa0] sm:$0xff] %vm1338, %v1309
        %1360 = vst.msk [vmem:[#allocation2 + $0xa8] sm:$0xff] %vm1338, %v1311
        %1361 = vst.msk [vmem:[#allocation2 + $0xb0] sm:$0xff] %vm1338, %v1314
        %1362 = vst.msk [vmem:[#allocation2 + $0xb8] sm:$0xff] %vm1338, %v1316
        %1363 = vst.msk [vmem:[#allocation2 + $0xc0] sm:$0xff] %vm1338, %v1319
        %1364 = vst.msk [vmem:[#allocation2 + $0xc8] sm:$0xff] %vm1338, %v1321
        %1365 = vst.msk [vmem:[#allocation2 + $0xd0] sm:$0xff] %vm1338, %v1324
        %1366 = vst.msk [vmem:[#allocation2 + $0xd8] sm:$0xff] %vm1338, %v1326
        %1367 = vst.msk [vmem:[#allocation2 + $0xe0] sm:$0xff] %vm1338, %v1329
        %1368 = vst.msk [vmem:[#allocation2 + $0xe8] sm:$0xff] %vm1338, %v1331
        %1369 = vst.msk [vmem:[#allocation2 + $0xf0] sm:$0xff] %vm1338, %v1334
        %1370 = vst.msk [vmem:[#allocation2 + $0xf8] sm:$0xff] %vm1338, %v1336
        %v1371 = vld [vmem:[#allocation2] sm:$0xff]
        %v1372 = vld [vmem:[#allocation2 + $0x8] sm:$0xff]
        %v1373 = vld [vmem:[#allocation2 + $0x10] sm:$0xff]
        %v1374 = vld [vmem:[#allocation2 + $0x18] sm:$0xff]
        %v1375 = vld [vmem:[#allocation2 + $0x20] sm:$0xff]
        %v1376 = vld [vmem:[#allocation2 + $0x28] sm:$0xff]
        %v1377 = vld [vmem:[#allocation2 + $0x30] sm:$0xff]
        %v1378 = vld [vmem:[#allocation2 + $0x38] sm:$0xff]
        %v1379 = vld [vmem:[#allocation2 + $0x40] sm:$0xff]
        %v1380 = vld [vmem:[#allocation2 + $0x48] sm:$0xff]
        %v1381 = vld [vmem:[#allocation2 + $0x50] sm:$0xff]
        %v1382 = vld [vmem:[#allocation2 + $0x58] sm:$0xff]
        %v1383 = vld [vmem:[#allocation2 + $0x60] sm:$0xff]
        %v1384 = vld [vmem:[#allocation2 + $0x68] sm:$0xff]
        %v1385 = vld [vmem:[#allocation2 + $0x70] sm:$0xff]
        %v1386 = vld [vmem:[#allocation2 + $0x78] sm:$0xff]
        %v1387 = vld [vmem:[#allocation2 + $0x80] sm:$0xff]
        %v1388 = vld [vmem:[#allocation2 + $0x88] sm:$0xff]
        %v1389 = vld [vmem:[#allocation2 + $0x90] sm:$0xff]
        %v1390 = vld [vmem:[#allocation2 + $0x98] sm:$0xff]
        %v1391 = vld [vmem:[#allocation2 + $0xa0] sm:$0xff]
        %v1392 = vld [vmem:[#allocation2 + $0xa8] sm:$0xff]
        %v1393 = vld [vmem:[#allocation2 + $0xb0] sm:$0xff]
        %v1394 = vld [vmem:[#allocation2 + $0xb8] sm:$0xff]
        %v1395 = vld [vmem:[#allocation2 + $0xc0] sm:$0xff]
        %v1396 = vld [vmem:[#allocation2 + $0xc8] sm:$0xff]
        %v1397 = vld [vmem:[#allocation2 + $0xd0] sm:$0xff]
        %v1398 = vld [vmem:[#allocation2 + $0xd8] sm:$0xff]
        %v1399 = vld [vmem:[#allocation2 + $0xe0] sm:$0xff]
        %v1400 = vld [vmem:[#allocation2 + $0xe8] sm:$0xff]
        %v1401 = vld [vmem:[#allocation2 + $0xf0] sm:$0xff]
        %v1402 = vld [vmem:[#allocation2 + $0xf8] sm:$0xff]
        %1435 = vrot.lane.b32.xlu0 %v1371, 120
        %v1436 = vpop.permute.xlu0 %1435
        %1437 = vrot.lane.b32.xlu0 %v1372, 120
        %v1438 = vpop.permute.xlu0 %1437
        %1439 = vrot.lane.b32.xlu0 %v1373, 120
        %v1440 = vpop.permute.xlu0 %1439
        %1441 = vrot.lane.b32.xlu0 %v1374, 120
        %v1442 = vpop.permute.xlu0 %1441
        %1443 = vrot.lane.b32.xlu0 %v1375, 120
        %v1444 = vpop.permute.xlu0 %1443
        %1445 = vrot.lane.b32.xlu0 %v1376, 120
        %v1446 = vpop.permute.xlu0 %1445
        %1447 = vrot.lane.b32.xlu0 %v1377, 120
        %v1448 = vpop.permute.xlu0 %1447
        %1449 = vrot.lane.b32.xlu0 %v1378, 120
        %v1450 = vpop.permute.xlu0 %1449
        %1451 = vrot.lane.b32.xlu0 %v1379, 120
        %v1452 = vpop.permute.xlu0 %1451
        %1453 = vrot.lane.b32.xlu0 %v1380, 120
        %v1454 = vpop.permute.xlu0 %1453
        %1455 = vrot.lane.b32.xlu0 %v1381, 120
        %v1456 = vpop.permute.xlu0 %1455
        %1457 = vrot.lane.b32.xlu0 %v1382, 120
        %v1458 = vpop.permute.xlu0 %1457
        %1459 = vrot.lane.b32.xlu0 %v1383, 120
        %v1460 = vpop.permute.xlu0 %1459
        %1461 = vrot.lane.b32.xlu0 %v1384, 120
        %v1462 = vpop.permute.xlu0 %1461
        %1463 = vrot.lane.b32.xlu0 %v1385, 120
        %v1464 = vpop.permute.xlu0 %1463
        %1465 = vrot.lane.b32.xlu0 %v1386, 120
        %v1466 = vpop.permute.xlu0 %1465
        %1467 = vrot.lane.b32.xlu0 %v1387, 120
        %v1468 = vpop.permute.xlu0 %1467
        %1469 = vrot.lane.b32.xlu0 %v1388, 120
        %v1470 = vpop.permute.xlu0 %1469
        %1471 = vrot.lane.b32.xlu0 %v1389, 120
        %v1472 = vpop.permute.xlu0 %1471
        %1473 = vrot.lane.b32.xlu0 %v1390, 120
        %v1474 = vpop.permute.xlu0 %1473
        %1475 = vrot.lane.b32.xlu0 %v1391, 120
        %v1476 = vpop.permute.xlu0 %1475
        %1477 = vrot.lane.b32.xlu0 %v1392, 120
        %v1478 = vpop.permute.xlu0 %1477
        %1479 = vrot.lane.b32.xlu0 %v1393, 120
        %v1480 = vpop.permute.xlu0 %1479
        %1481 = vrot.lane.b32.xlu0 %v1394, 120
        %v1482 = vpop.permute.xlu0 %1481
        %1483 = vrot.lane.b32.xlu0 %v1395, 120
        %v1484 = vpop.permute.xlu0 %1483
        %1485 = vrot.lane.b32.xlu0 %v1396, 120
        %v1486 = vpop.permute.xlu0 %1485
        %1487 = vrot.lane.b32.xlu0 %v1397, 120
        %v1488 = vpop.permute.xlu0 %1487
        %1489 = vrot.lane.b32.xlu0 %v1398, 120
        %v1490 = vpop.permute.xlu0 %1489
        %1491 = vrot.lane.b32.xlu0 %v1399, 120
        %v1492 = vpop.permute.xlu0 %1491
        %1493 = vrot.lane.b32.xlu0 %v1400, 120
        %v1494 = vpop.permute.xlu0 %1493
        %1495 = vrot.lane.b32.xlu0 %v1401, 120
        %v1496 = vpop.permute.xlu0 %1495
        %1497 = vrot.lane.b32.xlu0 %v1402, 120
        %v1498 = vpop.permute.xlu0 %1497
        %1531 = vrot.lane.b32.xlu0 %v1371, 112
        %v1532 = vpop.permute.xlu0 %1531
        %1533 = vrot.lane.b32.xlu0 %v1372, 112
        %v1534 = vpop.permute.xlu0 %1533
        %1535 = vrot.lane.b32.xlu0 %v1373, 112
        %v1536 = vpop.permute.xlu0 %1535
        %1537 = vrot.lane.b32.xlu0 %v1374, 112
        %v1538 = vpop.permute.xlu0 %1537
        %1539 = vrot.lane.b32.xlu0 %v1375, 112
        %v1540 = vpop.permute.xlu0 %1539
        %1541 = vrot.lane.b32.xlu0 %v1376, 112
        %v1542 = vpop.permute.xlu0 %1541
        %1543 = vrot.lane.b32.xlu0 %v1377, 112
        %v1544 = vpop.permute.xlu0 %1543
        %1545 = vrot.lane.b32.xlu0 %v1378, 112
        %v1546 = vpop.permute.xlu0 %1545
        %1547 = vrot.lane.b32.xlu0 %v1379, 112
        %v1548 = vpop.permute.xlu0 %1547
        %1549 = vrot.lane.b32.xlu0 %v1380, 112
        %v1550 = vpop.permute.xlu0 %1549
        %1551 = vrot.lane.b32.xlu0 %v1381, 112
        %v1552 = vpop.permute.xlu0 %1551
        %1553 = vrot.lane.b32.xlu0 %v1382, 112
        %v1554 = vpop.permute.xlu0 %1553
        %1555 = vrot.lane.b32.xlu0 %v1383, 112
        %v1556 = vpop.permute.xlu0 %1555
        %1557 = vrot.lane.b32.xlu0 %v1384, 112
        %v1558 = vpop.permute.xlu0 %1557
        %1559 = vrot.lane.b32.xlu0 %v1385, 112
        %v1560 = vpop.permute.xlu0 %1559
        %1561 = vrot.lane.b32.xlu0 %v1386, 112
        %v1562 = vpop.permute.xlu0 %1561
        %1563 = vrot.lane.b32.xlu0 %v1387, 112
        %v1564 = vpop.permute.xlu0 %1563
        %1565 = vrot.lane.b32.xlu0 %v1388, 112
        %v1566 = vpop.permute.xlu0 %1565
        %1567 = vrot.lane.b32.xlu0 %v1389, 112
        %v1568 = vpop.permute.xlu0 %1567
        %1569 = vrot.lane.b32.xlu0 %v1390, 112
        %v1570 = vpop.permute.xlu0 %1569
        %1571 = vrot.lane.b32.xlu0 %v1391, 112
        %v1572 = vpop.permute.xlu0 %1571
        %1573 = vrot.lane.b32.xlu0 %v1392, 112
        %v1574 = vpop.permute.xlu0 %1573
        %1575 = vrot.lane.b32.xlu0 %v1393, 112
        %v1576 = vpop.permute.xlu0 %1575
        %1577 = vrot.lane.b32.xlu0 %v1394, 112
        %v1578 = vpop.permute.xlu0 %1577
        %1579 = vrot.lane.b32.xlu0 %v1395, 112
        %v1580 = vpop.permute.xlu0 %1579
        %1581 = vrot.lane.b32.xlu0 %v1396, 112
        %v1582 = vpop.permute.xlu0 %1581
        %1583 = vrot.lane.b32.xlu0 %v1397, 112
        %v1584 = vpop.permute.xlu0 %1583
        %1585 = vrot.lane.b32.xlu0 %v1398, 112
        %v1586 = vpop.permute.xlu0 %1585
        %1587 = vrot.lane.b32.xlu0 %v1399, 112
        %v1588 = vpop.permute.xlu0 %1587
        %1589 = vrot.lane.b32.xlu0 %v1400, 112
        %v1590 = vpop.permute.xlu0 %1589
        %1591 = vrot.lane.b32.xlu0 %v1401, 112
        %v1592 = vpop.permute.xlu0 %1591
        %1593 = vrot.lane.b32.xlu0 %v1402, 112
        %v1594 = vpop.permute.xlu0 %1593
        %1627 = vrot.lane.b32.xlu0 %v1371, 104
        %v1628 = vpop.permute.xlu0 %1627
        %1629 = vrot.lane.b32.xlu0 %v1372, 104
        %v1630 = vpop.permute.xlu0 %1629
        %1631 = vrot.lane.b32.xlu0 %v1373, 104
        %v1632 = vpop.permute.xlu0 %1631
        %1633 = vrot.lane.b32.xlu0 %v1374, 104
        %v1634 = vpop.permute.xlu0 %1633
        %1635 = vrot.lane.b32.xlu0 %v1375, 104
        %v1636 = vpop.permute.xlu0 %1635
        %1637 = vrot.lane.b32.xlu0 %v1376, 104
        %v1638 = vpop.permute.xlu0 %1637
        %1639 = vrot.lane.b32.xlu0 %v1377, 104
        %v1640 = vpop.permute.xlu0 %1639
        %1641 = vrot.lane.b32.xlu0 %v1378, 104
        %v1642 = vpop.permute.xlu0 %1641
        %1643 = vrot.lane.b32.xlu0 %v1379, 104
        %v1644 = vpop.permute.xlu0 %1643
        %1645 = vrot.lane.b32.xlu0 %v1380, 104
        %v1646 = vpop.permute.xlu0 %1645
        %1647 = vrot.lane.b32.xlu0 %v1381, 104
        %v1648 = vpop.permute.xlu0 %1647
        %1649 = vrot.lane.b32.xlu0 %v1382, 104
        %v1650 = vpop.permute.xlu0 %1649
        %1651 = vrot.lane.b32.xlu0 %v1383, 104
        %v1652 = vpop.permute.xlu0 %1651
        %1653 = vrot.lane.b32.xlu0 %v1384, 104
        %v1654 = vpop.permute.xlu0 %1653
        %1655 = vrot.lane.b32.xlu0 %v1385, 104
        %v1656 = vpop.permute.xlu0 %1655
        %1657 = vrot.lane.b32.xlu0 %v1386, 104
        %v1658 = vpop.permute.xlu0 %1657
        %1659 = vrot.lane.b32.xlu0 %v1387, 104
        %v1660 = vpop.permute.xlu0 %1659
        %1661 = vrot.lane.b32.xlu0 %v1388, 104
        %v1662 = vpop.permute.xlu0 %1661
        %1663 = vrot.lane.b32.xlu0 %v1389, 104
        %v1664 = vpop.permute.xlu0 %1663
        %1665 = vrot.lane.b32.xlu0 %v1390, 104
        %v1666 = vpop.permute.xlu0 %1665
        %1667 = vrot.lane.b32.xlu0 %v1391, 104
        %v1668 = vpop.permute.xlu0 %1667
        %1669 = vrot.lane.b32.xlu0 %v1392, 104
        %v1670 = vpop.permute.xlu0 %1669
        %1671 = vrot.lane.b32.xlu0 %v1393, 104
        %v1672 = vpop.permute.xlu0 %1671
        %1673 = vrot.lane.b32.xlu0 %v1394, 104
        %v1674 = vpop.permute.xlu0 %1673
        %1675 = vrot.lane.b32.xlu0 %v1395, 104
        %v1676 = vpop.permute.xlu0 %1675
        %1677 = vrot.lane.b32.xlu0 %v1396, 104
        %v1678 = vpop.permute.xlu0 %1677
        %1679 = vrot.lane.b32.xlu0 %v1397, 104
        %v1680 = vpop.permute.xlu0 %1679
        %1681 = vrot.lane.b32.xlu0 %v1398, 104
        %v1682 = vpop.permute.xlu0 %1681
        %1683 = vrot.lane.b32.xlu0 %v1399, 104
        %v1684 = vpop.permute.xlu0 %1683
        %1685 = vrot.lane.b32.xlu0 %v1400, 104
        %v1686 = vpop.permute.xlu0 %1685
        %1687 = vrot.lane.b32.xlu0 %v1401, 104
        %v1688 = vpop.permute.xlu0 %1687
        %1689 = vrot.lane.b32.xlu0 %v1402, 104
        %v1690 = vpop.permute.xlu0 %1689
        %v1723 = vpack.c.bf16 %v1371, %v1371
        %v1724 = vpack.c.bf16 %v1372, %v1372
        %v1725 = vpack.c.bf16 %v1373, %v1373
        %v1726 = vpack.c.bf16 %v1374, %v1374
        %v1727 = vpack.c.bf16 %v1375, %v1375
        %v1728 = vpack.c.bf16 %v1376, %v1376
        %v1729 = vpack.c.bf16 %v1377, %v1377
        %v1730 = vpack.c.bf16 %v1378, %v1378
        %v1731 = vpack.c.bf16 %v1379, %v1379
        %v1732 = vpack.c.bf16 %v1380, %v1380
        %v1733 = vpack.c.bf16 %v1381, %v1381
        %v1734 = vpack.c.bf16 %v1382, %v1382
        %v1735 = vpack.c.bf16 %v1383, %v1383
        %v1736 = vpack.c.bf16 %v1384, %v1384
        %v1737 = vpack.c.bf16 %v1385, %v1385
        %v1738 = vpack.c.bf16 %v1386, %v1386
        %v1739 = vpack.c.bf16 %v1387, %v1387
        %v1740 = vpack.c.bf16 %v1388, %v1388
        %v1741 = vpack.c.bf16 %v1389, %v1389
        %v1742 = vpack.c.bf16 %v1390, %v1390
        %v1743 = vpack.c.bf16 %v1391, %v1391
        %v1744 = vpack.c.bf16 %v1392, %v1392
        %v1745 = vpack.c.bf16 %v1393, %v1393
        %v1746 = vpack.c.bf16 %v1394, %v1394
        %v1747 = vpack.c.bf16 %v1395, %v1395
        %v1748 = vpack.c.bf16 %v1396, %v1396
        %v1749 = vpack.c.bf16 %v1397, %v1397
        %v1750 = vpack.c.bf16 %v1398, %v1398
        %v1751 = vpack.c.bf16 %v1399, %v1399
        %v1752 = vpack.c.bf16 %v1400, %v1400
        %v1753 = vpack.c.bf16 %v1401, %v1401
        %v1754 = vpack.c.bf16 %v1402, %v1402
        %v1755 = vpack.c.bf16 %v1436, %v1436
        %v1756 = vpack.c.bf16 %v1438, %v1438
        %v1757 = vpack.c.bf16 %v1440, %v1440
        %v1758 = vpack.c.bf16 %v1442, %v1442
        %v1759 = vpack.c.bf16 %v1444, %v1444
        %v1760 = vpack.c.bf16 %v1446, %v1446
        %v1761 = vpack.c.bf16 %v1448, %v1448
        %v1762 = vpack.c.bf16 %v1450, %v1450
        %v1763 = vpack.c.bf16 %v1452, %v1452
        %v1764 = vpack.c.bf16 %v1454, %v1454
        %v1765 = vpack.c.bf16 %v1456, %v1456
        %v1766 = vpack.c.bf16 %v1458, %v1458
        %v1767 = vpack.c.bf16 %v1460, %v1460
        %v1768 = vpack.c.bf16 %v1462, %v1462
        %v1769 = vpack.c.bf16 %v1464, %v1464
        %v1770 = vpack.c.bf16 %v1466, %v1466
        %v1771 = vpack.c.bf16 %v1468, %v1468
        %v1772 = vpack.c.bf16 %v1470, %v1470
        %v1773 = vpack.c.bf16 %v1472, %v1472
        %v1774 = vpack.c.bf16 %v1474, %v1474
        %v1775 = vpack.c.bf16 %v1476, %v1476
        %v1776 = vpack.c.bf16 %v1478, %v1478
        %v1777 = vpack.c.bf16 %v1480, %v1480
        %v1778 = vpack.c.bf16 %v1482, %v1482
        %v1779 = vpack.c.bf16 %v1484, %v1484
        %v1780 = vpack.c.bf16 %v1486, %v1486
        %v1781 = vpack.c.bf16 %v1488, %v1488
        %v1782 = vpack.c.bf16 %v1490, %v1490
        %v1783 = vpack.c.bf16 %v1492, %v1492
        %v1784 = vpack.c.bf16 %v1494, %v1494
        %v1785 = vpack.c.bf16 %v1496, %v1496
        %v1786 = vpack.c.bf16 %v1498, %v1498
        %v1787 = vpack.c.bf16 %v1532, %v1532
        %v1788 = vpack.c.bf16 %v1534, %v1534
        %v1789 = vpack.c.bf16 %v1536, %v1536
        %v1790 = vpack.c.bf16 %v1538, %v1538
        %v1791 = vpack.c.bf16 %v1540, %v1540
        %v1792 = vpack.c.bf16 %v1542, %v1542
        %v1793 = vpack.c.bf16 %v1544, %v1544
        %v1794 = vpack.c.bf16 %v1546, %v1546
        %v1795 = vpack.c.bf16 %v1548, %v1548
        %v1796 = vpack.c.bf16 %v1550, %v1550
        %v1797 = vpack.c.bf16 %v1552, %v1552
        %v1798 = vpack.c.bf16 %v1554, %v1554
        %v1799 = vpack.c.bf16 %v1556, %v1556
        %v1800 = vpack.c.bf16 %v1558, %v1558
        %v1801 = vpack.c.bf16 %v1560, %v1560
        %v1802 = vpack.c.bf16 %v1562, %v1562
        %v1803 = vpack.c.bf16 %v1564, %v1564
        %v1804 = vpack.c.bf16 %v1566, %v1566
        %v1805 = vpack.c.bf16 %v1568, %v1568
        %v1806 = vpack.c.bf16 %v1570, %v1570
        %v1807 = vpack.c.bf16 %v1572, %v1572
        %v1808 = vpack.c.bf16 %v1574, %v1574
        %v1809 = vpack.c.bf16 %v1576, %v1576
        %v1810 = vpack.c.bf16 %v1578, %v1578
        %v1811 = vpack.c.bf16 %v1580, %v1580
        %v1812 = vpack.c.bf16 %v1582, %v1582
        %v1813 = vpack.c.bf16 %v1584, %v1584
        %v1814 = vpack.c.bf16 %v1586, %v1586
        %v1815 = vpack.c.bf16 %v1588, %v1588
        %v1816 = vpack.c.bf16 %v1590, %v1590
        %v1817 = vpack.c.bf16 %v1592, %v1592
        %v1818 = vpack.c.bf16 %v1594, %v1594
        %v1819 = vpack.c.bf16 %v1628, %v1628
        %v1820 = vpack.c.bf16 %v1630, %v1630
        %v1821 = vpack.c.bf16 %v1632, %v1632
        %v1822 = vpack.c.bf16 %v1634, %v1634
        %v1823 = vpack.c.bf16 %v1636, %v1636
        %v1824 = vpack.c.bf16 %v1638, %v1638
        %v1825 = vpack.c.bf16 %v1640, %v1640
        %v1826 = vpack.c.bf16 %v1642, %v1642
        %v1827 = vpack.c.bf16 %v1644, %v1644
        %v1828 = vpack.c.bf16 %v1646, %v1646
        %v1829 = vpack.c.bf16 %v1648, %v1648
        %v1830 = vpack.c.bf16 %v1650, %v1650
        %v1831 = vpack.c.bf16 %v1652, %v1652
        %v1832 = vpack.c.bf16 %v1654, %v1654
        %v1833 = vpack.c.bf16 %v1656, %v1656
        %v1834 = vpack.c.bf16 %v1658, %v1658
        %v1835 = vpack.c.bf16 %v1660, %v1660
        %v1836 = vpack.c.bf16 %v1662, %v1662
        %v1837 = vpack.c.bf16 %v1664, %v1664
        %v1838 = vpack.c.bf16 %v1666, %v1666
        %v1839 = vpack.c.bf16 %v1668, %v1668
        %v1840 = vpack.c.bf16 %v1670, %v1670
        %v1841 = vpack.c.bf16 %v1672, %v1672
        %v1842 = vpack.c.bf16 %v1674, %v1674
        %v1843 = vpack.c.bf16 %v1676, %v1676
        %v1844 = vpack.c.bf16 %v1678, %v1678
        %v1845 = vpack.c.bf16 %v1680, %v1680
        %v1846 = vpack.c.bf16 %v1682, %v1682
        %v1847 = vpack.c.bf16 %v1684, %v1684
        %v1848 = vpack.c.bf16 %v1686, %v1686
        %v1849 = vpack.c.bf16 %v1688, %v1688
        %v1850 = vpack.c.bf16 %v1690, %v1690
        %v1851 = vld [vmem:[#allocation10] sm:$0xff]
        %v1852 = vld [vmem:[#allocation10 + $0x8] sm:$0xff]
        %v1855 = vunpack.c.l.b16 %v1723
        %v1856 = vunpack.c.l.b16 %v1724
        %v1857 = vpack.c.b16 %v1856, %v1855
        %1858 = vrot.lane.b32.xlu0 %v1857, 96
        %v1859 = vpop.permute.xlu0 %1858
        %vm1860 = vcmask 64512
        %v1862 = vsel %vm1860, %v1857, 0
        %v1865 = vsel %vm1860, %v1859, 0
        %1867 = vmatpush.bf16.xpose.msra.mxu0 0
        %1868 = vmatpush.bf16.xpose.msra.mxu0 0
        %1869 = vmatpush.bf16.xpose.msra.mxu0 0
        %1870 = vmatpush.bf16.xpose.msra.mxu0 0
        %1871 = vmatpush.bf16.xpose.msra.mxu0 0
        %1872 = vmatpush.bf16.xpose.msra.mxu0 0
        %1873 = vmatpush.bf16.xpose.msra.mxu0 0
        %1874 = vmatpush.bf16.xpose.msra.mxu0 %v1865
        %1875 = vmatmul.bf16.gmra.mxu0 %v1862
        %v1876 = vpop.f32.mrf.mxu0
        %v1877 = vadd.f32 %v1851, %v1876
        %v1878 = vpop.f32.mrf.mxu0
        %v1879 = vadd.f32 %v1852, %v1878
        %1880 = vdwg.mxu0
        %v1883 = vunpack.c.l.b16 %v1725
        %v1884 = vunpack.c.l.b16 %v1726
        %v1885 = vpack.c.b16 %v1884, %v1883
        %1886 = vrot.lane.b32.xlu0 %v1885, 96
        %v1887 = vpop.permute.xlu0 %1886
        %v1889 = vsel %vm1860, %v1885, 0
        %v1892 = vsel %vm1860, %v1887, 0
        %1894 = vmatpush.bf16.xpose.msra.mxu0 0
        %1895 = vmatpush.bf16.xpose.msra.mxu0 0
        %1896 = vmatpush.bf16.xpose.msra.mxu0 0
        %1897 = vmatpush.bf16.xpose.msra.mxu0 0
        %1898 = vmatpush.bf16.xpose.msra.mxu0 0
        %1899 = vmatpush.bf16.xpose.msra.mxu0 0
        %1900 = vmatpush.bf16.xpose.msra.mxu0 0
        %1901 = vmatpush.bf16.xpose.msra.mxu0 %v1892
        %1902 = vmatmul.bf16.gmra.mxu0 %v1889
        %v1903 = vpop.f32.mrf.mxu0
        %v1904 = vadd.f32 %v1851, %v1903
        %v1905 = vpop.f32.mrf.mxu0
        %v1906 = vadd.f32 %v1852, %v1905
        %1907 = vdwg.mxu0
        %v1910 = vunpack.c.l.b16 %v1727
        %v1911 = vunpack.c.l.b16 %v1728
        %v1912 = vpack.c.b16 %v1911, %v1910
        %1913 = vrot.lane.b32.xlu0 %v1912, 96
        %v1914 = vpop.permute.xlu0 %1913
        %v1916 = vsel %vm1860, %v1912, 0
        %v1919 = vsel %vm1860, %v1914, 0
        %1921 = vmatpush.bf16.xpose.msra.mxu0 0
        %1922 = vmatpush.bf16.xpose.msra.mxu0 0
        %1923 = vmatpush.bf16.xpose.msra.mxu0 0
        %1924 = vmatpush.bf16.xpose.msra.mxu0 0
        %1925 = vmatpush.bf16.xpose.msra.mxu0 0
        %1926 = vmatpush.bf16.xpose.msra.mxu0 0
        %1927 = vmatpush.bf16.xpose.msra.mxu0 0
        %1928 = vmatpush.bf16.xpose.msra.mxu0 %v1919
        %1929 = vmatmul.bf16.gmra.mxu0 %v1916
        %v1930 = vpop.f32.mrf.mxu0
        %v1931 = vadd.f32 %v1851, %v1930
        %v1932 = vpop.f32.mrf.mxu0
        %v1933 = vadd.f32 %v1852, %v1932
        %1934 = vdwg.mxu0
        %v1937 = vunpack.c.l.b16 %v1729
        %v1938 = vunpack.c.l.b16 %v1730
        %v1939 = vpack.c.b16 %v1938, %v1937
        %1940 = vrot.lane.b32.xlu0 %v1939, 96
        %v1941 = vpop.permute.xlu0 %1940
        %v1943 = vsel %vm1860, %v1939, 0
        %v1946 = vsel %vm1860, %v1941, 0
        %1948 = vmatpush.bf16.xpose.msra.mxu0 0
        %1949 = vmatpush.bf16.xpose.msra.mxu0 0
        %1950 = vmatpush.bf16.xpose.msra.mxu0 0
        %1951 = vmatpush.bf16.xpose.msra.mxu0 0
        %1952 = vmatpush.bf16.xpose.msra.mxu0 0
        %1953 = vmatpush.bf16.xpose.msra.mxu0 0
        %1954 = vmatpush.bf16.xpose.msra.mxu0 0
        %1955 = vmatpush.bf16.xpose.msra.mxu0 %v1946
        %1956 = vmatmul.bf16.gmra.mxu0 %v1943
        %v1957 = vpop.f32.mrf.mxu0
        %v1958 = vadd.f32 %v1851, %v1957
        %v1959 = vpop.f32.mrf.mxu0
        %v1960 = vadd.f32 %v1852, %v1959
        %1961 = vdwg.mxu0
        %v1964 = vunpack.c.l.b16 %v1731
        %v1965 = vunpack.c.l.b16 %v1732
        %v1966 = vpack.c.b16 %v1965, %v1964
        %1967 = vrot.lane.b32.xlu0 %v1966, 96
        %v1968 = vpop.permute.xlu0 %1967
        %v1970 = vsel %vm1860, %v1966, 0
        %v1973 = vsel %vm1860, %v1968, 0
        %1975 = vmatpush.bf16.xpose.msra.mxu0 0
        %1976 = vmatpush.bf16.xpose.msra.mxu0 0
        %1977 = vmatpush.bf16.xpose.msra.mxu0 0
        %1978 = vmatpush.bf16.xpose.msra.mxu0 0
        %1979 = vmatpush.bf16.xpose.msra.mxu0 0
        %1980 = vmatpush.bf16.xpose.msra.mxu0 0
        %1981 = vmatpush.bf16.xpose.msra.mxu0 0
        %1982 = vmatpush.bf16.xpose.msra.mxu0 %v1973
        %1983 = vmatmul.bf16.gmra.mxu0 %v1970
        %v1984 = vpop.f32.mrf.mxu0
        %v1985 = vadd.f32 %v1851, %v1984
        %v1986 = vpop.f32.mrf.mxu0
        %v1987 = vadd.f32 %v1852, %v1986
        %1988 = vdwg.mxu0
        %v1991 = vunpack.c.l.b16 %v1733
        %v1992 = vunpack.c.l.b16 %v1734
        %v1993 = vpack.c.b16 %v1992, %v1991
        %1994 = vrot.lane.b32.xlu0 %v1993, 96
        %v1995 = vpop.permute.xlu0 %1994
        %v1997 = vsel %vm1860, %v1993, 0
        %v2000 = vsel %vm1860, %v1995, 0
        %2002 = vmatpush.bf16.xpose.msra.mxu0 0
        %2003 = vmatpush.bf16.xpose.msra.mxu0 0
        %2004 = vmatpush.bf16.xpose.msra.mxu0 0
        %2005 = vmatpush.bf16.xpose.msra.mxu0 0
        %2006 = vmatpush.bf16.xpose.msra.mxu0 0
        %2007 = vmatpush.bf16.xpose.msra.mxu0 0
        %2008 = vmatpush.bf16.xpose.msra.mxu0 0
        %2009 = vmatpush.bf16.xpose.msra.mxu0 %v2000
        %2010 = vmatmul.bf16.gmra.mxu0 %v1997
        %v2011 = vpop.f32.mrf.mxu0
        %v2012 = vadd.f32 %v1851, %v2011
        %v2013 = vpop.f32.mrf.mxu0
        %v2014 = vadd.f32 %v1852, %v2013
        %2015 = vdwg.mxu0
        %v2018 = vunpack.c.l.b16 %v1735
        %v2019 = vunpack.c.l.b16 %v1736
        %v2020 = vpack.c.b16 %v2019, %v2018
        %2021 = vrot.lane.b32.xlu0 %v2020, 96
        %v2022 = vpop.permute.xlu0 %2021
        %v2024 = vsel %vm1860, %v2020, 0
        %v2027 = vsel %vm1860, %v2022, 0
        %2029 = vmatpush.bf16.xpose.msra.mxu0 0
        %2030 = vmatpush.bf16.xpose.msra.mxu0 0
        %2031 = vmatpush.bf16.xpose.msra.mxu0 0
        %2032 = vmatpush.bf16.xpose.msra.mxu0 0
        %2033 = vmatpush.bf16.xpose.msra.mxu0 0
        %2034 = vmatpush.bf16.xpose.msra.mxu0 0
        %2035 = vmatpush.bf16.xpose.msra.mxu0 0
        %2036 = vmatpush.bf16.xpose.msra.mxu0 %v2027
        %2037 = vmatmul.bf16.gmra.mxu0 %v2024
        %v2038 = vpop.f32.mrf.mxu0
        %v2039 = vadd.f32 %v1851, %v2038
        %v2040 = vpop.f32.mrf.mxu0
        %v2041 = vadd.f32 %v1852, %v2040
        %2042 = vdwg.mxu0
        %v2045 = vunpack.c.l.b16 %v1737
        %v2046 = vunpack.c.l.b16 %v1738
        %v2047 = vpack.c.b16 %v2046, %v2045
        %2048 = vrot.lane.b32.xlu0 %v2047, 96
        %v2049 = vpop.permute.xlu0 %2048
        %v2051 = vsel %vm1860, %v2047, 0
        %v2054 = vsel %vm1860, %v2049, 0
        %2056 = vmatpush.bf16.xpose.msra.mxu0 0
        %2057 = vmatpush.bf16.xpose.msra.mxu0 0
        %2058 = vmatpush.bf16.xpose.msra.mxu0 0
        %2059 = vmatpush.bf16.xpose.msra.mxu0 0
        %2060 = vmatpush.bf16.xpose.msra.mxu0 0
        %2061 = vmatpush.bf16.xpose.msra.mxu0 0
        %2062 = vmatpush.bf16.xpose.msra.mxu0 0
        %2063 = vmatpush.bf16.xpose.msra.mxu0 %v2054
        %2064 = vmatmul.bf16.gmra.mxu0 %v2051
        %v2065 = vpop.f32.mrf.mxu0
        %v2066 = vadd.f32 %v1851, %v2065
        %v2067 = vpop.f32.mrf.mxu0
        %v2068 = vadd.f32 %v1852, %v2067
        %2069 = vdwg.mxu0
        %v2072 = vunpack.c.l.b16 %v1739
        %v2073 = vunpack.c.l.b16 %v1740
        %v2074 = vpack.c.b16 %v2073, %v2072
        %2075 = vrot.lane.b32.xlu0 %v2074, 96
        %v2076 = vpop.permute.xlu0 %2075
        %v2078 = vsel %vm1860, %v2074, 0
        %v2081 = vsel %vm1860, %v2076, 0
        %2083 = vmatpush.bf16.xpose.msra.mxu0 0
        %2084 = vmatpush.bf16.xpose.msra.mxu0 0
        %2085 = vmatpush.bf16.xpose.msra.mxu0 0
        %2086 = vmatpush.bf16.xpose.msra.mxu0 0
        %2087 = vmatpush.bf16.xpose.msra.mxu0 0
        %2088 = vmatpush.bf16.xpose.msra.mxu0 0
        %2089 = vmatpush.bf16.xpose.msra.mxu0 0
        %2090 = vmatpush.bf16.xpose.msra.mxu0 %v2081
        %2091 = vmatmul.bf16.gmra.mxu0 %v2078
        %v2092 = vpop.f32.mrf.mxu0
        %v2093 = vadd.f32 %v1851, %v2092
        %v2094 = vpop.f32.mrf.mxu0
        %v2095 = vadd.f32 %v1852, %v2094
        %2096 = vdwg.mxu0
        %v2099 = vunpack.c.l.b16 %v1741
        %v2100 = vunpack.c.l.b16 %v1742
        %v2101 = vpack.c.b16 %v2100, %v2099
        %2102 = vrot.lane.b32.xlu0 %v2101, 96
        %v2103 = vpop.permute.xlu0 %2102
        %v2105 = vsel %vm1860, %v2101, 0
        %v2108 = vsel %vm1860, %v2103, 0
        %2110 = vmatpush.bf16.xpose.msra.mxu0 0
        %2111 = vmatpush.bf16.xpose.msra.mxu0 0
        %2112 = vmatpush.bf16.xpose.msra.mxu0 0
        %2113 = vmatpush.bf16.xpose.msra.mxu0 0
        %2114 = vmatpush.bf16.xpose.msra.mxu0 0
        %2115 = vmatpush.bf16.xpose.msra.mxu0 0
        %2116 = vmatpush.bf16.xpose.msra.mxu0 0
        %2117 = vmatpush.bf16.xpose.msra.mxu0 %v2108
        %2118 = vmatmul.bf16.gmra.mxu0 %v2105
        %v2119 = vpop.f32.mrf.mxu0
        %v2120 = vadd.f32 %v1851, %v2119
        %v2121 = vpop.f32.mrf.mxu0
        %v2122 = vadd.f32 %v1852, %v2121
        %2123 = vdwg.mxu0
        %v2126 = vunpack.c.l.b16 %v1743
        %v2127 = vunpack.c.l.b16 %v1744
        %v2128 = vpack.c.b16 %v2127, %v2126
        %2129 = vrot.lane.b32.xlu0 %v2128, 96
        %v2130 = vpop.permute.xlu0 %2129
        %v2132 = vsel %vm1860, %v2128, 0
        %v2135 = vsel %vm1860, %v2130, 0
        %2137 = vmatpush.bf16.xpose.msra.mxu0 0
        %2138 = vmatpush.bf16.xpose.msra.mxu0 0
        %2139 = vmatpush.bf16.xpose.msra.mxu0 0
        %2140 = vmatpush.bf16.xpose.msra.mxu0 0
        %2141 = vmatpush.bf16.xpose.msra.mxu0 0
        %2142 = vmatpush.bf16.xpose.msra.mxu0 0
        %2143 = vmatpush.bf16.xpose.msra.mxu0 0
        %2144 = vmatpush.bf16.xpose.msra.mxu0 %v2135
        %2145 = vmatmul.bf16.gmra.mxu0 %v2132
        %v2146 = vpop.f32.mrf.mxu0
        %v2147 = vadd.f32 %v1851, %v2146
        %v2148 = vpop.f32.mrf.mxu0
        %v2149 = vadd.f32 %v1852, %v2148
        %2150 = vdwg.mxu0
        %v2153 = vunpack.c.l.b16 %v1745
        %v2154 = vunpack.c.l.b16 %v1746
        %v2155 = vpack.c.b16 %v2154, %v2153
        %2156 = vrot.lane.b32.xlu0 %v2155, 96
        %v2157 = vpop.permute.xlu0 %2156
        %v2159 = vsel %vm1860, %v2155, 0
        %v2162 = vsel %vm1860, %v2157, 0
        %2164 = vmatpush.bf16.xpose.msra.mxu0 0
        %2165 = vmatpush.bf16.xpose.msra.mxu0 0
        %2166 = vmatpush.bf16.xpose.msra.mxu0 0
        %2167 = vmatpush.bf16.xpose.msra.mxu0 0
        %2168 = vmatpush.bf16.xpose.msra.mxu0 0
        %2169 = vmatpush.bf16.xpose.msra.mxu0 0
        %2170 = vmatpush.bf16.xpose.msra.mxu0 0
        %2171 = vmatpush.bf16.xpose.msra.mxu0 %v2162
        %2172 = vmatmul.bf16.gmra.mxu0 %v2159
        %v2173 = vpop.f32.mrf.mxu0
        %v2174 = vadd.f32 %v1851, %v2173
        %v2175 = vpop.f32.mrf.mxu0
        %v2176 = vadd.f32 %v1852, %v2175
        %2177 = vdwg.mxu0
        %v2180 = vunpack.c.l.b16 %v1747
        %v2181 = vunpack.c.l.b16 %v1748
        %v2182 = vpack.c.b16 %v2181, %v2180
        %2183 = vrot.lane.b32.xlu0 %v2182, 96
        %v2184 = vpop.permute.xlu0 %2183
        %v2186 = vsel %vm1860, %v2182, 0
        %v2189 = vsel %vm1860, %v2184, 0
        %2191 = vmatpush.bf16.xpose.msra.mxu0 0
        %2192 = vmatpush.bf16.xpose.msra.mxu0 0
        %2193 = vmatpush.bf16.xpose.msra.mxu0 0
        %2194 = vmatpush.bf16.xpose.msra.mxu0 0
        %2195 = vmatpush.bf16.xpose.msra.mxu0 0
        %2196 = vmatpush.bf16.xpose.msra.mxu0 0
        %2197 = vmatpush.bf16.xpose.msra.mxu0 0
        %2198 = vmatpush.bf16.xpose.msra.mxu0 %v2189
        %2199 = vmatmul.bf16.gmra.mxu0 %v2186
        %v2200 = vpop.f32.mrf.mxu0
        %v2201 = vadd.f32 %v1851, %v2200
        %v2202 = vpop.f32.mrf.mxu0
        %v2203 = vadd.f32 %v1852, %v2202
        %2204 = vdwg.mxu0
        %v2207 = vunpack.c.l.b16 %v1749
        %v2208 = vunpack.c.l.b16 %v1750
        %v2209 = vpack.c.b16 %v2208, %v2207
        %2210 = vrot.lane.b32.xlu0 %v2209, 96
        %v2211 = vpop.permute.xlu0 %2210
        %v2213 = vsel %vm1860, %v2209, 0
        %v2216 = vsel %vm1860, %v2211, 0
        %2218 = vmatpush.bf16.xpose.msra.mxu0 0
        %2219 = vmatpush.bf16.xpose.msra.mxu0 0
        %2220 = vmatpush.bf16.xpose.msra.mxu0 0
        %2221 = vmatpush.bf16.xpose.msra.mxu0 0
        %2222 = vmatpush.bf16.xpose.msra.mxu0 0
        %2223 = vmatpush.bf16.xpose.msra.mxu0 0
        %2224 = vmatpush.bf16.xpose.msra.mxu0 0
        %2225 = vmatpush.bf16.xpose.msra.mxu0 %v2216
        %2226 = vmatmul.bf16.gmra.mxu0 %v2213
        %v2227 = vpop.f32.mrf.mxu0
        %v2228 = vadd.f32 %v1851, %v2227
        %v2229 = vpop.f32.mrf.mxu0
        %v2230 = vadd.f32 %v1852, %v2229
        %2231 = vdwg.mxu0
        %v2234 = vunpack.c.l.b16 %v1751
        %v2235 = vunpack.c.l.b16 %v1752
        %v2236 = vpack.c.b16 %v2235, %v2234
        %2237 = vrot.lane.b32.xlu0 %v2236, 96
        %v2238 = vpop.permute.xlu0 %2237
        %v2240 = vsel %vm1860, %v2236, 0
        %v2243 = vsel %vm1860, %v2238, 0
        %2245 = vmatpush.bf16.xpose.msra.mxu0 0
        %2246 = vmatpush.bf16.xpose.msra.mxu0 0
        %2247 = vmatpush.bf16.xpose.msra.mxu0 0
        %2248 = vmatpush.bf16.xpose.msra.mxu0 0
        %2249 = vmatpush.bf16.xpose.msra.mxu0 0
        %2250 = vmatpush.bf16.xpose.msra.mxu0 0
        %2251 = vmatpush.bf16.xpose.msra.mxu0 0
        %2252 = vmatpush.bf16.xpose.msra.mxu0 %v2243
        %2253 = vmatmul.bf16.gmra.mxu0 %v2240
        %v2254 = vpop.f32.mrf.mxu0
        %v2255 = vadd.f32 %v1851, %v2254
        %v2256 = vpop.f32.mrf.mxu0
        %v2257 = vadd.f32 %v1852, %v2256
        %2258 = vdwg.mxu0
        %v2261 = vunpack.c.l.b16 %v1753
        %v2262 = vunpack.c.l.b16 %v1754
        %v2263 = vpack.c.b16 %v2262, %v2261
        %2264 = vrot.lane.b32.xlu0 %v2263, 96
        %v2265 = vpop.permute.xlu0 %2264
        %v2267 = vsel %vm1860, %v2263, 0
        %v2270 = vsel %vm1860, %v2265, 0
        %2272 = vmatpush.bf16.xpose.msra.mxu0 0
        %2273 = vmatpush.bf16.xpose.msra.mxu0 0
        %2274 = vmatpush.bf16.xpose.msra.mxu0 0
        %2275 = vmatpush.bf16.xpose.msra.mxu0 0
        %2276 = vmatpush.bf16.xpose.msra.mxu0 0
        %2277 = vmatpush.bf16.xpose.msra.mxu0 0
        %2278 = vmatpush.bf16.xpose.msra.mxu0 0
        %2279 = vmatpush.bf16.xpose.msra.mxu0 %v2270
        %2280 = vmatmul.bf16.gmra.mxu0 %v2267
        %v2281 = vpop.f32.mrf.mxu0
        %v2282 = vadd.f32 %v1851, %v2281
        %v2283 = vpop.f32.mrf.mxu0
        %v2284 = vadd.f32 %v1852, %v2283
        %2285 = vdwg.mxu0
        %v2288 = vunpack.c.l.b16 %v1755
        %v2289 = vunpack.c.l.b16 %v1756
        %v2290 = vpack.c.b16 %v2289, %v2288
        %2291 = vrot.lane.b32.xlu0 %v2290, 96
        %v2292 = vpop.permute.xlu0 %2291
        %v2294 = vsel %vm1860, %v2290, 0
        %v2297 = vsel %vm1860, %v2292, 0
        %2299 = vmatpush.bf16.xpose.msra.mxu0 0
        %2300 = vmatpush.bf16.xpose.msra.mxu0 0
        %2301 = vmatpush.bf16.xpose.msra.mxu0 0
        %2302 = vmatpush.bf16.xpose.msra.mxu0 0
        %2303 = vmatpush.bf16.xpose.msra.mxu0 0
        %2304 = vmatpush.bf16.xpose.msra.mxu0 0
        %2305 = vmatpush.bf16.xpose.msra.mxu0 0
        %2306 = vmatpush.bf16.xpose.msra.mxu0 %v2297
        %2307 = vmatmul.bf16.gmra.mxu0 %v2294
        %v2308 = vpop.f32.mrf.mxu0
        %v2309 = vadd.f32 %v1851, %v2308
        %v2310 = vpop.f32.mrf.mxu0
        %v2311 = vadd.f32 %v1852, %v2310
        %2312 = vdwg.mxu0
        %v2315 = vunpack.c.l.b16 %v1757
        %v2316 = vunpack.c.l.b16 %v1758
        %v2317 = vpack.c.b16 %v2316, %v2315
        %2318 = vrot.lane.b32.xlu0 %v2317, 96
        %v2319 = vpop.permute.xlu0 %2318
        %v2321 = vsel %vm1860, %v2317, 0
        %v2324 = vsel %vm1860, %v2319, 0
        %2326 = vmatpush.bf16.xpose.msra.mxu0 0
        %2327 = vmatpush.bf16.xpose.msra.mxu0 0
        %2328 = vmatpush.bf16.xpose.msra.mxu0 0
        %2329 = vmatpush.bf16.xpose.msra.mxu0 0
        %2330 = vmatpush.bf16.xpose.msra.mxu0 0
        %2331 = vmatpush.bf16.xpose.msra.mxu0 0
        %2332 = vmatpush.bf16.xpose.msra.mxu0 0
        %2333 = vmatpush.bf16.xpose.msra.mxu0 %v2324
        %2334 = vmatmul.bf16.gmra.mxu0 %v2321
        %v2335 = vpop.f32.mrf.mxu0
        %v2336 = vadd.f32 %v1851, %v2335
        %v2337 = vpop.f32.mrf.mxu0
        %v2338 = vadd.f32 %v1852, %v2337
        %2339 = vdwg.mxu0
        %v2342 = vunpack.c.l.b16 %v1759
        %v2343 = vunpack.c.l.b16 %v1760
        %v2344 = vpack.c.b16 %v2343, %v2342
        %2345 = vrot.lane.b32.xlu0 %v2344, 96
        %v2346 = vpop.permute.xlu0 %2345
        %v2348 = vsel %vm1860, %v2344, 0
        %v2351 = vsel %vm1860, %v2346, 0
        %2353 = vmatpush.bf16.xpose.msra.mxu0 0
        %2354 = vmatpush.bf16.xpose.msra.mxu0 0
        %2355 = vmatpush.bf16.xpose.msra.mxu0 0
        %2356 = vmatpush.bf16.xpose.msra.mxu0 0
        %2357 = vmatpush.bf16.xpose.msra.mxu0 0
        %2358 = vmatpush.bf16.xpose.msra.mxu0 0
        %2359 = vmatpush.bf16.xpose.msra.mxu0 0
        %2360 = vmatpush.bf16.xpose.msra.mxu0 %v2351
        %2361 = vmatmul.bf16.gmra.mxu0 %v2348
        %v2362 = vpop.f32.mrf.mxu0
        %v2363 = vadd.f32 %v1851, %v2362
        %v2364 = vpop.f32.mrf.mxu0
        %v2365 = vadd.f32 %v1852, %v2364
        %2366 = vdwg.mxu0
        %v2369 = vunpack.c.l.b16 %v1761
        %v2370 = vunpack.c.l.b16 %v1762
        %v2371 = vpack.c.b16 %v2370, %v2369
        %2372 = vrot.lane.b32.xlu0 %v2371, 96
        %v2373 = vpop.permute.xlu0 %2372
        %v2375 = vsel %vm1860, %v2371, 0
        %v2378 = vsel %vm1860, %v2373, 0
        %2380 = vmatpush.bf16.xpose.msra.mxu0 0
        %2381 = vmatpush.bf16.xpose.msra.mxu0 0
        %2382 = vmatpush.bf16.xpose.msra.mxu0 0
        %2383 = vmatpush.bf16.xpose.msra.mxu0 0
        %2384 = vmatpush.bf16.xpose.msra.mxu0 0
        %2385 = vmatpush.bf16.xpose.msra.mxu0 0
        %2386 = vmatpush.bf16.xpose.msra.mxu0 0
        %2387 = vmatpush.bf16.xpose.msra.mxu0 %v2378
        %2388 = vmatmul.bf16.gmra.mxu0 %v2375
        %v2389 = vpop.f32.mrf.mxu0
        %v2390 = vadd.f32 %v1851, %v2389
        %v2391 = vpop.f32.mrf.mxu0
        %v2392 = vadd.f32 %v1852, %v2391
        %2393 = vdwg.mxu0
        %v2396 = vunpack.c.l.b16 %v1763
        %v2397 = vunpack.c.l.b16 %v1764
        %v2398 = vpack.c.b16 %v2397, %v2396
        %2399 = vrot.lane.b32.xlu0 %v2398, 96
        %v2400 = vpop.permute.xlu0 %2399
        %v2402 = vsel %vm1860, %v2398, 0
        %v2405 = vsel %vm1860, %v2400, 0
        %2407 = vmatpush.bf16.xpose.msra.mxu0 0
        %2408 = vmatpush.bf16.xpose.msra.mxu0 0
        %2409 = vmatpush.bf16.xpose.msra.mxu0 0
        %2410 = vmatpush.bf16.xpose.msra.mxu0 0
        %2411 = vmatpush.bf16.xpose.msra.mxu0 0
        %2412 = vmatpush.bf16.xpose.msra.mxu0 0
        %2413 = vmatpush.bf16.xpose.msra.mxu0 0
        %2414 = vmatpush.bf16.xpose.msra.mxu0 %v2405
        %2415 = vmatmul.bf16.gmra.mxu0 %v2402
        %v2416 = vpop.f32.mrf.mxu0
        %v2417 = vadd.f32 %v1851, %v2416
        %v2418 = vpop.f32.mrf.mxu0
        %v2419 = vadd.f32 %v1852, %v2418
        %2420 = vdwg.mxu0
        %v2423 = vunpack.c.l.b16 %v1765
        %v2424 = vunpack.c.l.b16 %v1766
        %v2425 = vpack.c.b16 %v2424, %v2423
        %2426 = vrot.lane.b32.xlu0 %v2425, 96
        %v2427 = vpop.permute.xlu0 %2426
        %v2429 = vsel %vm1860, %v2425, 0
        %v2432 = vsel %vm1860, %v2427, 0
        %2434 = vmatpush.bf16.xpose.msra.mxu0 0
        %2435 = vmatpush.bf16.xpose.msra.mxu0 0
        %2436 = vmatpush.bf16.xpose.msra.mxu0 0
        %2437 = vmatpush.bf16.xpose.msra.mxu0 0
        %2438 = vmatpush.bf16.xpose.msra.mxu0 0
        %2439 = vmatpush.bf16.xpose.msra.mxu0 0
        %2440 = vmatpush.bf16.xpose.msra.mxu0 0
        %2441 = vmatpush.bf16.xpose.msra.mxu0 %v2432
        %2442 = vmatmul.bf16.gmra.mxu0 %v2429
        %v2443 = vpop.f32.mrf.mxu0
        %v2444 = vadd.f32 %v1851, %v2443
        %v2445 = vpop.f32.mrf.mxu0
        %v2446 = vadd.f32 %v1852, %v2445
        %2447 = vdwg.mxu0
        %v2450 = vunpack.c.l.b16 %v1767
        %v2451 = vunpack.c.l.b16 %v1768
        %v2452 = vpack.c.b16 %v2451, %v2450
        %2453 = vrot.lane.b32.xlu0 %v2452, 96
        %v2454 = vpop.permute.xlu0 %2453
        %v2456 = vsel %vm1860, %v2452, 0
        %v2459 = vsel %vm1860, %v2454, 0
        %2461 = vmatpush.bf16.xpose.msra.mxu0 0
        %2462 = vmatpush.bf16.xpose.msra.mxu0 0
        %2463 = vmatpush.bf16.xpose.msra.mxu0 0
        %2464 = vmatpush.bf16.xpose.msra.mxu0 0
        %2465 = vmatpush.bf16.xpose.msra.mxu0 0
        %2466 = vmatpush.bf16.xpose.msra.mxu0 0
        %2467 = vmatpush.bf16.xpose.msra.mxu0 0
        %2468 = vmatpush.bf16.xpose.msra.mxu0 %v2459
        %2469 = vmatmul.bf16.gmra.mxu0 %v2456
        %v2470 = vpop.f32.mrf.mxu0
        %v2471 = vadd.f32 %v1851, %v2470
        %v2472 = vpop.f32.mrf.mxu0
        %v2473 = vadd.f32 %v1852, %v2472
        %2474 = vdwg.mxu0
        %v2477 = vunpack.c.l.b16 %v1769
        %v2478 = vunpack.c.l.b16 %v1770
        %v2479 = vpack.c.b16 %v2478, %v2477
        %2480 = vrot.lane.b32.xlu0 %v2479, 96
        %v2481 = vpop.permute.xlu0 %2480
        %v2483 = vsel %vm1860, %v2479, 0
        %v2486 = vsel %vm1860, %v2481, 0
        %2488 = vmatpush.bf16.xpose.msra.mxu0 0
        %2489 = vmatpush.bf16.xpose.msra.mxu0 0
        %2490 = vmatpush.bf16.xpose.msra.mxu0 0
        %2491 = vmatpush.bf16.xpose.msra.mxu0 0
        %2492 = vmatpush.bf16.xpose.msra.mxu0 0
        %2493 = vmatpush.bf16.xpose.msra.mxu0 0
        %2494 = vmatpush.bf16.xpose.msra.mxu0 0
        %2495 = vmatpush.bf16.xpose.msra.mxu0 %v2486
        %2496 = vmatmul.bf16.gmra.mxu0 %v2483
        %v2497 = vpop.f32.mrf.mxu0
        %v2498 = vadd.f32 %v1851, %v2497
        %v2499 = vpop.f32.mrf.mxu0
        %v2500 = vadd.f32 %v1852, %v2499
        %2501 = vdwg.mxu0
        %v2504 = vunpack.c.l.b16 %v1771
        %v2505 = vunpack.c.l.b16 %v1772
        %v2506 = vpack.c.b16 %v2505, %v2504
        %2507 = vrot.lane.b32.xlu0 %v2506, 96
        %v2508 = vpop.permute.xlu0 %2507
        %v2510 = vsel %vm1860, %v2506, 0
        %v2513 = vsel %vm1860, %v2508, 0
        %2515 = vmatpush.bf16.xpose.msra.mxu0 0
        %2516 = vmatpush.bf16.xpose.msra.mxu0 0
        %2517 = vmatpush.bf16.xpose.msra.mxu0 0
        %2518 = vmatpush.bf16.xpose.msra.mxu0 0
        %2519 = vmatpush.bf16.xpose.msra.mxu0 0
        %2520 = vmatpush.bf16.xpose.msra.mxu0 0
        %2521 = vmatpush.bf16.xpose.msra.mxu0 0
        %2522 = vmatpush.bf16.xpose.msra.mxu0 %v2513
        %2523 = vmatmul.bf16.gmra.mxu0 %v2510
        %v2524 = vpop.f32.mrf.mxu0
        %v2525 = vadd.f32 %v1851, %v2524
        %v2526 = vpop.f32.mrf.mxu0
        %v2527 = vadd.f32 %v1852, %v2526
        %2528 = vdwg.mxu0
        %v2531 = vunpack.c.l.b16 %v1773
        %v2532 = vunpack.c.l.b16 %v1774
        %v2533 = vpack.c.b16 %v2532, %v2531
        %2534 = vrot.lane.b32.xlu0 %v2533, 96
        %v2535 = vpop.permute.xlu0 %2534
        %v2537 = vsel %vm1860, %v2533, 0
        %v2540 = vsel %vm1860, %v2535, 0
        %2542 = vmatpush.bf16.xpose.msra.mxu0 0
        %2543 = vmatpush.bf16.xpose.msra.mxu0 0
        %2544 = vmatpush.bf16.xpose.msra.mxu0 0
        %2545 = vmatpush.bf16.xpose.msra.mxu0 0
        %2546 = vmatpush.bf16.xpose.msra.mxu0 0
        %2547 = vmatpush.bf16.xpose.msra.mxu0 0
        %2548 = vmatpush.bf16.xpose.msra.mxu0 0
        %2549 = vmatpush.bf16.xpose.msra.mxu0 %v2540
        %2550 = vmatmul.bf16.gmra.mxu0 %v2537
        %v2551 = vpop.f32.mrf.mxu0
        %v2552 = vadd.f32 %v1851, %v2551
        %v2553 = vpop.f32.mrf.mxu0
        %v2554 = vadd.f32 %v1852, %v2553
        %2555 = vdwg.mxu0
        %v2558 = vunpack.c.l.b16 %v1775
        %v2559 = vunpack.c.l.b16 %v1776
        %v2560 = vpack.c.b16 %v2559, %v2558
        %2561 = vrot.lane.b32.xlu0 %v2560, 96
        %v2562 = vpop.permute.xlu0 %2561
        %v2564 = vsel %vm1860, %v2560, 0
        %v2567 = vsel %vm1860, %v2562, 0
        %2569 = vmatpush.bf16.xpose.msra.mxu0 0
        %2570 = vmatpush.bf16.xpose.msra.mxu0 0
        %2571 = vmatpush.bf16.xpose.msra.mxu0 0
        %2572 = vmatpush.bf16.xpose.msra.mxu0 0
        %2573 = vmatpush.bf16.xpose.msra.mxu0 0
        %2574 = vmatpush.bf16.xpose.msra.mxu0 0
        %2575 = vmatpush.bf16.xpose.msra.mxu0 0
        %2576 = vmatpush.bf16.xpose.msra.mxu0 %v2567
        %2577 = vmatmul.bf16.gmra.mxu0 %v2564
        %v2578 = vpop.f32.mrf.mxu0
        %v2579 = vadd.f32 %v1851, %v2578
        %v2580 = vpop.f32.mrf.mxu0
        %v2581 = vadd.f32 %v1852, %v2580
        %2582 = vdwg.mxu0
        %v2585 = vunpack.c.l.b16 %v1777
        %v2586 = vunpack.c.l.b16 %v1778
        %v2587 = vpack.c.b16 %v2586, %v2585
        %2588 = vrot.lane.b32.xlu0 %v2587, 96
        %v2589 = vpop.permute.xlu0 %2588
        %v2591 = vsel %vm1860, %v2587, 0
        %v2594 = vsel %vm1860, %v2589, 0
        %2596 = vmatpush.bf16.xpose.msra.mxu0 0
        %2597 = vmatpush.bf16.xpose.msra.mxu0 0
        %2598 = vmatpush.bf16.xpose.msra.mxu0 0
        %2599 = vmatpush.bf16.xpose.msra.mxu0 0
        %2600 = vmatpush.bf16.xpose.msra.mxu0 0
        %2601 = vmatpush.bf16.xpose.msra.mxu0 0
        %2602 = vmatpush.bf16.xpose.msra.mxu0 0
        %2603 = vmatpush.bf16.xpose.msra.mxu0 %v2594
        %2604 = vmatmul.bf16.gmra.mxu0 %v2591
        %v2605 = vpop.f32.mrf.mxu0
        %v2606 = vadd.f32 %v1851, %v2605
        %v2607 = vpop.f32.mrf.mxu0
        %v2608 = vadd.f32 %v1852, %v2607
        %2609 = vdwg.mxu0
        %v2612 = vunpack.c.l.b16 %v1779
        %v2613 = vunpack.c.l.b16 %v1780
        %v2614 = vpack.c.b16 %v2613, %v2612
        %2615 = vrot.lane.b32.xlu0 %v2614, 96
        %v2616 = vpop.permute.xlu0 %2615
        %v2618 = vsel %vm1860, %v2614, 0
        %v2621 = vsel %vm1860, %v2616, 0
        %2623 = vmatpush.bf16.xpose.msra.mxu0 0
        %2624 = vmatpush.bf16.xpose.msra.mxu0 0
        %2625 = vmatpush.bf16.xpose.msra.mxu0 0
        %2626 = vmatpush.bf16.xpose.msra.mxu0 0
        %2627 = vmatpush.bf16.xpose.msra.mxu0 0
        %2628 = vmatpush.bf16.xpose.msra.mxu0 0
        %2629 = vmatpush.bf16.xpose.msra.mxu0 0
        %2630 = vmatpush.bf16.xpose.msra.mxu0 %v2621
        %2631 = vmatmul.bf16.gmra.mxu0 %v2618
        %v2632 = vpop.f32.mrf.mxu0
        %v2633 = vadd.f32 %v1851, %v2632
        %v2634 = vpop.f32.mrf.mxu0
        %v2635 = vadd.f32 %v1852, %v2634
        %2636 = vdwg.mxu0
        %v2639 = vunpack.c.l.b16 %v1781
        %v2640 = vunpack.c.l.b16 %v1782
        %v2641 = vpack.c.b16 %v2640, %v2639
        %2642 = vrot.lane.b32.xlu0 %v2641, 96
        %v2643 = vpop.permute.xlu0 %2642
        %v2645 = vsel %vm1860, %v2641, 0
        %v2648 = vsel %vm1860, %v2643, 0
        %2650 = vmatpush.bf16.xpose.msra.mxu0 0
        %2651 = vmatpush.bf16.xpose.msra.mxu0 0
        %2652 = vmatpush.bf16.xpose.msra.mxu0 0
        %2653 = vmatpush.bf16.xpose.msra.mxu0 0
        %2654 = vmatpush.bf16.xpose.msra.mxu0 0
        %2655 = vmatpush.bf16.xpose.msra.mxu0 0
        %2656 = vmatpush.bf16.xpose.msra.mxu0 0
        %2657 = vmatpush.bf16.xpose.msra.mxu0 %v2648
        %2658 = vmatmul.bf16.gmra.mxu0 %v2645
        %v2659 = vpop.f32.mrf.mxu0
        %v2660 = vadd.f32 %v1851, %v2659
        %v2661 = vpop.f32.mrf.mxu0
        %v2662 = vadd.f32 %v1852, %v2661
        %2663 = vdwg.mxu0
        %v2666 = vunpack.c.l.b16 %v1783
        %v2667 = vunpack.c.l.b16 %v1784
        %v2668 = vpack.c.b16 %v2667, %v2666
        %2669 = vrot.lane.b32.xlu0 %v2668, 96
        %v2670 = vpop.permute.xlu0 %2669
        %v2672 = vsel %vm1860, %v2668, 0
        %v2675 = vsel %vm1860, %v2670, 0
        %2677 = vmatpush.bf16.xpose.msra.mxu0 0
        %2678 = vmatpush.bf16.xpose.msra.mxu0 0
        %2679 = vmatpush.bf16.xpose.msra.mxu0 0
        %2680 = vmatpush.bf16.xpose.msra.mxu0 0
        %2681 = vmatpush.bf16.xpose.msra.mxu0 0
        %2682 = vmatpush.bf16.xpose.msra.mxu0 0
        %2683 = vmatpush.bf16.xpose.msra.mxu0 0
        %2684 = vmatpush.bf16.xpose.msra.mxu0 %v2675
        %2685 = vmatmul.bf16.gmra.mxu0 %v2672
        %v2686 = vpop.f32.mrf.mxu0
        %v2687 = vadd.f32 %v1851, %v2686
        %v2688 = vpop.f32.mrf.mxu0
        %v2689 = vadd.f32 %v1852, %v2688
        %2690 = vdwg.mxu0
        %v2693 = vunpack.c.l.b16 %v1785
        %v2694 = vunpack.c.l.b16 %v1786
        %v2695 = vpack.c.b16 %v2694, %v2693
        %2696 = vrot.lane.b32.xlu0 %v2695, 96
        %v2697 = vpop.permute.xlu0 %2696
        %v2699 = vsel %vm1860, %v2695, 0
        %v2702 = vsel %vm1860, %v2697, 0
        %2704 = vmatpush.bf16.xpose.msra.mxu0 0
        %2705 = vmatpush.bf16.xpose.msra.mxu0 0
        %2706 = vmatpush.bf16.xpose.msra.mxu0 0
        %2707 = vmatpush.bf16.xpose.msra.mxu0 0
        %2708 = vmatpush.bf16.xpose.msra.mxu0 0
        %2709 = vmatpush.bf16.xpose.msra.mxu0 0
        %2710 = vmatpush.bf16.xpose.msra.mxu0 0
        %2711 = vmatpush.bf16.xpose.msra.mxu0 %v2702
        %2712 = vmatmul.bf16.gmra.mxu0 %v2699
        %v2713 = vpop.f32.mrf.mxu0
        %v2714 = vadd.f32 %v1851, %v2713
        %v2715 = vpop.f32.mrf.mxu0
        %v2716 = vadd.f32 %v1852, %v2715
        %2717 = vdwg.mxu0
        %v2720 = vunpack.c.l.b16 %v1787
        %v2721 = vunpack.c.l.b16 %v1788
        %v2722 = vpack.c.b16 %v2721, %v2720
        %2723 = vrot.lane.b32.xlu0 %v2722, 96
        %v2724 = vpop.permute.xlu0 %2723
        %v2726 = vsel %vm1860, %v2722, 0
        %v2729 = vsel %vm1860, %v2724, 0
        %2731 = vmatpush.bf16.xpose.msra.mxu0 0
        %2732 = vmatpush.bf16.xpose.msra.mxu0 0
        %2733 = vmatpush.bf16.xpose.msra.mxu0 0
        %2734 = vmatpush.bf16.xpose.msra.mxu0 0
        %2735 = vmatpush.bf16.xpose.msra.mxu0 0
        %2736 = vmatpush.bf16.xpose.msra.mxu0 0
        %2737 = vmatpush.bf16.xpose.msra.mxu0 0
        %2738 = vmatpush.bf16.xpose.msra.mxu0 %v2729
        %2739 = vmatmul.bf16.gmra.mxu0 %v2726
        %v2740 = vpop.f32.mrf.mxu0
        %v2741 = vadd.f32 %v1851, %v2740
        %v2742 = vpop.f32.mrf.mxu0
        %v2743 = vadd.f32 %v1852, %v2742
        %2744 = vdwg.mxu0
        %v2747 = vunpack.c.l.b16 %v1789
        %v2748 = vunpack.c.l.b16 %v1790
        %v2749 = vpack.c.b16 %v2748, %v2747
        %2750 = vrot.lane.b32.xlu0 %v2749, 96
        %v2751 = vpop.permute.xlu0 %2750
        %v2753 = vsel %vm1860, %v2749, 0
        %v2756 = vsel %vm1860, %v2751, 0
        %2758 = vmatpush.bf16.xpose.msra.mxu0 0
        %2759 = vmatpush.bf16.xpose.msra.mxu0 0
        %2760 = vmatpush.bf16.xpose.msra.mxu0 0
        %2761 = vmatpush.bf16.xpose.msra.mxu0 0
        %2762 = vmatpush.bf16.xpose.msra.mxu0 0
        %2763 = vmatpush.bf16.xpose.msra.mxu0 0
        %2764 = vmatpush.bf16.xpose.msra.mxu0 0
        %2765 = vmatpush.bf16.xpose.msra.mxu0 %v2756
        %2766 = vmatmul.bf16.gmra.mxu0 %v2753
        %v2767 = vpop.f32.mrf.mxu0
        %v2768 = vadd.f32 %v1851, %v2767
        %v2769 = vpop.f32.mrf.mxu0
        %v2770 = vadd.f32 %v1852, %v2769
        %2771 = vdwg.mxu0
        %v2774 = vunpack.c.l.b16 %v1791
        %v2775 = vunpack.c.l.b16 %v1792
        %v2776 = vpack.c.b16 %v2775, %v2774
        %2777 = vrot.lane.b32.xlu0 %v2776, 96
        %v2778 = vpop.permute.xlu0 %2777
        %v2780 = vsel %vm1860, %v2776, 0
        %v2783 = vsel %vm1860, %v2778, 0
        %2785 = vmatpush.bf16.xpose.msra.mxu0 0
        %2786 = vmatpush.bf16.xpose.msra.mxu0 0
        %2787 = vmatpush.bf16.xpose.msra.mxu0 0
        %2788 = vmatpush.bf16.xpose.msra.mxu0 0
        %2789 = vmatpush.bf16.xpose.msra.mxu0 0
        %2790 = vmatpush.bf16.xpose.msra.mxu0 0
        %2791 = vmatpush.bf16.xpose.msra.mxu0 0
        %2792 = vmatpush.bf16.xpose.msra.mxu0 %v2783
        %2793 = vmatmul.bf16.gmra.mxu0 %v2780
        %v2794 = vpop.f32.mrf.mxu0
        %v2795 = vadd.f32 %v1851, %v2794
        %v2796 = vpop.f32.mrf.mxu0
        %v2797 = vadd.f32 %v1852, %v2796
        %2798 = vdwg.mxu0
        %v2801 = vunpack.c.l.b16 %v1793
        %v2802 = vunpack.c.l.b16 %v1794
        %v2803 = vpack.c.b16 %v2802, %v2801
        %2804 = vrot.lane.b32.xlu0 %v2803, 96
        %v2805 = vpop.permute.xlu0 %2804
        %v2807 = vsel %vm1860, %v2803, 0
        %v2810 = vsel %vm1860, %v2805, 0
        %2812 = vmatpush.bf16.xpose.msra.mxu0 0
        %2813 = vmatpush.bf16.xpose.msra.mxu0 0
        %2814 = vmatpush.bf16.xpose.msra.mxu0 0
        %2815 = vmatpush.bf16.xpose.msra.mxu0 0
        %2816 = vmatpush.bf16.xpose.msra.mxu0 0
        %2817 = vmatpush.bf16.xpose.msra.mxu0 0
        %2818 = vmatpush.bf16.xpose.msra.mxu0 0
        %2819 = vmatpush.bf16.xpose.msra.mxu0 %v2810
        %2820 = vmatmul.bf16.gmra.mxu0 %v2807
        %v2821 = vpop.f32.mrf.mxu0
        %v2822 = vadd.f32 %v1851, %v2821
        %v2823 = vpop.f32.mrf.mxu0
        %v2824 = vadd.f32 %v1852, %v2823
        %2825 = vdwg.mxu0
        %v2828 = vunpack.c.l.b16 %v1795
        %v2829 = vunpack.c.l.b16 %v1796
        %v2830 = vpack.c.b16 %v2829, %v2828
        %2831 = vrot.lane.b32.xlu0 %v2830, 96
        %v2832 = vpop.permute.xlu0 %2831
        %v2834 = vsel %vm1860, %v2830, 0
        %v2837 = vsel %vm1860, %v2832, 0
        %2839 = vmatpush.bf16.xpose.msra.mxu0 0
        %2840 = vmatpush.bf16.xpose.msra.mxu0 0
        %2841 = vmatpush.bf16.xpose.msra.mxu0 0
        %2842 = vmatpush.bf16.xpose.msra.mxu0 0
        %2843 = vmatpush.bf16.xpose.msra.mxu0 0
        %2844 = vmatpush.bf16.xpose.msra.mxu0 0
        %2845 = vmatpush.bf16.xpose.msra.mxu0 0
        %2846 = vmatpush.bf16.xpose.msra.mxu0 %v2837
        %2847 = vmatmul.bf16.gmra.mxu0 %v2834
        %v2848 = vpop.f32.mrf.mxu0
        %v2849 = vadd.f32 %v1851, %v2848
        %v2850 = vpop.f32.mrf.mxu0
        %v2851 = vadd.f32 %v1852, %v2850
        %2852 = vdwg.mxu0
        %v2855 = vunpack.c.l.b16 %v1797
        %v2856 = vunpack.c.l.b16 %v1798
        %v2857 = vpack.c.b16 %v2856, %v2855
        %2858 = vrot.lane.b32.xlu0 %v2857, 96
        %v2859 = vpop.permute.xlu0 %2858
        %v2861 = vsel %vm1860, %v2857, 0
        %v2864 = vsel %vm1860, %v2859, 0
        %2866 = vmatpush.bf16.xpose.msra.mxu0 0
        %2867 = vmatpush.bf16.xpose.msra.mxu0 0
        %2868 = vmatpush.bf16.xpose.msra.mxu0 0
        %2869 = vmatpush.bf16.xpose.msra.mxu0 0
        %2870 = vmatpush.bf16.xpose.msra.mxu0 0
        %2871 = vmatpush.bf16.xpose.msra.mxu0 0
        %2872 = vmatpush.bf16.xpose.msra.mxu0 0
        %2873 = vmatpush.bf16.xpose.msra.mxu0 %v2864
        %2874 = vmatmul.bf16.gmra.mxu0 %v2861
        %v2875 = vpop.f32.mrf.mxu0
        %v2876 = vadd.f32 %v1851, %v2875
        %v2877 = vpop.f32.mrf.mxu0
        %v2878 = vadd.f32 %v1852, %v2877
        %2879 = vdwg.mxu0
        %v2882 = vunpack.c.l.b16 %v1799
        %v2883 = vunpack.c.l.b16 %v1800
        %v2884 = vpack.c.b16 %v2883, %v2882
        %2885 = vrot.lane.b32.xlu0 %v2884, 96
        %v2886 = vpop.permute.xlu0 %2885
        %v2888 = vsel %vm1860, %v2884, 0
        %v2891 = vsel %vm1860, %v2886, 0
        %2893 = vmatpush.bf16.xpose.msra.mxu0 0
        %2894 = vmatpush.bf16.xpose.msra.mxu0 0
        %2895 = vmatpush.bf16.xpose.msra.mxu0 0
        %2896 = vmatpush.bf16.xpose.msra.mxu0 0
        %2897 = vmatpush.bf16.xpose.msra.mxu0 0
        %2898 = vmatpush.bf16.xpose.msra.mxu0 0
        %2899 = vmatpush.bf16.xpose.msra.mxu0 0
        %2900 = vmatpush.bf16.xpose.msra.mxu0 %v2891
        %2901 = vmatmul.bf16.gmra.mxu0 %v2888
        %v2902 = vpop.f32.mrf.mxu0
        %v2903 = vadd.f32 %v1851, %v2902
        %v2904 = vpop.f32.mrf.mxu0
        %v2905 = vadd.f32 %v1852, %v2904
        %2906 = vdwg.mxu0
        %v2909 = vunpack.c.l.b16 %v1801
        %v2910 = vunpack.c.l.b16 %v1802
        %v2911 = vpack.c.b16 %v2910, %v2909
        %2912 = vrot.lane.b32.xlu0 %v2911, 96
        %v2913 = vpop.permute.xlu0 %2912
        %v2915 = vsel %vm1860, %v2911, 0
        %v2918 = vsel %vm1860, %v2913, 0
        %2920 = vmatpush.bf16.xpose.msra.mxu0 0
        %2921 = vmatpush.bf16.xpose.msra.mxu0 0
        %2922 = vmatpush.bf16.xpose.msra.mxu0 0
        %2923 = vmatpush.bf16.xpose.msra.mxu0 0
        %2924 = vmatpush.bf16.xpose.msra.mxu0 0
        %2925 = vmatpush.bf16.xpose.msra.mxu0 0
        %2926 = vmatpush.bf16.xpose.msra.mxu0 0
        %2927 = vmatpush.bf16.xpose.msra.mxu0 %v2918
        %2928 = vmatmul.bf16.gmra.mxu0 %v2915
        %v2929 = vpop.f32.mrf.mxu0
        %v2930 = vadd.f32 %v1851, %v2929
        %v2931 = vpop.f32.mrf.mxu0
        %v2932 = vadd.f32 %v1852, %v2931
        %2933 = vdwg.mxu0
        %v2936 = vunpack.c.l.b16 %v1803
        %v2937 = vunpack.c.l.b16 %v1804
        %v2938 = vpack.c.b16 %v2937, %v2936
        %2939 = vrot.lane.b32.xlu0 %v2938, 96
        %v2940 = vpop.permute.xlu0 %2939
        %v2942 = vsel %vm1860, %v2938, 0
        %v2945 = vsel %vm1860, %v2940, 0
        %2947 = vmatpush.bf16.xpose.msra.mxu0 0
        %2948 = vmatpush.bf16.xpose.msra.mxu0 0
        %2949 = vmatpush.bf16.xpose.msra.mxu0 0
        %2950 = vmatpush.bf16.xpose.msra.mxu0 0
        %2951 = vmatpush.bf16.xpose.msra.mxu0 0
        %2952 = vmatpush.bf16.xpose.msra.mxu0 0
        %2953 = vmatpush.bf16.xpose.msra.mxu0 0
        %2954 = vmatpush.bf16.xpose.msra.mxu0 %v2945
        %2955 = vmatmul.bf16.gmra.mxu0 %v2942
        %v2956 = vpop.f32.mrf.mxu0
        %v2957 = vadd.f32 %v1851, %v2956
        %v2958 = vpop.f32.mrf.mxu0
        %v2959 = vadd.f32 %v1852, %v2958
        %2960 = vdwg.mxu0
        %v2963 = vunpack.c.l.b16 %v1805
        %v2964 = vunpack.c.l.b16 %v1806
        %v2965 = vpack.c.b16 %v2964, %v2963
        %2966 = vrot.lane.b32.xlu0 %v2965, 96
        %v2967 = vpop.permute.xlu0 %2966
        %v2969 = vsel %vm1860, %v2965, 0
        %v2972 = vsel %vm1860, %v2967, 0
        %2974 = vmatpush.bf16.xpose.msra.mxu0 0
        %2975 = vmatpush.bf16.xpose.msra.mxu0 0
        %2976 = vmatpush.bf16.xpose.msra.mxu0 0
        %2977 = vmatpush.bf16.xpose.msra.mxu0 0
        %2978 = vmatpush.bf16.xpose.msra.mxu0 0
        %2979 = vmatpush.bf16.xpose.msra.mxu0 0
        %2980 = vmatpush.bf16.xpose.msra.mxu0 0
        %2981 = vmatpush.bf16.xpose.msra.mxu0 %v2972
        %2982 = vmatmul.bf16.gmra.mxu0 %v2969
        %v2983 = vpop.f32.mrf.mxu0
        %v2984 = vadd.f32 %v1851, %v2983
        %v2985 = vpop.f32.mrf.mxu0
        %v2986 = vadd.f32 %v1852, %v2985
        %2987 = vdwg.mxu0
        %v2990 = vunpack.c.l.b16 %v1807
        %v2991 = vunpack.c.l.b16 %v1808
        %v2992 = vpack.c.b16 %v2991, %v2990
        %2993 = vrot.lane.b32.xlu0 %v2992, 96
        %v2994 = vpop.permute.xlu0 %2993
        %v2996 = vsel %vm1860, %v2992, 0
        %v2999 = vsel %vm1860, %v2994, 0
        %3001 = vmatpush.bf16.xpose.msra.mxu0 0
        %3002 = vmatpush.bf16.xpose.msra.mxu0 0
        %3003 = vmatpush.bf16.xpose.msra.mxu0 0
        %3004 = vmatpush.bf16.xpose.msra.mxu0 0
        %3005 = vmatpush.bf16.xpose.msra.mxu0 0
        %3006 = vmatpush.bf16.xpose.msra.mxu0 0
        %3007 = vmatpush.bf16.xpose.msra.mxu0 0
        %3008 = vmatpush.bf16.xpose.msra.mxu0 %v2999
        %3009 = vmatmul.bf16.gmra.mxu0 %v2996
        %v3010 = vpop.f32.mrf.mxu0
        %v3011 = vadd.f32 %v1851, %v3010
        %v3012 = vpop.f32.mrf.mxu0
        %v3013 = vadd.f32 %v1852, %v3012
        %3014 = vdwg.mxu0
        %v3017 = vunpack.c.l.b16 %v1809
        %v3018 = vunpack.c.l.b16 %v1810
        %v3019 = vpack.c.b16 %v3018, %v3017
        %3020 = vrot.lane.b32.xlu0 %v3019, 96
        %v3021 = vpop.permute.xlu0 %3020
        %v3023 = vsel %vm1860, %v3019, 0
        %v3026 = vsel %vm1860, %v3021, 0
        %3028 = vmatpush.bf16.xpose.msra.mxu0 0
        %3029 = vmatpush.bf16.xpose.msra.mxu0 0
        %3030 = vmatpush.bf16.xpose.msra.mxu0 0
        %3031 = vmatpush.bf16.xpose.msra.mxu0 0
        %3032 = vmatpush.bf16.xpose.msra.mxu0 0
        %3033 = vmatpush.bf16.xpose.msra.mxu0 0
        %3034 = vmatpush.bf16.xpose.msra.mxu0 0
        %3035 = vmatpush.bf16.xpose.msra.mxu0 %v3026
        %3036 = vmatmul.bf16.gmra.mxu0 %v3023
        %v3037 = vpop.f32.mrf.mxu0
        %v3038 = vadd.f32 %v1851, %v3037
        %v3039 = vpop.f32.mrf.mxu0
        %v3040 = vadd.f32 %v1852, %v3039
        %3041 = vdwg.mxu0
        %v3044 = vunpack.c.l.b16 %v1811
        %v3045 = vunpack.c.l.b16 %v1812
        %v3046 = vpack.c.b16 %v3045, %v3044
        %3047 = vrot.lane.b32.xlu0 %v3046, 96
        %v3048 = vpop.permute.xlu0 %3047
        %v3050 = vsel %vm1860, %v3046, 0
        %v3053 = vsel %vm1860, %v3048, 0
        %3055 = vmatpush.bf16.xpose.msra.mxu0 0
        %3056 = vmatpush.bf16.xpose.msra.mxu0 0
        %3057 = vmatpush.bf16.xpose.msra.mxu0 0
        %3058 = vmatpush.bf16.xpose.msra.mxu0 0
        %3059 = vmatpush.bf16.xpose.msra.mxu0 0
        %3060 = vmatpush.bf16.xpose.msra.mxu0 0
        %3061 = vmatpush.bf16.xpose.msra.mxu0 0
        %3062 = vmatpush.bf16.xpose.msra.mxu0 %v3053
        %3063 = vmatmul.bf16.gmra.mxu0 %v3050
        %v3064 = vpop.f32.mrf.mxu0
        %v3065 = vadd.f32 %v1851, %v3064
        %v3066 = vpop.f32.mrf.mxu0
        %v3067 = vadd.f32 %v1852, %v3066
        %3068 = vdwg.mxu0
        %v3071 = vunpack.c.l.b16 %v1813
        %v3072 = vunpack.c.l.b16 %v1814
        %v3073 = vpack.c.b16 %v3072, %v3071
        %3074 = vrot.lane.b32.xlu0 %v3073, 96
        %v3075 = vpop.permute.xlu0 %3074
        %v3077 = vsel %vm1860, %v3073, 0
        %v3080 = vsel %vm1860, %v3075, 0
        %3082 = vmatpush.bf16.xpose.msra.mxu0 0
        %3083 = vmatpush.bf16.xpose.msra.mxu0 0
        %3084 = vmatpush.bf16.xpose.msra.mxu0 0
        %3085 = vmatpush.bf16.xpose.msra.mxu0 0
        %3086 = vmatpush.bf16.xpose.msra.mxu0 0
        %3087 = vmatpush.bf16.xpose.msra.mxu0 0
        %3088 = vmatpush.bf16.xpose.msra.mxu0 0
        %3089 = vmatpush.bf16.xpose.msra.mxu0 %v3080
        %3090 = vmatmul.bf16.gmra.mxu0 %v3077
        %v3091 = vpop.f32.mrf.mxu0
        %v3092 = vadd.f32 %v1851, %v3091
        %v3093 = vpop.f32.mrf.mxu0
        %v3094 = vadd.f32 %v1852, %v3093
        %3095 = vdwg.mxu0
        %v3098 = vunpack.c.l.b16 %v1815
        %v3099 = vunpack.c.l.b16 %v1816
        %v3100 = vpack.c.b16 %v3099, %v3098
        %3101 = vrot.lane.b32.xlu0 %v3100, 96
        %v3102 = vpop.permute.xlu0 %3101
        %v3104 = vsel %vm1860, %v3100, 0
        %v3107 = vsel %vm1860, %v3102, 0
        %3109 = vmatpush.bf16.xpose.msra.mxu0 0
        %3110 = vmatpush.bf16.xpose.msra.mxu0 0
        %3111 = vmatpush.bf16.xpose.msra.mxu0 0
        %3112 = vmatpush.bf16.xpose.msra.mxu0 0
        %3113 = vmatpush.bf16.xpose.msra.mxu0 0
        %3114 = vmatpush.bf16.xpose.msra.mxu0 0
        %3115 = vmatpush.bf16.xpose.msra.mxu0 0
        %3116 = vmatpush.bf16.xpose.msra.mxu0 %v3107
        %3117 = vmatmul.bf16.gmra.mxu0 %v3104
        %v3118 = vpop.f32.mrf.mxu0
        %v3119 = vadd.f32 %v1851, %v3118
        %v3120 = vpop.f32.mrf.mxu0
        %v3121 = vadd.f32 %v1852, %v3120
        %3122 = vdwg.mxu0
        %v3125 = vunpack.c.l.b16 %v1817
        %v3126 = vunpack.c.l.b16 %v1818
        %v3127 = vpack.c.b16 %v3126, %v3125
        %3128 = vrot.lane.b32.xlu0 %v3127, 96
        %v3129 = vpop.permute.xlu0 %3128
        %v3131 = vsel %vm1860, %v3127, 0
        %v3134 = vsel %vm1860, %v3129, 0
        %3136 = vmatpush.bf16.xpose.msra.mxu0 0
        %3137 = vmatpush.bf16.xpose.msra.mxu0 0
        %3138 = vmatpush.bf16.xpose.msra.mxu0 0
        %3139 = vmatpush.bf16.xpose.msra.mxu0 0
        %3140 = vmatpush.bf16.xpose.msra.mxu0 0
        %3141 = vmatpush.bf16.xpose.msra.mxu0 0
        %3142 = vmatpush.bf16.xpose.msra.mxu0 0
        %3143 = vmatpush.bf16.xpose.msra.mxu0 %v3134
        %3144 = vmatmul.bf16.gmra.mxu0 %v3131
        %v3145 = vpop.f32.mrf.mxu0
        %v3146 = vadd.f32 %v1851, %v3145
        %v3147 = vpop.f32.mrf.mxu0
        %v3148 = vadd.f32 %v1852, %v3147
        %3149 = vdwg.mxu0
        %v3152 = vunpack.c.l.b16 %v1819
        %v3153 = vunpack.c.l.b16 %v1820
        %v3154 = vpack.c.b16 %v3153, %v3152
        %3155 = vrot.lane.b32.xlu0 %v3154, 96
        %v3156 = vpop.permute.xlu0 %3155
        %v3158 = vsel %vm1860, %v3154, 0
        %v3161 = vsel %vm1860, %v3156, 0
        %3163 = vmatpush.bf16.xpose.msra.mxu0 0
        %3164 = vmatpush.bf16.xpose.msra.mxu0 0
        %3165 = vmatpush.bf16.xpose.msra.mxu0 0
        %3166 = vmatpush.bf16.xpose.msra.mxu0 0
        %3167 = vmatpush.bf16.xpose.msra.mxu0 0
        %3168 = vmatpush.bf16.xpose.msra.mxu0 0
        %3169 = vmatpush.bf16.xpose.msra.mxu0 0
        %3170 = vmatpush.bf16.xpose.msra.mxu0 %v3161
        %3171 = vmatmul.bf16.gmra.mxu0 %v3158
        %v3172 = vpop.f32.mrf.mxu0
        %v3173 = vadd.f32 %v1851, %v3172
        %v3174 = vpop.f32.mrf.mxu0
        %v3175 = vadd.f32 %v1852, %v3174
        %3176 = vdwg.mxu0
        %v3179 = vunpack.c.l.b16 %v1821
        %v3180 = vunpack.c.l.b16 %v1822
        %v3181 = vpack.c.b16 %v3180, %v3179
        %3182 = vrot.lane.b32.xlu0 %v3181, 96
        %v3183 = vpop.permute.xlu0 %3182
        %v3185 = vsel %vm1860, %v3181, 0
        %v3188 = vsel %vm1860, %v3183, 0
        %3190 = vmatpush.bf16.xpose.msra.mxu0 0
        %3191 = vmatpush.bf16.xpose.msra.mxu0 0
        %3192 = vmatpush.bf16.xpose.msra.mxu0 0
        %3193 = vmatpush.bf16.xpose.msra.mxu0 0
        %3194 = vmatpush.bf16.xpose.msra.mxu0 0
        %3195 = vmatpush.bf16.xpose.msra.mxu0 0
        %3196 = vmatpush.bf16.xpose.msra.mxu0 0
        %3197 = vmatpush.bf16.xpose.msra.mxu0 %v3188
        %3198 = vmatmul.bf16.gmra.mxu0 %v3185
        %v3199 = vpop.f32.mrf.mxu0
        %v3200 = vadd.f32 %v1851, %v3199
        %v3201 = vpop.f32.mrf.mxu0
        %v3202 = vadd.f32 %v1852, %v3201
        %3203 = vdwg.mxu0
        %v3206 = vunpack.c.l.b16 %v1823
        %v3207 = vunpack.c.l.b16 %v1824
        %v3208 = vpack.c.b16 %v3207, %v3206
        %3209 = vrot.lane.b32.xlu0 %v3208, 96
        %v3210 = vpop.permute.xlu0 %3209
        %v3212 = vsel %vm1860, %v3208, 0
        %v3215 = vsel %vm1860, %v3210, 0
        %3217 = vmatpush.bf16.xpose.msra.mxu0 0
        %3218 = vmatpush.bf16.xpose.msra.mxu0 0
        %3219 = vmatpush.bf16.xpose.msra.mxu0 0
        %3220 = vmatpush.bf16.xpose.msra.mxu0 0
        %3221 = vmatpush.bf16.xpose.msra.mxu0 0
        %3222 = vmatpush.bf16.xpose.msra.mxu0 0
        %3223 = vmatpush.bf16.xpose.msra.mxu0 0
        %3224 = vmatpush.bf16.xpose.msra.mxu0 %v3215
        %3225 = vmatmul.bf16.gmra.mxu0 %v3212
        %v3226 = vpop.f32.mrf.mxu0
        %v3227 = vadd.f32 %v1851, %v3226
        %v3228 = vpop.f32.mrf.mxu0
        %v3229 = vadd.f32 %v1852, %v3228
        %3230 = vdwg.mxu0
        %v3233 = vunpack.c.l.b16 %v1825
        %v3234 = vunpack.c.l.b16 %v1826
        %v3235 = vpack.c.b16 %v3234, %v3233
        %3236 = vrot.lane.b32.xlu0 %v3235, 96
        %v3237 = vpop.permute.xlu0 %3236
        %v3239 = vsel %vm1860, %v3235, 0
        %v3242 = vsel %vm1860, %v3237, 0
        %3244 = vmatpush.bf16.xpose.msra.mxu0 0
        %3245 = vmatpush.bf16.xpose.msra.mxu0 0
        %3246 = vmatpush.bf16.xpose.msra.mxu0 0
        %3247 = vmatpush.bf16.xpose.msra.mxu0 0
        %3248 = vmatpush.bf16.xpose.msra.mxu0 0
        %3249 = vmatpush.bf16.xpose.msra.mxu0 0
        %3250 = vmatpush.bf16.xpose.msra.mxu0 0
        %3251 = vmatpush.bf16.xpose.msra.mxu0 %v3242
        %3252 = vmatmul.bf16.gmra.mxu0 %v3239
        %v3253 = vpop.f32.mrf.mxu0
        %v3254 = vadd.f32 %v1851, %v3253
        %v3255 = vpop.f32.mrf.mxu0
        %v3256 = vadd.f32 %v1852, %v3255
        %3257 = vdwg.mxu0
        %v3260 = vunpack.c.l.b16 %v1827
        %v3261 = vunpack.c.l.b16 %v1828
        %v3262 = vpack.c.b16 %v3261, %v3260
        %3263 = vrot.lane.b32.xlu0 %v3262, 96
        %v3264 = vpop.permute.xlu0 %3263
        %v3266 = vsel %vm1860, %v3262, 0
        %v3269 = vsel %vm1860, %v3264, 0
        %3271 = vmatpush.bf16.xpose.msra.mxu0 0
        %3272 = vmatpush.bf16.xpose.msra.mxu0 0
        %3273 = vmatpush.bf16.xpose.msra.mxu0 0
        %3274 = vmatpush.bf16.xpose.msra.mxu0 0
        %3275 = vmatpush.bf16.xpose.msra.mxu0 0
        %3276 = vmatpush.bf16.xpose.msra.mxu0 0
        %3277 = vmatpush.bf16.xpose.msra.mxu0 0
        %3278 = vmatpush.bf16.xpose.msra.mxu0 %v3269
        %3279 = vmatmul.bf16.gmra.mxu0 %v3266
        %v3280 = vpop.f32.mrf.mxu0
        %v3281 = vadd.f32 %v1851, %v3280
        %v3282 = vpop.f32.mrf.mxu0
        %v3283 = vadd.f32 %v1852, %v3282
        %3284 = vdwg.mxu0
        %v3287 = vunpack.c.l.b16 %v1829
        %v3288 = vunpack.c.l.b16 %v1830
        %v3289 = vpack.c.b16 %v3288, %v3287
        %3290 = vrot.lane.b32.xlu0 %v3289, 96
        %v3291 = vpop.permute.xlu0 %3290
        %v3293 = vsel %vm1860, %v3289, 0
        %v3296 = vsel %vm1860, %v3291, 0
        %3298 = vmatpush.bf16.xpose.msra.mxu0 0
        %3299 = vmatpush.bf16.xpose.msra.mxu0 0
        %3300 = vmatpush.bf16.xpose.msra.mxu0 0
        %3301 = vmatpush.bf16.xpose.msra.mxu0 0
        %3302 = vmatpush.bf16.xpose.msra.mxu0 0
        %3303 = vmatpush.bf16.xpose.msra.mxu0 0
        %3304 = vmatpush.bf16.xpose.msra.mxu0 0
        %3305 = vmatpush.bf16.xpose.msra.mxu0 %v3296
        %3306 = vmatmul.bf16.gmra.mxu0 %v3293
        %v3307 = vpop.f32.mrf.mxu0
        %v3308 = vadd.f32 %v1851, %v3307
        %v3309 = vpop.f32.mrf.mxu0
        %v3310 = vadd.f32 %v1852, %v3309
        %3311 = vdwg.mxu0
        %v3314 = vunpack.c.l.b16 %v1831
        %v3315 = vunpack.c.l.b16 %v1832
        %v3316 = vpack.c.b16 %v3315, %v3314
        %3317 = vrot.lane.b32.xlu0 %v3316, 96
        %v3318 = vpop.permute.xlu0 %3317
        %v3320 = vsel %vm1860, %v3316, 0
        %v3323 = vsel %vm1860, %v3318, 0
        %3325 = vmatpush.bf16.xpose.msra.mxu0 0
        %3326 = vmatpush.bf16.xpose.msra.mxu0 0
        %3327 = vmatpush.bf16.xpose.msra.mxu0 0
        %3328 = vmatpush.bf16.xpose.msra.mxu0 0
        %3329 = vmatpush.bf16.xpose.msra.mxu0 0
        %3330 = vmatpush.bf16.xpose.msra.mxu0 0
        %3331 = vmatpush.bf16.xpose.msra.mxu0 0
        %3332 = vmatpush.bf16.xpose.msra.mxu0 %v3323
        %3333 = vmatmul.bf16.gmra.mxu0 %v3320
        %v3334 = vpop.f32.mrf.mxu0
        %v3335 = vadd.f32 %v1851, %v3334
        %v3336 = vpop.f32.mrf.mxu0
        %v3337 = vadd.f32 %v1852, %v3336
        %3338 = vdwg.mxu0
        %v3341 = vunpack.c.l.b16 %v1833
        %v3342 = vunpack.c.l.b16 %v1834
        %v3343 = vpack.c.b16 %v3342, %v3341
        %3344 = vrot.lane.b32.xlu0 %v3343, 96
        %v3345 = vpop.permute.xlu0 %3344
        %v3347 = vsel %vm1860, %v3343, 0
        %v3350 = vsel %vm1860, %v3345, 0
        %3352 = vmatpush.bf16.xpose.msra.mxu0 0
        %3353 = vmatpush.bf16.xpose.msra.mxu0 0
        %3354 = vmatpush.bf16.xpose.msra.mxu0 0
        %3355 = vmatpush.bf16.xpose.msra.mxu0 0
        %3356 = vmatpush.bf16.xpose.msra.mxu0 0
        %3357 = vmatpush.bf16.xpose.msra.mxu0 0
        %3358 = vmatpush.bf16.xpose.msra.mxu0 0
        %3359 = vmatpush.bf16.xpose.msra.mxu0 %v3350
        %3360 = vmatmul.bf16.gmra.mxu0 %v3347
        %v3361 = vpop.f32.mrf.mxu0
        %v3362 = vadd.f32 %v1851, %v3361
        %v3363 = vpop.f32.mrf.mxu0
        %v3364 = vadd.f32 %v1852, %v3363
        %3365 = vdwg.mxu0
        %v3368 = vunpack.c.l.b16 %v1835
        %v3369 = vunpack.c.l.b16 %v1836
        %v3370 = vpack.c.b16 %v3369, %v3368
        %3371 = vrot.lane.b32.xlu0 %v3370, 96
        %v3372 = vpop.permute.xlu0 %3371
        %v3374 = vsel %vm1860, %v3370, 0
        %v3377 = vsel %vm1860, %v3372, 0
        %3379 = vmatpush.bf16.xpose.msra.mxu0 0
        %3380 = vmatpush.bf16.xpose.msra.mxu0 0
        %3381 = vmatpush.bf16.xpose.msra.mxu0 0
        %3382 = vmatpush.bf16.xpose.msra.mxu0 0
        %3383 = vmatpush.bf16.xpose.msra.mxu0 0
        %3384 = vmatpush.bf16.xpose.msra.mxu0 0
        %3385 = vmatpush.bf16.xpose.msra.mxu0 0
        %3386 = vmatpush.bf16.xpose.msra.mxu0 %v3377
        %3387 = vmatmul.bf16.gmra.mxu0 %v3374
        %v3388 = vpop.f32.mrf.mxu0
        %v3389 = vadd.f32 %v1851, %v3388
        %v3390 = vpop.f32.mrf.mxu0
        %v3391 = vadd.f32 %v1852, %v3390
        %3392 = vdwg.mxu0
        %v3395 = vunpack.c.l.b16 %v1837
        %v3396 = vunpack.c.l.b16 %v1838
        %v3397 = vpack.c.b16 %v3396, %v3395
        %3398 = vrot.lane.b32.xlu0 %v3397, 96
        %v3399 = vpop.permute.xlu0 %3398
        %v3401 = vsel %vm1860, %v3397, 0
        %v3404 = vsel %vm1860, %v3399, 0
        %3406 = vmatpush.bf16.xpose.msra.mxu0 0
        %3407 = vmatpush.bf16.xpose.msra.mxu0 0
        %3408 = vmatpush.bf16.xpose.msra.mxu0 0
        %3409 = vmatpush.bf16.xpose.msra.mxu0 0
        %3410 = vmatpush.bf16.xpose.msra.mxu0 0
        %3411 = vmatpush.bf16.xpose.msra.mxu0 0
        %3412 = vmatpush.bf16.xpose.msra.mxu0 0
        %3413 = vmatpush.bf16.xpose.msra.mxu0 %v3404
        %3414 = vmatmul.bf16.gmra.mxu0 %v3401
        %v3415 = vpop.f32.mrf.mxu0
        %v3416 = vadd.f32 %v1851, %v3415
        %v3417 = vpop.f32.mrf.mxu0
        %v3418 = vadd.f32 %v1852, %v3417
        %3419 = vdwg.mxu0
        %v3422 = vunpack.c.l.b16 %v1839
        %v3423 = vunpack.c.l.b16 %v1840
        %v3424 = vpack.c.b16 %v3423, %v3422
        %3425 = vrot.lane.b32.xlu0 %v3424, 96
        %v3426 = vpop.permute.xlu0 %3425
        %v3428 = vsel %vm1860, %v3424, 0
        %v3431 = vsel %vm1860, %v3426, 0
        %3433 = vmatpush.bf16.xpose.msra.mxu0 0
        %3434 = vmatpush.bf16.xpose.msra.mxu0 0
        %3435 = vmatpush.bf16.xpose.msra.mxu0 0
        %3436 = vmatpush.bf16.xpose.msra.mxu0 0
        %3437 = vmatpush.bf16.xpose.msra.mxu0 0
        %3438 = vmatpush.bf16.xpose.msra.mxu0 0
        %3439 = vmatpush.bf16.xpose.msra.mxu0 0
        %3440 = vmatpush.bf16.xpose.msra.mxu0 %v3431
        %3441 = vmatmul.bf16.gmra.mxu0 %v3428
        %v3442 = vpop.f32.mrf.mxu0
        %v3443 = vadd.f32 %v1851, %v3442
        %v3444 = vpop.f32.mrf.mxu0
        %v3445 = vadd.f32 %v1852, %v3444
        %3446 = vdwg.mxu0
        %v3449 = vunpack.c.l.b16 %v1841
        %v3450 = vunpack.c.l.b16 %v1842
        %v3451 = vpack.c.b16 %v3450, %v3449
        %3452 = vrot.lane.b32.xlu0 %v3451, 96
        %v3453 = vpop.permute.xlu0 %3452
        %v3455 = vsel %vm1860, %v3451, 0
        %v3458 = vsel %vm1860, %v3453, 0
        %3460 = vmatpush.bf16.xpose.msra.mxu0 0
        %3461 = vmatpush.bf16.xpose.msra.mxu0 0
        %3462 = vmatpush.bf16.xpose.msra.mxu0 0
        %3463 = vmatpush.bf16.xpose.msra.mxu0 0
        %3464 = vmatpush.bf16.xpose.msra.mxu0 0
        %3465 = vmatpush.bf16.xpose.msra.mxu0 0
        %3466 = vmatpush.bf16.xpose.msra.mxu0 0
        %3467 = vmatpush.bf16.xpose.msra.mxu0 %v3458
        %3468 = vmatmul.bf16.gmra.mxu0 %v3455
        %v3469 = vpop.f32.mrf.mxu0
        %v3470 = vadd.f32 %v1851, %v3469
        %v3471 = vpop.f32.mrf.mxu0
        %v3472 = vadd.f32 %v1852, %v3471
        %3473 = vdwg.mxu0
        %v3476 = vunpack.c.l.b16 %v1843
        %v3477 = vunpack.c.l.b16 %v1844
        %v3478 = vpack.c.b16 %v3477, %v3476
        %3479 = vrot.lane.b32.xlu0 %v3478, 96
        %v3480 = vpop.permute.xlu0 %3479
        %v3482 = vsel %vm1860, %v3478, 0
        %v3485 = vsel %vm1860, %v3480, 0
        %3487 = vmatpush.bf16.xpose.msra.mxu0 0
        %3488 = vmatpush.bf16.xpose.msra.mxu0 0
        %3489 = vmatpush.bf16.xpose.msra.mxu0 0
        %3490 = vmatpush.bf16.xpose.msra.mxu0 0
        %3491 = vmatpush.bf16.xpose.msra.mxu0 0
        %3492 = vmatpush.bf16.xpose.msra.mxu0 0
        %3493 = vmatpush.bf16.xpose.msra.mxu0 0
        %3494 = vmatpush.bf16.xpose.msra.mxu0 %v3485
        %3495 = vmatmul.bf16.gmra.mxu0 %v3482
        %v3496 = vpop.f32.mrf.mxu0
        %v3497 = vadd.f32 %v1851, %v3496
        %v3498 = vpop.f32.mrf.mxu0
        %v3499 = vadd.f32 %v1852, %v3498
        %3500 = vdwg.mxu0
        %v3503 = vunpack.c.l.b16 %v1845
        %v3504 = vunpack.c.l.b16 %v1846
        %v3505 = vpack.c.b16 %v3504, %v3503
        %3506 = vrot.lane.b32.xlu0 %v3505, 96
        %v3507 = vpop.permute.xlu0 %3506
        %v3509 = vsel %vm1860, %v3505, 0
        %v3512 = vsel %vm1860, %v3507, 0
        %3514 = vmatpush.bf16.xpose.msra.mxu0 0
        %3515 = vmatpush.bf16.xpose.msra.mxu0 0
        %3516 = vmatpush.bf16.xpose.msra.mxu0 0
        %3517 = vmatpush.bf16.xpose.msra.mxu0 0
        %3518 = vmatpush.bf16.xpose.msra.mxu0 0
        %3519 = vmatpush.bf16.xpose.msra.mxu0 0
        %3520 = vmatpush.bf16.xpose.msra.mxu0 0
        %3521 = vmatpush.bf16.xpose.msra.mxu0 %v3512
        %3522 = vmatmul.bf16.gmra.mxu0 %v3509
        %v3523 = vpop.f32.mrf.mxu0
        %v3524 = vadd.f32 %v1851, %v3523
        %v3525 = vpop.f32.mrf.mxu0
        %v3526 = vadd.f32 %v1852, %v3525
        %3527 = vdwg.mxu0
        %v3530 = vunpack.c.l.b16 %v1847
        %v3531 = vunpack.c.l.b16 %v1848
        %v3532 = vpack.c.b16 %v3531, %v3530
        %3533 = vrot.lane.b32.xlu0 %v3532, 96
        %v3534 = vpop.permute.xlu0 %3533
        %v3536 = vsel %vm1860, %v3532, 0
        %v3539 = vsel %vm1860, %v3534, 0
        %3541 = vmatpush.bf16.xpose.msra.mxu0 0
        %3542 = vmatpush.bf16.xpose.msra.mxu0 0
        %3543 = vmatpush.bf16.xpose.msra.mxu0 0
        %3544 = vmatpush.bf16.xpose.msra.mxu0 0
        %3545 = vmatpush.bf16.xpose.msra.mxu0 0
        %3546 = vmatpush.bf16.xpose.msra.mxu0 0
        %3547 = vmatpush.bf16.xpose.msra.mxu0 0
        %3548 = vmatpush.bf16.xpose.msra.mxu0 %v3539
        %3549 = vmatmul.bf16.gmra.mxu0 %v3536
        %v3550 = vpop.f32.mrf.mxu0
        %v3551 = vadd.f32 %v1851, %v3550
        %v3552 = vpop.f32.mrf.mxu0
        %v3553 = vadd.f32 %v1852, %v3552
        %3554 = vdwg.mxu0
        %v3557 = vunpack.c.l.b16 %v1849
        %v3558 = vunpack.c.l.b16 %v1850
        %v3559 = vpack.c.b16 %v3558, %v3557
        %3560 = vrot.lane.b32.xlu0 %v3559, 96
        %v3561 = vpop.permute.xlu0 %3560
        %v3563 = vsel %vm1860, %v3559, 0
        %v3566 = vsel %vm1860, %v3561, 0
        %3568 = vmatpush.bf16.xpose.msra.mxu0 0
        %3569 = vmatpush.bf16.xpose.msra.mxu0 0
        %3570 = vmatpush.bf16.xpose.msra.mxu0 0
        %3571 = vmatpush.bf16.xpose.msra.mxu0 0
        %3572 = vmatpush.bf16.xpose.msra.mxu0 0
        %3573 = vmatpush.bf16.xpose.msra.mxu0 0
        %3574 = vmatpush.bf16.xpose.msra.mxu0 0
        %3575 = vmatpush.bf16.xpose.msra.mxu0 %v3566
        %3576 = vmatmul.bf16.gmra.mxu0 %v3563
        %v3577 = vpop.f32.mrf.mxu0
        %v3578 = vadd.f32 %v1851, %v3577
        %v3579 = vpop.f32.mrf.mxu0
        %v3580 = vadd.f32 %v1852, %v3579
        %3581 = vdwg.mxu0
        %vm3582 = vcmask 130048
        %v3583 = vsel %vm3582, %v1877, -inf
        %3584 = vmax.xlane.f32.xlu0 %v3583
        %v3585 = vpop.xlane.xlu0 %3584
        %v3586 = vsel %vm3582, %v1879, -inf
        %3587 = vmax.xlane.f32.xlu0 %v3586
        %v3588 = vpop.xlane.xlu0 %3587
        %v3589 = vsel %vm3582, %v1904, -inf
        %3590 = vmax.xlane.f32.xlu0 %v3589
        %v3591 = vpop.xlane.xlu0 %3590
        %v3592 = vsel %vm3582, %v1906, -inf
        %3593 = vmax.xlane.f32.xlu0 %v3592
        %v3594 = vpop.xlane.xlu0 %3593
        %v3595 = vsel %vm3582, %v1931, -inf
        %3596 = vmax.xlane.f32.xlu0 %v3595
        %v3597 = vpop.xlane.xlu0 %3596
        %v3598 = vsel %vm3582, %v1933, -inf
        %3599 = vmax.xlane.f32.xlu0 %v3598
        %v3600 = vpop.xlane.xlu0 %3599
        %v3601 = vsel %vm3582, %v1958, -inf
        %3602 = vmax.xlane.f32.xlu0 %v3601
        %v3603 = vpop.xlane.xlu0 %3602
        %v3604 = vsel %vm3582, %v1960, -inf
        %3605 = vmax.xlane.f32.xlu0 %v3604
        %v3606 = vpop.xlane.xlu0 %3605
        %v3607 = vsel %vm3582, %v1985, -inf
        %3608 = vmax.xlane.f32.xlu0 %v3607
        %v3609 = vpop.xlane.xlu0 %3608
        %v3610 = vsel %vm3582, %v1987, -inf
        %3611 = vmax.xlane.f32.xlu0 %v3610
        %v3612 = vpop.xlane.xlu0 %3611
        %v3613 = vsel %vm3582, %v2012, -inf
        %3614 = vmax.xlane.f32.xlu0 %v3613
        %v3615 = vpop.xlane.xlu0 %3614
        %v3616 = vsel %vm3582, %v2014, -inf
        %3617 = vmax.xlane.f32.xlu0 %v3616
        %v3618 = vpop.xlane.xlu0 %3617
        %v3619 = vsel %vm3582, %v2039, -inf
        %3620 = vmax.xlane.f32.xlu0 %v3619
        %v3621 = vpop.xlane.xlu0 %3620
        %v3622 = vsel %vm3582, %v2041, -inf
        %3623 = vmax.xlane.f32.xlu0 %v3622
        %v3624 = vpop.xlane.xlu0 %3623
        %v3625 = vsel %vm3582, %v2066, -inf
        %3626 = vmax.xlane.f32.xlu0 %v3625
        %v3627 = vpop.xlane.xlu0 %3626
        %v3628 = vsel %vm3582, %v2068, -inf
        %3629 = vmax.xlane.f32.xlu0 %v3628
        %v3630 = vpop.xlane.xlu0 %3629
        %v3631 = vsel %vm3582, %v2093, -inf
        %3632 = vmax.xlane.f32.xlu0 %v3631
        %v3633 = vpop.xlane.xlu0 %3632
        %v3634 = vsel %vm3582, %v2095, -inf
        %3635 = vmax.xlane.f32.xlu0 %v3634
        %v3636 = vpop.xlane.xlu0 %3635
        %v3637 = vsel %vm3582, %v2120, -inf
        %3638 = vmax.xlane.f32.xlu0 %v3637
        %v3639 = vpop.xlane.xlu0 %3638
        %v3640 = vsel %vm3582, %v2122, -inf
        %3641 = vmax.xlane.f32.xlu0 %v3640
        %v3642 = vpop.xlane.xlu0 %3641
        %v3643 = vsel %vm3582, %v2147, -inf
        %3644 = vmax.xlane.f32.xlu0 %v3643
        %v3645 = vpop.xlane.xlu0 %3644
        %v3646 = vsel %vm3582, %v2149, -inf
        %3647 = vmax.xlane.f32.xlu0 %v3646
        %v3648 = vpop.xlane.xlu0 %3647
        %v3649 = vsel %vm3582, %v2174, -inf
        %3650 = vmax.xlane.f32.xlu0 %v3649
        %v3651 = vpop.xlane.xlu0 %3650
        %v3652 = vsel %vm3582, %v2176, -inf
        %3653 = vmax.xlane.f32.xlu0 %v3652
        %v3654 = vpop.xlane.xlu0 %3653
        %v3655 = vsel %vm3582, %v2201, -inf
        %3656 = vmax.xlane.f32.xlu0 %v3655
        %v3657 = vpop.xlane.xlu0 %3656
        %v3658 = vsel %vm3582, %v2203, -inf
        %3659 = vmax.xlane.f32.xlu0 %v3658
        %v3660 = vpop.xlane.xlu0 %3659
        %v3661 = vsel %vm3582, %v2228, -inf
        %3662 = vmax.xlane.f32.xlu0 %v3661
        %v3663 = vpop.xlane.xlu0 %3662
        %v3664 = vsel %vm3582, %v2230, -inf
        %3665 = vmax.xlane.f32.xlu0 %v3664
        %v3666 = vpop.xlane.xlu0 %3665
        %v3667 = vsel %vm3582, %v2255, -inf
        %3668 = vmax.xlane.f32.xlu0 %v3667
        %v3669 = vpop.xlane.xlu0 %3668
        %v3670 = vsel %vm3582, %v2257, -inf
        %3671 = vmax.xlane.f32.xlu0 %v3670
        %v3672 = vpop.xlane.xlu0 %3671
        %v3673 = vsel %vm3582, %v2282, -inf
        %3674 = vmax.xlane.f32.xlu0 %v3673
        %v3675 = vpop.xlane.xlu0 %3674
        %v3676 = vsel %vm3582, %v2284, -inf
        %3677 = vmax.xlane.f32.xlu0 %v3676
        %v3678 = vpop.xlane.xlu0 %3677
        %v3679 = vsel %vm3582, %v2309, -inf
        %3680 = vmax.xlane.f32.xlu0 %v3679
        %v3681 = vpop.xlane.xlu0 %3680
        %v3682 = vsel %vm3582, %v2311, -inf
        %3683 = vmax.xlane.f32.xlu0 %v3682
        %v3684 = vpop.xlane.xlu0 %3683
        %v3685 = vsel %vm3582, %v2336, -inf
        %3686 = vmax.xlane.f32.xlu0 %v3685
        %v3687 = vpop.xlane.xlu0 %3686
        %v3688 = vsel %vm3582, %v2338, -inf
        %3689 = vmax.xlane.f32.xlu0 %v3688
        %v3690 = vpop.xlane.xlu0 %3689
        %v3691 = vsel %vm3582, %v2363, -inf
        %3692 = vmax.xlane.f32.xlu0 %v3691
        %v3693 = vpop.xlane.xlu0 %3692
        %v3694 = vsel %vm3582, %v2365, -inf
        %3695 = vmax.xlane.f32.xlu0 %v3694
        %v3696 = vpop.xlane.xlu0 %3695
        %v3697 = vsel %vm3582, %v2390, -inf
        %3698 = vmax.xlane.f32.xlu0 %v3697
        %v3699 = vpop.xlane.xlu0 %3698
        %v3700 = vsel %vm3582, %v2392, -inf
        %3701 = vmax.xlane.f32.xlu0 %v3700
        %v3702 = vpop.xlane.xlu0 %3701
        %v3703 = vsel %vm3582, %v2417, -inf
        %3704 = vmax.xlane.f32.xlu0 %v3703
        %v3705 = vpop.xlane.xlu0 %3704
        %v3706 = vsel %vm3582, %v2419, -inf
        %3707 = vmax.xlane.f32.xlu0 %v3706
        %v3708 = vpop.xlane.xlu0 %3707
        %v3709 = vsel %vm3582, %v2444, -inf
        %3710 = vmax.xlane.f32.xlu0 %v3709
        %v3711 = vpop.xlane.xlu0 %3710
        %v3712 = vsel %vm3582, %v2446, -inf
        %3713 = vmax.xlane.f32.xlu0 %v3712
        %v3714 = vpop.xlane.xlu0 %3713
        %v3715 = vsel %vm3582, %v2471, -inf
        %3716 = vmax.xlane.f32.xlu0 %v3715
        %v3717 = vpop.xlane.xlu0 %3716
        %v3718 = vsel %vm3582, %v2473, -inf
        %3719 = vmax.xlane.f32.xlu0 %v3718
        %v3720 = vpop.xlane.xlu0 %3719
        %v3721 = vsel %vm3582, %v2498, -inf
        %3722 = vmax.xlane.f32.xlu0 %v3721
        %v3723 = vpop.xlane.xlu0 %3722
        %v3724 = vsel %vm3582, %v2500, -inf
        %3725 = vmax.xlane.f32.xlu0 %v3724
        %v3726 = vpop.xlane.xlu0 %3725
        %v3727 = vsel %vm3582, %v2525, -inf
        %3728 = vmax.xlane.f32.xlu0 %v3727
        %v3729 = vpop.xlane.xlu0 %3728
        %v3730 = vsel %vm3582, %v2527, -inf
        %3731 = vmax.xlane.f32.xlu0 %v3730
        %v3732 = vpop.xlane.xlu0 %3731
        %v3733 = vsel %vm3582, %v2552, -inf
        %3734 = vmax.xlane.f32.xlu0 %v3733
        %v3735 = vpop.xlane.xlu0 %3734
        %v3736 = vsel %vm3582, %v2554, -inf
        %3737 = vmax.xlane.f32.xlu0 %v3736
        %v3738 = vpop.xlane.xlu0 %3737
        %v3739 = vsel %vm3582, %v2579, -inf
        %3740 = vmax.xlane.f32.xlu0 %v3739
        %v3741 = vpop.xlane.xlu0 %3740
        %v3742 = vsel %vm3582, %v2581, -inf
        %3743 = vmax.xlane.f32.xlu0 %v3742
        %v3744 = vpop.xlane.xlu0 %3743
        %v3745 = vsel %vm3582, %v2606, -inf
        %3746 = vmax.xlane.f32.xlu0 %v3745
        %v3747 = vpop.xlane.xlu0 %3746
        %v3748 = vsel %vm3582, %v2608, -inf
        %3749 = vmax.xlane.f32.xlu0 %v3748
        %v3750 = vpop.xlane.xlu0 %3749
        %v3751 = vsel %vm3582, %v2633, -inf
        %3752 = vmax.xlane.f32.xlu0 %v3751
        %v3753 = vpop.xlane.xlu0 %3752
        %v3754 = vsel %vm3582, %v2635, -inf
        %3755 = vmax.xlane.f32.xlu0 %v3754
        %v3756 = vpop.xlane.xlu0 %3755
        %v3757 = vsel %vm3582, %v2660, -inf
        %3758 = vmax.xlane.f32.xlu0 %v3757
        %v3759 = vpop.xlane.xlu0 %3758
        %v3760 = vsel %vm3582, %v2662, -inf
        %3761 = vmax.xlane.f32.xlu0 %v3760
        %v3762 = vpop.xlane.xlu0 %3761
        %v3763 = vsel %vm3582, %v2687, -inf
        %3764 = vmax.xlane.f32.xlu0 %v3763
        %v3765 = vpop.xlane.xlu0 %3764
        %v3766 = vsel %vm3582, %v2689, -inf
        %3767 = vmax.xlane.f32.xlu0 %v3766
        %v3768 = vpop.xlane.xlu0 %3767
        %v3769 = vsel %vm3582, %v2714, -inf
        %3770 = vmax.xlane.f32.xlu0 %v3769
        %v3771 = vpop.xlane.xlu0 %3770
        %v3772 = vsel %vm3582, %v2716, -inf
        %3773 = vmax.xlane.f32.xlu0 %v3772
        %v3774 = vpop.xlane.xlu0 %3773
        %v3775 = vsel %vm3582, %v2741, -inf
        %3776 = vmax.xlane.f32.xlu0 %v3775
        %v3777 = vpop.xlane.xlu0 %3776
        %v3778 = vsel %vm3582, %v2743, -inf
        %3779 = vmax.xlane.f32.xlu0 %v3778
        %v3780 = vpop.xlane.xlu0 %3779
        %v3781 = vsel %vm3582, %v2768, -inf
        %3782 = vmax.xlane.f32.xlu0 %v3781
        %v3783 = vpop.xlane.xlu0 %3782
        %v3784 = vsel %vm3582, %v2770, -inf
        %3785 = vmax.xlane.f32.xlu0 %v3784
        %v3786 = vpop.xlane.xlu0 %3785
        %v3787 = vsel %vm3582, %v2795, -inf
        %3788 = vmax.xlane.f32.xlu0 %v3787
        %v3789 = vpop.xlane.xlu0 %3788
        %v3790 = vsel %vm3582, %v2797, -inf
        %3791 = vmax.xlane.f32.xlu0 %v3790
        %v3792 = vpop.xlane.xlu0 %3791
        %v3793 = vsel %vm3582, %v2822, -inf
        %3794 = vmax.xlane.f32.xlu0 %v3793
        %v3795 = vpop.xlane.xlu0 %3794
        %v3796 = vsel %vm3582, %v2824, -inf
        %3797 = vmax.xlane.f32.xlu0 %v3796
        %v3798 = vpop.xlane.xlu0 %3797
        %v3799 = vsel %vm3582, %v2849, -inf
        %3800 = vmax.xlane.f32.xlu0 %v3799
        %v3801 = vpop.xlane.xlu0 %3800
        %v3802 = vsel %vm3582, %v2851, -inf
        %3803 = vmax.xlane.f32.xlu0 %v3802
        %v3804 = vpop.xlane.xlu0 %3803
        %v3805 = vsel %vm3582, %v2876, -inf
        %3806 = vmax.xlane.f32.xlu0 %v3805
        %v3807 = vpop.xlane.xlu0 %3806
        %v3808 = vsel %vm3582, %v2878, -inf
        %3809 = vmax.xlane.f32.xlu0 %v3808
        %v3810 = vpop.xlane.xlu0 %3809
        %v3811 = vsel %vm3582, %v2903, -inf
        %3812 = vmax.xlane.f32.xlu0 %v3811
        %v3813 = vpop.xlane.xlu0 %3812
        %v3814 = vsel %vm3582, %v2905, -inf
        %3815 = vmax.xlane.f32.xlu0 %v3814
        %v3816 = vpop.xlane.xlu0 %3815
        %v3817 = vsel %vm3582, %v2930, -inf
        %3818 = vmax.xlane.f32.xlu0 %v3817
        %v3819 = vpop.xlane.xlu0 %3818
        %v3820 = vsel %vm3582, %v2932, -inf
        %3821 = vmax.xlane.f32.xlu0 %v3820
        %v3822 = vpop.xlane.xlu0 %3821
        %v3823 = vsel %vm3582, %v2957, -inf
        %3824 = vmax.xlane.f32.xlu0 %v3823
        %v3825 = vpop.xlane.xlu0 %3824
        %v3826 = vsel %vm3582, %v2959, -inf
        %3827 = vmax.xlane.f32.xlu0 %v3826
        %v3828 = vpop.xlane.xlu0 %3827
        %v3829 = vsel %vm3582, %v2984, -inf
        %3830 = vmax.xlane.f32.xlu0 %v3829
        %v3831 = vpop.xlane.xlu0 %3830
        %v3832 = vsel %vm3582, %v2986, -inf
        %3833 = vmax.xlane.f32.xlu0 %v3832
        %v3834 = vpop.xlane.xlu0 %3833
        %v3835 = vsel %vm3582, %v3011, -inf
        %3836 = vmax.xlane.f32.xlu0 %v3835
        %v3837 = vpop.xlane.xlu0 %3836
        %v3838 = vsel %vm3582, %v3013, -inf
        %3839 = vmax.xlane.f32.xlu0 %v3838
        %v3840 = vpop.xlane.xlu0 %3839
        %v3841 = vsel %vm3582, %v3038, -inf
        %3842 = vmax.xlane.f32.xlu0 %v3841
        %v3843 = vpop.xlane.xlu0 %3842
        %v3844 = vsel %vm3582, %v3040, -inf
        %3845 = vmax.xlane.f32.xlu0 %v3844
        %v3846 = vpop.xlane.xlu0 %3845
        %v3847 = vsel %vm3582, %v3065, -inf
        %3848 = vmax.xlane.f32.xlu0 %v3847
        %v3849 = vpop.xlane.xlu0 %3848
        %v3850 = vsel %vm3582, %v3067, -inf
        %3851 = vmax.xlane.f32.xlu0 %v3850
        %v3852 = vpop.xlane.xlu0 %3851
        %v3853 = vsel %vm3582, %v3092, -inf
        %3854 = vmax.xlane.f32.xlu0 %v3853
        %v3855 = vpop.xlane.xlu0 %3854
        %v3856 = vsel %vm3582, %v3094, -inf
        %3857 = vmax.xlane.f32.xlu0 %v3856
        %v3858 = vpop.xlane.xlu0 %3857
        %v3859 = vsel %vm3582, %v3119, -inf
        %3860 = vmax.xlane.f32.xlu0 %v3859
        %v3861 = vpop.xlane.xlu0 %3860
        %v3862 = vsel %vm3582, %v3121, -inf
        %3863 = vmax.xlane.f32.xlu0 %v3862
        %v3864 = vpop.xlane.xlu0 %3863
        %v3865 = vsel %vm3582, %v3146, -inf
        %3866 = vmax.xlane.f32.xlu0 %v3865
        %v3867 = vpop.xlane.xlu0 %3866
        %v3868 = vsel %vm3582, %v3148, -inf
        %3869 = vmax.xlane.f32.xlu0 %v3868
        %v3870 = vpop.xlane.xlu0 %3869
        %v3871 = vsel %vm3582, %v3173, -inf
        %3872 = vmax.xlane.f32.xlu0 %v3871
        %v3873 = vpop.xlane.xlu0 %3872
        %v3874 = vsel %vm3582, %v3175, -inf
        %3875 = vmax.xlane.f32.xlu0 %v3874
        %v3876 = vpop.xlane.xlu0 %3875
        %v3877 = vsel %vm3582, %v3200, -inf
        %3878 = vmax.xlane.f32.xlu0 %v3877
        %v3879 = vpop.xlane.xlu0 %3878
        %v3880 = vsel %vm3582, %v3202, -inf
        %3881 = vmax.xlane.f32.xlu0 %v3880
        %v3882 = vpop.xlane.xlu0 %3881
        %v3883 = vsel %vm3582, %v3227, -inf
        %3884 = vmax.xlane.f32.xlu0 %v3883
        %v3885 = vpop.xlane.xlu0 %3884
        %v3886 = vsel %vm3582, %v3229, -inf
        %3887 = vmax.xlane.f32.xlu0 %v3886
        %v3888 = vpop.xlane.xlu0 %3887
        %v3889 = vsel %vm3582, %v3254, -inf
        %3890 = vmax.xlane.f32.xlu0 %v3889
        %v3891 = vpop.xlane.xlu0 %3890
        %v3892 = vsel %vm3582, %v3256, -inf
        %3893 = vmax.xlane.f32.xlu0 %v3892
        %v3894 = vpop.xlane.xlu0 %3893
        %v3895 = vsel %vm3582, %v3281, -inf
        %3896 = vmax.xlane.f32.xlu0 %v3895
        %v3897 = vpop.xlane.xlu0 %3896
        %v3898 = vsel %vm3582, %v3283, -inf
        %3899 = vmax.xlane.f32.xlu0 %v3898
        %v3900 = vpop.xlane.xlu0 %3899
        %v3901 = vsel %vm3582, %v3308, -inf
        %3902 = vmax.xlane.f32.xlu0 %v3901
        %v3903 = vpop.xlane.xlu0 %3902
        %v3904 = vsel %vm3582, %v3310, -inf
        %3905 = vmax.xlane.f32.xlu0 %v3904
        %v3906 = vpop.xlane.xlu0 %3905
        %v3907 = vsel %vm3582, %v3335, -inf
        %3908 = vmax.xlane.f32.xlu0 %v3907
        %v3909 = vpop.xlane.xlu0 %3908
        %v3910 = vsel %vm3582, %v3337, -inf
        %3911 = vmax.xlane.f32.xlu0 %v3910
        %v3912 = vpop.xlane.xlu0 %3911
        %v3913 = vsel %vm3582, %v3362, -inf
        %3914 = vmax.xlane.f32.xlu0 %v3913
        %v3915 = vpop.xlane.xlu0 %3914
        %v3916 = vsel %vm3582, %v3364, -inf
        %3917 = vmax.xlane.f32.xlu0 %v3916
        %v3918 = vpop.xlane.xlu0 %3917
        %v3919 = vsel %vm3582, %v3389, -inf
        %3920 = vmax.xlane.f32.xlu0 %v3919
        %v3921 = vpop.xlane.xlu0 %3920
        %v3922 = vsel %vm3582, %v3391, -inf
        %3923 = vmax.xlane.f32.xlu0 %v3922
        %v3924 = vpop.xlane.xlu0 %3923
        %v3925 = vsel %vm3582, %v3416, -inf
        %3926 = vmax.xlane.f32.xlu0 %v3925
        %v3927 = vpop.xlane.xlu0 %3926
        %v3928 = vsel %vm3582, %v3418, -inf
        %3929 = vmax.xlane.f32.xlu0 %v3928
        %v3930 = vpop.xlane.xlu0 %3929
        %v3931 = vsel %vm3582, %v3443, -inf
        %3932 = vmax.xlane.f32.xlu0 %v3931
        %v3933 = vpop.xlane.xlu0 %3932
        %v3934 = vsel %vm3582, %v3445, -inf
        %3935 = vmax.xlane.f32.xlu0 %v3934
        %v3936 = vpop.xlane.xlu0 %3935
        %v3937 = vsel %vm3582, %v3470, -inf
        %3938 = vmax.xlane.f32.xlu0 %v3937
        %v3939 = vpop.xlane.xlu0 %3938
        %v3940 = vsel %vm3582, %v3472, -inf
        %3941 = vmax.xlane.f32.xlu0 %v3940
        %v3942 = vpop.xlane.xlu0 %3941
        %v3943 = vsel %vm3582, %v3497, -inf
        %3944 = vmax.xlane.f32.xlu0 %v3943
        %v3945 = vpop.xlane.xlu0 %3944
        %v3946 = vsel %vm3582, %v3499, -inf
        %3947 = vmax.xlane.f32.xlu0 %v3946
        %v3948 = vpop.xlane.xlu0 %3947
        %v3949 = vsel %vm3582, %v3524, -inf
        %3950 = vmax.xlane.f32.xlu0 %v3949
        %v3951 = vpop.xlane.xlu0 %3950
        %v3952 = vsel %vm3582, %v3526, -inf
        %3953 = vmax.xlane.f32.xlu0 %v3952
        %v3954 = vpop.xlane.xlu0 %3953
        %v3955 = vsel %vm3582, %v3551, -inf
        %3956 = vmax.xlane.f32.xlu0 %v3955
        %v3957 = vpop.xlane.xlu0 %3956
        %v3958 = vsel %vm3582, %v3553, -inf
        %3959 = vmax.xlane.f32.xlu0 %v3958
        %v3960 = vpop.xlane.xlu0 %3959
        %v3961 = vsel %vm3582, %v3578, -inf
        %3962 = vmax.xlane.f32.xlu0 %v3961
        %v3963 = vpop.xlane.xlu0 %3962
        %v3964 = vsel %vm3582, %v3580, -inf
        %3965 = vmax.xlane.f32.xlu0 %v3964
        %v3966 = vpop.xlane.xlu0 %3965
        %v3967 = vsub.f32 %v1877, %v3585
        %v3968 = vsub.f32 %v1879, %v3588
        %v3969 = vsub.f32 %v1904, %v3591
        %v3970 = vsub.f32 %v1906, %v3594
        %v3971 = vsub.f32 %v1931, %v3597
        %v3972 = vsub.f32 %v1933, %v3600
        %v3973 = vsub.f32 %v1958, %v3603
        %v3974 = vsub.f32 %v1960, %v3606
        %v3975 = vsub.f32 %v1985, %v3609
        %v3976 = vsub.f32 %v1987, %v3612
        %v3977 = vsub.f32 %v2012, %v3615
        %v3978 = vsub.f32 %v2014, %v3618
        %v3979 = vsub.f32 %v2039, %v3621
        %v3980 = vsub.f32 %v2041, %v3624
        %v3981 = vsub.f32 %v2066, %v3627
        %v3982 = vsub.f32 %v2068, %v3630
        %v3983 = vsub.f32 %v2093, %v3633
        %v3984 = vsub.f32 %v2095, %v3636
        %v3985 = vsub.f32 %v2120, %v3639
        %v3986 = vsub.f32 %v2122, %v3642
        %v3987 = vsub.f32 %v2147, %v3645
        %v3988 = vsub.f32 %v2149, %v3648
        %v3989 = vsub.f32 %v2174, %v3651
        %v3990 = vsub.f32 %v2176, %v3654
        %v3991 = vsub.f32 %v2201, %v3657
        %v3992 = vsub.f32 %v2203, %v3660
        %v3993 = vsub.f32 %v2228, %v3663
        %v3994 = vsub.f32 %v2230, %v3666
        %v3995 = vsub.f32 %v2255, %v3669
        %v3996 = vsub.f32 %v2257, %v3672
        %v3997 = vsub.f32 %v2282, %v3675
        %v3998 = vsub.f32 %v2284, %v3678
        %v3999 = vsub.f32 %v2309, %v3681
        %v4000 = vsub.f32 %v2311, %v3684
        %v4001 = vsub.f32 %v2336, %v3687
        %v4002 = vsub.f32 %v2338, %v3690
        %v4003 = vsub.f32 %v2363, %v3693
        %v4004 = vsub.f32 %v2365, %v3696
        %v4005 = vsub.f32 %v2390, %v3699
        %v4006 = vsub.f32 %v2392, %v3702
        %v4007 = vsub.f32 %v2417, %v3705
        %v4008 = vsub.f32 %v2419, %v3708
        %v4009 = vsub.f32 %v2444, %v3711
        %v4010 = vsub.f32 %v2446, %v3714
        %v4011 = vsub.f32 %v2471, %v3717
        %v4012 = vsub.f32 %v2473, %v3720
        %v4013 = vsub.f32 %v2498, %v3723
        %v4014 = vsub.f32 %v2500, %v3726
        %v4015 = vsub.f32 %v2525, %v3729
        %v4016 = vsub.f32 %v2527, %v3732
        %v4017 = vsub.f32 %v2552, %v3735
        %v4018 = vsub.f32 %v2554, %v3738
        %v4019 = vsub.f32 %v2579, %v3741
        %v4020 = vsub.f32 %v2581, %v3744
        %v4021 = vsub.f32 %v2606, %v3747
        %v4022 = vsub.f32 %v2608, %v3750
        %v4023 = vsub.f32 %v2633, %v3753
        %v4024 = vsub.f32 %v2635, %v3756
        %v4025 = vsub.f32 %v2660, %v3759
        %v4026 = vsub.f32 %v2662, %v3762
        %v4027 = vsub.f32 %v2687, %v3765
        %v4028 = vsub.f32 %v2689, %v3768
        %v4029 = vsub.f32 %v2714, %v3771
        %v4030 = vsub.f32 %v2716, %v3774
        %v4031 = vsub.f32 %v2741, %v3777
        %v4032 = vsub.f32 %v2743, %v3780
        %v4033 = vsub.f32 %v2768, %v3783
        %v4034 = vsub.f32 %v2770, %v3786
        %v4035 = vsub.f32 %v2795, %v3789
        %v4036 = vsub.f32 %v2797, %v3792
        %v4037 = vsub.f32 %v2822, %v3795
        %v4038 = vsub.f32 %v2824, %v3798
        %v4039 = vsub.f32 %v2849, %v3801
        %v4040 = vsub.f32 %v2851, %v3804
        %v4041 = vsub.f32 %v2876, %v3807
        %v4042 = vsub.f32 %v2878, %v3810
        %v4043 = vsub.f32 %v2903, %v3813
        %v4044 = vsub.f32 %v2905, %v3816
        %v4045 = vsub.f32 %v2930, %v3819
        %v4046 = vsub.f32 %v2932, %v3822
        %v4047 = vsub.f32 %v2957, %v3825
        %v4048 = vsub.f32 %v2959, %v3828
        %v4049 = vsub.f32 %v2984, %v3831
        %v4050 = vsub.f32 %v2986, %v3834
        %v4051 = vsub.f32 %v3011, %v3837
        %v4052 = vsub.f32 %v3013, %v3840
        %v4053 = vsub.f32 %v3038, %v3843
        %v4054 = vsub.f32 %v3040, %v3846
        %v4055 = vsub.f32 %v3065, %v3849
        %v4056 = vsub.f32 %v3067, %v3852
        %v4057 = vsub.f32 %v3092, %v3855
        %v4058 = vsub.f32 %v3094, %v3858
        %v4059 = vsub.f32 %v3119, %v3861
        %v4060 = vsub.f32 %v3121, %v3864
        %v4061 = vsub.f32 %v3146, %v3867
        %v4062 = vsub.f32 %v3148, %v3870
        %v4063 = vsub.f32 %v3173, %v3873
        %v4064 = vsub.f32 %v3175, %v3876
        %v4065 = vsub.f32 %v3200, %v3879
        %v4066 = vsub.f32 %v3202, %v3882
        %v4067 = vsub.f32 %v3227, %v3885
        %v4068 = vsub.f32 %v3229, %v3888
        %v4069 = vsub.f32 %v3254, %v3891
        %v4070 = vsub.f32 %v3256, %v3894
        %v4071 = vsub.f32 %v3281, %v3897
        %v4072 = vsub.f32 %v3283, %v3900
        %v4073 = vsub.f32 %v3308, %v3903
        %v4074 = vsub.f32 %v3310, %v3906
        %v4075 = vsub.f32 %v3335, %v3909
        %v4076 = vsub.f32 %v3337, %v3912
        %v4077 = vsub.f32 %v3362, %v3915
        %v4078 = vsub.f32 %v3364, %v3918
        %v4079 = vsub.f32 %v3389, %v3921
        %v4080 = vsub.f32 %v3391, %v3924
        %v4081 = vsub.f32 %v3416, %v3927
        %v4082 = vsub.f32 %v3418, %v3930
        %v4083 = vsub.f32 %v3443, %v3933
        %v4084 = vsub.f32 %v3445, %v3936
        %v4085 = vsub.f32 %v3470, %v3939
        %v4086 = vsub.f32 %v3472, %v3942
        %v4087 = vsub.f32 %v3497, %v3945
        %v4088 = vsub.f32 %v3499, %v3948
        %v4089 = vsub.f32 %v3524, %v3951
        %v4090 = vsub.f32 %v3526, %v3954
        %v4091 = vsub.f32 %v3551, %v3957
        %v4092 = vsub.f32 %v3553, %v3960
        %v4093 = vsub.f32 %v3578, %v3963
        %v4094 = vsub.f32 %v3580, %v3966
        %v4095 = vmul.f32 %v3967, 1.442695
        %v4096 = vpow.pop %v4095
        %v4097 = vmul.f32 %v3968, 1.442695
        %v4098 = vpow.pop %v4097
        %v4099 = vmul.f32 %v3969, 1.442695
        %v4100 = vpow.pop %v4099
        %v4101 = vmul.f32 %v3970, 1.442695
        %v4102 = vpow.pop %v4101
        %v4103 = vmul.f32 %v3971, 1.442695
        %v4104 = vpow.pop %v4103
        %v4105 = vmul.f32 %v3972, 1.442695
        %v4106 = vpow.pop %v4105
        %v4107 = vmul.f32 %v3973, 1.442695
        %v4108 = vpow.pop %v4107
        %v4109 = vmul.f32 %v3974, 1.442695
        %v4110 = vpow.pop %v4109
        %v4111 = vmul.f32 %v3975, 1.442695
        %v4112 = vpow.pop %v4111
        %v4113 = vmul.f32 %v3976, 1.442695
        %v4114 = vpow.pop %v4113
        %v4115 = vmul.f32 %v3977, 1.442695
        %v4116 = vpow.pop %v4115
        %v4117 = vmul.f32 %v3978, 1.442695
        %v4118 = vpow.pop %v4117
        %v4119 = vmul.f32 %v3979, 1.442695
        %v4120 = vpow.pop %v4119
        %v4121 = vmul.f32 %v3980, 1.442695
        %v4122 = vpow.pop %v4121
        %v4123 = vmul.f32 %v3981, 1.442695
        %v4124 = vpow.pop %v4123
        %v4125 = vmul.f32 %v3982, 1.442695
        %v4126 = vpow.pop %v4125
        %v4127 = vmul.f32 %v3983, 1.442695
        %v4128 = vpow.pop %v4127
        %v4129 = vmul.f32 %v3984, 1.442695
        %v4130 = vpow.pop %v4129
        %v4131 = vmul.f32 %v3985, 1.442695
        %v4132 = vpow.pop %v4131
        %v4133 = vmul.f32 %v3986, 1.442695
        %v4134 = vpow.pop %v4133
        %v4135 = vmul.f32 %v3987, 1.442695
        %v4136 = vpow.pop %v4135
        %v4137 = vmul.f32 %v3988, 1.442695
        %v4138 = vpow.pop %v4137
        %v4139 = vmul.f32 %v3989, 1.442695
        %v4140 = vpow.pop %v4139
        %v4141 = vmul.f32 %v3990, 1.442695
        %v4142 = vpow.pop %v4141
        %v4143 = vmul.f32 %v3991, 1.442695
        %v4144 = vpow.pop %v4143
        %v4145 = vmul.f32 %v3992, 1.442695
        %v4146 = vpow.pop %v4145
        %v4147 = vmul.f32 %v3993, 1.442695
        %v4148 = vpow.pop %v4147
        %v4149 = vmul.f32 %v3994, 1.442695
        %v4150 = vpow.pop %v4149
        %v4151 = vmul.f32 %v3995, 1.442695
        %v4152 = vpow.pop %v4151
        %v4153 = vmul.f32 %v3996, 1.442695
        %v4154 = vpow.pop %v4153
        %v4155 = vmul.f32 %v3997, 1.442695
        %v4156 = vpow.pop %v4155
        %v4157 = vmul.f32 %v3998, 1.442695
        %v4158 = vpow.pop %v4157
        %v4159 = vmul.f32 %v3999, 1.442695
        %v4160 = vpow.pop %v4159
        %v4161 = vmul.f32 %v4000, 1.442695
        %v4162 = vpow.pop %v4161
        %v4163 = vmul.f32 %v4001, 1.442695
        %v4164 = vpow.pop %v4163
        %v4165 = vmul.f32 %v4002, 1.442695
        %v4166 = vpow.pop %v4165
        %v4167 = vmul.f32 %v4003, 1.442695
        %v4168 = vpow.pop %v4167
        %v4169 = vmul.f32 %v4004, 1.442695
        %v4170 = vpow.pop %v4169
        %v4171 = vmul.f32 %v4005, 1.442695
        %v4172 = vpow.pop %v4171
        %v4173 = vmul.f32 %v4006, 1.442695
        %v4174 = vpow.pop %v4173
        %v4175 = vmul.f32 %v4007, 1.442695
        %v4176 = vpow.pop %v4175
        %v4177 = vmul.f32 %v4008, 1.442695
        %v4178 = vpow.pop %v4177
        %v4179 = vmul.f32 %v4009, 1.442695
        %v4180 = vpow.pop %v4179
        %v4181 = vmul.f32 %v4010, 1.442695
        %v4182 = vpow.pop %v4181
        %v4183 = vmul.f32 %v4011, 1.442695
        %v4184 = vpow.pop %v4183
        %v4185 = vmul.f32 %v4012, 1.442695
        %v4186 = vpow.pop %v4185
        %v4187 = vmul.f32 %v4013, 1.442695
        %v4188 = vpow.pop %v4187
        %v4189 = vmul.f32 %v4014, 1.442695
        %v4190 = vpow.pop %v4189
        %v4191 = vmul.f32 %v4015, 1.442695
        %v4192 = vpow.pop %v4191
        %v4193 = vmul.f32 %v4016, 1.442695
        %v4194 = vpow.pop %v4193
        %v4195 = vmul.f32 %v4017, 1.442695
        %v4196 = vpow.pop %v4195
        %v4197 = vmul.f32 %v4018, 1.442695
        %v4198 = vpow.pop %v4197
        %v4199 = vmul.f32 %v4019, 1.442695
        %v4200 = vpow.pop %v4199
        %v4201 = vmul.f32 %v4020, 1.442695
        %v4202 = vpow.pop %v4201
        %v4203 = vmul.f32 %v4021, 1.442695
        %v4204 = vpow.pop %v4203
        %v4205 = vmul.f32 %v4022, 1.442695
        %v4206 = vpow.pop %v4205
        %v4207 = vmul.f32 %v4023, 1.442695
        %v4208 = vpow.pop %v4207
        %v4209 = vmul.f32 %v4024, 1.442695
        %v4210 = vpow.pop %v4209
        %v4211 = vmul.f32 %v4025, 1.442695
        %v4212 = vpow.pop %v4211
        %v4213 = vmul.f32 %v4026, 1.442695
        %v4214 = vpow.pop %v4213
        %v4215 = vmul.f32 %v4027, 1.442695
        %v4216 = vpow.pop %v4215
        %v4217 = vmul.f32 %v4028, 1.442695
        %v4218 = vpow.pop %v4217
        %v4219 = vmul.f32 %v4029, 1.442695
        %v4220 = vpow.pop %v4219
        %v4221 = vmul.f32 %v4030, 1.442695
        %v4222 = vpow.pop %v4221
        %v4223 = vmul.f32 %v4031, 1.442695
        %v4224 = vpow.pop %v4223
        %v4225 = vmul.f32 %v4032, 1.442695
        %v4226 = vpow.pop %v4225
        %v4227 = vmul.f32 %v4033, 1.442695
        %v4228 = vpow.pop %v4227
        %v4229 = vmul.f32 %v4034, 1.442695
        %v4230 = vpow.pop %v4229
        %v4231 = vmul.f32 %v4035, 1.442695
        %v4232 = vpow.pop %v4231
        %v4233 = vmul.f32 %v4036, 1.442695
        %v4234 = vpow.pop %v4233
        %v4235 = vmul.f32 %v4037, 1.442695
        %v4236 = vpow.pop %v4235
        %v4237 = vmul.f32 %v4038, 1.442695
        %v4238 = vpow.pop %v4237
        %v4239 = vmul.f32 %v4039, 1.442695
        %v4240 = vpow.pop %v4239
        %v4241 = vmul.f32 %v4040, 1.442695
        %v4242 = vpow.pop %v4241
        %v4243 = vmul.f32 %v4041, 1.442695
        %v4244 = vpow.pop %v4243
        %v4245 = vmul.f32 %v4042, 1.442695
        %v4246 = vpow.pop %v4245
        %v4247 = vmul.f32 %v4043, 1.442695
        %v4248 = vpow.pop %v4247
        %v4249 = vmul.f32 %v4044, 1.442695
        %v4250 = vpow.pop %v4249
        %v4251 = vmul.f32 %v4045, 1.442695
        %v4252 = vpow.pop %v4251
        %v4253 = vmul.f32 %v4046, 1.442695
        %v4254 = vpow.pop %v4253
        %v4255 = vmul.f32 %v4047, 1.442695
        %v4256 = vpow.pop %v4255
        %v4257 = vmul.f32 %v4048, 1.442695
        %v4258 = vpow.pop %v4257
        %v4259 = vmul.f32 %v4049, 1.442695
        %v4260 = vpow.pop %v4259
        %v4261 = vmul.f32 %v4050, 1.442695
        %v4262 = vpow.pop %v4261
        %v4263 = vmul.f32 %v4051, 1.442695
        %v4264 = vpow.pop %v4263
        %v4265 = vmul.f32 %v4052, 1.442695
        %v4266 = vpow.pop %v4265
        %v4267 = vmul.f32 %v4053, 1.442695
        %v4268 = vpow.pop %v4267
        %v4269 = vmul.f32 %v4054, 1.442695
        %v4270 = vpow.pop %v4269
        %v4271 = vmul.f32 %v4055, 1.442695
        %v4272 = vpow.pop %v4271
        %v4273 = vmul.f32 %v4056, 1.442695
        %v4274 = vpow.pop %v4273
        %v4275 = vmul.f32 %v4057, 1.442695
        %v4276 = vpow.pop %v4275
        %v4277 = vmul.f32 %v4058, 1.442695
        %v4278 = vpow.pop %v4277
        %v4279 = vmul.f32 %v4059, 1.442695
        %v4280 = vpow.pop %v4279
        %v4281 = vmul.f32 %v4060, 1.442695
        %v4282 = vpow.pop %v4281
        %v4283 = vmul.f32 %v4061, 1.442695
        %v4284 = vpow.pop %v4283
        %v4285 = vmul.f32 %v4062, 1.442695
        %v4286 = vpow.pop %v4285
        %v4287 = vmul.f32 %v4063, 1.442695
        %v4288 = vpow.pop %v4287
        %v4289 = vmul.f32 %v4064, 1.442695
        %v4290 = vpow.pop %v4289
        %v4291 = vmul.f32 %v4065, 1.442695
        %v4292 = vpow.pop %v4291
        %v4293 = vmul.f32 %v4066, 1.442695
        %v4294 = vpow.pop %v4293
        %v4295 = vmul.f32 %v4067, 1.442695
        %v4296 = vpow.pop %v4295
        %v4297 = vmul.f32 %v4068, 1.442695
        %v4298 = vpow.pop %v4297
        %v4299 = vmul.f32 %v4069, 1.442695
        %v4300 = vpow.pop %v4299
        %v4301 = vmul.f32 %v4070, 1.442695
        %v4302 = vpow.pop %v4301
        %v4303 = vmul.f32 %v4071, 1.442695
        %v4304 = vpow.pop %v4303
        %v4305 = vmul.f32 %v4072, 1.442695
        %v4306 = vpow.pop %v4305
        %v4307 = vmul.f32 %v4073, 1.442695
        %v4308 = vpow.pop %v4307
        %v4309 = vmul.f32 %v4074, 1.442695
        %v4310 = vpow.pop %v4309
        %v4311 = vmul.f32 %v4075, 1.442695
        %v4312 = vpow.pop %v4311
        %v4313 = vmul.f32 %v4076, 1.442695
        %v4314 = vpow.pop %v4313
        %v4315 = vmul.f32 %v4077, 1.442695
        %v4316 = vpow.pop %v4315
        %v4317 = vmul.f32 %v4078, 1.442695
        %v4318 = vpow.pop %v4317
        %v4319 = vmul.f32 %v4079, 1.442695
        %v4320 = vpow.pop %v4319
        %v4321 = vmul.f32 %v4080, 1.442695
        %v4322 = vpow.pop %v4321
        %v4323 = vmul.f32 %v4081, 1.442695
        %v4324 = vpow.pop %v4323
        %v4325 = vmul.f32 %v4082, 1.442695
        %v4326 = vpow.pop %v4325
        %v4327 = vmul.f32 %v4083, 1.442695
        %v4328 = vpow.pop %v4327
        %v4329 = vmul.f32 %v4084, 1.442695
        %v4330 = vpow.pop %v4329
        %v4331 = vmul.f32 %v4085, 1.442695
        %v4332 = vpow.pop %v4331
        %v4333 = vmul.f32 %v4086, 1.442695
        %v4334 = vpow.pop %v4333
        %v4335 = vmul.f32 %v4087, 1.442695
        %v4336 = vpow.pop %v4335
        %v4337 = vmul.f32 %v4088, 1.442695
        %v4338 = vpow.pop %v4337
        %v4339 = vmul.f32 %v4089, 1.442695
        %v4340 = vpow.pop %v4339
        %v4341 = vmul.f32 %v4090, 1.442695
        %v4342 = vpow.pop %v4341
        %v4343 = vmul.f32 %v4091, 1.442695
        %v4344 = vpow.pop %v4343
        %v4345 = vmul.f32 %v4092, 1.442695
        %v4346 = vpow.pop %v4345
        %v4347 = vmul.f32 %v4093, 1.442695
        %v4348 = vpow.pop %v4347
        %v4349 = vmul.f32 %v4094, 1.442695
        %v4350 = vpow.pop %v4349
        %v4351 = vsel %vm3582, %v4096, 0.0
        %4352 = vadd.xlane.f32.xlu0 %v4351
        %v4353 = vpop.xlane.xlu0 %4352
        %v4354 = vsel %vm3582, %v4098, 0.0
        %4355 = vadd.xlane.f32.xlu0 %v4354
        %v4356 = vpop.xlane.xlu0 %4355
        %v4357 = vsel %vm3582, %v4100, 0.0
        %4358 = vadd.xlane.f32.xlu0 %v4357
        %v4359 = vpop.xlane.xlu0 %4358
        %v4360 = vsel %vm3582, %v4102, 0.0
        %4361 = vadd.xlane.f32.xlu0 %v4360
        %v4362 = vpop.xlane.xlu0 %4361
        %v4363 = vsel %vm3582, %v4104, 0.0
        %4364 = vadd.xlane.f32.xlu0 %v4363
        %v4365 = vpop.xlane.xlu0 %4364
        %v4366 = vsel %vm3582, %v4106, 0.0
        %4367 = vadd.xlane.f32.xlu0 %v4366
        %v4368 = vpop.xlane.xlu0 %4367
        %v4369 = vsel %vm3582, %v4108, 0.0
        %4370 = vadd.xlane.f32.xlu0 %v4369
        %v4371 = vpop.xlane.xlu0 %4370
        %v4372 = vsel %vm3582, %v4110, 0.0
        %4373 = vadd.xlane.f32.xlu0 %v4372
        %v4374 = vpop.xlane.xlu0 %4373
        %v4375 = vsel %vm3582, %v4112, 0.0
        %4376 = vadd.xlane.f32.xlu0 %v4375
        %v4377 = vpop.xlane.xlu0 %4376
        %v4378 = vsel %vm3582, %v4114, 0.0
        %4379 = vadd.xlane.f32.xlu0 %v4378
        %v4380 = vpop.xlane.xlu0 %4379
        %v4381 = vsel %vm3582, %v4116, 0.0
        %4382 = vadd.xlane.f32.xlu0 %v4381
        %v4383 = vpop.xlane.xlu0 %4382
        %v4384 = vsel %vm3582, %v4118, 0.0
        %4385 = vadd.xlane.f32.xlu0 %v4384
        %v4386 = vpop.xlane.xlu0 %4385
        %v4387 = vsel %vm3582, %v4120, 0.0
        %4388 = vadd.xlane.f32.xlu0 %v4387
        %v4389 = vpop.xlane.xlu0 %4388
        %v4390 = vsel %vm3582, %v4122, 0.0
        %4391 = vadd.xlane.f32.xlu0 %v4390
        %v4392 = vpop.xlane.xlu0 %4391
        %v4393 = vsel %vm3582, %v4124, 0.0
        %4394 = vadd.xlane.f32.xlu0 %v4393
        %v4395 = vpop.xlane.xlu0 %4394
        %v4396 = vsel %vm3582, %v4126, 0.0
        %4397 = vadd.xlane.f32.xlu0 %v4396
        %v4398 = vpop.xlane.xlu0 %4397
        %v4399 = vsel %vm3582, %v4128, 0.0
        %4400 = vadd.xlane.f32.xlu0 %v4399
        %v4401 = vpop.xlane.xlu0 %4400
        %v4402 = vsel %vm3582, %v4130, 0.0
        %4403 = vadd.xlane.f32.xlu0 %v4402
        %v4404 = vpop.xlane.xlu0 %4403
        %v4405 = vsel %vm3582, %v4132, 0.0
        %4406 = vadd.xlane.f32.xlu0 %v4405
        %v4407 = vpop.xlane.xlu0 %4406
        %v4408 = vsel %vm3582, %v4134, 0.0
        %4409 = vadd.xlane.f32.xlu0 %v4408
        %v4410 = vpop.xlane.xlu0 %4409
        %v4411 = vsel %vm3582, %v4136, 0.0
        %4412 = vadd.xlane.f32.xlu0 %v4411
        %v4413 = vpop.xlane.xlu0 %4412
        %v4414 = vsel %vm3582, %v4138, 0.0
        %4415 = vadd.xlane.f32.xlu0 %v4414
        %v4416 = vpop.xlane.xlu0 %4415
        %v4417 = vsel %vm3582, %v4140, 0.0
        %4418 = vadd.xlane.f32.xlu0 %v4417
        %v4419 = vpop.xlane.xlu0 %4418
        %v4420 = vsel %vm3582, %v4142, 0.0
        %4421 = vadd.xlane.f32.xlu0 %v4420
        %v4422 = vpop.xlane.xlu0 %4421
        %v4423 = vsel %vm3582, %v4144, 0.0
        %4424 = vadd.xlane.f32.xlu0 %v4423
        %v4425 = vpop.xlane.xlu0 %4424
        %v4426 = vsel %vm3582, %v4146, 0.0
        %4427 = vadd.xlane.f32.xlu0 %v4426
        %v4428 = vpop.xlane.xlu0 %4427
        %v4429 = vsel %vm3582, %v4148, 0.0
        %4430 = vadd.xlane.f32.xlu0 %v4429
        %v4431 = vpop.xlane.xlu0 %4430
        %v4432 = vsel %vm3582, %v4150, 0.0
        %4433 = vadd.xlane.f32.xlu0 %v4432
        %v4434 = vpop.xlane.xlu0 %4433
        %v4435 = vsel %vm3582, %v4152, 0.0
        %4436 = vadd.xlane.f32.xlu0 %v4435
        %v4437 = vpop.xlane.xlu0 %4436
        %v4438 = vsel %vm3582, %v4154, 0.0
        %4439 = vadd.xlane.f32.xlu0 %v4438
        %v4440 = vpop.xlane.xlu0 %4439
        %v4441 = vsel %vm3582, %v4156, 0.0
        %4442 = vadd.xlane.f32.xlu0 %v4441
        %v4443 = vpop.xlane.xlu0 %4442
        %v4444 = vsel %vm3582, %v4158, 0.0
        %4445 = vadd.xlane.f32.xlu0 %v4444
        %v4446 = vpop.xlane.xlu0 %4445
        %v4447 = vsel %vm3582, %v4160, 0.0
        %4448 = vadd.xlane.f32.xlu0 %v4447
        %v4449 = vpop.xlane.xlu0 %4448
        %v4450 = vsel %vm3582, %v4162, 0.0
        %4451 = vadd.xlane.f32.xlu0 %v4450
        %v4452 = vpop.xlane.xlu0 %4451
        %v4453 = vsel %vm3582, %v4164, 0.0
        %4454 = vadd.xlane.f32.xlu0 %v4453
        %v4455 = vpop.xlane.xlu0 %4454
        %v4456 = vsel %vm3582, %v4166, 0.0
        %4457 = vadd.xlane.f32.xlu0 %v4456
        %v4458 = vpop.xlane.xlu0 %4457
        %v4459 = vsel %vm3582, %v4168, 0.0
        %4460 = vadd.xlane.f32.xlu0 %v4459
        %v4461 = vpop.xlane.xlu0 %4460
        %v4462 = vsel %vm3582, %v4170, 0.0
        %4463 = vadd.xlane.f32.xlu0 %v4462
        %v4464 = vpop.xlane.xlu0 %4463
        %v4465 = vsel %vm3582, %v4172, 0.0
        %4466 = vadd.xlane.f32.xlu0 %v4465
        %v4467 = vpop.xlane.xlu0 %4466
        %v4468 = vsel %vm3582, %v4174, 0.0
        %4469 = vadd.xlane.f32.xlu0 %v4468
        %v4470 = vpop.xlane.xlu0 %4469
        %v4471 = vsel %vm3582, %v4176, 0.0
        %4472 = vadd.xlane.f32.xlu0 %v4471
        %v4473 = vpop.xlane.xlu0 %4472
        %v4474 = vsel %vm3582, %v4178, 0.0
        %4475 = vadd.xlane.f32.xlu0 %v4474
        %v4476 = vpop.xlane.xlu0 %4475
        %v4477 = vsel %vm3582, %v4180, 0.0
        %4478 = vadd.xlane.f32.xlu0 %v4477
        %v4479 = vpop.xlane.xlu0 %4478
        %v4480 = vsel %vm3582, %v4182, 0.0
        %4481 = vadd.xlane.f32.xlu0 %v4480
        %v4482 = vpop.xlane.xlu0 %4481
        %v4483 = vsel %vm3582, %v4184, 0.0
        %4484 = vadd.xlane.f32.xlu0 %v4483
        %v4485 = vpop.xlane.xlu0 %4484
        %v4486 = vsel %vm3582, %v4186, 0.0
        %4487 = vadd.xlane.f32.xlu0 %v4486
        %v4488 = vpop.xlane.xlu0 %4487
        %v4489 = vsel %vm3582, %v4188, 0.0
        %4490 = vadd.xlane.f32.xlu0 %v4489
        %v4491 = vpop.xlane.xlu0 %4490
        %v4492 = vsel %vm3582, %v4190, 0.0
        %4493 = vadd.xlane.f32.xlu0 %v4492
        %v4494 = vpop.xlane.xlu0 %4493
        %v4495 = vsel %vm3582, %v4192, 0.0
        %4496 = vadd.xlane.f32.xlu0 %v4495
        %v4497 = vpop.xlane.xlu0 %4496
        %v4498 = vsel %vm3582, %v4194, 0.0
        %4499 = vadd.xlane.f32.xlu0 %v4498
        %v4500 = vpop.xlane.xlu0 %4499
        %v4501 = vsel %vm3582, %v4196, 0.0
        %4502 = vadd.xlane.f32.xlu0 %v4501
        %v4503 = vpop.xlane.xlu0 %4502
        %v4504 = vsel %vm3582, %v4198, 0.0
        %4505 = vadd.xlane.f32.xlu0 %v4504
        %v4506 = vpop.xlane.xlu0 %4505
        %v4507 = vsel %vm3582, %v4200, 0.0
        %4508 = vadd.xlane.f32.xlu0 %v4507
        %v4509 = vpop.xlane.xlu0 %4508
        %v4510 = vsel %vm3582, %v4202, 0.0
        %4511 = vadd.xlane.f32.xlu0 %v4510
        %v4512 = vpop.xlane.xlu0 %4511
        %v4513 = vsel %vm3582, %v4204, 0.0
        %4514 = vadd.xlane.f32.xlu0 %v4513
        %v4515 = vpop.xlane.xlu0 %4514
        %v4516 = vsel %vm3582, %v4206, 0.0
        %4517 = vadd.xlane.f32.xlu0 %v4516
        %v4518 = vpop.xlane.xlu0 %4517
        %v4519 = vsel %vm3582, %v4208, 0.0
        %4520 = vadd.xlane.f32.xlu0 %v4519
        %v4521 = vpop.xlane.xlu0 %4520
        %v4522 = vsel %vm3582, %v4210, 0.0
        %4523 = vadd.xlane.f32.xlu0 %v4522
        %v4524 = vpop.xlane.xlu0 %4523
        %v4525 = vsel %vm3582, %v4212, 0.0
        %4526 = vadd.xlane.f32.xlu0 %v4525
        %v4527 = vpop.xlane.xlu0 %4526
        %v4528 = vsel %vm3582, %v4214, 0.0
        %4529 = vadd.xlane.f32.xlu0 %v4528
        %v4530 = vpop.xlane.xlu0 %4529
        %v4531 = vsel %vm3582, %v4216, 0.0
        %4532 = vadd.xlane.f32.xlu0 %v4531
        %v4533 = vpop.xlane.xlu0 %4532
        %v4534 = vsel %vm3582, %v4218, 0.0
        %4535 = vadd.xlane.f32.xlu0 %v4534
        %v4536 = vpop.xlane.xlu0 %4535
        %v4537 = vsel %vm3582, %v4220, 0.0
        %4538 = vadd.xlane.f32.xlu0 %v4537
        %v4539 = vpop.xlane.xlu0 %4538
        %v4540 = vsel %vm3582, %v4222, 0.0
        %4541 = vadd.xlane.f32.xlu0 %v4540
        %v4542 = vpop.xlane.xlu0 %4541
        %v4543 = vsel %vm3582, %v4224, 0.0
        %4544 = vadd.xlane.f32.xlu0 %v4543
        %v4545 = vpop.xlane.xlu0 %4544
        %v4546 = vsel %vm3582, %v4226, 0.0
        %4547 = vadd.xlane.f32.xlu0 %v4546
        %v4548 = vpop.xlane.xlu0 %4547
        %v4549 = vsel %vm3582, %v4228, 0.0
        %4550 = vadd.xlane.f32.xlu0 %v4549
        %v4551 = vpop.xlane.xlu0 %4550
        %v4552 = vsel %vm3582, %v4230, 0.0
        %4553 = vadd.xlane.f32.xlu0 %v4552
        %v4554 = vpop.xlane.xlu0 %4553
        %v4555 = vsel %vm3582, %v4232, 0.0
        %4556 = vadd.xlane.f32.xlu0 %v4555
        %v4557 = vpop.xlane.xlu0 %4556
        %v4558 = vsel %vm3582, %v4234, 0.0
        %4559 = vadd.xlane.f32.xlu0 %v4558
        %v4560 = vpop.xlane.xlu0 %4559
        %v4561 = vsel %vm3582, %v4236, 0.0
        %4562 = vadd.xlane.f32.xlu0 %v4561
        %v4563 = vpop.xlane.xlu0 %4562
        %v4564 = vsel %vm3582, %v4238, 0.0
        %4565 = vadd.xlane.f32.xlu0 %v4564
        %v4566 = vpop.xlane.xlu0 %4565
        %v4567 = vsel %vm3582, %v4240, 0.0
        %4568 = vadd.xlane.f32.xlu0 %v4567
        %v4569 = vpop.xlane.xlu0 %4568
        %v4570 = vsel %vm3582, %v4242, 0.0
        %4571 = vadd.xlane.f32.xlu0 %v4570
        %v4572 = vpop.xlane.xlu0 %4571
        %v4573 = vsel %vm3582, %v4244, 0.0
        %4574 = vadd.xlane.f32.xlu0 %v4573
        %v4575 = vpop.xlane.xlu0 %4574
        %v4576 = vsel %vm3582, %v4246, 0.0
        %4577 = vadd.xlane.f32.xlu0 %v4576
        %v4578 = vpop.xlane.xlu0 %4577
        %v4579 = vsel %vm3582, %v4248, 0.0
        %4580 = vadd.xlane.f32.xlu0 %v4579
        %v4581 = vpop.xlane.xlu0 %4580
        %v4582 = vsel %vm3582, %v4250, 0.0
        %4583 = vadd.xlane.f32.xlu0 %v4582
        %v4584 = vpop.xlane.xlu0 %4583
        %v4585 = vsel %vm3582, %v4252, 0.0
        %4586 = vadd.xlane.f32.xlu0 %v4585
        %v4587 = vpop.xlane.xlu0 %4586
        %v4588 = vsel %vm3582, %v4254, 0.0
        %4589 = vadd.xlane.f32.xlu0 %v4588
        %v4590 = vpop.xlane.xlu0 %4589
        %v4591 = vsel %vm3582, %v4256, 0.0
        %4592 = vadd.xlane.f32.xlu0 %v4591
        %v4593 = vpop.xlane.xlu0 %4592
        %v4594 = vsel %vm3582, %v4258, 0.0
        %4595 = vadd.xlane.f32.xlu0 %v4594
        %v4596 = vpop.xlane.xlu0 %4595
        %v4597 = vsel %vm3582, %v4260, 0.0
        %4598 = vadd.xlane.f32.xlu0 %v4597
        %v4599 = vpop.xlane.xlu0 %4598
        %v4600 = vsel %vm3582, %v4262, 0.0
        %4601 = vadd.xlane.f32.xlu0 %v4600
        %v4602 = vpop.xlane.xlu0 %4601
        %v4603 = vsel %vm3582, %v4264, 0.0
        %4604 = vadd.xlane.f32.xlu0 %v4603
        %v4605 = vpop.xlane.xlu0 %4604
        %v4606 = vsel %vm3582, %v4266, 0.0
        %4607 = vadd.xlane.f32.xlu0 %v4606
        %v4608 = vpop.xlane.xlu0 %4607
        %v4609 = vsel %vm3582, %v4268, 0.0
        %4610 = vadd.xlane.f32.xlu0 %v4609
        %v4611 = vpop.xlane.xlu0 %4610
        %v4612 = vsel %vm3582, %v4270, 0.0
        %4613 = vadd.xlane.f32.xlu0 %v4612
        %v4614 = vpop.xlane.xlu0 %4613
        %v4615 = vsel %vm3582, %v4272, 0.0
        %4616 = vadd.xlane.f32.xlu0 %v4615
        %v4617 = vpop.xlane.xlu0 %4616
        %v4618 = vsel %vm3582, %v4274, 0.0
        %4619 = vadd.xlane.f32.xlu0 %v4618
        %v4620 = vpop.xlane.xlu0 %4619
        %v4621 = vsel %vm3582, %v4276, 0.0
        %4622 = vadd.xlane.f32.xlu0 %v4621
        %v4623 = vpop.xlane.xlu0 %4622
        %v4624 = vsel %vm3582, %v4278, 0.0
        %4625 = vadd.xlane.f32.xlu0 %v4624
        %v4626 = vpop.xlane.xlu0 %4625
        %v4627 = vsel %vm3582, %v4280, 0.0
        %4628 = vadd.xlane.f32.xlu0 %v4627
        %v4629 = vpop.xlane.xlu0 %4628
        %v4630 = vsel %vm3582, %v4282, 0.0
        %4631 = vadd.xlane.f32.xlu0 %v4630
        %v4632 = vpop.xlane.xlu0 %4631
        %v4633 = vsel %vm3582, %v4284, 0.0
        %4634 = vadd.xlane.f32.xlu0 %v4633
        %v4635 = vpop.xlane.xlu0 %4634
        %v4636 = vsel %vm3582, %v4286, 0.0
        %4637 = vadd.xlane.f32.xlu0 %v4636
        %v4638 = vpop.xlane.xlu0 %4637
        %v4639 = vsel %vm3582, %v4288, 0.0
        %4640 = vadd.xlane.f32.xlu0 %v4639
        %v4641 = vpop.xlane.xlu0 %4640
        %v4642 = vsel %vm3582, %v4290, 0.0
        %4643 = vadd.xlane.f32.xlu0 %v4642
        %v4644 = vpop.xlane.xlu0 %4643
        %v4645 = vsel %vm3582, %v4292, 0.0
        %4646 = vadd.xlane.f32.xlu0 %v4645
        %v4647 = vpop.xlane.xlu0 %4646
        %v4648 = vsel %vm3582, %v4294, 0.0
        %4649 = vadd.xlane.f32.xlu0 %v4648
        %v4650 = vpop.xlane.xlu0 %4649
        %v4651 = vsel %vm3582, %v4296, 0.0
        %4652 = vadd.xlane.f32.xlu0 %v4651
        %v4653 = vpop.xlane.xlu0 %4652
        %v4654 = vsel %vm3582, %v4298, 0.0
        %4655 = vadd.xlane.f32.xlu0 %v4654
        %v4656 = vpop.xlane.xlu0 %4655
        %v4657 = vsel %vm3582, %v4300, 0.0
        %4658 = vadd.xlane.f32.xlu0 %v4657
        %v4659 = vpop.xlane.xlu0 %4658
        %v4660 = vsel %vm3582, %v4302, 0.0
        %4661 = vadd.xlane.f32.xlu0 %v4660
        %v4662 = vpop.xlane.xlu0 %4661
        %v4663 = vsel %vm3582, %v4304, 0.0
        %4664 = vadd.xlane.f32.xlu0 %v4663
        %v4665 = vpop.xlane.xlu0 %4664
        %v4666 = vsel %vm3582, %v4306, 0.0
        %4667 = vadd.xlane.f32.xlu0 %v4666
        %v4668 = vpop.xlane.xlu0 %4667
        %v4669 = vsel %vm3582, %v4308, 0.0
        %4670 = vadd.xlane.f32.xlu0 %v4669
        %v4671 = vpop.xlane.xlu0 %4670
        %v4672 = vsel %vm3582, %v4310, 0.0
        %4673 = vadd.xlane.f32.xlu0 %v4672
        %v4674 = vpop.xlane.xlu0 %4673
        %v4675 = vsel %vm3582, %v4312, 0.0
        %4676 = vadd.xlane.f32.xlu0 %v4675
        %v4677 = vpop.xlane.xlu0 %4676
        %v4678 = vsel %vm3582, %v4314, 0.0
        %4679 = vadd.xlane.f32.xlu0 %v4678
        %v4680 = vpop.xlane.xlu0 %4679
        %v4681 = vsel %vm3582, %v4316, 0.0
        %4682 = vadd.xlane.f32.xlu0 %v4681
        %v4683 = vpop.xlane.xlu0 %4682
        %v4684 = vsel %vm3582, %v4318, 0.0
        %4685 = vadd.xlane.f32.xlu0 %v4684
        %v4686 = vpop.xlane.xlu0 %4685
        %v4687 = vsel %vm3582, %v4320, 0.0
        %4688 = vadd.xlane.f32.xlu0 %v4687
        %v4689 = vpop.xlane.xlu0 %4688
        %v4690 = vsel %vm3582, %v4322, 0.0
        %4691 = vadd.xlane.f32.xlu0 %v4690
        %v4692 = vpop.xlane.xlu0 %4691
        %v4693 = vsel %vm3582, %v4324, 0.0
        %4694 = vadd.xlane.f32.xlu0 %v4693
        %v4695 = vpop.xlane.xlu0 %4694
        %v4696 = vsel %vm3582, %v4326, 0.0
        %4697 = vadd.xlane.f32.xlu0 %v4696
        %v4698 = vpop.xlane.xlu0 %4697
        %v4699 = vsel %vm3582, %v4328, 0.0
        %4700 = vadd.xlane.f32.xlu0 %v4699
        %v4701 = vpop.xlane.xlu0 %4700
        %v4702 = vsel %vm3582, %v4330, 0.0
        %4703 = vadd.xlane.f32.xlu0 %v4702
        %v4704 = vpop.xlane.xlu0 %4703
        %v4705 = vsel %vm3582, %v4332, 0.0
        %4706 = vadd.xlane.f32.xlu0 %v4705
        %v4707 = vpop.xlane.xlu0 %4706
        %v4708 = vsel %vm3582, %v4334, 0.0
        %4709 = vadd.xlane.f32.xlu0 %v4708
        %v4710 = vpop.xlane.xlu0 %4709
        %v4711 = vsel %vm3582, %v4336, 0.0
        %4712 = vadd.xlane.f32.xlu0 %v4711
        %v4713 = vpop.xlane.xlu0 %4712
        %v4714 = vsel %vm3582, %v4338, 0.0
        %4715 = vadd.xlane.f32.xlu0 %v4714
        %v4716 = vpop.xlane.xlu0 %4715
        %v4717 = vsel %vm3582, %v4340, 0.0
        %4718 = vadd.xlane.f32.xlu0 %v4717
        %v4719 = vpop.xlane.xlu0 %4718
        %v4720 = vsel %vm3582, %v4342, 0.0
        %4721 = vadd.xlane.f32.xlu0 %v4720
        %v4722 = vpop.xlane.xlu0 %4721
        %v4723 = vsel %vm3582, %v4344, 0.0
        %4724 = vadd.xlane.f32.xlu0 %v4723
        %v4725 = vpop.xlane.xlu0 %4724
        %v4726 = vsel %vm3582, %v4346, 0.0
        %4727 = vadd.xlane.f32.xlu0 %v4726
        %v4728 = vpop.xlane.xlu0 %4727
        %v4729 = vsel %vm3582, %v4348, 0.0
        %4730 = vadd.xlane.f32.xlu0 %v4729
        %v4731 = vpop.xlane.xlu0 %4730
        %v4732 = vsel %vm3582, %v4350, 0.0
        %4733 = vadd.xlane.f32.xlu0 %v4732
        %v4734 = vpop.xlane.xlu0 %4733
        %v4735 = vpack.c.bf16 %v4096, %v4096
        %v4736 = vpack.c.bf16 %v4098, %v4098
        %v4737 = vpack.c.bf16 %v4100, %v4100
        %v4738 = vpack.c.bf16 %v4102, %v4102
        %v4739 = vpack.c.bf16 %v4104, %v4104
        %v4740 = vpack.c.bf16 %v4106, %v4106
        %v4741 = vpack.c.bf16 %v4108, %v4108
        %v4742 = vpack.c.bf16 %v4110, %v4110
        %v4743 = vpack.c.bf16 %v4112, %v4112
        %v4744 = vpack.c.bf16 %v4114, %v4114
        %v4745 = vpack.c.bf16 %v4116, %v4116
        %v4746 = vpack.c.bf16 %v4118, %v4118
        %v4747 = vpack.c.bf16 %v4120, %v4120
        %v4748 = vpack.c.bf16 %v4122, %v4122
        %v4749 = vpack.c.bf16 %v4124, %v4124
        %v4750 = vpack.c.bf16 %v4126, %v4126
        %v4751 = vpack.c.bf16 %v4128, %v4128
        %v4752 = vpack.c.bf16 %v4130, %v4130
        %v4753 = vpack.c.bf16 %v4132, %v4132
        %v4754 = vpack.c.bf16 %v4134, %v4134
        %v4755 = vpack.c.bf16 %v4136, %v4136
        %v4756 = vpack.c.bf16 %v4138, %v4138
        %v4757 = vpack.c.bf16 %v4140, %v4140
        %v4758 = vpack.c.bf16 %v4142, %v4142
        %v4759 = vpack.c.bf16 %v4144, %v4144
        %v4760 = vpack.c.bf16 %v4146, %v4146
        %v4761 = vpack.c.bf16 %v4148, %v4148
        %v4762 = vpack.c.bf16 %v4150, %v4150
        %v4763 = vpack.c.bf16 %v4152, %v4152
        %v4764 = vpack.c.bf16 %v4154, %v4154
        %v4765 = vpack.c.bf16 %v4156, %v4156
        %v4766 = vpack.c.bf16 %v4158, %v4158
        %v4767 = vpack.c.bf16 %v4160, %v4160
        %v4768 = vpack.c.bf16 %v4162, %v4162
        %v4769 = vpack.c.bf16 %v4164, %v4164
        %v4770 = vpack.c.bf16 %v4166, %v4166
        %v4771 = vpack.c.bf16 %v4168, %v4168
        %v4772 = vpack.c.bf16 %v4170, %v4170
        %v4773 = vpack.c.bf16 %v4172, %v4172
        %v4774 = vpack.c.bf16 %v4174, %v4174
        %v4775 = vpack.c.bf16 %v4176, %v4176
        %v4776 = vpack.c.bf16 %v4178, %v4178
        %v4777 = vpack.c.bf16 %v4180, %v4180
        %v4778 = vpack.c.bf16 %v4182, %v4182
        %v4779 = vpack.c.bf16 %v4184, %v4184
        %v4780 = vpack.c.bf16 %v4186, %v4186
        %v4781 = vpack.c.bf16 %v4188, %v4188
        %v4782 = vpack.c.bf16 %v4190, %v4190
        %v4783 = vpack.c.bf16 %v4192, %v4192
        %v4784 = vpack.c.bf16 %v4194, %v4194
        %v4785 = vpack.c.bf16 %v4196, %v4196
        %v4786 = vpack.c.bf16 %v4198, %v4198
        %v4787 = vpack.c.bf16 %v4200, %v4200
        %v4788 = vpack.c.bf16 %v4202, %v4202
        %v4789 = vpack.c.bf16 %v4204, %v4204
        %v4790 = vpack.c.bf16 %v4206, %v4206
        %v4791 = vpack.c.bf16 %v4208, %v4208
        %v4792 = vpack.c.bf16 %v4210, %v4210
        %v4793 = vpack.c.bf16 %v4212, %v4212
        %v4794 = vpack.c.bf16 %v4214, %v4214
        %v4795 = vpack.c.bf16 %v4216, %v4216
        %v4796 = vpack.c.bf16 %v4218, %v4218
        %v4797 = vpack.c.bf16 %v4220, %v4220
        %v4798 = vpack.c.bf16 %v4222, %v4222
        %v4799 = vpack.c.bf16 %v4224, %v4224
        %v4800 = vpack.c.bf16 %v4226, %v4226
        %v4801 = vpack.c.bf16 %v4228, %v4228
        %v4802 = vpack.c.bf16 %v4230, %v4230
        %v4803 = vpack.c.bf16 %v4232, %v4232
        %v4804 = vpack.c.bf16 %v4234, %v4234
        %v4805 = vpack.c.bf16 %v4236, %v4236
        %v4806 = vpack.c.bf16 %v4238, %v4238
        %v4807 = vpack.c.bf16 %v4240, %v4240
        %v4808 = vpack.c.bf16 %v4242, %v4242
        %v4809 = vpack.c.bf16 %v4244, %v4244
        %v4810 = vpack.c.bf16 %v4246, %v4246
        %v4811 = vpack.c.bf16 %v4248, %v4248
        %v4812 = vpack.c.bf16 %v4250, %v4250
        %v4813 = vpack.c.bf16 %v4252, %v4252
        %v4814 = vpack.c.bf16 %v4254, %v4254
        %v4815 = vpack.c.bf16 %v4256, %v4256
        %v4816 = vpack.c.bf16 %v4258, %v4258
        %v4817 = vpack.c.bf16 %v4260, %v4260
        %v4818 = vpack.c.bf16 %v4262, %v4262
        %v4819 = vpack.c.bf16 %v4264, %v4264
        %v4820 = vpack.c.bf16 %v4266, %v4266
        %v4821 = vpack.c.bf16 %v4268, %v4268
        %v4822 = vpack.c.bf16 %v4270, %v4270
        %v4823 = vpack.c.bf16 %v4272, %v4272
        %v4824 = vpack.c.bf16 %v4274, %v4274
        %v4825 = vpack.c.bf16 %v4276, %v4276
        %v4826 = vpack.c.bf16 %v4278, %v4278
        %v4827 = vpack.c.bf16 %v4280, %v4280
        %v4828 = vpack.c.bf16 %v4282, %v4282
        %v4829 = vpack.c.bf16 %v4284, %v4284
        %v4830 = vpack.c.bf16 %v4286, %v4286
        %v4831 = vpack.c.bf16 %v4288, %v4288
        %v4832 = vpack.c.bf16 %v4290, %v4290
        %v4833 = vpack.c.bf16 %v4292, %v4292
        %v4834 = vpack.c.bf16 %v4294, %v4294
        %v4835 = vpack.c.bf16 %v4296, %v4296
        %v4836 = vpack.c.bf16 %v4298, %v4298
        %v4837 = vpack.c.bf16 %v4300, %v4300
        %v4838 = vpack.c.bf16 %v4302, %v4302
        %v4839 = vpack.c.bf16 %v4304, %v4304
        %v4840 = vpack.c.bf16 %v4306, %v4306
        %v4841 = vpack.c.bf16 %v4308, %v4308
        %v4842 = vpack.c.bf16 %v4310, %v4310
        %v4843 = vpack.c.bf16 %v4312, %v4312
        %v4844 = vpack.c.bf16 %v4314, %v4314
        %v4845 = vpack.c.bf16 %v4316, %v4316
        %v4846 = vpack.c.bf16 %v4318, %v4318
        %v4847 = vpack.c.bf16 %v4320, %v4320
        %v4848 = vpack.c.bf16 %v4322, %v4322
        %v4849 = vpack.c.bf16 %v4324, %v4324
        %v4850 = vpack.c.bf16 %v4326, %v4326
        %v4851 = vpack.c.bf16 %v4328, %v4328
        %v4852 = vpack.c.bf16 %v4330, %v4330
        %v4853 = vpack.c.bf16 %v4332, %v4332
        %v4854 = vpack.c.bf16 %v4334, %v4334
        %v4855 = vpack.c.bf16 %v4336, %v4336
        %v4856 = vpack.c.bf16 %v4338, %v4338
        %v4857 = vpack.c.bf16 %v4340, %v4340
        %v4858 = vpack.c.bf16 %v4342, %v4342
        %v4859 = vpack.c.bf16 %v4344, %v4344
        %v4860 = vpack.c.bf16 %v4346, %v4346
        %v4861 = vpack.c.bf16 %v4348, %v4348
        %v4862 = vpack.c.bf16 %v4350, %v4350
        %v4865 = vunpack.c.l.b16 %v4735
        %v4866 = vunpack.c.l.b16 %v4736
        %v4867 = vpack.c.b16 %v4866, %v4865
        %4868 = vrot.lane.b32.xlu0 %v1857, 64
        %v4869 = vpop.permute.xlu0 %4868
        %v4872 = vsel %vm3582, %v4867, 0
        %4874 = vmatpush.bf16.msra.mxu0 0
        %4875 = vmatpush.bf16.msra.mxu0 0
        %4876 = vmatpush.bf16.msra.mxu0 0
        %4877 = vmatpush.bf16.msra.mxu0 0
        %4878 = vmatpush.bf16.msra.mxu0 0
        %4879 = vmatpush.bf16.msra.mxu0 0
        %4880 = vmatpush.bf16.msra.mxu0 0
        %4881 = vmatpush.bf16.msra.mxu0 %v4869
        %4882 = vmatmul.bf16.gmra.mxu0 %v4872
        %v4883 = vpop.f32.mrf.mxu0
        %v4884 = vadd.f32 0.0, %v4883
        %v4885 = vpop.f32.mrf.mxu0
        %v4886 = vadd.f32 0.0, %v4885
        %4887 = vdwg.mxu0
        %v4890 = vunpack.c.l.b16 %v4737
        %v4891 = vunpack.c.l.b16 %v4738
        %v4892 = vpack.c.b16 %v4891, %v4890
        %4893 = vrot.lane.b32.xlu0 %v1885, 64
        %v4894 = vpop.permute.xlu0 %4893
        %v4897 = vsel %vm3582, %v4892, 0
        %4899 = vmatpush.bf16.msra.mxu0 0
        %4900 = vmatpush.bf16.msra.mxu0 0
        %4901 = vmatpush.bf16.msra.mxu0 0
        %4902 = vmatpush.bf16.msra.mxu0 0
        %4903 = vmatpush.bf16.msra.mxu0 0
        %4904 = vmatpush.bf16.msra.mxu0 0
        %4905 = vmatpush.bf16.msra.mxu0 0
        %4906 = vmatpush.bf16.msra.mxu0 %v4894
        %4907 = vmatmul.bf16.gmra.mxu0 %v4897
        %v4908 = vpop.f32.mrf.mxu0
        %v4909 = vadd.f32 0.0, %v4908
        %v4910 = vpop.f32.mrf.mxu0
        %v4911 = vadd.f32 0.0, %v4910
        %4912 = vdwg.mxu0
        %v4915 = vunpack.c.l.b16 %v4739
        %v4916 = vunpack.c.l.b16 %v4740
        %v4917 = vpack.c.b16 %v4916, %v4915
        %4918 = vrot.lane.b32.xlu0 %v1912, 64
        %v4919 = vpop.permute.xlu0 %4918
        %v4922 = vsel %vm3582, %v4917, 0
        %4924 = vmatpush.bf16.msra.mxu0 0
        %4925 = vmatpush.bf16.msra.mxu0 0
        %4926 = vmatpush.bf16.msra.mxu0 0
        %4927 = vmatpush.bf16.msra.mxu0 0
        %4928 = vmatpush.bf16.msra.mxu0 0
        %4929 = vmatpush.bf16.msra.mxu0 0
        %4930 = vmatpush.bf16.msra.mxu0 0
        %4931 = vmatpush.bf16.msra.mxu0 %v4919
        %4932 = vmatmul.bf16.gmra.mxu0 %v4922
        %v4933 = vpop.f32.mrf.mxu0
        %v4934 = vadd.f32 0.0, %v4933
        %v4935 = vpop.f32.mrf.mxu0
        %v4936 = vadd.f32 0.0, %v4935
        %4937 = vdwg.mxu0
        %v4940 = vunpack.c.l.b16 %v4741
        %v4941 = vunpack.c.l.b16 %v4742
        %v4942 = vpack.c.b16 %v4941, %v4940
        %4943 = vrot.lane.b32.xlu0 %v1939, 64
        %v4944 = vpop.permute.xlu0 %4943
        %v4947 = vsel %vm3582, %v4942, 0
        %4949 = vmatpush.bf16.msra.mxu0 0
        %4950 = vmatpush.bf16.msra.mxu0 0
        %4951 = vmatpush.bf16.msra.mxu0 0
        %4952 = vmatpush.bf16.msra.mxu0 0
        %4953 = vmatpush.bf16.msra.mxu0 0
        %4954 = vmatpush.bf16.msra.mxu0 0
        %4955 = vmatpush.bf16.msra.mxu0 0
        %4956 = vmatpush.bf16.msra.mxu0 %v4944
        %4957 = vmatmul.bf16.gmra.mxu0 %v4947
        %v4958 = vpop.f32.mrf.mxu0
        %v4959 = vadd.f32 0.0, %v4958
        %v4960 = vpop.f32.mrf.mxu0
        %v4961 = vadd.f32 0.0, %v4960
        %4962 = vdwg.mxu0
        %v4965 = vunpack.c.l.b16 %v4743
        %v4966 = vunpack.c.l.b16 %v4744
        %v4967 = vpack.c.b16 %v4966, %v4965
        %4968 = vrot.lane.b32.xlu0 %v1966, 64
        %v4969 = vpop.permute.xlu0 %4968
        %v4972 = vsel %vm3582, %v4967, 0
        %4974 = vmatpush.bf16.msra.mxu0 0
        %4975 = vmatpush.bf16.msra.mxu0 0
        %4976 = vmatpush.bf16.msra.mxu0 0
        %4977 = vmatpush.bf16.msra.mxu0 0
        %4978 = vmatpush.bf16.msra.mxu0 0
        %4979 = vmatpush.bf16.msra.mxu0 0
        %4980 = vmatpush.bf16.msra.mxu0 0
        %4981 = vmatpush.bf16.msra.mxu0 %v4969
        %4982 = vmatmul.bf16.gmra.mxu0 %v4972
        %v4983 = vpop.f32.mrf.mxu0
        %v4984 = vadd.f32 0.0, %v4983
        %v4985 = vpop.f32.mrf.mxu0
        %v4986 = vadd.f32 0.0, %v4985
        %4987 = vdwg.mxu0
        %v4990 = vunpack.c.l.b16 %v4745
        %v4991 = vunpack.c.l.b16 %v4746
        %v4992 = vpack.c.b16 %v4991, %v4990
        %4993 = vrot.lane.b32.xlu0 %v1993, 64
        %v4994 = vpop.permute.xlu0 %4993
        %v4997 = vsel %vm3582, %v4992, 0
        %4999 = vmatpush.bf16.msra.mxu0 0
        %5000 = vmatpush.bf16.msra.mxu0 0
        %5001 = vmatpush.bf16.msra.mxu0 0
        %5002 = vmatpush.bf16.msra.mxu0 0
        %5003 = vmatpush.bf16.msra.mxu0 0
        %5004 = vmatpush.bf16.msra.mxu0 0
        %5005 = vmatpush.bf16.msra.mxu0 0
        %5006 = vmatpush.bf16.msra.mxu0 %v4994
        %5007 = vmatmul.bf16.gmra.mxu0 %v4997
        %v5008 = vpop.f32.mrf.mxu0
        %v5009 = vadd.f32 0.0, %v5008
        %v5010 = vpop.f32.mrf.mxu0
        %v5011 = vadd.f32 0.0, %v5010
        %5012 = vdwg.mxu0
        %v5015 = vunpack.c.l.b16 %v4747
        %v5016 = vunpack.c.l.b16 %v4748
        %v5017 = vpack.c.b16 %v5016, %v5015
        %5018 = vrot.lane.b32.xlu0 %v2020, 64
        %v5019 = vpop.permute.xlu0 %5018
        %v5022 = vsel %vm3582, %v5017, 0
        %5024 = vmatpush.bf16.msra.mxu0 0
        %5025 = vmatpush.bf16.msra.mxu0 0
        %5026 = vmatpush.bf16.msra.mxu0 0
        %5027 = vmatpush.bf16.msra.mxu0 0
        %5028 = vmatpush.bf16.msra.mxu0 0
        %5029 = vmatpush.bf16.msra.mxu0 0
        %5030 = vmatpush.bf16.msra.mxu0 0
        %5031 = vmatpush.bf16.msra.mxu0 %v5019
        %5032 = vmatmul.bf16.gmra.mxu0 %v5022
        %v5033 = vpop.f32.mrf.mxu0
        %v5034 = vadd.f32 0.0, %v5033
        %v5035 = vpop.f32.mrf.mxu0
        %v5036 = vadd.f32 0.0, %v5035
        %5037 = vdwg.mxu0
        %v5040 = vunpack.c.l.b16 %v4749
        %v5041 = vunpack.c.l.b16 %v4750
        %v5042 = vpack.c.b16 %v5041, %v5040
        %5043 = vrot.lane.b32.xlu0 %v2047, 64
        %v5044 = vpop.permute.xlu0 %5043
        %v5047 = vsel %vm3582, %v5042, 0
        %5049 = vmatpush.bf16.msra.mxu0 0
        %5050 = vmatpush.bf16.msra.mxu0 0
        %5051 = vmatpush.bf16.msra.mxu0 0
        %5052 = vmatpush.bf16.msra.mxu0 0
        %5053 = vmatpush.bf16.msra.mxu0 0
        %5054 = vmatpush.bf16.msra.mxu0 0
        %5055 = vmatpush.bf16.msra.mxu0 0
        %5056 = vmatpush.bf16.msra.mxu0 %v5044
        %5057 = vmatmul.bf16.gmra.mxu0 %v5047
        %v5058 = vpop.f32.mrf.mxu0
        %v5059 = vadd.f32 0.0, %v5058
        %v5060 = vpop.f32.mrf.mxu0
        %v5061 = vadd.f32 0.0, %v5060
        %5062 = vdwg.mxu0
        %v5065 = vunpack.c.l.b16 %v4751
        %v5066 = vunpack.c.l.b16 %v4752
        %v5067 = vpack.c.b16 %v5066, %v5065
        %5068 = vrot.lane.b32.xlu0 %v2074, 64
        %v5069 = vpop.permute.xlu0 %5068
        %v5072 = vsel %vm3582, %v5067, 0
        %5074 = vmatpush.bf16.msra.mxu0 0
        %5075 = vmatpush.bf16.msra.mxu0 0
        %5076 = vmatpush.bf16.msra.mxu0 0
        %5077 = vmatpush.bf16.msra.mxu0 0
        %5078 = vmatpush.bf16.msra.mxu0 0
        %5079 = vmatpush.bf16.msra.mxu0 0
        %5080 = vmatpush.bf16.msra.mxu0 0
        %5081 = vmatpush.bf16.msra.mxu0 %v5069
        %5082 = vmatmul.bf16.gmra.mxu0 %v5072
        %v5083 = vpop.f32.mrf.mxu0
        %v5084 = vadd.f32 0.0, %v5083
        %v5085 = vpop.f32.mrf.mxu0
        %v5086 = vadd.f32 0.0, %v5085
        %5087 = vdwg.mxu0
        %v5090 = vunpack.c.l.b16 %v4753
        %v5091 = vunpack.c.l.b16 %v4754
        %v5092 = vpack.c.b16 %v5091, %v5090
        %5093 = vrot.lane.b32.xlu0 %v2101, 64
        %v5094 = vpop.permute.xlu0 %5093
        %v5097 = vsel %vm3582, %v5092, 0
        %5099 = vmatpush.bf16.msra.mxu0 0
        %5100 = vmatpush.bf16.msra.mxu0 0
        %5101 = vmatpush.bf16.msra.mxu0 0
        %5102 = vmatpush.bf16.msra.mxu0 0
        %5103 = vmatpush.bf16.msra.mxu0 0
        %5104 = vmatpush.bf16.msra.mxu0 0
        %5105 = vmatpush.bf16.msra.mxu0 0
        %5106 = vmatpush.bf16.msra.mxu0 %v5094
        %5107 = vmatmul.bf16.gmra.mxu0 %v5097
        %v5108 = vpop.f32.mrf.mxu0
        %v5109 = vadd.f32 0.0, %v5108
        %v5110 = vpop.f32.mrf.mxu0
        %v5111 = vadd.f32 0.0, %v5110
        %5112 = vdwg.mxu0
        %v5115 = vunpack.c.l.b16 %v4755
        %v5116 = vunpack.c.l.b16 %v4756
        %v5117 = vpack.c.b16 %v5116, %v5115
        %5118 = vrot.lane.b32.xlu0 %v2128, 64
        %v5119 = vpop.permute.xlu0 %5118
        %v5122 = vsel %vm3582, %v5117, 0
        %5124 = vmatpush.bf16.msra.mxu0 0
        %5125 = vmatpush.bf16.msra.mxu0 0
        %5126 = vmatpush.bf16.msra.mxu0 0
        %5127 = vmatpush.bf16.msra.mxu0 0
        %5128 = vmatpush.bf16.msra.mxu0 0
        %5129 = vmatpush.bf16.msra.mxu0 0
        %5130 = vmatpush.bf16.msra.mxu0 0
        %5131 = vmatpush.bf16.msra.mxu0 %v5119
        %5132 = vmatmul.bf16.gmra.mxu0 %v5122
        %v5133 = vpop.f32.mrf.mxu0
        %v5134 = vadd.f32 0.0, %v5133
        %v5135 = vpop.f32.mrf.mxu0
        %v5136 = vadd.f32 0.0, %v5135
        %5137 = vdwg.mxu0
        %v5140 = vunpack.c.l.b16 %v4757
        %v5141 = vunpack.c.l.b16 %v4758
        %v5142 = vpack.c.b16 %v5141, %v5140
        %5143 = vrot.lane.b32.xlu0 %v2155, 64
        %v5144 = vpop.permute.xlu0 %5143
        %v5147 = vsel %vm3582, %v5142, 0
        %5149 = vmatpush.bf16.msra.mxu0 0
        %5150 = vmatpush.bf16.msra.mxu0 0
        %5151 = vmatpush.bf16.msra.mxu0 0
        %5152 = vmatpush.bf16.msra.mxu0 0
        %5153 = vmatpush.bf16.msra.mxu0 0
        %5154 = vmatpush.bf16.msra.mxu0 0
        %5155 = vmatpush.bf16.msra.mxu0 0
        %5156 = vmatpush.bf16.msra.mxu0 %v5144
        %5157 = vmatmul.bf16.gmra.mxu0 %v5147
        %v5158 = vpop.f32.mrf.mxu0
        %v5159 = vadd.f32 0.0, %v5158
        %v5160 = vpop.f32.mrf.mxu0
        %v5161 = vadd.f32 0.0, %v5160
        %5162 = vdwg.mxu0
        %v5165 = vunpack.c.l.b16 %v4759
        %v5166 = vunpack.c.l.b16 %v4760
        %v5167 = vpack.c.b16 %v5166, %v5165
        %5168 = vrot.lane.b32.xlu0 %v2182, 64
        %v5169 = vpop.permute.xlu0 %5168
        %v5172 = vsel %vm3582, %v5167, 0
        %5174 = vmatpush.bf16.msra.mxu0 0
        %5175 = vmatpush.bf16.msra.mxu0 0
        %5176 = vmatpush.bf16.msra.mxu0 0
        %5177 = vmatpush.bf16.msra.mxu0 0
        %5178 = vmatpush.bf16.msra.mxu0 0
        %5179 = vmatpush.bf16.msra.mxu0 0
        %5180 = vmatpush.bf16.msra.mxu0 0
        %5181 = vmatpush.bf16.msra.mxu0 %v5169
        %5182 = vmatmul.bf16.gmra.mxu0 %v5172
        %v5183 = vpop.f32.mrf.mxu0
        %v5184 = vadd.f32 0.0, %v5183
        %v5185 = vpop.f32.mrf.mxu0
        %v5186 = vadd.f32 0.0, %v5185
        %5187 = vdwg.mxu0
        %v5190 = vunpack.c.l.b16 %v4761
        %v5191 = vunpack.c.l.b16 %v4762
        %v5192 = vpack.c.b16 %v5191, %v5190
        %5193 = vrot.lane.b32.xlu0 %v2209, 64
        %v5194 = vpop.permute.xlu0 %5193
        %v5197 = vsel %vm3582, %v5192, 0
        %5199 = vmatpush.bf16.msra.mxu0 0
        %5200 = vmatpush.bf16.msra.mxu0 0
        %5201 = vmatpush.bf16.msra.mxu0 0
        %5202 = vmatpush.bf16.msra.mxu0 0
        %5203 = vmatpush.bf16.msra.mxu0 0
        %5204 = vmatpush.bf16.msra.mxu0 0
        %5205 = vmatpush.bf16.msra.mxu0 0
        %5206 = vmatpush.bf16.msra.mxu0 %v5194
        %5207 = vmatmul.bf16.gmra.mxu0 %v5197
        %v5208 = vpop.f32.mrf.mxu0
        %v5209 = vadd.f32 0.0, %v5208
        %v5210 = vpop.f32.mrf.mxu0
        %v5211 = vadd.f32 0.0, %v5210
        %5212 = vdwg.mxu0
        %v5215 = vunpack.c.l.b16 %v4763
        %v5216 = vunpack.c.l.b16 %v4764
        %v5217 = vpack.c.b16 %v5216, %v5215
        %5218 = vrot.lane.b32.xlu0 %v2236, 64
        %v5219 = vpop.permute.xlu0 %5218
        %v5222 = vsel %vm3582, %v5217, 0
        %5224 = vmatpush.bf16.msra.mxu0 0
        %5225 = vmatpush.bf16.msra.mxu0 0
        %5226 = vmatpush.bf16.msra.mxu0 0
        %5227 = vmatpush.bf16.msra.mxu0 0
        %5228 = vmatpush.bf16.msra.mxu0 0
        %5229 = vmatpush.bf16.msra.mxu0 0
        %5230 = vmatpush.bf16.msra.mxu0 0
        %5231 = vmatpush.bf16.msra.mxu0 %v5219
        %5232 = vmatmul.bf16.gmra.mxu0 %v5222
        %v5233 = vpop.f32.mrf.mxu0
        %v5234 = vadd.f32 0.0, %v5233
        %v5235 = vpop.f32.mrf.mxu0
        %v5236 = vadd.f32 0.0, %v5235
        %5237 = vdwg.mxu0
        %v5240 = vunpack.c.l.b16 %v4765
        %v5241 = vunpack.c.l.b16 %v4766
        %v5242 = vpack.c.b16 %v5241, %v5240
        %5243 = vrot.lane.b32.xlu0 %v2263, 64
        %v5244 = vpop.permute.xlu0 %5243
        %v5247 = vsel %vm3582, %v5242, 0
        %5249 = vmatpush.bf16.msra.mxu0 0
        %5250 = vmatpush.bf16.msra.mxu0 0
        %5251 = vmatpush.bf16.msra.mxu0 0
        %5252 = vmatpush.bf16.msra.mxu0 0
        %5253 = vmatpush.bf16.msra.mxu0 0
        %5254 = vmatpush.bf16.msra.mxu0 0
        %5255 = vmatpush.bf16.msra.mxu0 0
        %5256 = vmatpush.bf16.msra.mxu0 %v5244
        %5257 = vmatmul.bf16.gmra.mxu0 %v5247
        %v5258 = vpop.f32.mrf.mxu0
        %v5259 = vadd.f32 0.0, %v5258
        %v5260 = vpop.f32.mrf.mxu0
        %v5261 = vadd.f32 0.0, %v5260
        %5262 = vdwg.mxu0
        %v5265 = vunpack.c.l.b16 %v4767
        %v5266 = vunpack.c.l.b16 %v4768
        %v5267 = vpack.c.b16 %v5266, %v5265
        %5268 = vrot.lane.b32.xlu0 %v2290, 64
        %v5269 = vpop.permute.xlu0 %5268
        %v5272 = vsel %vm3582, %v5267, 0
        %5274 = vmatpush.bf16.msra.mxu0 0
        %5275 = vmatpush.bf16.msra.mxu0 0
        %5276 = vmatpush.bf16.msra.mxu0 0
        %5277 = vmatpush.bf16.msra.mxu0 0
        %5278 = vmatpush.bf16.msra.mxu0 0
        %5279 = vmatpush.bf16.msra.mxu0 0
        %5280 = vmatpush.bf16.msra.mxu0 0
        %5281 = vmatpush.bf16.msra.mxu0 %v5269
        %5282 = vmatmul.bf16.gmra.mxu0 %v5272
        %v5283 = vpop.f32.mrf.mxu0
        %v5284 = vadd.f32 0.0, %v5283
        %v5285 = vpop.f32.mrf.mxu0
        %v5286 = vadd.f32 0.0, %v5285
        %5287 = vdwg.mxu0
        %v5290 = vunpack.c.l.b16 %v4769
        %v5291 = vunpack.c.l.b16 %v4770
        %v5292 = vpack.c.b16 %v5291, %v5290
        %5293 = vrot.lane.b32.xlu0 %v2317, 64
        %v5294 = vpop.permute.xlu0 %5293
        %v5297 = vsel %vm3582, %v5292, 0
        %5299 = vmatpush.bf16.msra.mxu0 0
        %5300 = vmatpush.bf16.msra.mxu0 0
        %5301 = vmatpush.bf16.msra.mxu0 0
        %5302 = vmatpush.bf16.msra.mxu0 0
        %5303 = vmatpush.bf16.msra.mxu0 0
        %5304 = vmatpush.bf16.msra.mxu0 0
        %5305 = vmatpush.bf16.msra.mxu0 0
        %5306 = vmatpush.bf16.msra.mxu0 %v5294
        %5307 = vmatmul.bf16.gmra.mxu0 %v5297
        %v5308 = vpop.f32.mrf.mxu0
        %v5309 = vadd.f32 0.0, %v5308
        %v5310 = vpop.f32.mrf.mxu0
        %v5311 = vadd.f32 0.0, %v5310
        %5312 = vdwg.mxu0
        %v5315 = vunpack.c.l.b16 %v4771
        %v5316 = vunpack.c.l.b16 %v4772
        %v5317 = vpack.c.b16 %v5316, %v5315
        %5318 = vrot.lane.b32.xlu0 %v2344, 64
        %v5319 = vpop.permute.xlu0 %5318
        %v5322 = vsel %vm3582, %v5317, 0
        %5324 = vmatpush.bf16.msra.mxu0 0
        %5325 = vmatpush.bf16.msra.mxu0 0
        %5326 = vmatpush.bf16.msra.mxu0 0
        %5327 = vmatpush.bf16.msra.mxu0 0
        %5328 = vmatpush.bf16.msra.mxu0 0
        %5329 = vmatpush.bf16.msra.mxu0 0
        %5330 = vmatpush.bf16.msra.mxu0 0
        %5331 = vmatpush.bf16.msra.mxu0 %v5319
        %5332 = vmatmul.bf16.gmra.mxu0 %v5322
        %v5333 = vpop.f32.mrf.mxu0
        %v5334 = vadd.f32 0.0, %v5333
        %v5335 = vpop.f32.mrf.mxu0
        %v5336 = vadd.f32 0.0, %v5335
        %5337 = vdwg.mxu0
        %v5340 = vunpack.c.l.b16 %v4773
        %v5341 = vunpack.c.l.b16 %v4774
        %v5342 = vpack.c.b16 %v5341, %v5340
        %5343 = vrot.lane.b32.xlu0 %v2371, 64
        %v5344 = vpop.permute.xlu0 %5343
        %v5347 = vsel %vm3582, %v5342, 0
        %5349 = vmatpush.bf16.msra.mxu0 0
        %5350 = vmatpush.bf16.msra.mxu0 0
        %5351 = vmatpush.bf16.msra.mxu0 0
        %5352 = vmatpush.bf16.msra.mxu0 0
        %5353 = vmatpush.bf16.msra.mxu0 0
        %5354 = vmatpush.bf16.msra.mxu0 0
        %5355 = vmatpush.bf16.msra.mxu0 0
        %5356 = vmatpush.bf16.msra.mxu0 %v5344
        %5357 = vmatmul.bf16.gmra.mxu0 %v5347
        %v5358 = vpop.f32.mrf.mxu0
        %v5359 = vadd.f32 0.0, %v5358
        %v5360 = vpop.f32.mrf.mxu0
        %v5361 = vadd.f32 0.0, %v5360
        %5362 = vdwg.mxu0
        %v5365 = vunpack.c.l.b16 %v4775
        %v5366 = vunpack.c.l.b16 %v4776
        %v5367 = vpack.c.b16 %v5366, %v5365
        %5368 = vrot.lane.b32.xlu0 %v2398, 64
        %v5369 = vpop.permute.xlu0 %5368
        %v5372 = vsel %vm3582, %v5367, 0
        %5374 = vmatpush.bf16.msra.mxu0 0
        %5375 = vmatpush.bf16.msra.mxu0 0
        %5376 = vmatpush.bf16.msra.mxu0 0
        %5377 = vmatpush.bf16.msra.mxu0 0
        %5378 = vmatpush.bf16.msra.mxu0 0
        %5379 = vmatpush.bf16.msra.mxu0 0
        %5380 = vmatpush.bf16.msra.mxu0 0
        %5381 = vmatpush.bf16.msra.mxu0 %v5369
        %5382 = vmatmul.bf16.gmra.mxu0 %v5372
        %v5383 = vpop.f32.mrf.mxu0
        %v5384 = vadd.f32 0.0, %v5383
        %v5385 = vpop.f32.mrf.mxu0
        %v5386 = vadd.f32 0.0, %v5385
        %5387 = vdwg.mxu0
        %v5390 = vunpack.c.l.b16 %v4777
        %v5391 = vunpack.c.l.b16 %v4778
        %v5392 = vpack.c.b16 %v5391, %v5390
        %5393 = vrot.lane.b32.xlu0 %v2425, 64
        %v5394 = vpop.permute.xlu0 %5393
        %v5397 = vsel %vm3582, %v5392, 0
        %5399 = vmatpush.bf16.msra.mxu0 0
        %5400 = vmatpush.bf16.msra.mxu0 0
        %5401 = vmatpush.bf16.msra.mxu0 0
        %5402 = vmatpush.bf16.msra.mxu0 0
        %5403 = vmatpush.bf16.msra.mxu0 0
        %5404 = vmatpush.bf16.msra.mxu0 0
        %5405 = vmatpush.bf16.msra.mxu0 0
        %5406 = vmatpush.bf16.msra.mxu0 %v5394
        %5407 = vmatmul.bf16.gmra.mxu0 %v5397
        %v5408 = vpop.f32.mrf.mxu0
        %v5409 = vadd.f32 0.0, %v5408
        %v5410 = vpop.f32.mrf.mxu0
        %v5411 = vadd.f32 0.0, %v5410
        %5412 = vdwg.mxu0
        %v5415 = vunpack.c.l.b16 %v4779
        %v5416 = vunpack.c.l.b16 %v4780
        %v5417 = vpack.c.b16 %v5416, %v5415
        %5418 = vrot.lane.b32.xlu0 %v2452, 64
        %v5419 = vpop.permute.xlu0 %5418
        %v5422 = vsel %vm3582, %v5417, 0
        %5424 = vmatpush.bf16.msra.mxu0 0
        %5425 = vmatpush.bf16.msra.mxu0 0
        %5426 = vmatpush.bf16.msra.mxu0 0
        %5427 = vmatpush.bf16.msra.mxu0 0
        %5428 = vmatpush.bf16.msra.mxu0 0
        %5429 = vmatpush.bf16.msra.mxu0 0
        %5430 = vmatpush.bf16.msra.mxu0 0
        %5431 = vmatpush.bf16.msra.mxu0 %v5419
        %5432 = vmatmul.bf16.gmra.mxu0 %v5422
        %v5433 = vpop.f32.mrf.mxu0
        %v5434 = vadd.f32 0.0, %v5433
        %v5435 = vpop.f32.mrf.mxu0
        %v5436 = vadd.f32 0.0, %v5435
        %5437 = vdwg.mxu0
        %v5440 = vunpack.c.l.b16 %v4781
        %v5441 = vunpack.c.l.b16 %v4782
        %v5442 = vpack.c.b16 %v5441, %v5440
        %5443 = vrot.lane.b32.xlu0 %v2479, 64
        %v5444 = vpop.permute.xlu0 %5443
        %v5447 = vsel %vm3582, %v5442, 0
        %5449 = vmatpush.bf16.msra.mxu0 0
        %5450 = vmatpush.bf16.msra.mxu0 0
        %5451 = vmatpush.bf16.msra.mxu0 0
        %5452 = vmatpush.bf16.msra.mxu0 0
        %5453 = vmatpush.bf16.msra.mxu0 0
        %5454 = vmatpush.bf16.msra.mxu0 0
        %5455 = vmatpush.bf16.msra.mxu0 0
        %5456 = vmatpush.bf16.msra.mxu0 %v5444
        %5457 = vmatmul.bf16.gmra.mxu0 %v5447
        %v5458 = vpop.f32.mrf.mxu0
        %v5459 = vadd.f32 0.0, %v5458
        %v5460 = vpop.f32.mrf.mxu0
        %v5461 = vadd.f32 0.0, %v5460
        %5462 = vdwg.mxu0
        %v5465 = vunpack.c.l.b16 %v4783
        %v5466 = vunpack.c.l.b16 %v4784
        %v5467 = vpack.c.b16 %v5466, %v5465
        %5468 = vrot.lane.b32.xlu0 %v2506, 64
        %v5469 = vpop.permute.xlu0 %5468
        %v5472 = vsel %vm3582, %v5467, 0
        %5474 = vmatpush.bf16.msra.mxu0 0
        %5475 = vmatpush.bf16.msra.mxu0 0
        %5476 = vmatpush.bf16.msra.mxu0 0
        %5477 = vmatpush.bf16.msra.mxu0 0
        %5478 = vmatpush.bf16.msra.mxu0 0
        %5479 = vmatpush.bf16.msra.mxu0 0
        %5480 = vmatpush.bf16.msra.mxu0 0
        %5481 = vmatpush.bf16.msra.mxu0 %v5469
        %5482 = vmatmul.bf16.gmra.mxu0 %v5472
        %v5483 = vpop.f32.mrf.mxu0
        %v5484 = vadd.f32 0.0, %v5483
        %v5485 = vpop.f32.mrf.mxu0
        %v5486 = vadd.f32 0.0, %v5485
        %5487 = vdwg.mxu0
        %v5490 = vunpack.c.l.b16 %v4785
        %v5491 = vunpack.c.l.b16 %v4786
        %v5492 = vpack.c.b16 %v5491, %v5490
        %5493 = vrot.lane.b32.xlu0 %v2533, 64
        %v5494 = vpop.permute.xlu0 %5493
        %v5497 = vsel %vm3582, %v5492, 0
        %5499 = vmatpush.bf16.msra.mxu0 0
        %5500 = vmatpush.bf16.msra.mxu0 0
        %5501 = vmatpush.bf16.msra.mxu0 0
        %5502 = vmatpush.bf16.msra.mxu0 0
        %5503 = vmatpush.bf16.msra.mxu0 0
        %5504 = vmatpush.bf16.msra.mxu0 0
        %5505 = vmatpush.bf16.msra.mxu0 0
        %5506 = vmatpush.bf16.msra.mxu0 %v5494
        %5507 = vmatmul.bf16.gmra.mxu0 %v5497
        %v5508 = vpop.f32.mrf.mxu0
        %v5509 = vadd.f32 0.0, %v5508
        %v5510 = vpop.f32.mrf.mxu0
        %v5511 = vadd.f32 0.0, %v5510
        %5512 = vdwg.mxu0
        %v5515 = vunpack.c.l.b16 %v4787
        %v5516 = vunpack.c.l.b16 %v4788
        %v5517 = vpack.c.b16 %v5516, %v5515
        %5518 = vrot.lane.b32.xlu0 %v2560, 64
        %v5519 = vpop.permute.xlu0 %5518
        %v5522 = vsel %vm3582, %v5517, 0
        %5524 = vmatpush.bf16.msra.mxu0 0
        %5525 = vmatpush.bf16.msra.mxu0 0
        %5526 = vmatpush.bf16.msra.mxu0 0
        %5527 = vmatpush.bf16.msra.mxu0 0
        %5528 = vmatpush.bf16.msra.mxu0 0
        %5529 = vmatpush.bf16.msra.mxu0 0
        %5530 = vmatpush.bf16.msra.mxu0 0
        %5531 = vmatpush.bf16.msra.mxu0 %v5519
        %5532 = vmatmul.bf16.gmra.mxu0 %v5522
        %v5533 = vpop.f32.mrf.mxu0
        %v5534 = vadd.f32 0.0, %v5533
        %v5535 = vpop.f32.mrf.mxu0
        %v5536 = vadd.f32 0.0, %v5535
        %5537 = vdwg.mxu0
        %v5540 = vunpack.c.l.b16 %v4789
        %v5541 = vunpack.c.l.b16 %v4790
        %v5542 = vpack.c.b16 %v5541, %v5540
        %5543 = vrot.lane.b32.xlu0 %v2587, 64
        %v5544 = vpop.permute.xlu0 %5543
        %v5547 = vsel %vm3582, %v5542, 0
        %5549 = vmatpush.bf16.msra.mxu0 0
        %5550 = vmatpush.bf16.msra.mxu0 0
        %5551 = vmatpush.bf16.msra.mxu0 0
        %5552 = vmatpush.bf16.msra.mxu0 0
        %5553 = vmatpush.bf16.msra.mxu0 0
        %5554 = vmatpush.bf16.msra.mxu0 0
        %5555 = vmatpush.bf16.msra.mxu0 0
        %5556 = vmatpush.bf16.msra.mxu0 %v5544
        %5557 = vmatmul.bf16.gmra.mxu0 %v5547
        %v5558 = vpop.f32.mrf.mxu0
        %v5559 = vadd.f32 0.0, %v5558
        %v5560 = vpop.f32.mrf.mxu0
        %v5561 = vadd.f32 0.0, %v5560
        %5562 = vdwg.mxu0
        %v5565 = vunpack.c.l.b16 %v4791
        %v5566 = vunpack.c.l.b16 %v4792
        %v5567 = vpack.c.b16 %v5566, %v5565
        %5568 = vrot.lane.b32.xlu0 %v2614, 64
        %v5569 = vpop.permute.xlu0 %5568
        %v5572 = vsel %vm3582, %v5567, 0
        %5574 = vmatpush.bf16.msra.mxu0 0
        %5575 = vmatpush.bf16.msra.mxu0 0
        %5576 = vmatpush.bf16.msra.mxu0 0
        %5577 = vmatpush.bf16.msra.mxu0 0
        %5578 = vmatpush.bf16.msra.mxu0 0
        %5579 = vmatpush.bf16.msra.mxu0 0
        %5580 = vmatpush.bf16.msra.mxu0 0
        %5581 = vmatpush.bf16.msra.mxu0 %v5569
        %5582 = vmatmul.bf16.gmra.mxu0 %v5572
        %v5583 = vpop.f32.mrf.mxu0
        %v5584 = vadd.f32 0.0, %v5583
        %v5585 = vpop.f32.mrf.mxu0
        %v5586 = vadd.f32 0.0, %v5585
        %5587 = vdwg.mxu0
        %v5590 = vunpack.c.l.b16 %v4793
        %v5591 = vunpack.c.l.b16 %v4794
        %v5592 = vpack.c.b16 %v5591, %v5590
        %5593 = vrot.lane.b32.xlu0 %v2641, 64
        %v5594 = vpop.permute.xlu0 %5593
        %v5597 = vsel %vm3582, %v5592, 0
        %5599 = vmatpush.bf16.msra.mxu0 0
        %5600 = vmatpush.bf16.msra.mxu0 0
        %5601 = vmatpush.bf16.msra.mxu0 0
        %5602 = vmatpush.bf16.msra.mxu0 0
        %5603 = vmatpush.bf16.msra.mxu0 0
        %5604 = vmatpush.bf16.msra.mxu0 0
        %5605 = vmatpush.bf16.msra.mxu0 0
        %5606 = vmatpush.bf16.msra.mxu0 %v5594
        %5607 = vmatmul.bf16.gmra.mxu0 %v5597
        %v5608 = vpop.f32.mrf.mxu0
        %v5609 = vadd.f32 0.0, %v5608
        %v5610 = vpop.f32.mrf.mxu0
        %v5611 = vadd.f32 0.0, %v5610
        %5612 = vdwg.mxu0
        %v5615 = vunpack.c.l.b16 %v4795
        %v5616 = vunpack.c.l.b16 %v4796
        %v5617 = vpack.c.b16 %v5616, %v5615
        %5618 = vrot.lane.b32.xlu0 %v2668, 64
        %v5619 = vpop.permute.xlu0 %5618
        %v5622 = vsel %vm3582, %v5617, 0
        %5624 = vmatpush.bf16.msra.mxu0 0
        %5625 = vmatpush.bf16.msra.mxu0 0
        %5626 = vmatpush.bf16.msra.mxu0 0
        %5627 = vmatpush.bf16.msra.mxu0 0
        %5628 = vmatpush.bf16.msra.mxu0 0
        %5629 = vmatpush.bf16.msra.mxu0 0
        %5630 = vmatpush.bf16.msra.mxu0 0
        %5631 = vmatpush.bf16.msra.mxu0 %v5619
        %5632 = vmatmul.bf16.gmra.mxu0 %v5622
        %v5633 = vpop.f32.mrf.mxu0
        %v5634 = vadd.f32 0.0, %v5633
        %v5635 = vpop.f32.mrf.mxu0
        %v5636 = vadd.f32 0.0, %v5635
        %5637 = vdwg.mxu0
        %v5640 = vunpack.c.l.b16 %v4797
        %v5641 = vunpack.c.l.b16 %v4798
        %v5642 = vpack.c.b16 %v5641, %v5640
        %5643 = vrot.lane.b32.xlu0 %v2695, 64
        %v5644 = vpop.permute.xlu0 %5643
        %v5647 = vsel %vm3582, %v5642, 0
        %5649 = vmatpush.bf16.msra.mxu0 0
        %5650 = vmatpush.bf16.msra.mxu0 0
        %5651 = vmatpush.bf16.msra.mxu0 0
        %5652 = vmatpush.bf16.msra.mxu0 0
        %5653 = vmatpush.bf16.msra.mxu0 0
        %5654 = vmatpush.bf16.msra.mxu0 0
        %5655 = vmatpush.bf16.msra.mxu0 0
        %5656 = vmatpush.bf16.msra.mxu0 %v5644
        %5657 = vmatmul.bf16.gmra.mxu0 %v5647
        %v5658 = vpop.f32.mrf.mxu0
        %v5659 = vadd.f32 0.0, %v5658
        %v5660 = vpop.f32.mrf.mxu0
        %v5661 = vadd.f32 0.0, %v5660
        %5662 = vdwg.mxu0
        %v5665 = vunpack.c.l.b16 %v4799
        %v5666 = vunpack.c.l.b16 %v4800
        %v5667 = vpack.c.b16 %v5666, %v5665
        %5668 = vrot.lane.b32.xlu0 %v2722, 64
        %v5669 = vpop.permute.xlu0 %5668
        %v5672 = vsel %vm3582, %v5667, 0
        %5674 = vmatpush.bf16.msra.mxu0 0
        %5675 = vmatpush.bf16.msra.mxu0 0
        %5676 = vmatpush.bf16.msra.mxu0 0
        %5677 = vmatpush.bf16.msra.mxu0 0
        %5678 = vmatpush.bf16.msra.mxu0 0
        %5679 = vmatpush.bf16.msra.mxu0 0
        %5680 = vmatpush.bf16.msra.mxu0 0
        %5681 = vmatpush.bf16.msra.mxu0 %v5669
        %5682 = vmatmul.bf16.gmra.mxu0 %v5672
        %v5683 = vpop.f32.mrf.mxu0
        %v5684 = vadd.f32 0.0, %v5683
        %v5685 = vpop.f32.mrf.mxu0
        %v5686 = vadd.f32 0.0, %v5685
        %5687 = vdwg.mxu0
        %v5690 = vunpack.c.l.b16 %v4801
        %v5691 = vunpack.c.l.b16 %v4802
        %v5692 = vpack.c.b16 %v5691, %v5690
        %5693 = vrot.lane.b32.xlu0 %v2749, 64
        %v5694 = vpop.permute.xlu0 %5693
        %v5697 = vsel %vm3582, %v5692, 0
        %5699 = vmatpush.bf16.msra.mxu0 0
        %5700 = vmatpush.bf16.msra.mxu0 0
        %5701 = vmatpush.bf16.msra.mxu0 0
        %5702 = vmatpush.bf16.msra.mxu0 0
        %5703 = vmatpush.bf16.msra.mxu0 0
        %5704 = vmatpush.bf16.msra.mxu0 0
        %5705 = vmatpush.bf16.msra.mxu0 0
        %5706 = vmatpush.bf16.msra.mxu0 %v5694
        %5707 = vmatmul.bf16.gmra.mxu0 %v5697
        %v5708 = vpop.f32.mrf.mxu0
        %v5709 = vadd.f32 0.0, %v5708
        %v5710 = vpop.f32.mrf.mxu0
        %v5711 = vadd.f32 0.0, %v5710
        %5712 = vdwg.mxu0
        %v5715 = vunpack.c.l.b16 %v4803
        %v5716 = vunpack.c.l.b16 %v4804
        %v5717 = vpack.c.b16 %v5716, %v5715
        %5718 = vrot.lane.b32.xlu0 %v2776, 64
        %v5719 = vpop.permute.xlu0 %5718
        %v5722 = vsel %vm3582, %v5717, 0
        %5724 = vmatpush.bf16.msra.mxu0 0
        %5725 = vmatpush.bf16.msra.mxu0 0
        %5726 = vmatpush.bf16.msra.mxu0 0
        %5727 = vmatpush.bf16.msra.mxu0 0
        %5728 = vmatpush.bf16.msra.mxu0 0
        %5729 = vmatpush.bf16.msra.mxu0 0
        %5730 = vmatpush.bf16.msra.mxu0 0
        %5731 = vmatpush.bf16.msra.mxu0 %v5719
        %5732 = vmatmul.bf16.gmra.mxu0 %v5722
        %v5733 = vpop.f32.mrf.mxu0
        %v5734 = vadd.f32 0.0, %v5733
        %v5735 = vpop.f32.mrf.mxu0
        %v5736 = vadd.f32 0.0, %v5735
        %5737 = vdwg.mxu0
        %v5740 = vunpack.c.l.b16 %v4805
        %v5741 = vunpack.c.l.b16 %v4806
        %v5742 = vpack.c.b16 %v5741, %v5740
        %5743 = vrot.lane.b32.xlu0 %v2803, 64
        %v5744 = vpop.permute.xlu0 %5743
        %v5747 = vsel %vm3582, %v5742, 0
        %5749 = vmatpush.bf16.msra.mxu0 0
        %5750 = vmatpush.bf16.msra.mxu0 0
        %5751 = vmatpush.bf16.msra.mxu0 0
        %5752 = vmatpush.bf16.msra.mxu0 0
        %5753 = vmatpush.bf16.msra.mxu0 0
        %5754 = vmatpush.bf16.msra.mxu0 0
        %5755 = vmatpush.bf16.msra.mxu0 0
        %5756 = vmatpush.bf16.msra.mxu0 %v5744
        %5757 = vmatmul.bf16.gmra.mxu0 %v5747
        %v5758 = vpop.f32.mrf.mxu0
        %v5759 = vadd.f32 0.0, %v5758
        %v5760 = vpop.f32.mrf.mxu0
        %v5761 = vadd.f32 0.0, %v5760
        %5762 = vdwg.mxu0
        %v5765 = vunpack.c.l.b16 %v4807
        %v5766 = vunpack.c.l.b16 %v4808
        %v5767 = vpack.c.b16 %v5766, %v5765
        %5768 = vrot.lane.b32.xlu0 %v2830, 64
        %v5769 = vpop.permute.xlu0 %5768
        %v5772 = vsel %vm3582, %v5767, 0
        %5774 = vmatpush.bf16.msra.mxu0 0
        %5775 = vmatpush.bf16.msra.mxu0 0
        %5776 = vmatpush.bf16.msra.mxu0 0
        %5777 = vmatpush.bf16.msra.mxu0 0
        %5778 = vmatpush.bf16.msra.mxu0 0
        %5779 = vmatpush.bf16.msra.mxu0 0
        %5780 = vmatpush.bf16.msra.mxu0 0
        %5781 = vmatpush.bf16.msra.mxu0 %v5769
        %5782 = vmatmul.bf16.gmra.mxu0 %v5772
        %v5783 = vpop.f32.mrf.mxu0
        %v5784 = vadd.f32 0.0, %v5783
        %v5785 = vpop.f32.mrf.mxu0
        %v5786 = vadd.f32 0.0, %v5785
        %5787 = vdwg.mxu0
        %v5790 = vunpack.c.l.b16 %v4809
        %v5791 = vunpack.c.l.b16 %v4810
        %v5792 = vpack.c.b16 %v5791, %v5790
        %5793 = vrot.lane.b32.xlu0 %v2857, 64
        %v5794 = vpop.permute.xlu0 %5793
        %v5797 = vsel %vm3582, %v5792, 0
        %5799 = vmatpush.bf16.msra.mxu0 0
        %5800 = vmatpush.bf16.msra.mxu0 0
        %5801 = vmatpush.bf16.msra.mxu0 0
        %5802 = vmatpush.bf16.msra.mxu0 0
        %5803 = vmatpush.bf16.msra.mxu0 0
        %5804 = vmatpush.bf16.msra.mxu0 0
        %5805 = vmatpush.bf16.msra.mxu0 0
        %5806 = vmatpush.bf16.msra.mxu0 %v5794
        %5807 = vmatmul.bf16.gmra.mxu0 %v5797
        %v5808 = vpop.f32.mrf.mxu0
        %v5809 = vadd.f32 0.0, %v5808
        %v5810 = vpop.f32.mrf.mxu0
        %v5811 = vadd.f32 0.0, %v5810
        %5812 = vdwg.mxu0
        %v5815 = vunpack.c.l.b16 %v4811
        %v5816 = vunpack.c.l.b16 %v4812
        %v5817 = vpack.c.b16 %v5816, %v5815
        %5818 = vrot.lane.b32.xlu0 %v2884, 64
        %v5819 = vpop.permute.xlu0 %5818
        %v5822 = vsel %vm3582, %v5817, 0
        %5824 = vmatpush.bf16.msra.mxu0 0
        %5825 = vmatpush.bf16.msra.mxu0 0
        %5826 = vmatpush.bf16.msra.mxu0 0
        %5827 = vmatpush.bf16.msra.mxu0 0
        %5828 = vmatpush.bf16.msra.mxu0 0
        %5829 = vmatpush.bf16.msra.mxu0 0
        %5830 = vmatpush.bf16.msra.mxu0 0
        %5831 = vmatpush.bf16.msra.mxu0 %v5819
        %5832 = vmatmul.bf16.gmra.mxu0 %v5822
        %v5833 = vpop.f32.mrf.mxu0
        %v5834 = vadd.f32 0.0, %v5833
        %v5835 = vpop.f32.mrf.mxu0
        %v5836 = vadd.f32 0.0, %v5835
        %5837 = vdwg.mxu0
        %v5840 = vunpack.c.l.b16 %v4813
        %v5841 = vunpack.c.l.b16 %v4814
        %v5842 = vpack.c.b16 %v5841, %v5840
        %5843 = vrot.lane.b32.xlu0 %v2911, 64
        %v5844 = vpop.permute.xlu0 %5843
        %v5847 = vsel %vm3582, %v5842, 0
        %5849 = vmatpush.bf16.msra.mxu0 0
        %5850 = vmatpush.bf16.msra.mxu0 0
        %5851 = vmatpush.bf16.msra.mxu0 0
        %5852 = vmatpush.bf16.msra.mxu0 0
        %5853 = vmatpush.bf16.msra.mxu0 0
        %5854 = vmatpush.bf16.msra.mxu0 0
        %5855 = vmatpush.bf16.msra.mxu0 0
        %5856 = vmatpush.bf16.msra.mxu0 %v5844
        %5857 = vmatmul.bf16.gmra.mxu0 %v5847
        %v5858 = vpop.f32.mrf.mxu0
        %v5859 = vadd.f32 0.0, %v5858
        %v5860 = vpop.f32.mrf.mxu0
        %v5861 = vadd.f32 0.0, %v5860
        %5862 = vdwg.mxu0
        %v5865 = vunpack.c.l.b16 %v4815
        %v5866 = vunpack.c.l.b16 %v4816
        %v5867 = vpack.c.b16 %v5866, %v5865
        %5868 = vrot.lane.b32.xlu0 %v2938, 64
        %v5869 = vpop.permute.xlu0 %5868
        %v5872 = vsel %vm3582, %v5867, 0
        %5874 = vmatpush.bf16.msra.mxu0 0
        %5875 = vmatpush.bf16.msra.mxu0 0
        %5876 = vmatpush.bf16.msra.mxu0 0
        %5877 = vmatpush.bf16.msra.mxu0 0
        %5878 = vmatpush.bf16.msra.mxu0 0
        %5879 = vmatpush.bf16.msra.mxu0 0
        %5880 = vmatpush.bf16.msra.mxu0 0
        %5881 = vmatpush.bf16.msra.mxu0 %v5869
        %5882 = vmatmul.bf16.gmra.mxu0 %v5872
        %v5883 = vpop.f32.mrf.mxu0
        %v5884 = vadd.f32 0.0, %v5883
        %v5885 = vpop.f32.mrf.mxu0
        %v5886 = vadd.f32 0.0, %v5885
        %5887 = vdwg.mxu0
        %v5890 = vunpack.c.l.b16 %v4817
        %v5891 = vunpack.c.l.b16 %v4818
        %v5892 = vpack.c.b16 %v5891, %v5890
        %5893 = vrot.lane.b32.xlu0 %v2965, 64
        %v5894 = vpop.permute.xlu0 %5893
        %v5897 = vsel %vm3582, %v5892, 0
        %5899 = vmatpush.bf16.msra.mxu0 0
        %5900 = vmatpush.bf16.msra.mxu0 0
        %5901 = vmatpush.bf16.msra.mxu0 0
        %5902 = vmatpush.bf16.msra.mxu0 0
        %5903 = vmatpush.bf16.msra.mxu0 0
        %5904 = vmatpush.bf16.msra.mxu0 0
        %5905 = vmatpush.bf16.msra.mxu0 0
        %5906 = vmatpush.bf16.msra.mxu0 %v5894
        %5907 = vmatmul.bf16.gmra.mxu0 %v5897
        %v5908 = vpop.f32.mrf.mxu0
        %v5909 = vadd.f32 0.0, %v5908
        %v5910 = vpop.f32.mrf.mxu0
        %v5911 = vadd.f32 0.0, %v5910
        %5912 = vdwg.mxu0
        %v5915 = vunpack.c.l.b16 %v4819
        %v5916 = vunpack.c.l.b16 %v4820
        %v5917 = vpack.c.b16 %v5916, %v5915
        %5918 = vrot.lane.b32.xlu0 %v2992, 64
        %v5919 = vpop.permute.xlu0 %5918
        %v5922 = vsel %vm3582, %v5917, 0
        %5924 = vmatpush.bf16.msra.mxu0 0
        %5925 = vmatpush.bf16.msra.mxu0 0
        %5926 = vmatpush.bf16.msra.mxu0 0
        %5927 = vmatpush.bf16.msra.mxu0 0
        %5928 = vmatpush.bf16.msra.mxu0 0
        %5929 = vmatpush.bf16.msra.mxu0 0
        %5930 = vmatpush.bf16.msra.mxu0 0
        %5931 = vmatpush.bf16.msra.mxu0 %v5919
        %5932 = vmatmul.bf16.gmra.mxu0 %v5922
        %v5933 = vpop.f32.mrf.mxu0
        %v5934 = vadd.f32 0.0, %v5933
        %v5935 = vpop.f32.mrf.mxu0
        %v5936 = vadd.f32 0.0, %v5935
        %5937 = vdwg.mxu0
        %v5940 = vunpack.c.l.b16 %v4821
        %v5941 = vunpack.c.l.b16 %v4822
        %v5942 = vpack.c.b16 %v5941, %v5940
        %5943 = vrot.lane.b32.xlu0 %v3019, 64
        %v5944 = vpop.permute.xlu0 %5943
        %v5947 = vsel %vm3582, %v5942, 0
        %5949 = vmatpush.bf16.msra.mxu0 0
        %5950 = vmatpush.bf16.msra.mxu0 0
        %5951 = vmatpush.bf16.msra.mxu0 0
        %5952 = vmatpush.bf16.msra.mxu0 0
        %5953 = vmatpush.bf16.msra.mxu0 0
        %5954 = vmatpush.bf16.msra.mxu0 0
        %5955 = vmatpush.bf16.msra.mxu0 0
        %5956 = vmatpush.bf16.msra.mxu0 %v5944
        %5957 = vmatmul.bf16.gmra.mxu0 %v5947
        %v5958 = vpop.f32.mrf.mxu0
        %v5959 = vadd.f32 0.0, %v5958
        %v5960 = vpop.f32.mrf.mxu0
        %v5961 = vadd.f32 0.0, %v5960
        %5962 = vdwg.mxu0
        %v5965 = vunpack.c.l.b16 %v4823
        %v5966 = vunpack.c.l.b16 %v4824
        %v5967 = vpack.c.b16 %v5966, %v5965
        %5968 = vrot.lane.b32.xlu0 %v3046, 64
        %v5969 = vpop.permute.xlu0 %5968
        %v5972 = vsel %vm3582, %v5967, 0
        %5974 = vmatpush.bf16.msra.mxu0 0
        %5975 = vmatpush.bf16.msra.mxu0 0
        %5976 = vmatpush.bf16.msra.mxu0 0
        %5977 = vmatpush.bf16.msra.mxu0 0
        %5978 = vmatpush.bf16.msra.mxu0 0
        %5979 = vmatpush.bf16.msra.mxu0 0
        %5980 = vmatpush.bf16.msra.mxu0 0
        %5981 = vmatpush.bf16.msra.mxu0 %v5969
        %5982 = vmatmul.bf16.gmra.mxu0 %v5972
        %v5983 = vpop.f32.mrf.mxu0
        %v5984 = vadd.f32 0.0, %v5983
        %v5985 = vpop.f32.mrf.mxu0
        %v5986 = vadd.f32 0.0, %v5985
        %5987 = vdwg.mxu0
        %v5990 = vunpack.c.l.b16 %v4825
        %v5991 = vunpack.c.l.b16 %v4826
        %v5992 = vpack.c.b16 %v5991, %v5990
        %5993 = vrot.lane.b32.xlu0 %v3073, 64
        %v5994 = vpop.permute.xlu0 %5993
        %v5997 = vsel %vm3582, %v5992, 0
        %5999 = vmatpush.bf16.msra.mxu0 0
        %6000 = vmatpush.bf16.msra.mxu0 0
        %6001 = vmatpush.bf16.msra.mxu0 0
        %6002 = vmatpush.bf16.msra.mxu0 0
        %6003 = vmatpush.bf16.msra.mxu0 0
        %6004 = vmatpush.bf16.msra.mxu0 0
        %6005 = vmatpush.bf16.msra.mxu0 0
        %6006 = vmatpush.bf16.msra.mxu0 %v5994
        %6007 = vmatmul.bf16.gmra.mxu0 %v5997
        %v6008 = vpop.f32.mrf.mxu0
        %v6009 = vadd.f32 0.0, %v6008
        %v6010 = vpop.f32.mrf.mxu0
        %v6011 = vadd.f32 0.0, %v6010
        %6012 = vdwg.mxu0
        %v6015 = vunpack.c.l.b16 %v4827
        %v6016 = vunpack.c.l.b16 %v4828
        %v6017 = vpack.c.b16 %v6016, %v6015
        %6018 = vrot.lane.b32.xlu0 %v3100, 64
        %v6019 = vpop.permute.xlu0 %6018
        %v6022 = vsel %vm3582, %v6017, 0
        %6024 = vmatpush.bf16.msra.mxu0 0
        %6025 = vmatpush.bf16.msra.mxu0 0
        %6026 = vmatpush.bf16.msra.mxu0 0
        %6027 = vmatpush.bf16.msra.mxu0 0
        %6028 = vmatpush.bf16.msra.mxu0 0
        %6029 = vmatpush.bf16.msra.mxu0 0
        %6030 = vmatpush.bf16.msra.mxu0 0
        %6031 = vmatpush.bf16.msra.mxu0 %v6019
        %6032 = vmatmul.bf16.gmra.mxu0 %v6022
        %v6033 = vpop.f32.mrf.mxu0
        %v6034 = vadd.f32 0.0, %v6033
        %v6035 = vpop.f32.mrf.mxu0
        %v6036 = vadd.f32 0.0, %v6035
        %6037 = vdwg.mxu0
        %v6040 = vunpack.c.l.b16 %v4829
        %v6041 = vunpack.c.l.b16 %v4830
        %v6042 = vpack.c.b16 %v6041, %v6040
        %6043 = vrot.lane.b32.xlu0 %v3127, 64
        %v6044 = vpop.permute.xlu0 %6043
        %v6047 = vsel %vm3582, %v6042, 0
        %6049 = vmatpush.bf16.msra.mxu0 0
        %6050 = vmatpush.bf16.msra.mxu0 0
        %6051 = vmatpush.bf16.msra.mxu0 0
        %6052 = vmatpush.bf16.msra.mxu0 0
        %6053 = vmatpush.bf16.msra.mxu0 0
        %6054 = vmatpush.bf16.msra.mxu0 0
        %6055 = vmatpush.bf16.msra.mxu0 0
        %6056 = vmatpush.bf16.msra.mxu0 %v6044
        %6057 = vmatmul.bf16.gmra.mxu0 %v6047
        %v6058 = vpop.f32.mrf.mxu0
        %v6059 = vadd.f32 0.0, %v6058
        %v6060 = vpop.f32.mrf.mxu0
        %v6061 = vadd.f32 0.0, %v6060
        %6062 = vdwg.mxu0
        %v6065 = vunpack.c.l.b16 %v4831
        %v6066 = vunpack.c.l.b16 %v4832
        %v6067 = vpack.c.b16 %v6066, %v6065
        %6068 = vrot.lane.b32.xlu0 %v3154, 64
        %v6069 = vpop.permute.xlu0 %6068
        %v6072 = vsel %vm3582, %v6067, 0
        %6074 = vmatpush.bf16.msra.mxu0 0
        %6075 = vmatpush.bf16.msra.mxu0 0
        %6076 = vmatpush.bf16.msra.mxu0 0
        %6077 = vmatpush.bf16.msra.mxu0 0
        %6078 = vmatpush.bf16.msra.mxu0 0
        %6079 = vmatpush.bf16.msra.mxu0 0
        %6080 = vmatpush.bf16.msra.mxu0 0
        %6081 = vmatpush.bf16.msra.mxu0 %v6069
        %6082 = vmatmul.bf16.gmra.mxu0 %v6072
        %v6083 = vpop.f32.mrf.mxu0
        %v6084 = vadd.f32 0.0, %v6083
        %v6085 = vpop.f32.mrf.mxu0
        %v6086 = vadd.f32 0.0, %v6085
        %6087 = vdwg.mxu0
        %v6090 = vunpack.c.l.b16 %v4833
        %v6091 = vunpack.c.l.b16 %v4834
        %v6092 = vpack.c.b16 %v6091, %v6090
        %6093 = vrot.lane.b32.xlu0 %v3181, 64
        %v6094 = vpop.permute.xlu0 %6093
        %v6097 = vsel %vm3582, %v6092, 0
        %6099 = vmatpush.bf16.msra.mxu0 0
        %6100 = vmatpush.bf16.msra.mxu0 0
        %6101 = vmatpush.bf16.msra.mxu0 0
        %6102 = vmatpush.bf16.msra.mxu0 0
        %6103 = vmatpush.bf16.msra.mxu0 0
        %6104 = vmatpush.bf16.msra.mxu0 0
        %6105 = vmatpush.bf16.msra.mxu0 0
        %6106 = vmatpush.bf16.msra.mxu0 %v6094
        %6107 = vmatmul.bf16.gmra.mxu0 %v6097
        %v6108 = vpop.f32.mrf.mxu0
        %v6109 = vadd.f32 0.0, %v6108
        %v6110 = vpop.f32.mrf.mxu0
        %v6111 = vadd.f32 0.0, %v6110
        %6112 = vdwg.mxu0
        %v6115 = vunpack.c.l.b16 %v4835
        %v6116 = vunpack.c.l.b16 %v4836
        %v6117 = vpack.c.b16 %v6116, %v6115
        %6118 = vrot.lane.b32.xlu0 %v3208, 64
        %v6119 = vpop.permute.xlu0 %6118
        %v6122 = vsel %vm3582, %v6117, 0
        %6124 = vmatpush.bf16.msra.mxu0 0
        %6125 = vmatpush.bf16.msra.mxu0 0
        %6126 = vmatpush.bf16.msra.mxu0 0
        %6127 = vmatpush.bf16.msra.mxu0 0
        %6128 = vmatpush.bf16.msra.mxu0 0
        %6129 = vmatpush.bf16.msra.mxu0 0
        %6130 = vmatpush.bf16.msra.mxu0 0
        %6131 = vmatpush.bf16.msra.mxu0 %v6119
        %6132 = vmatmul.bf16.gmra.mxu0 %v6122
        %v6133 = vpop.f32.mrf.mxu0
        %v6134 = vadd.f32 0.0, %v6133
        %v6135 = vpop.f32.mrf.mxu0
        %v6136 = vadd.f32 0.0, %v6135
        %6137 = vdwg.mxu0
        %v6140 = vunpack.c.l.b16 %v4837
        %v6141 = vunpack.c.l.b16 %v4838
        %v6142 = vpack.c.b16 %v6141, %v6140
        %6143 = vrot.lane.b32.xlu0 %v3235, 64
        %v6144 = vpop.permute.xlu0 %6143
        %v6147 = vsel %vm3582, %v6142, 0
        %6149 = vmatpush.bf16.msra.mxu0 0
        %6150 = vmatpush.bf16.msra.mxu0 0
        %6151 = vmatpush.bf16.msra.mxu0 0
        %6152 = vmatpush.bf16.msra.mxu0 0
        %6153 = vmatpush.bf16.msra.mxu0 0
        %6154 = vmatpush.bf16.msra.mxu0 0
        %6155 = vmatpush.bf16.msra.mxu0 0
        %6156 = vmatpush.bf16.msra.mxu0 %v6144
        %6157 = vmatmul.bf16.gmra.mxu0 %v6147
        %v6158 = vpop.f32.mrf.mxu0
        %v6159 = vadd.f32 0.0, %v6158
        %v6160 = vpop.f32.mrf.mxu0
        %v6161 = vadd.f32 0.0, %v6160
        %6162 = vdwg.mxu0
        %v6165 = vunpack.c.l.b16 %v4839
        %v6166 = vunpack.c.l.b16 %v4840
        %v6167 = vpack.c.b16 %v6166, %v6165
        %6168 = vrot.lane.b32.xlu0 %v3262, 64
        %v6169 = vpop.permute.xlu0 %6168
        %v6172 = vsel %vm3582, %v6167, 0
        %6174 = vmatpush.bf16.msra.mxu0 0
        %6175 = vmatpush.bf16.msra.mxu0 0
        %6176 = vmatpush.bf16.msra.mxu0 0
        %6177 = vmatpush.bf16.msra.mxu0 0
        %6178 = vmatpush.bf16.msra.mxu0 0
        %6179 = vmatpush.bf16.msra.mxu0 0
        %6180 = vmatpush.bf16.msra.mxu0 0
        %6181 = vmatpush.bf16.msra.mxu0 %v6169
        %6182 = vmatmul.bf16.gmra.mxu0 %v6172
        %v6183 = vpop.f32.mrf.mxu0
        %v6184 = vadd.f32 0.0, %v6183
        %v6185 = vpop.f32.mrf.mxu0
        %v6186 = vadd.f32 0.0, %v6185
        %6187 = vdwg.mxu0
        %v6190 = vunpack.c.l.b16 %v4841
        %v6191 = vunpack.c.l.b16 %v4842
        %v6192 = vpack.c.b16 %v6191, %v6190
        %6193 = vrot.lane.b32.xlu0 %v3289, 64
        %v6194 = vpop.permute.xlu0 %6193
        %v6197 = vsel %vm3582, %v6192, 0
        %6199 = vmatpush.bf16.msra.mxu0 0
        %6200 = vmatpush.bf16.msra.mxu0 0
        %6201 = vmatpush.bf16.msra.mxu0 0
        %6202 = vmatpush.bf16.msra.mxu0 0
        %6203 = vmatpush.bf16.msra.mxu0 0
        %6204 = vmatpush.bf16.msra.mxu0 0
        %6205 = vmatpush.bf16.msra.mxu0 0
        %6206 = vmatpush.bf16.msra.mxu0 %v6194
        %6207 = vmatmul.bf16.gmra.mxu0 %v6197
        %v6208 = vpop.f32.mrf.mxu0
        %v6209 = vadd.f32 0.0, %v6208
        %v6210 = vpop.f32.mrf.mxu0
        %v6211 = vadd.f32 0.0, %v6210
        %6212 = vdwg.mxu0
        %v6215 = vunpack.c.l.b16 %v4843
        %v6216 = vunpack.c.l.b16 %v4844
        %v6217 = vpack.c.b16 %v6216, %v6215
        %6218 = vrot.lane.b32.xlu0 %v3316, 64
        %v6219 = vpop.permute.xlu0 %6218
        %v6222 = vsel %vm3582, %v6217, 0
        %6224 = vmatpush.bf16.msra.mxu0 0
        %6225 = vmatpush.bf16.msra.mxu0 0
        %6226 = vmatpush.bf16.msra.mxu0 0
        %6227 = vmatpush.bf16.msra.mxu0 0
        %6228 = vmatpush.bf16.msra.mxu0 0
        %6229 = vmatpush.bf16.msra.mxu0 0
        %6230 = vmatpush.bf16.msra.mxu0 0
        %6231 = vmatpush.bf16.msra.mxu0 %v6219
        %6232 = vmatmul.bf16.gmra.mxu0 %v6222
        %v6233 = vpop.f32.mrf.mxu0
        %v6234 = vadd.f32 0.0, %v6233
        %v6235 = vpop.f32.mrf.mxu0
        %v6236 = vadd.f32 0.0, %v6235
        %6237 = vdwg.mxu0
        %v6240 = vunpack.c.l.b16 %v4845
        %v6241 = vunpack.c.l.b16 %v4846
        %v6242 = vpack.c.b16 %v6241, %v6240
        %6243 = vrot.lane.b32.xlu0 %v3343, 64
        %v6244 = vpop.permute.xlu0 %6243
        %v6247 = vsel %vm3582, %v6242, 0
        %6249 = vmatpush.bf16.msra.mxu0 0
        %6250 = vmatpush.bf16.msra.mxu0 0
        %6251 = vmatpush.bf16.msra.mxu0 0
        %6252 = vmatpush.bf16.msra.mxu0 0
        %6253 = vmatpush.bf16.msra.mxu0 0
        %6254 = vmatpush.bf16.msra.mxu0 0
        %6255 = vmatpush.bf16.msra.mxu0 0
        %6256 = vmatpush.bf16.msra.mxu0 %v6244
        %6257 = vmatmul.bf16.gmra.mxu0 %v6247
        %v6258 = vpop.f32.mrf.mxu0
        %v6259 = vadd.f32 0.0, %v6258
        %v6260 = vpop.f32.mrf.mxu0
        %v6261 = vadd.f32 0.0, %v6260
        %6262 = vdwg.mxu0
        %v6265 = vunpack.c.l.b16 %v4847
        %v6266 = vunpack.c.l.b16 %v4848
        %v6267 = vpack.c.b16 %v6266, %v6265
        %6268 = vrot.lane.b32.xlu0 %v3370, 64
        %v6269 = vpop.permute.xlu0 %6268
        %v6272 = vsel %vm3582, %v6267, 0
        %6274 = vmatpush.bf16.msra.mxu0 0
        %6275 = vmatpush.bf16.msra.mxu0 0
        %6276 = vmatpush.bf16.msra.mxu0 0
        %6277 = vmatpush.bf16.msra.mxu0 0
        %6278 = vmatpush.bf16.msra.mxu0 0
        %6279 = vmatpush.bf16.msra.mxu0 0
        %6280 = vmatpush.bf16.msra.mxu0 0
        %6281 = vmatpush.bf16.msra.mxu0 %v6269
        %6282 = vmatmul.bf16.gmra.mxu0 %v6272
        %v6283 = vpop.f32.mrf.mxu0
        %v6284 = vadd.f32 0.0, %v6283
        %v6285 = vpop.f32.mrf.mxu0
        %v6286 = vadd.f32 0.0, %v6285
        %6287 = vdwg.mxu0
        %v6290 = vunpack.c.l.b16 %v4849
        %v6291 = vunpack.c.l.b16 %v4850
        %v6292 = vpack.c.b16 %v6291, %v6290
        %6293 = vrot.lane.b32.xlu0 %v3397, 64
        %v6294 = vpop.permute.xlu0 %6293
        %v6297 = vsel %vm3582, %v6292, 0
        %6299 = vmatpush.bf16.msra.mxu0 0
        %6300 = vmatpush.bf16.msra.mxu0 0
        %6301 = vmatpush.bf16.msra.mxu0 0
        %6302 = vmatpush.bf16.msra.mxu0 0
        %6303 = vmatpush.bf16.msra.mxu0 0
        %6304 = vmatpush.bf16.msra.mxu0 0
        %6305 = vmatpush.bf16.msra.mxu0 0
        %6306 = vmatpush.bf16.msra.mxu0 %v6294
        %6307 = vmatmul.bf16.gmra.mxu0 %v6297
        %v6308 = vpop.f32.mrf.mxu0
        %v6309 = vadd.f32 0.0, %v6308
        %v6310 = vpop.f32.mrf.mxu0
        %v6311 = vadd.f32 0.0, %v6310
        %6312 = vdwg.mxu0
        %v6315 = vunpack.c.l.b16 %v4851
        %v6316 = vunpack.c.l.b16 %v4852
        %v6317 = vpack.c.b16 %v6316, %v6315
        %6318 = vrot.lane.b32.xlu0 %v3424, 64
        %v6319 = vpop.permute.xlu0 %6318
        %v6322 = vsel %vm3582, %v6317, 0
        %6324 = vmatpush.bf16.msra.mxu0 0
        %6325 = vmatpush.bf16.msra.mxu0 0
        %6326 = vmatpush.bf16.msra.mxu0 0
        %6327 = vmatpush.bf16.msra.mxu0 0
        %6328 = vmatpush.bf16.msra.mxu0 0
        %6329 = vmatpush.bf16.msra.mxu0 0
        %6330 = vmatpush.bf16.msra.mxu0 0
        %6331 = vmatpush.bf16.msra.mxu0 %v6319
        %6332 = vmatmul.bf16.gmra.mxu0 %v6322
        %v6333 = vpop.f32.mrf.mxu0
        %v6334 = vadd.f32 0.0, %v6333
        %v6335 = vpop.f32.mrf.mxu0
        %v6336 = vadd.f32 0.0, %v6335
        %6337 = vdwg.mxu0
        %v6340 = vunpack.c.l.b16 %v4853
        %v6341 = vunpack.c.l.b16 %v4854
        %v6342 = vpack.c.b16 %v6341, %v6340
        %6343 = vrot.lane.b32.xlu0 %v3451, 64
        %v6344 = vpop.permute.xlu0 %6343
        %v6347 = vsel %vm3582, %v6342, 0
        %6349 = vmatpush.bf16.msra.mxu0 0
        %6350 = vmatpush.bf16.msra.mxu0 0
        %6351 = vmatpush.bf16.msra.mxu0 0
        %6352 = vmatpush.bf16.msra.mxu0 0
        %6353 = vmatpush.bf16.msra.mxu0 0
        %6354 = vmatpush.bf16.msra.mxu0 0
        %6355 = vmatpush.bf16.msra.mxu0 0
        %6356 = vmatpush.bf16.msra.mxu0 %v6344
        %6357 = vmatmul.bf16.gmra.mxu0 %v6347
        %v6358 = vpop.f32.mrf.mxu0
        %v6359 = vadd.f32 0.0, %v6358
        %v6360 = vpop.f32.mrf.mxu0
        %v6361 = vadd.f32 0.0, %v6360
        %6362 = vdwg.mxu0
        %v6365 = vunpack.c.l.b16 %v4855
        %v6366 = vunpack.c.l.b16 %v4856
        %v6367 = vpack.c.b16 %v6366, %v6365
        %6368 = vrot.lane.b32.xlu0 %v3478, 64
        %v6369 = vpop.permute.xlu0 %6368
        %v6372 = vsel %vm3582, %v6367, 0
        %6374 = vmatpush.bf16.msra.mxu0 0
        %6375 = vmatpush.bf16.msra.mxu0 0
        %6376 = vmatpush.bf16.msra.mxu0 0
        %6377 = vmatpush.bf16.msra.mxu0 0
        %6378 = vmatpush.bf16.msra.mxu0 0
        %6379 = vmatpush.bf16.msra.mxu0 0
        %6380 = vmatpush.bf16.msra.mxu0 0
        %6381 = vmatpush.bf16.msra.mxu0 %v6369
        %6382 = vmatmul.bf16.gmra.mxu0 %v6372
        %v6383 = vpop.f32.mrf.mxu0
        %v6384 = vadd.f32 0.0, %v6383
        %v6385 = vpop.f32.mrf.mxu0
        %v6386 = vadd.f32 0.0, %v6385
        %6387 = vdwg.mxu0
        %v6390 = vunpack.c.l.b16 %v4857
        %v6391 = vunpack.c.l.b16 %v4858
        %v6392 = vpack.c.b16 %v6391, %v6390
        %6393 = vrot.lane.b32.xlu0 %v3505, 64
        %v6394 = vpop.permute.xlu0 %6393
        %v6397 = vsel %vm3582, %v6392, 0
        %6399 = vmatpush.bf16.msra.mxu0 0
        %6400 = vmatpush.bf16.msra.mxu0 0
        %6401 = vmatpush.bf16.msra.mxu0 0
        %6402 = vmatpush.bf16.msra.mxu0 0
        %6403 = vmatpush.bf16.msra.mxu0 0
        %6404 = vmatpush.bf16.msra.mxu0 0
        %6405 = vmatpush.bf16.msra.mxu0 0
        %6406 = vmatpush.bf16.msra.mxu0 %v6394
        %6407 = vmatmul.bf16.gmra.mxu0 %v6397
        %v6408 = vpop.f32.mrf.mxu0
        %v6409 = vadd.f32 0.0, %v6408
        %v6410 = vpop.f32.mrf.mxu0
        %v6411 = vadd.f32 0.0, %v6410
        %6412 = vdwg.mxu0
        %v6415 = vunpack.c.l.b16 %v4859
        %v6416 = vunpack.c.l.b16 %v4860
        %v6417 = vpack.c.b16 %v6416, %v6415
        %6418 = vrot.lane.b32.xlu0 %v3532, 64
        %v6419 = vpop.permute.xlu0 %6418
        %v6422 = vsel %vm3582, %v6417, 0
        %6424 = vmatpush.bf16.msra.mxu0 0
        %6425 = vmatpush.bf16.msra.mxu0 0
        %6426 = vmatpush.bf16.msra.mxu0 0
        %6427 = vmatpush.bf16.msra.mxu0 0
        %6428 = vmatpush.bf16.msra.mxu0 0
        %6429 = vmatpush.bf16.msra.mxu0 0
        %6430 = vmatpush.bf16.msra.mxu0 0
        %6431 = vmatpush.bf16.msra.mxu0 %v6419
        %6432 = vmatmul.bf16.gmra.mxu0 %v6422
        %v6433 = vpop.f32.mrf.mxu0
        %v6434 = vadd.f32 0.0, %v6433
        %v6435 = vpop.f32.mrf.mxu0
        %v6436 = vadd.f32 0.0, %v6435
        %6437 = vdwg.mxu0
        %v6440 = vunpack.c.l.b16 %v4861
        %v6441 = vunpack.c.l.b16 %v4862
        %v6442 = vpack.c.b16 %v6441, %v6440
        %6443 = vrot.lane.b32.xlu0 %v3559, 64
        %v6444 = vpop.permute.xlu0 %6443
        %v6447 = vsel %vm3582, %v6442, 0
        %6449 = vmatpush.bf16.msra.mxu0 0
        %6450 = vmatpush.bf16.msra.mxu0 0
        %6451 = vmatpush.bf16.msra.mxu0 0
        %6452 = vmatpush.bf16.msra.mxu0 0
        %6453 = vmatpush.bf16.msra.mxu0 0
        %6454 = vmatpush.bf16.msra.mxu0 0
        %6455 = vmatpush.bf16.msra.mxu0 0
        %6456 = vmatpush.bf16.msra.mxu0 %v6444
        %6457 = vmatmul.bf16.gmra.mxu0 %v6447
        %v6458 = vpop.f32.mrf.mxu0
        %v6459 = vadd.f32 0.0, %v6458
        %v6460 = vpop.f32.mrf.mxu0
        %v6461 = vadd.f32 0.0, %v6460
        %6462 = vdwg.mxu0
        %v6463 = vrcp.pop %v4353
        %v6464 = vrcp.pop %v4356
        %v6465 = vrcp.pop %v4359
        %v6466 = vrcp.pop %v4362
        %v6467 = vrcp.pop %v4365
        %v6468 = vrcp.pop %v4368
        %v6469 = vrcp.pop %v4371
        %v6470 = vrcp.pop %v4374
        %v6471 = vrcp.pop %v4377
        %v6472 = vrcp.pop %v4380
        %v6473 = vrcp.pop %v4383
        %v6474 = vrcp.pop %v4386
        %v6475 = vrcp.pop %v4389
        %v6476 = vrcp.pop %v4392
        %v6477 = vrcp.pop %v4395
        %v6478 = vrcp.pop %v4398
        %v6479 = vrcp.pop %v4401
        %v6480 = vrcp.pop %v4404
        %v6481 = vrcp.pop %v4407
        %v6482 = vrcp.pop %v4410
        %v6483 = vrcp.pop %v4413
        %v6484 = vrcp.pop %v4416
        %v6485 = vrcp.pop %v4419
        %v6486 = vrcp.pop %v4422
        %v6487 = vrcp.pop %v4425
        %v6488 = vrcp.pop %v4428
        %v6489 = vrcp.pop %v4431
        %v6490 = vrcp.pop %v4434
        %v6491 = vrcp.pop %v4437
        %v6492 = vrcp.pop %v4440
        %v6493 = vrcp.pop %v4443
        %v6494 = vrcp.pop %v4446
        %v6495 = vrcp.pop %v4449
        %v6496 = vrcp.pop %v4452
        %v6497 = vrcp.pop %v4455
        %v6498 = vrcp.pop %v4458
        %v6499 = vrcp.pop %v4461
        %v6500 = vrcp.pop %v4464
        %v6501 = vrcp.pop %v4467
        %v6502 = vrcp.pop %v4470
        %v6503 = vrcp.pop %v4473
        %v6504 = vrcp.pop %v4476
        %v6505 = vrcp.pop %v4479
        %v6506 = vrcp.pop %v4482
        %v6507 = vrcp.pop %v4485
        %v6508 = vrcp.pop %v4488
        %v6509 = vrcp.pop %v4491
        %v6510 = vrcp.pop %v4494
        %v6511 = vrcp.pop %v4497
        %v6512 = vrcp.pop %v4500
        %v6513 = vrcp.pop %v4503
        %v6514 = vrcp.pop %v4506
        %v6515 = vrcp.pop %v4509
        %v6516 = vrcp.pop %v4512
        %v6517 = vrcp.pop %v4515
        %v6518 = vrcp.pop %v4518
        %v6519 = vrcp.pop %v4521
        %v6520 = vrcp.pop %v4524
        %v6521 = vrcp.pop %v4527
        %v6522 = vrcp.pop %v4530
        %v6523 = vrcp.pop %v4533
        %v6524 = vrcp.pop %v4536
        %v6525 = vrcp.pop %v4539
        %v6526 = vrcp.pop %v4542
        %v6527 = vrcp.pop %v4545
        %v6528 = vrcp.pop %v4548
        %v6529 = vrcp.pop %v4551
        %v6530 = vrcp.pop %v4554
        %v6531 = vrcp.pop %v4557
        %v6532 = vrcp.pop %v4560
        %v6533 = vrcp.pop %v4563
        %v6534 = vrcp.pop %v4566
        %v6535 = vrcp.pop %v4569
        %v6536 = vrcp.pop %v4572
        %v6537 = vrcp.pop %v4575
        %v6538 = vrcp.pop %v4578
        %v6539 = vrcp.pop %v4581
        %v6540 = vrcp.pop %v4584
        %v6541 = vrcp.pop %v4587
        %v6542 = vrcp.pop %v4590
        %v6543 = vrcp.pop %v4593
        %v6544 = vrcp.pop %v4596
        %v6545 = vrcp.pop %v4599
        %v6546 = vrcp.pop %v4602
        %v6547 = vrcp.pop %v4605
        %v6548 = vrcp.pop %v4608
        %v6549 = vrcp.pop %v4611
        %v6550 = vrcp.pop %v4614
        %v6551 = vrcp.pop %v4617
        %v6552 = vrcp.pop %v4620
        %v6553 = vrcp.pop %v4623
        %v6554 = vrcp.pop %v4626
        %v6555 = vrcp.pop %v4629
        %v6556 = vrcp.pop %v4632
        %v6557 = vrcp.pop %v4635
        %v6558 = vrcp.pop %v4638
        %v6559 = vrcp.pop %v4641
        %v6560 = vrcp.pop %v4644
        %v6561 = vrcp.pop %v4647
        %v6562 = vrcp.pop %v4650
        %v6563 = vrcp.pop %v4653
        %v6564 = vrcp.pop %v4656
        %v6565 = vrcp.pop %v4659
        %v6566 = vrcp.pop %v4662
        %v6567 = vrcp.pop %v4665
        %v6568 = vrcp.pop %v4668
        %v6569 = vrcp.pop %v4671
        %v6570 = vrcp.pop %v4674
        %v6571 = vrcp.pop %v4677
        %v6572 = vrcp.pop %v4680
        %v6573 = vrcp.pop %v4683
        %v6574 = vrcp.pop %v4686
        %v6575 = vrcp.pop %v4689
        %v6576 = vrcp.pop %v4692
        %v6577 = vrcp.pop %v4695
        %v6578 = vrcp.pop %v4698
        %v6579 = vrcp.pop %v4701
        %v6580 = vrcp.pop %v4704
        %v6581 = vrcp.pop %v4707
        %v6582 = vrcp.pop %v4710
        %v6583 = vrcp.pop %v4713
        %v6584 = vrcp.pop %v4716
        %v6585 = vrcp.pop %v4719
        %v6586 = vrcp.pop %v4722
        %v6587 = vrcp.pop %v4725
        %v6588 = vrcp.pop %v4728
        %v6589 = vrcp.pop %v4731
        %v6590 = vrcp.pop %v4734
        %v6591 = vmul.f32 %v4884, %v6463
        %v6592 = vmul.f32 %v4886, %v6464
        %v6593 = vmul.f32 %v4909, %v6465
        %v6594 = vmul.f32 %v4911, %v6466
        %v6595 = vmul.f32 %v4934, %v6467
        %v6596 = vmul.f32 %v4936, %v6468
        %v6597 = vmul.f32 %v4959, %v6469
        %v6598 = vmul.f32 %v4961, %v6470
        %v6599 = vmul.f32 %v4984, %v6471
        %v6600 = vmul.f32 %v4986, %v6472
        %v6601 = vmul.f32 %v5009, %v6473
        %v6602 = vmul.f32 %v5011, %v6474
        %v6603 = vmul.f32 %v5034, %v6475
        %v6604 = vmul.f32 %v5036, %v6476
        %v6605 = vmul.f32 %v5059, %v6477
        %v6606 = vmul.f32 %v5061, %v6478
        %v6607 = vmul.f32 %v5084, %v6479
        %v6608 = vmul.f32 %v5086, %v6480
        %v6609 = vmul.f32 %v5109, %v6481
        %v6610 = vmul.f32 %v5111, %v6482
        %v6611 = vmul.f32 %v5134, %v6483
        %v6612 = vmul.f32 %v5136, %v6484
        %v6613 = vmul.f32 %v5159, %v6485
        %v6614 = vmul.f32 %v5161, %v6486
        %v6615 = vmul.f32 %v5184, %v6487
        %v6616 = vmul.f32 %v5186, %v6488
        %v6617 = vmul.f32 %v5209, %v6489
        %v6618 = vmul.f32 %v5211, %v6490
        %v6619 = vmul.f32 %v5234, %v6491
        %v6620 = vmul.f32 %v5236, %v6492
        %v6621 = vmul.f32 %v5259, %v6493
        %v6622 = vmul.f32 %v5261, %v6494
        %v6623 = vmul.f32 %v5284, %v6495
        %v6624 = vmul.f32 %v5286, %v6496
        %v6625 = vmul.f32 %v5309, %v6497
        %v6626 = vmul.f32 %v5311, %v6498
        %v6627 = vmul.f32 %v5334, %v6499
        %v6628 = vmul.f32 %v5336, %v6500
        %v6629 = vmul.f32 %v5359, %v6501
        %v6630 = vmul.f32 %v5361, %v6502
        %v6631 = vmul.f32 %v5384, %v6503
        %v6632 = vmul.f32 %v5386, %v6504
        %v6633 = vmul.f32 %v5409, %v6505
        %v6634 = vmul.f32 %v5411, %v6506
        %v6635 = vmul.f32 %v5434, %v6507
        %v6636 = vmul.f32 %v5436, %v6508
        %v6637 = vmul.f32 %v5459, %v6509
        %v6638 = vmul.f32 %v5461, %v6510
        %v6639 = vmul.f32 %v5484, %v6511
        %v6640 = vmul.f32 %v5486, %v6512
        %v6641 = vmul.f32 %v5509, %v6513
        %v6642 = vmul.f32 %v5511, %v6514
        %v6643 = vmul.f32 %v5534, %v6515
        %v6644 = vmul.f32 %v5536, %v6516
        %v6645 = vmul.f32 %v5559, %v6517
        %v6646 = vmul.f32 %v5561, %v6518
        %v6647 = vmul.f32 %v5584, %v6519
        %v6648 = vmul.f32 %v5586, %v6520
        %v6649 = vmul.f32 %v5609, %v6521
        %v6650 = vmul.f32 %v5611, %v6522
        %v6651 = vmul.f32 %v5634, %v6523
        %v6652 = vmul.f32 %v5636, %v6524
        %v6653 = vmul.f32 %v5659, %v6525
        %v6654 = vmul.f32 %v5661, %v6526
        %v6655 = vmul.f32 %v5684, %v6527
        %v6656 = vmul.f32 %v5686, %v6528
        %v6657 = vmul.f32 %v5709, %v6529
        %v6658 = vmul.f32 %v5711, %v6530
        %v6659 = vmul.f32 %v5734, %v6531
        %v6660 = vmul.f32 %v5736, %v6532
        %v6661 = vmul.f32 %v5759, %v6533
        %v6662 = vmul.f32 %v5761, %v6534
        %v6663 = vmul.f32 %v5784, %v6535
        %v6664 = vmul.f32 %v5786, %v6536
        %v6665 = vmul.f32 %v5809, %v6537
        %v6666 = vmul.f32 %v5811, %v6538
        %v6667 = vmul.f32 %v5834, %v6539
        %v6668 = vmul.f32 %v5836, %v6540
        %v6669 = vmul.f32 %v5859, %v6541
        %v6670 = vmul.f32 %v5861, %v6542
        %v6671 = vmul.f32 %v5884, %v6543
        %v6672 = vmul.f32 %v5886, %v6544
        %v6673 = vmul.f32 %v5909, %v6545
        %v6674 = vmul.f32 %v5911, %v6546
        %v6675 = vmul.f32 %v5934, %v6547
        %v6676 = vmul.f32 %v5936, %v6548
        %v6677 = vmul.f32 %v5959, %v6549
        %v6678 = vmul.f32 %v5961, %v6550
        %v6679 = vmul.f32 %v5984, %v6551
        %v6680 = vmul.f32 %v5986, %v6552
        %v6681 = vmul.f32 %v6009, %v6553
        %v6682 = vmul.f32 %v6011, %v6554
        %v6683 = vmul.f32 %v6034, %v6555
        %v6684 = vmul.f32 %v6036, %v6556
        %v6685 = vmul.f32 %v6059, %v6557
        %v6686 = vmul.f32 %v6061, %v6558
        %v6687 = vmul.f32 %v6084, %v6559
        %v6688 = vmul.f32 %v6086, %v6560
        %v6689 = vmul.f32 %v6109, %v6561
        %v6690 = vmul.f32 %v6111, %v6562
        %v6691 = vmul.f32 %v6134, %v6563
        %v6692 = vmul.f32 %v6136, %v6564
        %v6693 = vmul.f32 %v6159, %v6565
        %v6694 = vmul.f32 %v6161, %v6566
        %v6695 = vmul.f32 %v6184, %v6567
        %v6696 = vmul.f32 %v6186, %v6568
        %v6697 = vmul.f32 %v6209, %v6569
        %v6698 = vmul.f32 %v6211, %v6570
        %v6699 = vmul.f32 %v6234, %v6571
        %v6700 = vmul.f32 %v6236, %v6572
        %v6701 = vmul.f32 %v6259, %v6573
        %v6702 = vmul.f32 %v6261, %v6574
        %v6703 = vmul.f32 %v6284, %v6575
        %v6704 = vmul.f32 %v6286, %v6576
        %v6705 = vmul.f32 %v6309, %v6577
        %v6706 = vmul.f32 %v6311, %v6578
        %v6707 = vmul.f32 %v6334, %v6579
        %v6708 = vmul.f32 %v6336, %v6580
        %v6709 = vmul.f32 %v6359, %v6581
        %v6710 = vmul.f32 %v6361, %v6582
        %v6711 = vmul.f32 %v6384, %v6583
        %v6712 = vmul.f32 %v6386, %v6584
        %v6713 = vmul.f32 %v6409, %v6585
        %v6714 = vmul.f32 %v6411, %v6586
        %v6715 = vmul.f32 %v6434, %v6587
        %v6716 = vmul.f32 %v6436, %v6588
        %v6717 = vmul.f32 %v6459, %v6589
        %v6718 = vmul.f32 %v6461, %v6590
        %6719 = vst.msk [vmem:[#allocation3] sm:$0xff] %vm1860, %v6591
        %6720 = vst.msk [vmem:[#allocation3 + $0x8] sm:$0xff] %vm1860, %v6592
        %6721 = vst.msk [vmem:[#allocation3 + $0x10] sm:$0xff] %vm1860, %v6593
        %6722 = vst.msk [vmem:[#allocation3 + $0x18] sm:$0xff] %vm1860, %v6594
        %6723 = vst.msk [vmem:[#allocation3 + $0x20] sm:$0xff] %vm1860, %v6595
        %6724 = vst.msk [vmem:[#allocation3 + $0x28] sm:$0xff] %vm1860, %v6596
        %6725 = vst.msk [vmem:[#allocation3 + $0x30] sm:$0xff] %vm1860, %v6597
        %6726 = vst.msk [vmem:[#allocation3 + $0x38] sm:$0xff] %vm1860, %v6598
        %6727 = vst.msk [vmem:[#allocation3 + $0x40] sm:$0xff] %vm1860, %v6599
        %6728 = vst.msk [vmem:[#allocation3 + $0x48] sm:$0xff] %vm1860, %v6600
        %6729 = vst.msk [vmem:[#allocation3 + $0x50] sm:$0xff] %vm1860, %v6601
        %6730 = vst.msk [vmem:[#allocation3 + $0x58] sm:$0xff] %vm1860, %v6602
        %6731 = vst.msk [vmem:[#allocation3 + $0x60] sm:$0xff] %vm1860, %v6603
        %6732 = vst.msk [vmem:[#allocation3 + $0x68] sm:$0xff] %vm1860, %v6604
        %6733 = vst.msk [vmem:[#allocation3 + $0x70] sm:$0xff] %vm1860, %v6605
        %6734 = vst.msk [vmem:[#allocation3 + $0x78] sm:$0xff] %vm1860, %v6606
        %6735 = vst.msk [vmem:[#allocation3 + $0x80] sm:$0xff] %vm1860, %v6607
        %6736 = vst.msk [vmem:[#allocation3 + $0x88] sm:$0xff] %vm1860, %v6608
        %6737 = vst.msk [vmem:[#allocation3 + $0x90] sm:$0xff] %vm1860, %v6609
        %6738 = vst.msk [vmem:[#allocation3 + $0x98] sm:$0xff] %vm1860, %v6610
        %6739 = vst.msk [vmem:[#allocation3 + $0xa0] sm:$0xff] %vm1860, %v6611
        %6740 = vst.msk [vmem:[#allocation3 + $0xa8] sm:$0xff] %vm1860, %v6612
        %6741 = vst.msk [vmem:[#allocation3 + $0xb0] sm:$0xff] %vm1860, %v6613
        %6742 = vst.msk [vmem:[#allocation3 + $0xb8] sm:$0xff] %vm1860, %v6614
        %6743 = vst.msk [vmem:[#allocation3 + $0xc0] sm:$0xff] %vm1860, %v6615
        %6744 = vst.msk [vmem:[#allocation3 + $0xc8] sm:$0xff] %vm1860, %v6616
        %6745 = vst.msk [vmem:[#allocation3 + $0xd0] sm:$0xff] %vm1860, %v6617
        %6746 = vst.msk [vmem:[#allocation3 + $0xd8] sm:$0xff] %vm1860, %v6618
        %6747 = vst.msk [vmem:[#allocation3 + $0xe0] sm:$0xff] %vm1860, %v6619
        %6748 = vst.msk [vmem:[#allocation3 + $0xe8] sm:$0xff] %vm1860, %v6620
        %6749 = vst.msk [vmem:[#allocation3 + $0xf0] sm:$0xff] %vm1860, %v6621
        %6750 = vst.msk [vmem:[#allocation3 + $0xf8] sm:$0xff] %vm1860, %v6622
        %6783 = vrot.lane.b32.xlu0 %v6623, 8
        %v6784 = vpop.permute.xlu0 %6783
        %6785 = vrot.lane.b32.xlu0 %v6624, 8
        %v6786 = vpop.permute.xlu0 %6785
        %6787 = vrot.lane.b32.xlu0 %v6625, 8
        %v6788 = vpop.permute.xlu0 %6787
        %6789 = vrot.lane.b32.xlu0 %v6626, 8
        %v6790 = vpop.permute.xlu0 %6789
        %6791 = vrot.lane.b32.xlu0 %v6627, 8
        %v6792 = vpop.permute.xlu0 %6791
        %6793 = vrot.lane.b32.xlu0 %v6628, 8
        %v6794 = vpop.permute.xlu0 %6793
        %6795 = vrot.lane.b32.xlu0 %v6629, 8
        %v6796 = vpop.permute.xlu0 %6795
        %6797 = vrot.lane.b32.xlu0 %v6630, 8
        %v6798 = vpop.permute.xlu0 %6797
        %6799 = vrot.lane.b32.xlu0 %v6631, 8
        %v6800 = vpop.permute.xlu0 %6799
        %6801 = vrot.lane.b32.xlu0 %v6632, 8
        %v6802 = vpop.permute.xlu0 %6801
        %6803 = vrot.lane.b32.xlu0 %v6633, 8
        %v6804 = vpop.permute.xlu0 %6803
        %6805 = vrot.lane.b32.xlu0 %v6634, 8
        %v6806 = vpop.permute.xlu0 %6805
        %6807 = vrot.lane.b32.xlu0 %v6635, 8
        %v6808 = vpop.permute.xlu0 %6807
        %6809 = vrot.lane.b32.xlu0 %v6636, 8
        %v6810 = vpop.permute.xlu0 %6809
        %6811 = vrot.lane.b32.xlu0 %v6637, 8
        %v6812 = vpop.permute.xlu0 %6811
        %6813 = vrot.lane.b32.xlu0 %v6638, 8
        %v6814 = vpop.permute.xlu0 %6813
        %6815 = vrot.lane.b32.xlu0 %v6639, 8
        %v6816 = vpop.permute.xlu0 %6815
        %6817 = vrot.lane.b32.xlu0 %v6640, 8
        %v6818 = vpop.permute.xlu0 %6817
        %6819 = vrot.lane.b32.xlu0 %v6641, 8
        %v6820 = vpop.permute.xlu0 %6819
        %6821 = vrot.lane.b32.xlu0 %v6642, 8
        %v6822 = vpop.permute.xlu0 %6821
        %6823 = vrot.lane.b32.xlu0 %v6643, 8
        %v6824 = vpop.permute.xlu0 %6823
        %6825 = vrot.lane.b32.xlu0 %v6644, 8
        %v6826 = vpop.permute.xlu0 %6825
        %6827 = vrot.lane.b32.xlu0 %v6645, 8
        %v6828 = vpop.permute.xlu0 %6827
        %6829 = vrot.lane.b32.xlu0 %v6646, 8
        %v6830 = vpop.permute.xlu0 %6829
        %6831 = vrot.lane.b32.xlu0 %v6647, 8
        %v6832 = vpop.permute.xlu0 %6831
        %6833 = vrot.lane.b32.xlu0 %v6648, 8
        %v6834 = vpop.permute.xlu0 %6833
        %6835 = vrot.lane.b32.xlu0 %v6649, 8
        %v6836 = vpop.permute.xlu0 %6835
        %6837 = vrot.lane.b32.xlu0 %v6650, 8
        %v6838 = vpop.permute.xlu0 %6837
        %6839 = vrot.lane.b32.xlu0 %v6651, 8
        %v6840 = vpop.permute.xlu0 %6839
        %6841 = vrot.lane.b32.xlu0 %v6652, 8
        %v6842 = vpop.permute.xlu0 %6841
        %6843 = vrot.lane.b32.xlu0 %v6653, 8
        %v6844 = vpop.permute.xlu0 %6843
        %6845 = vrot.lane.b32.xlu0 %v6654, 8
        %v6846 = vpop.permute.xlu0 %6845
        %vm6879 = vcmask 130112
        %6880 = vst.msk [vmem:[#allocation3] sm:$0xff] %vm6879, %v6784
        %6881 = vst.msk [vmem:[#allocation3 + $0x8] sm:$0xff] %vm6879, %v6786
        %6882 = vst.msk [vmem:[#allocation3 + $0x10] sm:$0xff] %vm6879, %v6788
        %6883 = vst.msk [vmem:[#allocation3 + $0x18] sm:$0xff] %vm6879, %v6790
        %6884 = vst.msk [vmem:[#allocation3 + $0x20] sm:$0xff] %vm6879, %v6792
        %6885 = vst.msk [vmem:[#allocation3 + $0x28] sm:$0xff] %vm6879, %v6794
        %6886 = vst.msk [vmem:[#allocation3 + $0x30] sm:$0xff] %vm6879, %v6796
        %6887 = vst.msk [vmem:[#allocation3 + $0x38] sm:$0xff] %vm6879, %v6798
        %6888 = vst.msk [vmem:[#allocation3 + $0x40] sm:$0xff] %vm6879, %v6800
        %6889 = vst.msk [vmem:[#allocation3 + $0x48] sm:$0xff] %vm6879, %v6802
        %6890 = vst.msk [vmem:[#allocation3 + $0x50] sm:$0xff] %vm6879, %v6804
        %6891 = vst.msk [vmem:[#allocation3 + $0x58] sm:$0xff] %vm6879, %v6806
        %6892 = vst.msk [vmem:[#allocation3 + $0x60] sm:$0xff] %vm6879, %v6808
        %6893 = vst.msk [vmem:[#allocation3 + $0x68] sm:$0xff] %vm6879, %v6810
        %6894 = vst.msk [vmem:[#allocation3 + $0x70] sm:$0xff] %vm6879, %v6812
        %6895 = vst.msk [vmem:[#allocation3 + $0x78] sm:$0xff] %vm6879, %v6814
        %6896 = vst.msk [vmem:[#allocation3 + $0x80] sm:$0xff] %vm6879, %v6816
        %6897 = vst.msk [vmem:[#allocation3 + $0x88] sm:$0xff] %vm6879, %v6818
        %6898 = vst.msk [vmem:[#allocation3 + $0x90] sm:$0xff] %vm6879, %v6820
        %6899 = vst.msk [vmem:[#allocation3 + $0x98] sm:$0xff] %vm6879, %v6822
        %6900 = vst.msk [vmem:[#allocation3 + $0xa0] sm:$0xff] %vm6879, %v6824
        %6901 = vst.msk [vmem:[#allocation3 + $0xa8] sm:$0xff] %vm6879, %v6826
        %6902 = vst.msk [vmem:[#allocation3 + $0xb0] sm:$0xff] %vm6879, %v6828
        %6903 = vst.msk [vmem:[#allocation3 + $0xb8] sm:$0xff] %vm6879, %v6830
        %6904 = vst.msk [vmem:[#allocation3 + $0xc0] sm:$0xff] %vm6879, %v6832
        %6905 = vst.msk [vmem:[#allocation3 + $0xc8] sm:$0xff] %vm6879, %v6834
        %6906 = vst.msk [vmem:[#allocation3 + $0xd0] sm:$0xff] %vm6879, %v6836
        %6907 = vst.msk [vmem:[#allocation3 + $0xd8] sm:$0xff] %vm6879, %v6838
        %6908 = vst.msk [vmem:[#allocation3 + $0xe0] sm:$0xff] %vm6879, %v6840
        %6909 = vst.msk [vmem:[#allocation3 + $0xe8] sm:$0xff] %vm6879, %v6842
        %6910 = vst.msk [vmem:[#allocation3 + $0xf0] sm:$0xff] %vm6879, %v6844
        %6911 = vst.msk [vmem:[#allocation3 + $0xf8] sm:$0xff] %vm6879, %v6846
        %6944 = vrot.lane.b32.xlu0 %v6655, 16
        %v6945 = vpop.permute.xlu0 %6944
        %6946 = vrot.lane.b32.xlu0 %v6656, 16
        %v6947 = vpop.permute.xlu0 %6946
        %6948 = vrot.lane.b32.xlu0 %v6657, 16
        %v6949 = vpop.permute.xlu0 %6948
        %6950 = vrot.lane.b32.xlu0 %v6658, 16
        %v6951 = vpop.permute.xlu0 %6950
        %6952 = vrot.lane.b32.xlu0 %v6659, 16
        %v6953 = vpop.permute.xlu0 %6952
        %6954 = vrot.lane.b32.xlu0 %v6660, 16
        %v6955 = vpop.permute.xlu0 %6954
        %6956 = vrot.lane.b32.xlu0 %v6661, 16
        %v6957 = vpop.permute.xlu0 %6956
        %6958 = vrot.lane.b32.xlu0 %v6662, 16
        %v6959 = vpop.permute.xlu0 %6958
        %6960 = vrot.lane.b32.xlu0 %v6663, 16
        %v6961 = vpop.permute.xlu0 %6960
        %6962 = vrot.lane.b32.xlu0 %v6664, 16
        %v6963 = vpop.permute.xlu0 %6962
        %6964 = vrot.lane.b32.xlu0 %v6665, 16
        %v6965 = vpop.permute.xlu0 %6964
        %6966 = vrot.lane.b32.xlu0 %v6666, 16
        %v6967 = vpop.permute.xlu0 %6966
        %6968 = vrot.lane.b32.xlu0 %v6667, 16
        %v6969 = vpop.permute.xlu0 %6968
        %6970 = vrot.lane.b32.xlu0 %v6668, 16
        %v6971 = vpop.permute.xlu0 %6970
        %6972 = vrot.lane.b32.xlu0 %v6669, 16
        %v6973 = vpop.permute.xlu0 %6972
        %6974 = vrot.lane.b32.xlu0 %v6670, 16
        %v6975 = vpop.permute.xlu0 %6974
        %6976 = vrot.lane.b32.xlu0 %v6671, 16
        %v6977 = vpop.permute.xlu0 %6976
        %6978 = vrot.lane.b32.xlu0 %v6672, 16
        %v6979 = vpop.permute.xlu0 %6978
        %6980 = vrot.lane.b32.xlu0 %v6673, 16
        %v6981 = vpop.permute.xlu0 %6980
        %6982 = vrot.lane.b32.xlu0 %v6674, 16
        %v6983 = vpop.permute.xlu0 %6982
        %6984 = vrot.lane.b32.xlu0 %v6675, 16
        %v6985 = vpop.permute.xlu0 %6984
        %6986 = vrot.lane.b32.xlu0 %v6676, 16
        %v6987 = vpop.permute.xlu0 %6986
        %6988 = vrot.lane.b32.xlu0 %v6677, 16
        %v6989 = vpop.permute.xlu0 %6988
        %6990 = vrot.lane.b32.xlu0 %v6678, 16
        %v6991 = vpop.permute.xlu0 %6990
        %6992 = vrot.lane.b32.xlu0 %v6679, 16
        %v6993 = vpop.permute.xlu0 %6992
        %6994 = vrot.lane.b32.xlu0 %v6680, 16
        %v6995 = vpop.permute.xlu0 %6994
        %6996 = vrot.lane.b32.xlu0 %v6681, 16
        %v6997 = vpop.permute.xlu0 %6996
        %6998 = vrot.lane.b32.xlu0 %v6682, 16
        %v6999 = vpop.permute.xlu0 %6998
        %7000 = vrot.lane.b32.xlu0 %v6683, 16
        %v7001 = vpop.permute.xlu0 %7000
        %7002 = vrot.lane.b32.xlu0 %v6684, 16
        %v7003 = vpop.permute.xlu0 %7002
        %7004 = vrot.lane.b32.xlu0 %v6685, 16
        %v7005 = vpop.permute.xlu0 %7004
        %7006 = vrot.lane.b32.xlu0 %v6686, 16
        %v7007 = vpop.permute.xlu0 %7006
        %vm7040 = vcmask 195712
        %7041 = vst.msk [vmem:[#allocation3] sm:$0xff] %vm7040, %v6945
        %7042 = vst.msk [vmem:[#allocation3 + $0x8] sm:$0xff] %vm7040, %v6947
        %7043 = vst.msk [vmem:[#allocation3 + $0x10] sm:$0xff] %vm7040, %v6949
        %7044 = vst.msk [vmem:[#allocation3 + $0x18] sm:$0xff] %vm7040, %v6951
        %7045 = vst.msk [vmem:[#allocation3 + $0x20] sm:$0xff] %vm7040, %v6953
        %7046 = vst.msk [vmem:[#allocation3 + $0x28] sm:$0xff] %vm7040, %v6955
        %7047 = vst.msk [vmem:[#allocation3 + $0x30] sm:$0xff] %vm7040, %v6957
        %7048 = vst.msk [vmem:[#allocation3 + $0x38] sm:$0xff] %vm7040, %v6959
        %7049 = vst.msk [vmem:[#allocation3 + $0x40] sm:$0xff] %vm7040, %v6961
        %7050 = vst.msk [vmem:[#allocation3 + $0x48] sm:$0xff] %vm7040, %v6963
        %7051 = vst.msk [vmem:[#allocation3 + $0x50] sm:$0xff] %vm7040, %v6965
        %7052 = vst.msk [vmem:[#allocation3 + $0x58] sm:$0xff] %vm7040, %v6967
        %7053 = vst.msk [vmem:[#allocation3 + $0x60] sm:$0xff] %vm7040, %v6969
        %7054 = vst.msk [vmem:[#allocation3 + $0x68] sm:$0xff] %vm7040, %v6971
        %7055 = vst.msk [vmem:[#allocation3 + $0x70] sm:$0xff] %vm7040, %v6973
        %7056 = vst.msk [vmem:[#allocation3 + $0x78] sm:$0xff] %vm7040, %v6975
        %7057 = vst.msk [vmem:[#allocation3 + $0x80] sm:$0xff] %vm7040, %v6977
        %7058 = vst.msk [vmem:[#allocation3 + $0x88] sm:$0xff] %vm7040, %v6979
        %7059 = vst.msk [vmem:[#allocation3 + $0x90] sm:$0xff] %vm7040, %v6981
        %7060 = vst.msk [vmem:[#allocation3 + $0x98] sm:$0xff] %vm7040, %v6983
        %7061 = vst.msk [vmem:[#allocation3 + $0xa0] sm:$0xff] %vm7040, %v6985
        %7062 = vst.msk [vmem:[#allocation3 + $0xa8] sm:$0xff] %vm7040, %v6987
        %7063 = vst.msk [vmem:[#allocation3 + $0xb0] sm:$0xff] %vm7040, %v6989
        %7064 = vst.msk [vmem:[#allocation3 + $0xb8] sm:$0xff] %vm7040, %v6991
        %7065 = vst.msk [vmem:[#allocation3 + $0xc0] sm:$0xff] %vm7040, %v6993
        %7066 = vst.msk [vmem:[#allocation3 + $0xc8] sm:$0xff] %vm7040, %v6995
        %7067 = vst.msk [vmem:[#allocation3 + $0xd0] sm:$0xff] %vm7040, %v6997
        %7068 = vst.msk [vmem:[#allocation3 + $0xd8] sm:$0xff] %vm7040, %v6999
        %7069 = vst.msk [vmem:[#allocation3 + $0xe0] sm:$0xff] %vm7040, %v7001
        %7070 = vst.msk [vmem:[#allocation3 + $0xe8] sm:$0xff] %vm7040, %v7003
        %7071 = vst.msk [vmem:[#allocation3 + $0xf0] sm:$0xff] %vm7040, %v7005
        %7072 = vst.msk [vmem:[#allocation3 + $0xf8] sm:$0xff] %vm7040, %v7007
        %7105 = vrot.lane.b32.xlu0 %v6687, 24
        %v7106 = vpop.permute.xlu0 %7105
        %7107 = vrot.lane.b32.xlu0 %v6688, 24
        %v7108 = vpop.permute.xlu0 %7107
        %7109 = vrot.lane.b32.xlu0 %v6689, 24
        %v7110 = vpop.permute.xlu0 %7109
        %7111 = vrot.lane.b32.xlu0 %v6690, 24
        %v7112 = vpop.permute.xlu0 %7111
        %7113 = vrot.lane.b32.xlu0 %v6691, 24
        %v7114 = vpop.permute.xlu0 %7113
        %7115 = vrot.lane.b32.xlu0 %v6692, 24
        %v7116 = vpop.permute.xlu0 %7115
        %7117 = vrot.lane.b32.xlu0 %v6693, 24
        %v7118 = vpop.permute.xlu0 %7117
        %7119 = vrot.lane.b32.xlu0 %v6694, 24
        %v7120 = vpop.permute.xlu0 %7119
        %7121 = vrot.lane.b32.xlu0 %v6695, 24
        %v7122 = vpop.permute.xlu0 %7121
        %7123 = vrot.lane.b32.xlu0 %v6696, 24
        %v7124 = vpop.permute.xlu0 %7123
        %7125 = vrot.lane.b32.xlu0 %v6697, 24
        %v7126 = vpop.permute.xlu0 %7125
        %7127 = vrot.lane.b32.xlu0 %v6698, 24
        %v7128 = vpop.permute.xlu0 %7127
        %7129 = vrot.lane.b32.xlu0 %v6699, 24
        %v7130 = vpop.permute.xlu0 %7129
        %7131 = vrot.lane.b32.xlu0 %v6700, 24
        %v7132 = vpop.permute.xlu0 %7131
        %7133 = vrot.lane.b32.xlu0 %v6701, 24
        %v7134 = vpop.permute.xlu0 %7133
        %7135 = vrot.lane.b32.xlu0 %v6702, 24
        %v7136 = vpop.permute.xlu0 %7135
        %7137 = vrot.lane.b32.xlu0 %v6703, 24
        %v7138 = vpop.permute.xlu0 %7137
        %7139 = vrot.lane.b32.xlu0 %v6704, 24
        %v7140 = vpop.permute.xlu0 %7139
        %7141 = vrot.lane.b32.xlu0 %v6705, 24
        %v7142 = vpop.permute.xlu0 %7141
        %7143 = vrot.lane.b32.xlu0 %v6706, 24
        %v7144 = vpop.permute.xlu0 %7143
        %7145 = vrot.lane.b32.xlu0 %v6707, 24
        %v7146 = vpop.permute.xlu0 %7145
        %7147 = vrot.lane.b32.xlu0 %v6708, 24
        %v7148 = vpop.permute.xlu0 %7147
        %7149 = vrot.lane.b32.xlu0 %v6709, 24
        %v7150 = vpop.permute.xlu0 %7149
        %7151 = vrot.lane.b32.xlu0 %v6710, 24
        %v7152 = vpop.permute.xlu0 %7151
        %7153 = vrot.lane.b32.xlu0 %v6711, 24
        %v7154 = vpop.permute.xlu0 %7153
        %7155 = vrot.lane.b32.xlu0 %v6712, 24
        %v7156 = vpop.permute.xlu0 %7155
        %7157 = vrot.lane.b32.xlu0 %v6713, 24
        %v7158 = vpop.permute.xlu0 %7157
        %7159 = vrot.lane.b32.xlu0 %v6714, 24
        %v7160 = vpop.permute.xlu0 %7159
        %7161 = vrot.lane.b32.xlu0 %v6715, 24
        %v7162 = vpop.permute.xlu0 %7161
        %7163 = vrot.lane.b32.xlu0 %v6716, 24
        %v7164 = vpop.permute.xlu0 %7163
        %7165 = vrot.lane.b32.xlu0 %v6717, 24
        %v7166 = vpop.permute.xlu0 %7165
        %7167 = vrot.lane.b32.xlu0 %v6718, 24
        %v7168 = vpop.permute.xlu0 %7167
        %vm7201 = vcmask 261312
        %7202 = vst.msk [vmem:[#allocation3] sm:$0xff] %vm7201, %v7106
        %7203 = vst.msk [vmem:[#allocation3 + $0x8] sm:$0xff] %vm7201, %v7108
        %7204 = vst.msk [vmem:[#allocation3 + $0x10] sm:$0xff] %vm7201, %v7110
        %7205 = vst.msk [vmem:[#allocation3 + $0x18] sm:$0xff] %vm7201, %v7112
        %7206 = vst.msk [vmem:[#allocation3 + $0x20] sm:$0xff] %vm7201, %v7114
        %7207 = vst.msk [vmem:[#allocation3 + $0x28] sm:$0xff] %vm7201, %v7116
        %7208 = vst.msk [vmem:[#allocation3 + $0x30] sm:$0xff] %vm7201, %v7118
        %7209 = vst.msk [vmem:[#allocation3 + $0x38] sm:$0xff] %vm7201, %v7120
        %7210 = vst.msk [vmem:[#allocation3 + $0x40] sm:$0xff] %vm7201, %v7122
        %7211 = vst.msk [vmem:[#allocation3 + $0x48] sm:$0xff] %vm7201, %v7124
        %7212 = vst.msk [vmem:[#allocation3 + $0x50] sm:$0xff] %vm7201, %v7126
        %7213 = vst.msk [vmem:[#allocation3 + $0x58] sm:$0xff] %vm7201, %v7128
        %7214 = vst.msk [vmem:[#allocation3 + $0x60] sm:$0xff] %vm7201, %v7130
        %7215 = vst.msk [vmem:[#allocation3 + $0x68] sm:$0xff] %vm7201, %v7132
        %7216 = vst.msk [vmem:[#allocation3 + $0x70] sm:$0xff] %vm7201, %v7134
        %7217 = vst.msk [vmem:[#allocation3 + $0x78] sm:$0xff] %vm7201, %v7136
        %7218 = vst.msk [vmem:[#allocation3 + $0x80] sm:$0xff] %vm7201, %v7138
        %7219 = vst.msk [vmem:[#allocation3 + $0x88] sm:$0xff] %vm7201, %v7140
        %7220 = vst.msk [vmem:[#allocation3 + $0x90] sm:$0xff] %vm7201, %v7142
        %7221 = vst.msk [vmem:[#allocation3 + $0x98] sm:$0xff] %vm7201, %v7144
        %7222 = vst.msk [vmem:[#allocation3 + $0xa0] sm:$0xff] %vm7201, %v7146
        %7223 = vst.msk [vmem:[#allocation3 + $0xa8] sm:$0xff] %vm7201, %v7148
        %7224 = vst.msk [vmem:[#allocation3 + $0xb0] sm:$0xff] %vm7201, %v7150
        %7225 = vst.msk [vmem:[#allocation3 + $0xb8] sm:$0xff] %vm7201, %v7152
        %7226 = vst.msk [vmem:[#allocation3 + $0xc0] sm:$0xff] %vm7201, %v7154
        %7227 = vst.msk [vmem:[#allocation3 + $0xc8] sm:$0xff] %vm7201, %v7156
        %7228 = vst.msk [vmem:[#allocation3 + $0xd0] sm:$0xff] %vm7201, %v7158
        %7229 = vst.msk [vmem:[#allocation3 + $0xd8] sm:$0xff] %vm7201, %v7160
        %7230 = vst.msk [vmem:[#allocation3 + $0xe0] sm:$0xff] %vm7201, %v7162
        %7231 = vst.msk [vmem:[#allocation3 + $0xe8] sm:$0xff] %vm7201, %v7164
        %7232 = vst.msk [vmem:[#allocation3 + $0xf0] sm:$0xff] %vm7201, %v7166
        %7233 = vst.msk [vmem:[#allocation3 + $0xf8] sm:$0xff] %vm7201, %v7168
        %v7234 = vld [vmem:[#allocation3] sm:$0xff]
        %v7235 = vld [vmem:[#allocation3 + $0x8] sm:$0xff]
        %v7236 = vld [vmem:[#allocation3 + $0x10] sm:$0xff]
        %v7237 = vld [vmem:[#allocation3 + $0x18] sm:$0xff]
        %v7238 = vld [vmem:[#allocation3 + $0x20] sm:$0xff]
        %v7239 = vld [vmem:[#allocation3 + $0x28] sm:$0xff]
        %v7240 = vld [vmem:[#allocation3 + $0x30] sm:$0xff]
        %v7241 = vld [vmem:[#allocation3 + $0x38] sm:$0xff]
        %v7242 = vld [vmem:[#allocation3 + $0x40] sm:$0xff]
        %v7243 = vld [vmem:[#allocation3 + $0x48] sm:$0xff]
        %v7244 = vld [vmem:[#allocation3 + $0x50] sm:$0xff]
        %v7245 = vld [vmem:[#allocation3 + $0x58] sm:$0xff]
        %v7246 = vld [vmem:[#allocation3 + $0x60] sm:$0xff]
        %v7247 = vld [vmem:[#allocation3 + $0x68] sm:$0xff]
        %v7248 = vld [vmem:[#allocation3 + $0x70] sm:$0xff]
        %v7249 = vld [vmem:[#allocation3 + $0x78] sm:$0xff]
        %v7250 = vld [vmem:[#allocation3 + $0x80] sm:$0xff]
        %v7251 = vld [vmem:[#allocation3 + $0x88] sm:$0xff]
        %v7252 = vld [vmem:[#allocation3 + $0x90] sm:$0xff]
        %v7253 = vld [vmem:[#allocation3 + $0x98] sm:$0xff]
        %v7254 = vld [vmem:[#allocation3 + $0xa0] sm:$0xff]
        %v7255 = vld [vmem:[#allocation3 + $0xa8] sm:$0xff]
        %v7256 = vld [vmem:[#allocation3 + $0xb0] sm:$0xff]
        %v7257 = vld [vmem:[#allocation3 + $0xb8] sm:$0xff]
        %v7258 = vld [vmem:[#allocation3 + $0xc0] sm:$0xff]
        %v7259 = vld [vmem:[#allocation3 + $0xc8] sm:$0xff]
        %v7260 = vld [vmem:[#allocation3 + $0xd0] sm:$0xff]
        %v7261 = vld [vmem:[#allocation3 + $0xd8] sm:$0xff]
        %v7262 = vld [vmem:[#allocation3 + $0xe0] sm:$0xff]
        %v7263 = vld [vmem:[#allocation3 + $0xe8] sm:$0xff]
        %v7264 = vld [vmem:[#allocation3 + $0xf0] sm:$0xff]
        %v7265 = vld [vmem:[#allocation3 + $0xf8] sm:$0xff]
        %v7266 = vpack.c.bf16 %v7235, %v7234
        %v7267 = vpack.c.bf16 %v7237, %v7236
        %v7268 = vpack.c.bf16 %v7239, %v7238
        %v7269 = vpack.c.bf16 %v7241, %v7240
        %v7270 = vpack.c.bf16 %v7243, %v7242
        %v7271 = vpack.c.bf16 %v7245, %v7244
        %v7272 = vpack.c.bf16 %v7247, %v7246
        %v7273 = vpack.c.bf16 %v7249, %v7248
        %v7274 = vpack.c.bf16 %v7251, %v7250
        %v7275 = vpack.c.bf16 %v7253, %v7252
        %v7276 = vpack.c.bf16 %v7255, %v7254
        %v7277 = vpack.c.bf16 %v7257, %v7256
        %v7278 = vpack.c.bf16 %v7259, %v7258
        %v7279 = vpack.c.bf16 %v7261, %v7260
        %v7280 = vpack.c.bf16 %v7263, %v7262
        %v7281 = vpack.c.bf16 %v7265, %v7264
        %v7282 = vld [vmem:[#allocation9] sm:$0xf]
        %v7283 = vld [vmem:[#allocation9 + $0x4] sm:$0xf]
        %v7284 = vld [vmem:[#allocation9 + $0x8] sm:$0xf]
        %v7285 = vld [vmem:[#allocation9 + $0xc] sm:$0xf]
        %v7286 = vld [vmem:[%s3] sm:$0x1]
        %v7288 = vperm.slane %v7286, 0
        %v7294 = vunpack.c.l.b16 %v7282
        %v7295 = vunpack.c.l.b16 %v7283
        %v7296 = vunpack.c.l.b16 %v7284
        %v7297 = vunpack.c.l.b16 %v7285
        %v7298 = vpack.c.b16 %v7295, %v7294
        %v7299 = vpack.c.b16 %v7297, %v7296
        %v7303 = vsel %vm385, %v7266, 0
        %v7306 = vsel %vm385, %v7267, 0
        %v7309 = vsel %vm385, %v7268, 0
        %v7312 = vsel %vm385, %v7269, 0
        %v7315 = vsel %vm385, %v7270, 0
        %v7318 = vsel %vm385, %v7271, 0
        %v7321 = vsel %vm385, %v7272, 0
        %v7324 = vsel %vm385, %v7273, 0
        %v7327 = vsel %vm385, %v7274, 0
        %v7330 = vsel %vm385, %v7275, 0
        %v7333 = vsel %vm385, %v7276, 0
        %v7336 = vsel %vm385, %v7277, 0
        %v7339 = vsel %vm385, %v7278, 0
        %v7342 = vsel %vm385, %v7279, 0
        %v7345 = vsel %vm385, %v7280, 0
        %v7348 = vsel %vm385, %v7281, 0
        %7350 = vmatpush.bf16.msra.mxu0 0
        %7351 = vmatpush.bf16.msra.mxu0 0
        %7352 = vmatpush.bf16.msra.mxu0 0
        %7353 = vmatpush.bf16.msra.mxu0 0
        %7354 = vmatpush.bf16.msra.mxu0 0
        %7355 = vmatpush.bf16.msra.mxu0 0
        %7356 = vmatpush.bf16.msra.mxu0 %v7299
        %7357 = vmatpush.bf16.msra.mxu0 %v7298
        %7358 = vmatmul.bf16.gmra.mxu0 %v7303
        %v7359 = vpop.f32.mrf.mxu0
        %v7360 = vadd.f32 %v7288, %v7359
        %v7361 = vpop.f32.mrf.mxu0
        %v7362 = vadd.f32 %v7288, %v7361
        %7363 = vmatmul.bf16.gmra.mxu0 %v7306
        %v7364 = vpop.f32.mrf.mxu0
        %v7365 = vadd.f32 %v7288, %v7364
        %v7366 = vpop.f32.mrf.mxu0
        %v7367 = vadd.f32 %v7288, %v7366
        %7368 = vmatmul.bf16.gmra.mxu0 %v7309
        %v7369 = vpop.f32.mrf.mxu0
        %v7370 = vadd.f32 %v7288, %v7369
        %v7371 = vpop.f32.mrf.mxu0
        %v7372 = vadd.f32 %v7288, %v7371
        %7373 = vmatmul.bf16.gmra.mxu0 %v7312
        %v7374 = vpop.f32.mrf.mxu0
        %v7375 = vadd.f32 %v7288, %v7374
        %v7376 = vpop.f32.mrf.mxu0
        %v7377 = vadd.f32 %v7288, %v7376
        %7378 = vmatmul.bf16.gmra.mxu0 %v7315
        %v7379 = vpop.f32.mrf.mxu0
        %v7380 = vadd.f32 %v7288, %v7379
        %v7381 = vpop.f32.mrf.mxu0
        %v7382 = vadd.f32 %v7288, %v7381
        %7383 = vmatmul.bf16.gmra.mxu0 %v7318
        %v7384 = vpop.f32.mrf.mxu0
        %v7385 = vadd.f32 %v7288, %v7384
        %v7386 = vpop.f32.mrf.mxu0
        %v7387 = vadd.f32 %v7288, %v7386
        %7388 = vmatmul.bf16.gmra.mxu0 %v7321
        %v7389 = vpop.f32.mrf.mxu0
        %v7390 = vadd.f32 %v7288, %v7389
        %v7391 = vpop.f32.mrf.mxu0
        %v7392 = vadd.f32 %v7288, %v7391
        %7393 = vmatmul.bf16.gmra.mxu0 %v7324
        %v7394 = vpop.f32.mrf.mxu0
        %v7395 = vadd.f32 %v7288, %v7394
        %v7396 = vpop.f32.mrf.mxu0
        %v7397 = vadd.f32 %v7288, %v7396
        %7398 = vmatmul.bf16.gmra.mxu0 %v7327
        %v7399 = vpop.f32.mrf.mxu0
        %v7400 = vadd.f32 %v7288, %v7399
        %v7401 = vpop.f32.mrf.mxu0
        %v7402 = vadd.f32 %v7288, %v7401
        %7403 = vmatmul.bf16.gmra.mxu0 %v7330
        %v7404 = vpop.f32.mrf.mxu0
        %v7405 = vadd.f32 %v7288, %v7404
        %v7406 = vpop.f32.mrf.mxu0
        %v7407 = vadd.f32 %v7288, %v7406
        %7408 = vmatmul.bf16.gmra.mxu0 %v7333
        %v7409 = vpop.f32.mrf.mxu0
        %v7410 = vadd.f32 %v7288, %v7409
        %v7411 = vpop.f32.mrf.mxu0
        %v7412 = vadd.f32 %v7288, %v7411
        %7413 = vmatmul.bf16.gmra.mxu0 %v7336
        %v7414 = vpop.f32.mrf.mxu0
        %v7415 = vadd.f32 %v7288, %v7414
        %v7416 = vpop.f32.mrf.mxu0
        %v7417 = vadd.f32 %v7288, %v7416
        %7418 = vmatmul.bf16.gmra.mxu0 %v7339
        %v7419 = vpop.f32.mrf.mxu0
        %v7420 = vadd.f32 %v7288, %v7419
        %v7421 = vpop.f32.mrf.mxu0
        %v7422 = vadd.f32 %v7288, %v7421
        %7423 = vmatmul.bf16.gmra.mxu0 %v7342
        %v7424 = vpop.f32.mrf.mxu0
        %v7425 = vadd.f32 %v7288, %v7424
        %v7426 = vpop.f32.mrf.mxu0
        %v7427 = vadd.f32 %v7288, %v7426
        %7428 = vmatmul.bf16.gmra.mxu0 %v7345
        %v7429 = vpop.f32.mrf.mxu0
        %v7430 = vadd.f32 %v7288, %v7429
        %v7431 = vpop.f32.mrf.mxu0
        %v7432 = vadd.f32 %v7288, %v7431
        %7433 = vmatmul.bf16.gmra.mxu0 %v7348
        %v7434 = vpop.f32.mrf.mxu0
        %v7435 = vadd.f32 %v7288, %v7434
        %v7436 = vpop.f32.mrf.mxu0
        %v7437 = vadd.f32 %v7288, %v7436
        %7438 = vdwg.mxu0
        %7439 = vst.msk [vmem:[%s349] sm:$0xff] %vm385, %v7360
        %7440 = vst.msk [vmem:[%s349 + $0x8] sm:$0xff] %vm385, %v7362
        %7441 = vst.msk [vmem:[%s349 + $0x10] sm:$0xff] %vm385, %v7365
        %7442 = vst.msk [vmem:[%s349 + $0x18] sm:$0xff] %vm385, %v7367
        %7443 = vst.msk [vmem:[%s349 + $0x20] sm:$0xff] %vm385, %v7370
        %7444 = vst.msk [vmem:[%s349 + $0x28] sm:$0xff] %vm385, %v7372
        %7445 = vst.msk [vmem:[%s349 + $0x30] sm:$0xff] %vm385, %v7375
        %7446 = vst.msk [vmem:[%s349 + $0x38] sm:$0xff] %vm385, %v7377
        %7447 = vst.msk [vmem:[%s349 + $0x40] sm:$0xff] %vm385, %v7380
        %7448 = vst.msk [vmem:[%s349 + $0x48] sm:$0xff] %vm385, %v7382
        %7449 = vst.msk [vmem:[%s349 + $0x50] sm:$0xff] %vm385, %v7385
        %7450 = vst.msk [vmem:[%s349 + $0x58] sm:$0xff] %vm385, %v7387
        %7451 = vst.msk [vmem:[%s349 + $0x60] sm:$0xff] %vm385, %v7390
        %7452 = vst.msk [vmem:[%s349 + $0x68] sm:$0xff] %vm385, %v7392
        %7453 = vst.msk [vmem:[%s349 + $0x70] sm:$0xff] %vm385, %v7395
        %7454 = vst.msk [vmem:[%s349 + $0x78] sm:$0xff] %vm385, %v7397
        %7455 = vst.msk [vmem:[%s349 + $0x80] sm:$0xff] %vm385, %v7400
        %7456 = vst.msk [vmem:[%s349 + $0x88] sm:$0xff] %vm385, %v7402
        %7457 = vst.msk [vmem:[%s349 + $0x90] sm:$0xff] %vm385, %v7405
        %7458 = vst.msk [vmem:[%s349 + $0x98] sm:$0xff] %vm385, %v7407
        %7459 = vst.msk [vmem:[%s349 + $0xa0] sm:$0xff] %vm385, %v7410
        %7460 = vst.msk [vmem:[%s349 + $0xa8] sm:$0xff] %vm385, %v7412
        %7461 = vst.msk [vmem:[%s349 + $0xb0] sm:$0xff] %vm385, %v7415
        %7462 = vst.msk [vmem:[%s349 + $0xb8] sm:$0xff] %vm385, %v7417
        %7463 = vst.msk [vmem:[%s349 + $0xc0] sm:$0xff] %vm385, %v7420
        %7464 = vst.msk [vmem:[%s349 + $0xc8] sm:$0xff] %vm385, %v7422
        %7465 = vst.msk [vmem:[%s349 + $0xd0] sm:$0xff] %vm385, %v7425
        %7466 = vst.msk [vmem:[%s349 + $0xd8] sm:$0xff] %vm385, %v7427
        %7467 = vst.msk [vmem:[%s349 + $0xe0] sm:$0xff] %vm385, %v7430
        %7468 = vst.msk [vmem:[%s349 + $0xe8] sm:$0xff] %vm385, %v7432
        %7469 = vst.msk [vmem:[%s349 + $0xf0] sm:$0xff] %vm385, %v7435
        %7470 = vst.msk [vmem:[%s349 + $0xf8] sm:$0xff] %vm385, %v7437
        %s7471 = sand.u32 %s186, 1
        %s7472 = scalar_lea.sflag [#allocation6], %s7471
        %s7473 = sand.u32 %s186, 1
        %s7474 = smul.addr %s7473, 256
        %s7475 = scalar_lea.vmem [#allocation12], %s7474
        // Predicated region
        $region65: #{tpu_custom_call.1} parent=47 // pred_check
          %p7476 = pneg %p196
        $region66: #{tpu_custom_call.1} parent=47 // pred_check_branch
          %7478 = sbr.rel (%p7476) target = $region68
        $region67: #{tpu_custom_call.1} parent=47 // pred_region
          %s7479 = smul.u32 16, %s26
          %7481 = vsyncadd %s7472, 0
          %s7482 = smul.addr %s7479, 2
          %s7483 = smul.addr %s7482, 8
          %s7484 = scalar_lea.hbm %s7, %s7483
          %s7485 = sshll.u32 %s7475, 4
          %s7486 = int_to_ptr.vmem [resolvable:$true] %s7485
          %s7487 = sshll.u32 %s7484, 4
          %s7488 = int_to_ptr.hbm [resolvable:$true] %s7487
          %7493 = dma.vmem_to_hbm [thread:$0]  %s7486, 4096, %s7488, %s7472, 128, 128, 8
        $region68: #{tpu_custom_call.1} parent=47 // pred_fallthru
          _
      $region48: #{tpu_custom_call.1} parent=5 // pred_fallthru
        _
      %p7494 = scmp.le.s32.totalorder 2, %s21
      // Predicated region
      $region69: #{tpu_custom_call.1} parent=5 // pred_check
        %p7495 = pneg %p7494
      $region70: #{tpu_custom_call.1} parent=5 // pred_check_branch
        %7497 = sbr.rel (%p7495) target = $region72
      $region71: #{tpu_custom_call.1} parent=5 // pred_region
        %s7498 = ssub.s32 %s21, 2
        // Predicated region
        $region73: #{tpu_custom_call.1} parent=71 // pred_check
          %p7499 = pneg %p202
        $region74: #{tpu_custom_call.1} parent=71 // pred_check_branch
          %7501 = sbr.rel (%p7499) target = $region76
        $region75: #{tpu_custom_call.1} parent=71 // pred_region
          %s7502 = sand.u32 %s187, 1
          %s7503 = scalar_lea.sflag [#allocation6], %s7502
          %s7504 = sand.u32 %s187, 1
          %s7505 = smul.addr %s7504, 256
          %s7506 = scalar_lea.vmem [#allocation12], %s7505
          %7508 = dma.done %s7503, 4096
        $region76: #{tpu_custom_call.1} parent=71 // pred_fallthru
          _
      $region72: #{tpu_custom_call.1} parent=5 // pred_fallthru
        _
    $region6: #{tpu_custom_call.1} parent=1 // loop_footer
      %s25 = sadd.s32 1, %s21
    $region7: #{tpu_custom_call.1} parent=1 // loop_footer_branch
      %20 = sbr.rel target = $region3
    $region8: #{tpu_custom_call.1} parent=1 // loop_exit
      _
    %7509 = vsyncpa [#allocation5], 1
    %s7510 = scalar_lea.sflag [#allocation5], 1
    %7511 = vsyncpa %s7510, 1
    %7512 = vsyncpa [#allocation8], 1
    %7513 = vsyncpa [#allocation11], 1
    %7514 = vsyncpa [#allocation6], 1
    %s7515 = scalar_lea.sflag [#allocation6], 1
    %7516 = vsyncpa %s7515, 1

</llo_original>
